<compile_context>
chip_gen: v7x
topology: tpu7x:2x2x1
jax: 0.10.0
libtpu: 0.0.40
codegen_flags: <defaults>
</compile_context>

<pallas_src>
import jax
import jax.numpy as jnp
from jax.experimental import pallas as pl
from jax.experimental.pallas import tpu as pltpu

LANE = 128  # pad matmul K / N dims to this (128 is aligned on v5e/v6e/v7x)


def _round_up(v, m):
    return (v + m - 1) // m * m


def _decoder_block_kernel(x_ref, w1_ref, b1_ref, w2_ref, b2_ref, o_ref,
                          xpad_ref, hpad_ref):
    # x_ref   : (1, H, W, Cin)        bf16 input tile (one batch element)
    # w1_ref  : (K1_pad, Mid_pad)     bf16, (ky, kx, cin)-ordered rows, zero-padded
    # b1_ref  : (1, Mid_pad)          f32  (padded entries are 0)
    # w2_ref  : (9*Mid_pad, Cout_pad) bf16
    # b2_ref  : (1, Cout_pad)         f32  (padded entries are 0)
    # o_ref   : (1, H*W, Cout_pad)    f32  lane-dense output slab
    # xpad_ref: (H+2, W+2, Cin)       bf16 VMEM scratch (zero halo for conv1)
    # hpad_ref: (H+2, W+2, Mid_pad)   bf16 VMEM scratch (zero halo for conv2)
    H = xpad_ref.shape[0] - 2
    W = xpad_ref.shape[1] - 2
    cin = xpad_ref.shape[2]
    mid_p = hpad_ref.shape[2]
    k1_pad = w1_ref.shape[0]

    # Zero halos ('SAME' padding); interiors are overwritten below.
    xpad_ref[...] = jnp.zeros_like(xpad_ref)
    hpad_ref[...] = jnp.zeros_like(hpad_ref)
    xpad_ref[1:H + 1, 1:W + 1, :] = x_ref[0]

    def im2col(pad_ref, c):
        # 9 shifted windows of an already-padded buffer, concatenated on the
        # lane axis in (ky, kx, cin) order -> (H*W, 9*c) bf16 slab.
        cols = [pad_ref[dy:dy + H, dx:dx + W, :].reshape(H * W, c)
                for dy in range(3) for dx in range(3)]
        return jnp.concatenate(cols, axis=-1)

    # ---------------- Conv1 + ReLU (single K=K1_pad MXU pass) ----------------
    p1 = im2col(xpad_ref, cin)                                  # (H*W, 9*Cin)
    if k1_pad > 9 * cin:
        # Match the zero rows appended to w1 so K is a full 128 multiple.
        p1 = jnp.concatenate(
            [p1, jnp.zeros((H * W, k1_pad - 9 * cin), p1.dtype)], axis=-1)
    h = jnp.dot(p1, w1_ref[...], preferred_element_type=jnp.float32)
    h = jnp.maximum(h + b1_ref[...], 0.0)                       # (H*W, Mid_pad) f32
    # Store the intermediate straight into the padded bf16 scratch; padded
    # channels are ReLU(0 + 0) = 0, so conv2's contraction sees exact zeros.
    hpad_ref[1:H + 1, 1:W + 1, :] = h.astype(jnp.bfloat16).reshape(H, W, mid_p)

    # ---------------- Conv2 + ReLU (single K=9*Mid_pad MXU pass) -------------
    p2 = im2col(hpad_ref, mid_p)                                # (H*W, 9*Mid_pad)
    y = jnp.dot(p2, w2_ref[...], preferred_element_type=jnp.float32)
    # Lane-dense (H*W, Cout_pad) store; padded channels stay 0 and are sliced
    # off in the wrapper.
    o_ref[0] = jnp.maximum(y + b2_ref[...], 0.0).astype(o_ref.dtype)


def decoder_block_forward(params, x_nchw):
    """Forward pass equivalent to DecoderBlock.forward. Input/output: NCHW f32."""
    N, Cin, H, W = x_nchw.shape
    mid = params["b1"].shape[0]
    cout = params["b2"].shape[0]

    mid_p = _round_up(mid, LANE)
    cout_p = _round_up(cout, LANE)
    k1 = 9 * Cin
    k1_p = _round_up(k1, LANE)
    k2_p = 9 * mid_p

    # NCHW -> NHWC, bf16 once in the wrapper (MXU-native operand dtype).
    # TODO(synk): at tiny Cin the (.., Cin) lane dim is still padded to 128
    # inside VMEM; at production Cin >= 64 NHWC is the right layout.
    x = jnp.transpose(x_nchw, (0, 2, 3, 1)).astype(jnp.bfloat16)

    # ---- Pack weights once: (ky, kx, cin)-ordered rows, zero-padded K / N ----
    w1 = jnp.pad(params["w1"], ((0, 0), (0, 0), (0, 0), (0, mid_p - mid)))
    w1 = w1.reshape(k1, mid_p)
    w1p = jnp.pad(w1, ((0, k1_p - k1), (0, 0))).astype(jnp.bfloat16)
    b1p = jnp.pad(params["b1"], (0, mid_p - mid)).reshape(1, mid_p).astype(jnp.float32)

    w2 = jnp.pad(params["w2"],
                 ((0, 0), (0, 0), (0, mid_p - mid), (0, cout_p - cout)))
    w2p = w2.reshape(k2_p, cout_p).astype(jnp.bfloat16)
    b2p = jnp.pad(params["b2"], (0, cout_p - cout)).reshape(1, cout_p).astype(jnp.float32)

    flops = 2 * N * H * W * (k1_p * mid_p + k2_p * cout_p)
    bytes_accessed = (x.size * 2 + w1p.size * 2 + w2p.size * 2
                      + b1p.size * 4 + b2p.size * 4 + N * H * W * cout_p * 4)

    y = pl.pallas_call(
        _decoder_block_kernel,
        out_shape=jax.ShapeDtypeStruct((N, H * W, cout_p), x_nchw.dtype),
        grid=(N,),
        in_specs=[
            pl.BlockSpec((1, H, W, Cin), lambda n: (n, 0, 0, 0)),
            pl.BlockSpec((k1_p, mid_p), lambda n: (0, 0)),
            pl.BlockSpec((1, mid_p), lambda n: (0, 0)),
            pl.BlockSpec((k2_p, cout_p), lambda n: (0, 0)),
            pl.BlockSpec((1, cout_p), lambda n: (0, 0)),
        ],
        out_specs=pl.BlockSpec((1, H * W, cout_p), lambda n: (n, 0, 0)),
        scratch_shapes=[
            pltpu.VMEM((H + 2, W + 2, Cin), jnp.bfloat16),    # padded conv1 input
            pltpu.VMEM((H + 2, W + 2, mid_p), jnp.bfloat16),  # padded conv1 output
        ],
        compiler_params=pltpu.CompilerParams(
            dimension_semantics=("parallel",),
            vmem_limit_bytes=64 * 1024 * 1024),
        cost_estimate=pl.CostEstimate(
            flops=int(flops), transcendentals=0,
            bytes_accessed=int(bytes_accessed)),
    )(x, w1p, b1p, w2p, b2p)

    # Drop padded output channels and restore NCHW outside the kernel.
    y = y[:, :, :cout].reshape(N, H, W, cout)
    return jnp.transpose(y, (0, 3, 1, 2))


def init_decoder_block_params(key, in_channels, out_channels):
    """Deterministic parameter init matching nn.Conv2d shapes.

    Conv1: (in//2, in, 3, 3), Conv2: (out, in//2, 3, 3) in PyTorch OIHW.
    Stored here in HWIO (3, 3, in, out) for the NHWC kernel.
    """
    mid = in_channels // 2
    k1, k2, k3, k4 = jax.random.split(key, 4)
    w1 = jax.random.normal(k1, (3, 3, in_channels, mid), jnp.float32) * 0.1
    b1 = jax.random.normal(k2, (mid,), jnp.float32) * 0.1
    w2 = jax.random.normal(k3, (3, 3, mid, out_channels), jnp.float32) * 0.1
    b2 = jax.random.normal(k4, (out_channels,), jnp.float32) * 0.1
    return {"w1": w1, "b1": b1, "w2": w2, "b2": b2}


def _reference_forward(params, x_nchw):
    """Pure-JAX reference with the same bf16-matmul / f32-accumulate numerics."""
    def conv_relu(x_nhwc, w, b):
        y = jax.lax.conv_general_dilated(
            x_nhwc.astype(jnp.bfloat16), w.astype(jnp.bfloat16),
            window_strides=(1, 1), padding="SAME",
            dimension_numbers=("NHWC", "HWIO", "NHWC"),
            preferred_element_type=jnp.float32)
        return jnp.maximum(y + b[None, None, None, :], 0.0)

    x = jnp.transpose(x_nchw, (0, 2, 3, 1))
    h = conv_relu(x, params["w1"], params["b1"])
    y = conv_relu(h, params["w2"], params["b2"])
    return jnp.transpose(y, (0, 3, 1, 2)).astype(x_nchw.dtype)


if __name__ == "__main__":
    in_channels, out_channels = 4, 4
    N, H, W = 2, 16, 16

    key = jax.random.PRNGKey(0)
    kx, kp = jax.random.split(key)
    x = jax.random.normal(kx, (N, in_channels, H, W), jnp.float32)
    params = init_decoder_block_params(kp, in_channels, out_channels)

    out = decoder_block_forward(params, x)
    out = jax.block_until_ready(out)

    ref = _reference_forward(params, x)
    assert out.shape == (N, out_channels, H, W)
    err = float(jnp.max(jnp.abs(out - ref)))
    assert err < 2e-2, "max abs err = %g" % err

    print("KERNEL_OK")
</pallas_src>

<mosaic_0001>
module attributes {stable_mosaic.version = 11 : i64} {
  func.func @_decoder_block_kernel(%arg0: i32, %arg1: memref<1x16x16x4xbf16, #tpu.memory_space<vmem>>, %arg2: memref<128x128xbf16, #tpu.memory_space<vmem>>, %arg3: memref<1x128xf32, #tpu.memory_space<vmem>>, %arg4: memref<1152x128xbf16, #tpu.memory_space<vmem>>, %arg5: memref<1x128xf32, #tpu.memory_space<vmem>>, %arg6: memref<1x256x128xf32, #tpu.memory_space<vmem>>, %arg7: memref<18x18x4xbf16, #tpu.memory_space<vmem>>, %arg8: memref<18x18x128xbf16, #tpu.memory_space<vmem>>) attributes {dimension_semantics = [#tpu.dimension_semantics<parallel>], iteration_bounds = array<i64: 2>, scalar_prefetch = 0 : i64, scratch_operands = 2 : i64, tpu.core_type = #tpu.core_type<tc>, window_params = [{transform_indices = @transform_0, window_bounds = array<i64: 1, 16, 16, 4>}, {pipeline_mode = #tpu.pipeline_mode<synchronous>, transform_indices = @transform_1, window_bounds = array<i64: 128, 128>}, {pipeline_mode = #tpu.pipeline_mode<synchronous>, transform_indices = @transform_2, window_bounds = array<i64: 1, 128>}, {pipeline_mode = #tpu.pipeline_mode<synchronous>, transform_indices = @transform_3, window_bounds = array<i64: 1152, 128>}, {pipeline_mode = #tpu.pipeline_mode<synchronous>, transform_indices = @transform_4, window_bounds = array<i64: 1, 128>}, {transform_indices = @transform_5, window_bounds = array<i64: 1, 256, 128>}]} {
    %cst = arith.constant 0.000000e+00 : bf16
    %0 = vector.broadcast %cst : bf16 to vector<18x18x4xbf16>
    %c0 = arith.constant 0 : index
    %c0_0 = arith.constant 0 : index
    %c0_1 = arith.constant 0 : index
    %1 = vector.load %arg7[%c0, %c0_0, %c0_1] : memref<18x18x4xbf16, #tpu.memory_space<vmem>>, vector<18x18x4xbf16>
    tpu.vector_store %arg7[%c0, %c0_0, %c0_1], %0 {strides = array<i32>} : memref<18x18x4xbf16, #tpu.memory_space<vmem>>, vector<18x18x4xbf16>,
    %cst_2 = arith.constant 0.000000e+00 : bf16
    %2 = vector.broadcast %cst_2 : bf16 to vector<18x18x128xbf16>
    %c0_3 = arith.constant 0 : index
    %c0_4 = arith.constant 0 : index
    %c0_5 = arith.constant 0 : index
    %3 = vector.load %arg8[%c0_3, %c0_4, %c0_5] : memref<18x18x128xbf16, #tpu.memory_space<vmem>>, vector<18x18x128xbf16>
    tpu.vector_store %arg8[%c0_3, %c0_4, %c0_5], %2 {strides = array<i32>} : memref<18x18x128xbf16, #tpu.memory_space<vmem>>, vector<18x18x128xbf16>,
    %c0_6 = arith.constant 0 : index
    %c0_7 = arith.constant 0 : index
    %c0_8 = arith.constant 0 : index
    %c0_9 = arith.constant 0 : index
    %4 = vector.load %arg1[%c0_6, %c0_7, %c0_8, %c0_9] : memref<1x16x16x4xbf16, #tpu.memory_space<vmem>>, vector<1x16x16x4xbf16>
    %5 = vector.shape_cast %4 : vector<1x16x16x4xbf16> to vector<16x16x4xbf16>
    %c1 = arith.constant 1 : index
    %c1_10 = arith.constant 1 : index
    %c0_11 = arith.constant 0 : index
    %6 = vector.load %arg7[%c1, %c1_10, %c0_11] : memref<18x18x4xbf16, #tpu.memory_space<vmem>>, vector<16x16x4xbf16>
    tpu.vector_store %arg7[%c1, %c1_10, %c0_11], %5 {strides = array<i32>} : memref<18x18x4xbf16, #tpu.memory_space<vmem>>, vector<16x16x4xbf16>,
    %c0_12 = arith.constant 0 : index
    %c0_13 = arith.constant 0 : index
    %c0_14 = arith.constant 0 : index
    %7 = vector.load %arg7[%c0_12, %c0_13, %c0_14] : memref<18x18x4xbf16, #tpu.memory_space<vmem>>, vector<16x16x4xbf16>
    %8 = vector.shape_cast %7 : vector<16x16x4xbf16> to vector<256x4xbf16>
    %c0_15 = arith.constant 0 : index
    %c1_16 = arith.constant 1 : index
    %c0_17 = arith.constant 0 : index
    %9 = vector.load %arg7[%c0_15, %c1_16, %c0_17] : memref<18x18x4xbf16, #tpu.memory_space<vmem>>, vector<16x16x4xbf16>
    %10 = vector.shape_cast %9 : vector<16x16x4xbf16> to vector<256x4xbf16>
    %c0_18 = arith.constant 0 : index
    %c2 = arith.constant 2 : index
    %c0_19 = arith.constant 0 : index
    %11 = vector.load %arg7[%c0_18, %c2, %c0_19] : memref<18x18x4xbf16, #tpu.memory_space<vmem>>, vector<16x16x4xbf16>
    %12 = vector.shape_cast %11 : vector<16x16x4xbf16> to vector<256x4xbf16>
    %c1_20 = arith.constant 1 : index
    %c0_21 = arith.constant 0 : index
    %c0_22 = arith.constant 0 : index
    %13 = vector.load %arg7[%c1_20, %c0_21, %c0_22] : memref<18x18x4xbf16, #tpu.memory_space<vmem>>, vector<16x16x4xbf16>
    %14 = vector.shape_cast %13 : vector<16x16x4xbf16> to vector<256x4xbf16>
    %c1_23 = arith.constant 1 : index
    %c1_24 = arith.constant 1 : index
    %c0_25 = arith.constant 0 : index
    %15 = vector.load %arg7[%c1_23, %c1_24, %c0_25] : memref<18x18x4xbf16, #tpu.memory_space<vmem>>, vector<16x16x4xbf16>
    %16 = vector.shape_cast %15 : vector<16x16x4xbf16> to vector<256x4xbf16>
    %c1_26 = arith.constant 1 : index
    %c2_27 = arith.constant 2 : index
    %c0_28 = arith.constant 0 : index
    %17 = vector.load %arg7[%c1_26, %c2_27, %c0_28] : memref<18x18x4xbf16, #tpu.memory_space<vmem>>, vector<16x16x4xbf16>
    %18 = vector.shape_cast %17 : vector<16x16x4xbf16> to vector<256x4xbf16>
    %c2_29 = arith.constant 2 : index
    %c0_30 = arith.constant 0 : index
    %c0_31 = arith.constant 0 : index
    %19 = vector.load %arg7[%c2_29, %c0_30, %c0_31] : memref<18x18x4xbf16, #tpu.memory_space<vmem>>, vector<16x16x4xbf16>
    %20 = vector.shape_cast %19 : vector<16x16x4xbf16> to vector<256x4xbf16>
    %c2_32 = arith.constant 2 : index
    %c1_33 = arith.constant 1 : index
    %c0_34 = arith.constant 0 : index
    %21 = vector.load %arg7[%c2_32, %c1_33, %c0_34] : memref<18x18x4xbf16, #tpu.memory_space<vmem>>, vector<16x16x4xbf16>
    %22 = vector.shape_cast %21 : vector<16x16x4xbf16> to vector<256x4xbf16>
    %c2_35 = arith.constant 2 : index
    %c2_36 = arith.constant 2 : index
    %c0_37 = arith.constant 0 : index
    %23 = vector.load %arg7[%c2_35, %c2_36, %c0_37] : memref<18x18x4xbf16, #tpu.memory_space<vmem>>, vector<16x16x4xbf16>
    %24 = vector.shape_cast %23 : vector<16x16x4xbf16> to vector<256x4xbf16>
    %25 = tpu.concatenate %8, %10, %12, %14, %16, %18, %20, %22, %24 in 1 : vector<256x4xbf16>, vector<256x4xbf16>, vector<256x4xbf16>, vector<256x4xbf16>, vector<256x4xbf16>, vector<256x4xbf16>, vector<256x4xbf16>, vector<256x4xbf16>, vector<256x4xbf16> -> vector<256x36xbf16>
    %cst_38 = arith.constant 0.000000e+00 : bf16
    %26 = vector.broadcast %cst_38 : bf16 to vector<256x92xbf16>
    %27 = tpu.concatenate %25, %26 in 1 : vector<256x36xbf16>, vector<256x92xbf16> -> vector<256x128xbf16>
    %c0_39 = arith.constant 0 : index
    %c0_40 = arith.constant 0 : index
    %28 = vector.load %arg2[%c0_39, %c0_40] : memref<128x128xbf16, #tpu.memory_space<vmem>>, vector<128x128xbf16>
    %cst_41 = arith.constant dense<0.000000e+00> : vector<256x128xf32>
    %29 = tpu.matmul %27, %28, %cst_41 {dimension_numbers = #tpu.dot_dimension_numbers<[1], [0], [0], [1], [0, 0, 1, 1], [], []>} : vector<256x128xbf16>, vector<128x128xbf16>, vector<256x128xf32> -> vector<256x128xf32>
    %c0_42 = arith.constant 0 : index
    %c0_43 = arith.constant 0 : index
    %30 = vector.load %arg3[%c0_42, %c0_43] : memref<1x128xf32, #tpu.memory_space<vmem>>, vector<1x128xf32>
    %31 = vector.broadcast %30 : vector<1x128xf32> to vector<256x128xf32>
    %32 = arith.addf %29, %31 : vector<256x128xf32>
    %cst_44 = arith.constant 0.000000e+00 : f32
    %33 = vector.broadcast %cst_44 : f32 to vector<256x128xf32>
    %34 = arith.maximumf %32, %33 : vector<256x128xf32>
    %35 = arith.truncf %34 : vector<256x128xf32> to vector<256x128xbf16>
    %36 = vector.shape_cast %35 : vector<256x128xbf16> to vector<16x16x128xbf16>
    %c1_45 = arith.constant 1 : index
    %c1_46 = arith.constant 1 : index
    %c0_47 = arith.constant 0 : index
    %37 = vector.load %arg8[%c1_45, %c1_46, %c0_47] : memref<18x18x128xbf16, #tpu.memory_space<vmem>>, vector<16x16x128xbf16>
    tpu.vector_store %arg8[%c1_45, %c1_46, %c0_47], %36 {strides = array<i32>} : memref<18x18x128xbf16, #tpu.memory_space<vmem>>, vector<16x16x128xbf16>,
    %c0_48 = arith.constant 0 : index
    %c0_49 = arith.constant 0 : index
    %c0_50 = arith.constant 0 : index
    %38 = vector.load %arg8[%c0_48, %c0_49, %c0_50] : memref<18x18x128xbf16, #tpu.memory_space<vmem>>, vector<16x16x128xbf16>
    %39 = vector.shape_cast %38 : vector<16x16x128xbf16> to vector<256x128xbf16>
    %c0_51 = arith.constant 0 : index
    %c1_52 = arith.constant 1 : index
    %c0_53 = arith.constant 0 : index
    %40 = vector.load %arg8[%c0_51, %c1_52, %c0_53] : memref<18x18x128xbf16, #tpu.memory_space<vmem>>, vector<16x16x128xbf16>
    %41 = vector.shape_cast %40 : vector<16x16x128xbf16> to vector<256x128xbf16>
    %c0_54 = arith.constant 0 : index
    %c2_55 = arith.constant 2 : index
    %c0_56 = arith.constant 0 : index
    %42 = vector.load %arg8[%c0_54, %c2_55, %c0_56] : memref<18x18x128xbf16, #tpu.memory_space<vmem>>, vector<16x16x128xbf16>
    %43 = vector.shape_cast %42 : vector<16x16x128xbf16> to vector<256x128xbf16>
    %c1_57 = arith.constant 1 : index
    %c0_58 = arith.constant 0 : index
    %c0_59 = arith.constant 0 : index
    %44 = vector.load %arg8[%c1_57, %c0_58, %c0_59] : memref<18x18x128xbf16, #tpu.memory_space<vmem>>, vector<16x16x128xbf16>
    %45 = vector.shape_cast %44 : vector<16x16x128xbf16> to vector<256x128xbf16>
    %c1_60 = arith.constant 1 : index
    %c1_61 = arith.constant 1 : index
    %c0_62 = arith.constant 0 : index
    %46 = vector.load %arg8[%c1_60, %c1_61, %c0_62] : memref<18x18x128xbf16, #tpu.memory_space<vmem>>, vector<16x16x128xbf16>
    %47 = vector.shape_cast %46 : vector<16x16x128xbf16> to vector<256x128xbf16>
    %c1_63 = arith.constant 1 : index
    %c2_64 = arith.constant 2 : index
    %c0_65 = arith.constant 0 : index
    %48 = vector.load %arg8[%c1_63, %c2_64, %c0_65] : memref<18x18x128xbf16, #tpu.memory_space<vmem>>, vector<16x16x128xbf16>
    %49 = vector.shape_cast %48 : vector<16x16x128xbf16> to vector<256x128xbf16>
    %c2_66 = arith.constant 2 : index
    %c0_67 = arith.constant 0 : index
    %c0_68 = arith.constant 0 : index
    %50 = vector.load %arg8[%c2_66, %c0_67, %c0_68] : memref<18x18x128xbf16, #tpu.memory_space<vmem>>, vector<16x16x128xbf16>
    %51 = vector.shape_cast %50 : vector<16x16x128xbf16> to vector<256x128xbf16>
    %c2_69 = arith.constant 2 : index
    %c1_70 = arith.constant 1 : index
    %c0_71 = arith.constant 0 : index
    %52 = vector.load %arg8[%c2_69, %c1_70, %c0_71] : memref<18x18x128xbf16, #tpu.memory_space<vmem>>, vector<16x16x128xbf16>
    %53 = vector.shape_cast %52 : vector<16x16x128xbf16> to vector<256x128xbf16>
    %c2_72 = arith.constant 2 : index
    %c2_73 = arith.constant 2 : index
    %c0_74 = arith.constant 0 : index
    %54 = vector.load %arg8[%c2_72, %c2_73, %c0_74] : memref<18x18x128xbf16, #tpu.memory_space<vmem>>, vector<16x16x128xbf16>
    %55 = vector.shape_cast %54 : vector<16x16x128xbf16> to vector<256x128xbf16>
    %56 = tpu.concatenate %39, %41, %43, %45, %47, %49, %51, %53, %55 in 1 : vector<256x128xbf16>, vector<256x128xbf16>, vector<256x128xbf16>, vector<256x128xbf16>, vector<256x128xbf16>, vector<256x128xbf16>, vector<256x128xbf16>, vector<256x128xbf16>, vector<256x128xbf16> -> vector<256x1152xbf16>
    %c0_75 = arith.constant 0 : index
    %c0_76 = arith.constant 0 : index
    %57 = vector.load %arg4[%c0_75, %c0_76] : memref<1152x128xbf16, #tpu.memory_space<vmem>>, vector<1152x128xbf16>
    %cst_77 = arith.constant dense<0.000000e+00> : vector<256x128xf32>
    %58 = tpu.matmul %56, %57, %cst_77 {dimension_numbers = #tpu.dot_dimension_numbers<[1], [0], [0], [1], [0, 0, 1, 1], [], []>} : vector<256x1152xbf16>, vector<1152x128xbf16>, vector<256x128xf32> -> vector<256x128xf32>
    %c0_78 = arith.constant 0 : index
    %c0_79 = arith.constant 0 : index
    %59 = vector.load %arg5[%c0_78, %c0_79] : memref<1x128xf32, #tpu.memory_space<vmem>>, vector<1x128xf32>
    %60 = vector.broadcast %59 : vector<1x128xf32> to vector<256x128xf32>
    %61 = arith.addf %58, %60 : vector<256x128xf32>
    %cst_80 = arith.constant 0.000000e+00 : f32
    %62 = vector.broadcast %cst_80 : f32 to vector<256x128xf32>
    %63 = arith.maximumf %61, %62 : vector<256x128xf32>
    %c0_81 = arith.constant 0 : index
    %c0_82 = arith.constant 0 : index
    %c0_83 = arith.constant 0 : index
    %64 = vector.load %arg6[%c0_81, %c0_82, %c0_83] : memref<1x256x128xf32, #tpu.memory_space<vmem>>, vector<1x256x128xf32>
    %65 = vector.shape_cast %64 : vector<1x256x128xf32> to vector<256x128xf32>
    %66 = vector.shape_cast %63 : vector<256x128xf32> to vector<1x256x128xf32>
    tpu.vector_store %arg6[%c0_81, %c0_82, %c0_83], %66 {strides = array<i32>} : memref<1x256x128xf32, #tpu.memory_space<vmem>>, vector<1x256x128xf32>,
    return
  }
  func.func @transform_0(%arg0: i32) -> (i32, i32, i32, i32) {
    %c0_i32 = arith.constant 0 : i32
    %c0_i32_0 = arith.constant 0 : i32
    %c0_i32_1 = arith.constant 0 : i32
    %c0_i32_2 = arith.constant 0 : i32
    return %arg0, %c0_i32, %c0_i32_0, %c0_i32_1 : i32, i32, i32, i32
  }
  func.func @transform_1(%arg0: i32) -> (i32, i32) {
    %c0_i32 = arith.constant 0 : i32
    %c0_i32_0 = arith.constant 0 : i32
    %c0_i32_1 = arith.constant 0 : i32
    return %c0_i32, %c0_i32_0 : i32, i32
  }
  func.func @transform_2(%arg0: i32) -> (i32, i32) {
    %c0_i32 = arith.constant 0 : i32
    %c0_i32_0 = arith.constant 0 : i32
    %c0_i32_1 = arith.constant 0 : i32
    return %c0_i32, %c0_i32_0 : i32, i32
  }
  func.func @transform_3(%arg0: i32) -> (i32, i32) {
    %c0_i32 = arith.constant 0 : i32
    %c0_i32_0 = arith.constant 0 : i32
    %c0_i32_1 = arith.constant 0 : i32
    return %c0_i32, %c0_i32_0 : i32, i32
  }
  func.func @transform_4(%arg0: i32) -> (i32, i32) {
    %c0_i32 = arith.constant 0 : i32
    %c0_i32_0 = arith.constant 0 : i32
    %c0_i32_1 = arith.constant 0 : i32
    return %c0_i32, %c0_i32_0 : i32, i32
  }
  func.func @transform_5(%arg0: i32) -> (i32, i32, i32) {
    %c0_i32 = arith.constant 0 : i32
    %c0_i32_0 = arith.constant 0 : i32
    %c0_i32_1 = arith.constant 0 : i32
    return %arg0, %c0_i32, %c0_i32_0 : i32, i32, i32
  }
}

</mosaic_0001>

<llo_original>
// kernel: tpu_custom_call.1
$region0: #{tpu_custom_call.1}
  #allocation0 [shape = 'u32[]', space=smem, size = 0x4, offset = 0x4, fixed_abs, tag = 'smem constant byte address 0x4 - core index']
  #allocation1 [shape = 'u32[144,128]{1,0:T(1,128)}', space=vmem, size = 0x12000, scoped, tag = 'internal scratch']
  #allocation2 [shape = 'bf16[18,18,4]{2,1,0:T(8,128)(2,1)}', space=vmem, size = 0x1b000, scoped, tag = 'scratch operand']
  #allocation3 [shape = 'bf16[18,18,128]{2,1,0:T(8,128)(2,1)}', space=vmem, size = 0x1b000, scoped, tag = 'scratch operand']
  %s0 = inlined_call_operand.hbm [shape: bf16[2,16,16,4], index: 0, kind: input, shape index: {}]
  %s1 = inlined_call_operand.hbm [shape: bf16[128,128], index: 1, kind: input, shape index: {}]
  %s2 = inlined_call_operand.hbm [shape: f32[1,128], index: 2, kind: input, shape index: {}]
  %s3 = inlined_call_operand.hbm [shape: bf16[1152,128], index: 3, kind: input, shape index: {}]
  %s4 = inlined_call_operand.hbm [shape: f32[1,128], index: 4, kind: input, shape index: {}]
  %s5 = inlined_call_operand.hbm [shape: f32[2,256,128], index: 5, kind: output, shape index: {}]
  %s6 = sld [smem:[#allocation0]]
  $region73: #{tpu_custom_call.1} parent=0
    _
  %s8 = ssub.s32 1, %s6
  %s9 = scalar_select 0, %s8, %s6
  $region1: #{tpu_custom_call.1} parent=0
    #allocation4 [shape = 'u8[131072]{0}', space=vmem, size = 0x20000, scoped, tag = 'input window, operand 0']
    #allocation5 [shape = 's32[2]{0}', space=sflag, size = 0x8, scoped, tag = 'scoped memory for tpu_custom_call.1']
    #allocation6 [shape = 's32[2]{0}', space=sflag, size = 0x8, scoped, tag = 'scoped memory for tpu_custom_call.1']
    #allocation7 [shape = 'u8[32768]{0}', space=vmem, size = 0x8000, scoped, tag = 'input window, operand 1, single buffered']
    #allocation8 [shape = 's32[1]{0}', space=sflag, size = 0x4, scoped, tag = 'scoped memory for tpu_custom_call.1']
    #allocation9 [shape = 'u8[512]{0}', space=vmem, size = 0x400, scoped, tag = 'input window, operand 2, single buffered']
    #allocation10 [shape = 'u8[294912]{0}', space=vmem, size = 0x48000, scoped, tag = 'input window, operand 3, single buffered']
    #allocation11 [shape = 's32[1]{0}', space=sflag, size = 0x4, scoped, tag = 'scoped memory for tpu_custom_call.1']
    #allocation12 [shape = 'u8[512]{0}', space=vmem, size = 0x400, scoped, tag = 'input window, operand 4, single buffered']
    #allocation13 [shape = 'u8[262144]{0}', space=vmem, size = 0x40000, scoped, tag = 'output window, operand 0']
    %10 = vsyncpa [#allocation5], 0
    %s11 = scalar_lea.sflag [#allocation5], 1
    %12 = vsyncpa %s11, 0
    %13 = vsyncpa [#allocation8], 0
    %14 = vsyncpa [#allocation11], 0
    %15 = vsyncpa [#allocation6], 0
    %s16 = scalar_lea.sflag [#allocation6], 1
    %17 = vsyncpa %s16, 0
    loop: start=0, step=1, limit=4
    $region2: #{tpu_custom_call.1} parent=1 // loop_pre_header
      _
    $region3: #{tpu_custom_call.1} parent=1 // loop_header
      %s19 = sphi 0, %s23
      %p20 = scmp.ge.s32.totalorder %s19, 4
      %s29 = sphi 0, %s31
      %s32 = sphi 0, %s29
      %s33 = sphi 0, %s32
      %s49 = sphi 0, %s33
      %s53 = sphi 0, %s53
      %s55 = sphi 0, %s53
      %s56 = sphi 0, %s55
      %s70 = sphi 0, %s56
      %s74 = sphi 0, %s74
      %s76 = sphi 0, %s74
      %s77 = sphi 0, %s76
      %s91 = sphi 0, %s77
      %s95 = sphi 0, %s95
      %s97 = sphi 0, %s95
      %s98 = sphi 0, %s97
      %s112 = sphi 0, %s98
      %s116 = sphi 0, %s116
      %s118 = sphi 0, %s116
      %s119 = sphi 0, %s118
      %s133 = sphi 0, %s119
      %s139 = sphi 0, %s141
      %s142 = sphi 0, %s139
      %s143 = sphi 0, %s142
      %s159 = sphi 0, %s143
    $region4: #{tpu_custom_call.1} parent=1 // loop_header_branch
      %22 = sbr.rel (%p20) target = $region8
    $region5: #{tpu_custom_call.1} parent=1 // loop_body
      %s24 = ssub.s32 %s19, 1
      %s25 = ssub.s32 %s19, 2
      %s26 = sadd.s32 %s19, 1
      %s27 = ssub.s32 %s19, %s26
      %p28 = scmp.eq.s32.totalorder %s27, 0
      %s30 = sadd.s32 %s29, 1
      %s31 = scalar_select %p28, %s29, %s30
      %p34 = pneg %p28
      %p35 = scmp.eq.s32.totalorder %s19, 1
      %p36 = por %p34, %p35
      %p37 = scmp.ne.s32.totalorder %s29, %s32
      %p38 = scmp.eq.s32.totalorder %s19, 0
      %p39 = por %p37, %p38
      %p40 = scmp.ne.s32.totalorder %s29, %s32
      %p41 = scmp.eq.s32.totalorder %s24, 1
      %p42 = por %p40, %p41
      %p43 = scmp.ne.s32.totalorder %s32, %s33
      %p44 = scmp.eq.s32.totalorder %s24, 0
      %p45 = por %p43, %p44
      %p46 = scmp.ne.s32.totalorder %s32, %s33
      %p47 = scmp.eq.s32.totalorder %s25, 1
      %p48 = por %p46, %p47
      %p50 = scmp.ne.s32.totalorder %s33, %s49
      %p51 = scmp.eq.s32.totalorder %s25, 0
      %p52 = por %p50, %p51
      %s54 = sadd.s32 %s53, 1
      %p57 = scmp.eq.s32.totalorder %s19, 1
      %p58 = scmp.ne.s32.totalorder %s53, %s55
      %p59 = scmp.eq.s32.totalorder %s19, 0
      %p60 = por %p58, %p59
      %p61 = scmp.ne.s32.totalorder %s53, %s55
      %p62 = scmp.eq.s32.totalorder %s24, 1
      %p63 = por %p61, %p62
      %p64 = scmp.ne.s32.totalorder %s55, %s56
      %p65 = scmp.eq.s32.totalorder %s24, 0
      %p66 = por %p64, %p65
      %p67 = scmp.ne.s32.totalorder %s55, %s56
      %p68 = scmp.eq.s32.totalorder %s25, 1
      %p69 = por %p67, %p68
      %p71 = scmp.ne.s32.totalorder %s56, %s70
      %p72 = scmp.eq.s32.totalorder %s25, 0
      %p73 = por %p71, %p72
      %s75 = sadd.s32 %s74, 1
      %p78 = scmp.eq.s32.totalorder %s19, 1
      %p79 = scmp.ne.s32.totalorder %s74, %s76
      %p80 = scmp.eq.s32.totalorder %s19, 0
      %p81 = por %p79, %p80
      %p82 = scmp.ne.s32.totalorder %s74, %s76
      %p83 = scmp.eq.s32.totalorder %s24, 1
      %p84 = por %p82, %p83
      %p85 = scmp.ne.s32.totalorder %s76, %s77
      %p86 = scmp.eq.s32.totalorder %s24, 0
      %p87 = por %p85, %p86
      %p88 = scmp.ne.s32.totalorder %s76, %s77
      %p89 = scmp.eq.s32.totalorder %s25, 1
      %p90 = por %p88, %p89
      %p92 = scmp.ne.s32.totalorder %s77, %s91
      %p93 = scmp.eq.s32.totalorder %s25, 0
      %p94 = por %p92, %p93
      %s96 = sadd.s32 %s95, 1
      %p99 = scmp.eq.s32.totalorder %s19, 1
      %p100 = scmp.ne.s32.totalorder %s95, %s97
      %p101 = scmp.eq.s32.totalorder %s19, 0
      %p102 = por %p100, %p101
      %p103 = scmp.ne.s32.totalorder %s95, %s97
      %p104 = scmp.eq.s32.totalorder %s24, 1
      %p105 = por %p103, %p104
      %p106 = scmp.ne.s32.totalorder %s97, %s98
      %p107 = scmp.eq.s32.totalorder %s24, 0
      %p108 = por %p106, %p107
      %p109 = scmp.ne.s32.totalorder %s97, %s98
      %p110 = scmp.eq.s32.totalorder %s25, 1
      %p111 = por %p109, %p110
      %p113 = scmp.ne.s32.totalorder %s98, %s112
      %p114 = scmp.eq.s32.totalorder %s25, 0
      %p115 = por %p113, %p114
      %s117 = sadd.s32 %s116, 1
      %p120 = scmp.eq.s32.totalorder %s19, 1
      %p121 = scmp.ne.s32.totalorder %s116, %s118
      %p122 = scmp.eq.s32.totalorder %s19, 0
      %p123 = por %p121, %p122
      %p124 = scmp.ne.s32.totalorder %s116, %s118
      %p125 = scmp.eq.s32.totalorder %s24, 1
      %p126 = por %p124, %p125
      %p127 = scmp.ne.s32.totalorder %s118, %s119
      %p128 = scmp.eq.s32.totalorder %s24, 0
      %p129 = por %p127, %p128
      %p130 = scmp.ne.s32.totalorder %s118, %s119
      %p131 = scmp.eq.s32.totalorder %s25, 1
      %p132 = por %p130, %p131
      %p134 = scmp.ne.s32.totalorder %s119, %s133
      %p135 = scmp.eq.s32.totalorder %s25, 0
      %p136 = por %p134, %p135
      %s137 = ssub.s32 %s19, %s26
      %p138 = scmp.eq.s32.totalorder %s137, 0
      %s140 = sadd.s32 %s139, 1
      %s141 = scalar_select %p138, %s139, %s140
      %p144 = pneg %p138
      %p145 = scmp.eq.s32.totalorder %s19, 1
      %p146 = por %p144, %p145
      %p147 = scmp.ne.s32.totalorder %s139, %s142
      %p148 = scmp.eq.s32.totalorder %s19, 0
      %p149 = por %p147, %p148
      %p150 = scmp.ne.s32.totalorder %s139, %s142
      %p151 = scmp.eq.s32.totalorder %s24, 1
      %p152 = por %p150, %p151
      %p153 = scmp.ne.s32.totalorder %s142, %s143
      %p154 = scmp.eq.s32.totalorder %s24, 0
      %p155 = por %p153, %p154
      %p156 = scmp.ne.s32.totalorder %s142, %s143
      %p157 = scmp.eq.s32.totalorder %s25, 1
      %p158 = por %p156, %p157
      %p160 = scmp.ne.s32.totalorder %s143, %s159
      %p161 = scmp.eq.s32.totalorder %s25, 0
      %p162 = por %p160, %p161
      %p163 = scmp.le.s32.totalorder 1, %s19
      %p164 = scmp.lt.s32.totalorder %s19, 3
      %p165 = pnand %p163, %p164
      %p166 = pneg %p165
      // Predicated region
      $region9: #{tpu_custom_call.1} parent=5 // pred_check
        _
      $region10: #{tpu_custom_call.1} parent=5 // pred_check_branch
        %168 = sbr.rel (%p165) target = $region12
      $region11: #{tpu_custom_call.1} parent=5 // pred_region
        %s169 = ssub.s32 %s19, 1
        // Predicated region
        $region13: #{tpu_custom_call.1} parent=11 // pred_check
          %p170 = pneg %p66
        $region14: #{tpu_custom_call.1} parent=11 // pred_check_branch
          %172 = sbr.rel (%p170) target = $region16
        $region15: #{tpu_custom_call.1} parent=11 // pred_region
          %s174 = ssub.s32 1024, 1024
          %175 = vsyncadd [#allocation8], %s174
          %s176 = sshll.u32 [#allocation7], 4
          %s177 = int_to_ptr.vmem [resolvable:$true] %s176
          %182 = dma.hbm_to_vmem [thread:$0]  %s1, 1024, %s177, [#allocation8], 64, 64, 4
        $region16: #{tpu_custom_call.1} parent=11 // pred_fallthru
          _
        // Predicated region
        $region17: #{tpu_custom_call.1} parent=11 // pred_check
          %p183 = pneg %p87
        $region18: #{tpu_custom_call.1} parent=11 // pred_check_branch
          %185 = sbr.rel (%p183) target = $region20
        $region19: #{tpu_custom_call.1} parent=11 // pred_region
          %s187 = ssub.s32 16, 16
          %188 = vsyncadd [#allocation8], %s187
          %s190 = sshll.u32 [#allocation9], 4
          %s191 = int_to_ptr.vmem [resolvable:$true] %s190
          %193 = dma.hbm_to_vmem [thread:$0]  %s2, 16, %s191, [#allocation8]
        $region20: #{tpu_custom_call.1} parent=11 // pred_fallthru
          _
        // Predicated region
        $region21: #{tpu_custom_call.1} parent=11 // pred_check
          %p194 = pneg %p108
        $region22: #{tpu_custom_call.1} parent=11 // pred_check_branch
          %196 = sbr.rel (%p194) target = $region24
        $region23: #{tpu_custom_call.1} parent=11 // pred_region
          %s198 = ssub.s32 9216, 9216
          %199 = vsyncadd [#allocation11], %s198
          %s200 = sshll.u32 [#allocation10], 4
          %s201 = int_to_ptr.vmem [resolvable:$true] %s200
          %206 = dma.hbm_to_vmem [thread:$0]  %s3, 9216, %s201, [#allocation11], 64, 64, 4
        $region24: #{tpu_custom_call.1} parent=11 // pred_fallthru
          _
        // Predicated region
        $region25: #{tpu_custom_call.1} parent=11 // pred_check
          %p207 = pneg %p129
        $region26: #{tpu_custom_call.1} parent=11 // pred_check_branch
          %209 = sbr.rel (%p207) target = $region28
        $region27: #{tpu_custom_call.1} parent=11 // pred_region
          %s211 = ssub.s32 16, 16
          %212 = vsyncadd [#allocation11], %s211
          %s214 = sshll.u32 [#allocation12], 4
          %s215 = int_to_ptr.vmem [resolvable:$true] %s214
          %217 = dma.hbm_to_vmem [thread:$0]  %s4, 16, %s215, [#allocation11]
        $region28: #{tpu_custom_call.1} parent=11 // pred_fallthru
          _
      $region12: #{tpu_custom_call.1} parent=5 // pred_fallthru
        _
      %p218 = scmp.lt.s32.totalorder %s19, 2
      // Predicated region
      $region29: #{tpu_custom_call.1} parent=5 // pred_check
        %p219 = pneg %p218
      $region30: #{tpu_custom_call.1} parent=5 // pred_check_branch
        %221 = sbr.rel (%p219) target = $region32
      $region31: #{tpu_custom_call.1} parent=5 // pred_region
        // Predicated region
        $region33: #{tpu_custom_call.1} parent=31 // pred_check
          %p222 = pneg %p39
        $region34: #{tpu_custom_call.1} parent=31 // pred_check_branch
          %224 = sbr.rel (%p222) target = $region36
        $region35: #{tpu_custom_call.1} parent=31 // pred_region
          %s225 = sand.u32 %s29, 1
          %s226 = scalar_lea.sflag [#allocation5], %s225
          %s227 = sand.u32 %s29, 1
          %s228 = smul.addr %s227, 128
          %s229 = scalar_lea.vmem [#allocation4], %s228
          %s231 = ssub.s32 2048, 2048
          %232 = vsyncadd %s226, %s231
          %s233 = smul.addr %s19, 32
          %s234 = smul.addr %s233, 64
          %s235 = scalar_lea.hbm %s0, %s234
          %s236 = sshll.u32 %s229, 4
          %s237 = int_to_ptr.vmem [resolvable:$true] %s236
          %242 = dma.hbm_to_vmem [thread:$0]  %s235, 2048, %s237, %s226, 64, 64, 4
        $region36: #{tpu_custom_call.1} parent=31 // pred_fallthru
          _
      $region32: #{tpu_custom_call.1} parent=5 // pred_fallthru
        _
      %p243 = scmp.le.s32.totalorder 1, %s19
      %p244 = scmp.lt.s32.totalorder %s19, 3
      %p245 = pnand %p243, %p244
      %p246 = pneg %p245
      // Predicated region
      $region37: #{tpu_custom_call.1} parent=5 // pred_check
        _
      $region38: #{tpu_custom_call.1} parent=5 // pred_check_branch
        %248 = sbr.rel (%p245) target = $region40
      $region39: #{tpu_custom_call.1} parent=5 // pred_region
        %s249 = ssub.s32 %s19, 1
        %s250 = sand.u32 %s32, 1
        %s251 = scalar_lea.sflag [#allocation5], %s250
        %s252 = sand.u32 %s32, 1
        %s253 = smul.addr %s252, 128
        %s254 = scalar_lea.vmem [#allocation4], %s253
        // Predicated region
        $region41: #{tpu_custom_call.1} parent=39 // pred_check
          %p255 = pneg %p45
        $region42: #{tpu_custom_call.1} parent=39 // pred_check_branch
          %257 = sbr.rel (%p255) target = $region44
        $region43: #{tpu_custom_call.1} parent=39 // pred_region
          %258 = dma.done %s251, 2048
        $region44: #{tpu_custom_call.1} parent=39 // pred_fallthru
          _
        // Predicated region
        $region45: #{tpu_custom_call.1} parent=39 // pred_check
          %p259 = pneg %p66
        $region46: #{tpu_custom_call.1} parent=39 // pred_check_branch
          %261 = sbr.rel (%p259) target = $region48
        $region47: #{tpu_custom_call.1} parent=39 // pred_region
          %262 = dma.done [#allocation8], 1024
        $region48: #{tpu_custom_call.1} parent=39 // pred_fallthru
          _
        // Predicated region
        $region49: #{tpu_custom_call.1} parent=39 // pred_check
          %p263 = pneg %p87
        $region50: #{tpu_custom_call.1} parent=39 // pred_check_branch
          %265 = sbr.rel (%p263) target = $region52
        $region51: #{tpu_custom_call.1} parent=39 // pred_region
          %266 = dma.done [#allocation8], 16
        $region52: #{tpu_custom_call.1} parent=39 // pred_fallthru
          _
        // Predicated region
        $region53: #{tpu_custom_call.1} parent=39 // pred_check
          %p267 = pneg %p108
        $region54: #{tpu_custom_call.1} parent=39 // pred_check_branch
          %269 = sbr.rel (%p267) target = $region56
        $region55: #{tpu_custom_call.1} parent=39 // pred_region
          %270 = dma.done [#allocation11], 9216
        $region56: #{tpu_custom_call.1} parent=39 // pred_fallthru
          _
        // Predicated region
        $region57: #{tpu_custom_call.1} parent=39 // pred_check
          %p271 = pneg %p129
        $region58: #{tpu_custom_call.1} parent=39 // pred_check_branch
          %273 = sbr.rel (%p271) target = $region60
        $region59: #{tpu_custom_call.1} parent=39 // pred_region
          %274 = dma.done [#allocation11], 16
        $region60: #{tpu_custom_call.1} parent=39 // pred_fallthru
          _
        %s275 = sand.u32 %s32, 1
        %s276 = scalar_lea.sflag [#allocation5], %s275
        %s277 = sand.u32 %s32, 1
        %s278 = smul.addr %s277, 128
        %s279 = scalar_lea.vmem [#allocation4], %s278
        %p280 = pneg %p45
        %p281 = pneg %p42
        %p282 = pneg %p66
        %p283 = pneg %p63
        %p284 = pneg %p87
        %p285 = pneg %p84
        %p286 = pneg %p108
        %p287 = pneg %p105
        %p288 = pneg %p129
        %p289 = pneg %p126
        %p290 = pneg %p155
        %p291 = pneg %p152
        %s292 = sand.u32 %s142, 1
        %s293 = scalar_lea.sflag [#allocation6], %s292
        %s294 = sand.u32 %s142, 1
        %s295 = smul.addr %s294, 256
        %s296 = scalar_lea.vmem [#allocation13], %s295
        %vm298 = vcmask 27648
        %299 = vst.msk [vmem:[#allocation2] sm:$0xf] %vm298, 0
        %300 = vst.msk [vmem:[#allocation2 + $0x4] sm:$0xf] %vm298, 0
        %vm301 = vcmask 24576
        %302 = vst.msk [vmem:[#allocation2 + $0x8] sm:$0x1] %vm301, 0
        %303 = vst.msk [vmem:[#allocation2 + $0xc] sm:$0xf] %vm298, 0
        %304 = vst.msk [vmem:[#allocation2 + $0x10] sm:$0xf] %vm298, 0
        %305 = vst.msk [vmem:[#allocation2 + $0x14] sm:$0x1] %vm301, 0
        %306 = vst.msk [vmem:[#allocation2 + $0x18] sm:$0xf] %vm298, 0
        %307 = vst.msk [vmem:[#allocation2 + $0x1c] sm:$0xf] %vm298, 0
        %308 = vst.msk [vmem:[#allocation2 + $0x20] sm:$0x1] %vm301, 0
        %309 = vst.msk [vmem:[#allocation2 + $0x24] sm:$0xf] %vm298, 0
        %310 = vst.msk [vmem:[#allocation2 + $0x28] sm:$0xf] %vm298, 0
        %311 = vst.msk [vmem:[#allocation2 + $0x2c] sm:$0x1] %vm301, 0
        %312 = vst.msk [vmem:[#allocation2 + $0x30] sm:$0xf] %vm298, 0
        %313 = vst.msk [vmem:[#allocation2 + $0x34] sm:$0xf] %vm298, 0
        %314 = vst.msk [vmem:[#allocation2 + $0x38] sm:$0x1] %vm301, 0
        %315 = vst.msk [vmem:[#allocation2 + $0x3c] sm:$0xf] %vm298, 0
        %316 = vst.msk [vmem:[#allocation2 + $0x40] sm:$0xf] %vm298, 0
        %317 = vst.msk [vmem:[#allocation2 + $0x44] sm:$0x1] %vm301, 0
        %318 = vst.msk [vmem:[#allocation2 + $0x48] sm:$0xf] %vm298, 0
        %319 = vst.msk [vmem:[#allocation2 + $0x4c] sm:$0xf] %vm298, 0
        %320 = vst.msk [vmem:[#allocation2 + $0x50] sm:$0x1] %vm301, 0
        %321 = vst.msk [vmem:[#allocation2 + $0x54] sm:$0xf] %vm298, 0
        %322 = vst.msk [vmem:[#allocation2 + $0x58] sm:$0xf] %vm298, 0
        %323 = vst.msk [vmem:[#allocation2 + $0x5c] sm:$0x1] %vm301, 0
        %324 = vst.msk [vmem:[#allocation2 + $0x60] sm:$0xf] %vm298, 0
        %325 = vst.msk [vmem:[#allocation2 + $0x64] sm:$0xf] %vm298, 0
        %326 = vst.msk [vmem:[#allocation2 + $0x68] sm:$0x1] %vm301, 0
        %327 = vst.msk [vmem:[#allocation2 + $0x6c] sm:$0xf] %vm298, 0
        %328 = vst.msk [vmem:[#allocation2 + $0x70] sm:$0xf] %vm298, 0
        %329 = vst.msk [vmem:[#allocation2 + $0x74] sm:$0x1] %vm301, 0
        %330 = vst.msk [vmem:[#allocation2 + $0x78] sm:$0xf] %vm298, 0
        %331 = vst.msk [vmem:[#allocation2 + $0x7c] sm:$0xf] %vm298, 0
        %332 = vst.msk [vmem:[#allocation2 + $0x80] sm:$0x1] %vm301, 0
        %333 = vst.msk [vmem:[#allocation2 + $0x84] sm:$0xf] %vm298, 0
        %334 = vst.msk [vmem:[#allocation2 + $0x88] sm:$0xf] %vm298, 0
        %335 = vst.msk [vmem:[#allocation2 + $0x8c] sm:$0x1] %vm301, 0
        %336 = vst.msk [vmem:[#allocation2 + $0x90] sm:$0xf] %vm298, 0
        %337 = vst.msk [vmem:[#allocation2 + $0x94] sm:$0xf] %vm298, 0
        %338 = vst.msk [vmem:[#allocation2 + $0x98] sm:$0x1] %vm301, 0
        %339 = vst.msk [vmem:[#allocation2 + $0x9c] sm:$0xf] %vm298, 0
        %340 = vst.msk [vmem:[#allocation2 + $0xa0] sm:$0xf] %vm298, 0
        %341 = vst.msk [vmem:[#allocation2 + $0xa4] sm:$0x1] %vm301, 0
        %342 = vst.msk [vmem:[#allocation2 + $0xa8] sm:$0xf] %vm298, 0
        %343 = vst.msk [vmem:[#allocation2 + $0xac] sm:$0xf] %vm298, 0
        %344 = vst.msk [vmem:[#allocation2 + $0xb0] sm:$0x1] %vm301, 0
        %345 = vst.msk [vmem:[#allocation2 + $0xb4] sm:$0xf] %vm298, 0
        %346 = vst.msk [vmem:[#allocation2 + $0xb8] sm:$0xf] %vm298, 0
        %347 = vst.msk [vmem:[#allocation2 + $0xbc] sm:$0x1] %vm301, 0
        %348 = vst.msk [vmem:[#allocation2 + $0xc0] sm:$0xf] %vm298, 0
        %349 = vst.msk [vmem:[#allocation2 + $0xc4] sm:$0xf] %vm298, 0
        %350 = vst.msk [vmem:[#allocation2 + $0xc8] sm:$0x1] %vm301, 0
        %351 = vst.msk [vmem:[#allocation2 + $0xcc] sm:$0xf] %vm298, 0
        %352 = vst.msk [vmem:[#allocation2 + $0xd0] sm:$0xf] %vm298, 0
        %353 = vst.msk [vmem:[#allocation2 + $0xd4] sm:$0x1] %vm301, 0
        %354 = vst [vmem:[#allocation3] sm:$0xf] 0
        %355 = vst [vmem:[#allocation3 + $0x4] sm:$0xf] 0
        %356 = vst [vmem:[#allocation3 + $0x8] sm:$0x1] 0
        %357 = vst [vmem:[#allocation3 + $0xc] sm:$0xf] 0
        %358 = vst [vmem:[#allocation3 + $0x10] sm:$0xf] 0
        %359 = vst [vmem:[#allocation3 + $0x14] sm:$0x1] 0
        %360 = vst [vmem:[#allocation3 + $0x18] sm:$0xf] 0
        %361 = vst [vmem:[#allocation3 + $0x1c] sm:$0xf] 0
        %362 = vst [vmem:[#allocation3 + $0x20] sm:$0x1] 0
        %363 = vst [vmem:[#allocation3 + $0x24] sm:$0xf] 0
        %364 = vst [vmem:[#allocation3 + $0x28] sm:$0xf] 0
        %365 = vst [vmem:[#allocation3 + $0x2c] sm:$0x1] 0
        %366 = vst [vmem:[#allocation3 + $0x30] sm:$0xf] 0
        %367 = vst [vmem:[#allocation3 + $0x34] sm:$0xf] 0
        %368 = vst [vmem:[#allocation3 + $0x38] sm:$0x1] 0
        %369 = vst [vmem:[#allocation3 + $0x3c] sm:$0xf] 0
        %370 = vst [vmem:[#allocation3 + $0x40] sm:$0xf] 0
        %371 = vst [vmem:[#allocation3 + $0x44] sm:$0x1] 0
        %372 = vst [vmem:[#allocation3 + $0x48] sm:$0xf] 0
        %373 = vst [vmem:[#allocation3 + $0x4c] sm:$0xf] 0
        %374 = vst [vmem:[#allocation3 + $0x50] sm:$0x1] 0
        %375 = vst [vmem:[#allocation3 + $0x54] sm:$0xf] 0
        %376 = vst [vmem:[#allocation3 + $0x58] sm:$0xf] 0
        %377 = vst [vmem:[#allocation3 + $0x5c] sm:$0x1] 0
        %378 = vst [vmem:[#allocation3 + $0x60] sm:$0xf] 0
        %379 = vst [vmem:[#allocation3 + $0x64] sm:$0xf] 0
        %380 = vst [vmem:[#allocation3 + $0x68] sm:$0x1] 0
        %381 = vst [vmem:[#allocation3 + $0x6c] sm:$0xf] 0
        %382 = vst [vmem:[#allocation3 + $0x70] sm:$0xf] 0
        %383 = vst [vmem:[#allocation3 + $0x74] sm:$0x1] 0
        %384 = vst [vmem:[#allocation3 + $0x78] sm:$0xf] 0
        %385 = vst [vmem:[#allocation3 + $0x7c] sm:$0xf] 0
        %386 = vst [vmem:[#allocation3 + $0x80] sm:$0x1] 0
        %387 = vst [vmem:[#allocation3 + $0x84] sm:$0xf] 0
        %388 = vst [vmem:[#allocation3 + $0x88] sm:$0xf] 0
        %389 = vst [vmem:[#allocation3 + $0x8c] sm:$0x1] 0
        %390 = vst [vmem:[#allocation3 + $0x90] sm:$0xf] 0
        %391 = vst [vmem:[#allocation3 + $0x94] sm:$0xf] 0
        %392 = vst [vmem:[#allocation3 + $0x98] sm:$0x1] 0
        %393 = vst [vmem:[#allocation3 + $0x9c] sm:$0xf] 0
        %394 = vst [vmem:[#allocation3 + $0xa0] sm:$0xf] 0
        %395 = vst [vmem:[#allocation3 + $0xa4] sm:$0x1] 0
        %396 = vst [vmem:[#allocation3 + $0xa8] sm:$0xf] 0
        %397 = vst [vmem:[#allocation3 + $0xac] sm:$0xf] 0
        %398 = vst [vmem:[#allocation3 + $0xb0] sm:$0x1] 0
        %399 = vst [vmem:[#allocation3 + $0xb4] sm:$0xf] 0
        %400 = vst [vmem:[#allocation3 + $0xb8] sm:$0xf] 0
        %401 = vst [vmem:[#allocation3 + $0xbc] sm:$0x1] 0
        %402 = vst [vmem:[#allocation3 + $0xc0] sm:$0xf] 0
        %403 = vst [vmem:[#allocation3 + $0xc4] sm:$0xf] 0
        %404 = vst [vmem:[#allocation3 + $0xc8] sm:$0x1] 0
        %405 = vst [vmem:[#allocation3 + $0xcc] sm:$0xf] 0
        %406 = vst [vmem:[#allocation3 + $0xd0] sm:$0xf] 0
        %407 = vst [vmem:[#allocation3 + $0xd4] sm:$0x1] 0
        %v408 = vld [vmem:[%s254] sm:$0xf]
        %v409 = vld [vmem:[%s254 + $0x4] sm:$0xf]
        %v410 = vld [vmem:[%s254 + $0x8] sm:$0xf]
        %v411 = vld [vmem:[%s254 + $0xc] sm:$0xf]
        %v412 = vld [vmem:[%s254 + $0x10] sm:$0xf]
        %v413 = vld [vmem:[%s254 + $0x14] sm:$0xf]
        %v414 = vld [vmem:[%s254 + $0x18] sm:$0xf]
        %v415 = vld [vmem:[%s254 + $0x1c] sm:$0xf]
        %v416 = vld [vmem:[%s254 + $0x20] sm:$0xf]
        %v417 = vld [vmem:[%s254 + $0x24] sm:$0xf]
        %v418 = vld [vmem:[%s254 + $0x28] sm:$0xf]
        %v419 = vld [vmem:[%s254 + $0x2c] sm:$0xf]
        %v420 = vld [vmem:[%s254 + $0x30] sm:$0xf]
        %v421 = vld [vmem:[%s254 + $0x34] sm:$0xf]
        %v422 = vld [vmem:[%s254 + $0x38] sm:$0xf]
        %v423 = vld [vmem:[%s254 + $0x3c] sm:$0xf]
        %v424 = vld [vmem:[%s254 + $0x40] sm:$0xf]
        %v425 = vld [vmem:[%s254 + $0x44] sm:$0xf]
        %v426 = vld [vmem:[%s254 + $0x48] sm:$0xf]
        %v427 = vld [vmem:[%s254 + $0x4c] sm:$0xf]
        %v428 = vld [vmem:[%s254 + $0x50] sm:$0xf]
        %v429 = vld [vmem:[%s254 + $0x54] sm:$0xf]
        %v430 = vld [vmem:[%s254 + $0x58] sm:$0xf]
        %v431 = vld [vmem:[%s254 + $0x5c] sm:$0xf]
        %v432 = vld [vmem:[%s254 + $0x60] sm:$0xf]
        %v433 = vld [vmem:[%s254 + $0x64] sm:$0xf]
        %v434 = vld [vmem:[%s254 + $0x68] sm:$0xf]
        %v435 = vld [vmem:[%s254 + $0x6c] sm:$0xf]
        %v436 = vld [vmem:[%s254 + $0x70] sm:$0xf]
        %v437 = vld [vmem:[%s254 + $0x74] sm:$0xf]
        %v438 = vld [vmem:[%s254 + $0x78] sm:$0xf]
        %v439 = vld [vmem:[%s254 + $0x7c] sm:$0xf]
        %vm440 = vsmask.f32 256
        %vm441 = vsmask.f32 4368
        %vm442 = vmor %vm440, %vm441
        %v444 = vshrl.u32 %v408, 16
        %v446 = vrot.slane %v444, 7
        %v447 = vshll.u32 %v408, 16
        %v449 = vor.u32 %v446, %v447
        %v450 = vrot.slane %v446, 4
        %v452 = vshrl.u32 %v409, 16
        %v454 = vrot.slane %v452, 7
        %v455 = vshll.u32 %v409, 16
        %v457 = vor.u32 %v454, %v455
        %v458 = vsel %vm442, %v450, %v457
        %v459 = vrot.slane %v454, 4
        %v461 = vshrl.u32 %v410, 16
        %v463 = vrot.slane %v461, 7
        %v464 = vshll.u32 %v410, 16
        %v466 = vor.u32 %v463, %v464
        %v467 = vrot.slane %v463, 4
        %v469 = vshrl.u32 %v411, 16
        %v471 = vrot.slane %v469, 7
        %v472 = vshll.u32 %v411, 16
        %v474 = vor.u32 %v471, %v472
        %v475 = vsel %vm442, %v467, %v474
        %v476 = vrot.slane %v471, 4
        %v478 = vshrl.u32 %v412, 16
        %v480 = vrot.slane %v478, 7
        %v481 = vshll.u32 %v412, 16
        %v483 = vor.u32 %v480, %v481
        %v484 = vrot.slane %v480, 4
        %v486 = vshrl.u32 %v413, 16
        %v488 = vrot.slane %v486, 7
        %v489 = vshll.u32 %v413, 16
        %v491 = vor.u32 %v488, %v489
        %v492 = vsel %vm442, %v484, %v491
        %v493 = vrot.slane %v488, 4
        %v495 = vshrl.u32 %v414, 16
        %v497 = vrot.slane %v495, 7
        %v498 = vshll.u32 %v414, 16
        %v500 = vor.u32 %v497, %v498
        %v501 = vrot.slane %v497, 4
        %v503 = vshrl.u32 %v415, 16
        %v505 = vrot.slane %v503, 7
        %v506 = vshll.u32 %v415, 16
        %v508 = vor.u32 %v505, %v506
        %v509 = vsel %vm442, %v501, %v508
        %v510 = vrot.slane %v505, 4
        %v512 = vshrl.u32 %v416, 16
        %v514 = vrot.slane %v512, 7
        %v515 = vshll.u32 %v416, 16
        %v517 = vor.u32 %v514, %v515
        %v518 = vrot.slane %v514, 4
        %v520 = vshrl.u32 %v417, 16
        %v522 = vrot.slane %v520, 7
        %v523 = vshll.u32 %v417, 16
        %v525 = vor.u32 %v522, %v523
        %v526 = vsel %vm442, %v518, %v525
        %v527 = vrot.slane %v522, 4
        %v529 = vshrl.u32 %v418, 16
        %v531 = vrot.slane %v529, 7
        %v532 = vshll.u32 %v418, 16
        %v534 = vor.u32 %v531, %v532
        %v535 = vrot.slane %v531, 4
        %v537 = vshrl.u32 %v419, 16
        %v539 = vrot.slane %v537, 7
        %v540 = vshll.u32 %v419, 16
        %v542 = vor.u32 %v539, %v540
        %v543 = vsel %vm442, %v535, %v542
        %v544 = vrot.slane %v539, 4
        %v546 = vshrl.u32 %v420, 16
        %v548 = vrot.slane %v546, 7
        %v549 = vshll.u32 %v420, 16
        %v551 = vor.u32 %v548, %v549
        %v552 = vrot.slane %v548, 4
        %v554 = vshrl.u32 %v421, 16
        %v556 = vrot.slane %v554, 7
        %v557 = vshll.u32 %v421, 16
        %v559 = vor.u32 %v556, %v557
        %v560 = vsel %vm442, %v552, %v559
        %v561 = vrot.slane %v556, 4
        %v563 = vshrl.u32 %v422, 16
        %v565 = vrot.slane %v563, 7
        %v566 = vshll.u32 %v422, 16
        %v568 = vor.u32 %v565, %v566
        %v569 = vrot.slane %v565, 4
        %v571 = vshrl.u32 %v423, 16
        %v573 = vrot.slane %v571, 7
        %v574 = vshll.u32 %v423, 16
        %v576 = vor.u32 %v573, %v574
        %v577 = vsel %vm442, %v569, %v576
        %v578 = vrot.slane %v573, 4
        %v580 = vshrl.u32 %v424, 16
        %v582 = vrot.slane %v580, 7
        %v583 = vshll.u32 %v424, 16
        %v585 = vor.u32 %v582, %v583
        %v586 = vrot.slane %v582, 4
        %v588 = vshrl.u32 %v425, 16
        %v590 = vrot.slane %v588, 7
        %v591 = vshll.u32 %v425, 16
        %v593 = vor.u32 %v590, %v591
        %v594 = vsel %vm442, %v586, %v593
        %v595 = vrot.slane %v590, 4
        %v597 = vshrl.u32 %v426, 16
        %v599 = vrot.slane %v597, 7
        %v600 = vshll.u32 %v426, 16
        %v602 = vor.u32 %v599, %v600
        %v603 = vrot.slane %v599, 4
        %v605 = vshrl.u32 %v427, 16
        %v607 = vrot.slane %v605, 7
        %v608 = vshll.u32 %v427, 16
        %v610 = vor.u32 %v607, %v608
        %v611 = vsel %vm442, %v603, %v610
        %v612 = vrot.slane %v607, 4
        %v614 = vshrl.u32 %v428, 16
        %v616 = vrot.slane %v614, 7
        %v617 = vshll.u32 %v428, 16
        %v619 = vor.u32 %v616, %v617
        %v620 = vrot.slane %v616, 4
        %v622 = vshrl.u32 %v429, 16
        %v624 = vrot.slane %v622, 7
        %v625 = vshll.u32 %v429, 16
        %v627 = vor.u32 %v624, %v625
        %v628 = vsel %vm442, %v620, %v627
        %v629 = vrot.slane %v624, 4
        %v631 = vshrl.u32 %v430, 16
        %v633 = vrot.slane %v631, 7
        %v634 = vshll.u32 %v430, 16
        %v636 = vor.u32 %v633, %v634
        %v637 = vrot.slane %v633, 4
        %v639 = vshrl.u32 %v431, 16
        %v641 = vrot.slane %v639, 7
        %v642 = vshll.u32 %v431, 16
        %v644 = vor.u32 %v641, %v642
        %v645 = vsel %vm442, %v637, %v644
        %v646 = vrot.slane %v641, 4
        %v648 = vshrl.u32 %v432, 16
        %v650 = vrot.slane %v648, 7
        %v651 = vshll.u32 %v432, 16
        %v653 = vor.u32 %v650, %v651
        %v654 = vrot.slane %v650, 4
        %v656 = vshrl.u32 %v433, 16
        %v658 = vrot.slane %v656, 7
        %v659 = vshll.u32 %v433, 16
        %v661 = vor.u32 %v658, %v659
        %v662 = vsel %vm442, %v654, %v661
        %v663 = vrot.slane %v658, 4
        %v665 = vshrl.u32 %v434, 16
        %v667 = vrot.slane %v665, 7
        %v668 = vshll.u32 %v434, 16
        %v670 = vor.u32 %v667, %v668
        %v671 = vrot.slane %v667, 4
        %v673 = vshrl.u32 %v435, 16
        %v675 = vrot.slane %v673, 7
        %v676 = vshll.u32 %v435, 16
        %v678 = vor.u32 %v675, %v676
        %v679 = vsel %vm442, %v671, %v678
        %v680 = vrot.slane %v675, 4
        %v682 = vshrl.u32 %v436, 16
        %v684 = vrot.slane %v682, 7
        %v685 = vshll.u32 %v436, 16
        %v687 = vor.u32 %v684, %v685
        %v688 = vrot.slane %v684, 4
        %v690 = vshrl.u32 %v437, 16
        %v692 = vrot.slane %v690, 7
        %v693 = vshll.u32 %v437, 16
        %v695 = vor.u32 %v692, %v693
        %v696 = vsel %vm442, %v688, %v695
        %v697 = vrot.slane %v692, 4
        %v699 = vshrl.u32 %v438, 16
        %v701 = vrot.slane %v699, 7
        %v702 = vshll.u32 %v438, 16
        %v704 = vor.u32 %v701, %v702
        %v705 = vrot.slane %v701, 4
        %v707 = vshrl.u32 %v439, 16
        %v709 = vrot.slane %v707, 7
        %v710 = vshll.u32 %v439, 16
        %v712 = vor.u32 %v709, %v710
        %v713 = vsel %vm442, %v705, %v712
        %v714 = vrot.slane %v709, 4
        %s763 = scalar_lea.vmem [#allocation2], 12
        %vm764 = vcmask 27648
        %vm765 = vsmask.f32 7938
        %vm766 = vmand %vm764, %vm765
        %v767 = vld [vmem:[%s763] sm:$0xf]
        %v768 = vsel %vm766, %v449, %v767
        %769 = vst [vmem:[%s763] sm:$0xf] %v768
        %770 = vst.msk [vmem:[%s763 + $0x4] sm:$0xf] %vm298, %v458
        %vm771 = vcmask 24576
        %vm772 = vmand %vm771, %vm440
        %v773 = vld [vmem:[%s763 + $0x8] sm:$0x1]
        %v774 = vsel %vm772, %v459, %v773
        %775 = vst [vmem:[%s763 + $0x8] sm:$0x1] %v774
        %v776 = vld [vmem:[%s763 + $0xc] sm:$0xf]
        %v777 = vsel %vm766, %v466, %v776
        %778 = vst [vmem:[%s763 + $0xc] sm:$0xf] %v777
        %779 = vst.msk [vmem:[%s763 + $0x10] sm:$0xf] %vm298, %v475
        %v780 = vld [vmem:[%s763 + $0x14] sm:$0x1]
        %v781 = vsel %vm772, %v476, %v780
        %782 = vst [vmem:[%s763 + $0x14] sm:$0x1] %v781
        %v783 = vld [vmem:[%s763 + $0x18] sm:$0xf]
        %v784 = vsel %vm766, %v483, %v783
        %785 = vst [vmem:[%s763 + $0x18] sm:$0xf] %v784
        %786 = vst.msk [vmem:[%s763 + $0x1c] sm:$0xf] %vm298, %v492
        %v787 = vld [vmem:[%s763 + $0x20] sm:$0x1]
        %v788 = vsel %vm772, %v493, %v787
        %789 = vst [vmem:[%s763 + $0x20] sm:$0x1] %v788
        %v790 = vld [vmem:[%s763 + $0x24] sm:$0xf]
        %v791 = vsel %vm766, %v500, %v790
        %792 = vst [vmem:[%s763 + $0x24] sm:$0xf] %v791
        %793 = vst.msk [vmem:[%s763 + $0x28] sm:$0xf] %vm298, %v509
        %v794 = vld [vmem:[%s763 + $0x2c] sm:$0x1]
        %v795 = vsel %vm772, %v510, %v794
        %796 = vst [vmem:[%s763 + $0x2c] sm:$0x1] %v795
        %v797 = vld [vmem:[%s763 + $0x30] sm:$0xf]
        %v798 = vsel %vm766, %v517, %v797
        %799 = vst [vmem:[%s763 + $0x30] sm:$0xf] %v798
        %800 = vst.msk [vmem:[%s763 + $0x34] sm:$0xf] %vm298, %v526
        %v801 = vld [vmem:[%s763 + $0x38] sm:$0x1]
        %v802 = vsel %vm772, %v527, %v801
        %803 = vst [vmem:[%s763 + $0x38] sm:$0x1] %v802
        %v804 = vld [vmem:[%s763 + $0x3c] sm:$0xf]
        %v805 = vsel %vm766, %v534, %v804
        %806 = vst [vmem:[%s763 + $0x3c] sm:$0xf] %v805
        %807 = vst.msk [vmem:[%s763 + $0x40] sm:$0xf] %vm298, %v543
        %v808 = vld [vmem:[%s763 + $0x44] sm:$0x1]
        %v809 = vsel %vm772, %v544, %v808
        %810 = vst [vmem:[%s763 + $0x44] sm:$0x1] %v809
        %v811 = vld [vmem:[%s763 + $0x48] sm:$0xf]
        %v812 = vsel %vm766, %v551, %v811
        %813 = vst [vmem:[%s763 + $0x48] sm:$0xf] %v812
        %814 = vst.msk [vmem:[%s763 + $0x4c] sm:$0xf] %vm298, %v560
        %v815 = vld [vmem:[%s763 + $0x50] sm:$0x1]
        %v816 = vsel %vm772, %v561, %v815
        %817 = vst [vmem:[%s763 + $0x50] sm:$0x1] %v816
        %v818 = vld [vmem:[%s763 + $0x54] sm:$0xf]
        %v819 = vsel %vm766, %v568, %v818
        %820 = vst [vmem:[%s763 + $0x54] sm:$0xf] %v819
        %821 = vst.msk [vmem:[%s763 + $0x58] sm:$0xf] %vm298, %v577
        %v822 = vld [vmem:[%s763 + $0x5c] sm:$0x1]
        %v823 = vsel %vm772, %v578, %v822
        %824 = vst [vmem:[%s763 + $0x5c] sm:$0x1] %v823
        %v825 = vld [vmem:[%s763 + $0x60] sm:$0xf]
        %v826 = vsel %vm766, %v585, %v825
        %827 = vst [vmem:[%s763 + $0x60] sm:$0xf] %v826
        %828 = vst.msk [vmem:[%s763 + $0x64] sm:$0xf] %vm298, %v594
        %v829 = vld [vmem:[%s763 + $0x68] sm:$0x1]
        %v830 = vsel %vm772, %v595, %v829
        %831 = vst [vmem:[%s763 + $0x68] sm:$0x1] %v830
        %v832 = vld [vmem:[%s763 + $0x6c] sm:$0xf]
        %v833 = vsel %vm766, %v602, %v832
        %834 = vst [vmem:[%s763 + $0x6c] sm:$0xf] %v833
        %835 = vst.msk [vmem:[%s763 + $0x70] sm:$0xf] %vm298, %v611
        %v836 = vld [vmem:[%s763 + $0x74] sm:$0x1]
        %v837 = vsel %vm772, %v612, %v836
        %838 = vst [vmem:[%s763 + $0x74] sm:$0x1] %v837
        %v839 = vld [vmem:[%s763 + $0x78] sm:$0xf]
        %v840 = vsel %vm766, %v619, %v839
        %841 = vst [vmem:[%s763 + $0x78] sm:$0xf] %v840
        %842 = vst.msk [vmem:[%s763 + $0x7c] sm:$0xf] %vm298, %v628
        %v843 = vld [vmem:[%s763 + $0x80] sm:$0x1]
        %v844 = vsel %vm772, %v629, %v843
        %845 = vst [vmem:[%s763 + $0x80] sm:$0x1] %v844
        %v846 = vld [vmem:[%s763 + $0x84] sm:$0xf]
        %v847 = vsel %vm766, %v636, %v846
        %848 = vst [vmem:[%s763 + $0x84] sm:$0xf] %v847
        %849 = vst.msk [vmem:[%s763 + $0x88] sm:$0xf] %vm298, %v645
        %v850 = vld [vmem:[%s763 + $0x8c] sm:$0x1]
        %v851 = vsel %vm772, %v646, %v850
        %852 = vst [vmem:[%s763 + $0x8c] sm:$0x1] %v851
        %v853 = vld [vmem:[%s763 + $0x90] sm:$0xf]
        %v854 = vsel %vm766, %v653, %v853
        %855 = vst [vmem:[%s763 + $0x90] sm:$0xf] %v854
        %856 = vst.msk [vmem:[%s763 + $0x94] sm:$0xf] %vm298, %v662
        %v857 = vld [vmem:[%s763 + $0x98] sm:$0x1]
        %v858 = vsel %vm772, %v663, %v857
        %859 = vst [vmem:[%s763 + $0x98] sm:$0x1] %v858
        %v860 = vld [vmem:[%s763 + $0x9c] sm:$0xf]
        %v861 = vsel %vm766, %v670, %v860
        %862 = vst [vmem:[%s763 + $0x9c] sm:$0xf] %v861
        %863 = vst.msk [vmem:[%s763 + $0xa0] sm:$0xf] %vm298, %v679
        %v864 = vld [vmem:[%s763 + $0xa4] sm:$0x1]
        %v865 = vsel %vm772, %v680, %v864
        %866 = vst [vmem:[%s763 + $0xa4] sm:$0x1] %v865
        %v867 = vld [vmem:[%s763 + $0xa8] sm:$0xf]
        %v868 = vsel %vm766, %v687, %v867
        %869 = vst [vmem:[%s763 + $0xa8] sm:$0xf] %v868
        %870 = vst.msk [vmem:[%s763 + $0xac] sm:$0xf] %vm298, %v696
        %v871 = vld [vmem:[%s763 + $0xb0] sm:$0x1]
        %v872 = vsel %vm772, %v697, %v871
        %873 = vst [vmem:[%s763 + $0xb0] sm:$0x1] %v872
        %v874 = vld [vmem:[%s763 + $0xb4] sm:$0xf]
        %v875 = vsel %vm766, %v704, %v874
        %876 = vst [vmem:[%s763 + $0xb4] sm:$0xf] %v875
        %877 = vst.msk [vmem:[%s763 + $0xb8] sm:$0xf] %vm298, %v713
        %v878 = vld [vmem:[%s763 + $0xbc] sm:$0x1]
        %v879 = vsel %vm772, %v714, %v878
        %880 = vst [vmem:[%s763 + $0xbc] sm:$0x1] %v879
        %v881 = vld [vmem:[#allocation2] sm:$0xf]
        %v882 = vld [vmem:[#allocation2 + $0x4] sm:$0xf]
        %v883 = vld [vmem:[#allocation2 + $0xc] sm:$0xf]
        %v884 = vld [vmem:[#allocation2 + $0x10] sm:$0xf]
        %v885 = vld [vmem:[#allocation2 + $0x18] sm:$0xf]
        %v886 = vld [vmem:[#allocation2 + $0x1c] sm:$0xf]
        %v887 = vld [vmem:[#allocation2 + $0x24] sm:$0xf]
        %v888 = vld [vmem:[#allocation2 + $0x28] sm:$0xf]
        %v889 = vld [vmem:[#allocation2 + $0x30] sm:$0xf]
        %v890 = vld [vmem:[#allocation2 + $0x34] sm:$0xf]
        %v891 = vld [vmem:[#allocation2 + $0x3c] sm:$0xf]
        %v892 = vld [vmem:[#allocation2 + $0x40] sm:$0xf]
        %v893 = vld [vmem:[#allocation2 + $0x48] sm:$0xf]
        %v894 = vld [vmem:[#allocation2 + $0x4c] sm:$0xf]
        %v895 = vld [vmem:[#allocation2 + $0x54] sm:$0xf]
        %v896 = vld [vmem:[#allocation2 + $0x58] sm:$0xf]
        %v897 = vld [vmem:[#allocation2 + $0x60] sm:$0xf]
        %v898 = vld [vmem:[#allocation2 + $0x64] sm:$0xf]
        %v899 = vld [vmem:[#allocation2 + $0x6c] sm:$0xf]
        %v900 = vld [vmem:[#allocation2 + $0x70] sm:$0xf]
        %v901 = vld [vmem:[#allocation2 + $0x78] sm:$0xf]
        %v902 = vld [vmem:[#allocation2 + $0x7c] sm:$0xf]
        %v903 = vld [vmem:[#allocation2 + $0x84] sm:$0xf]
        %v904 = vld [vmem:[#allocation2 + $0x88] sm:$0xf]
        %v905 = vld [vmem:[#allocation2 + $0x90] sm:$0xf]
        %v906 = vld [vmem:[#allocation2 + $0x94] sm:$0xf]
        %v907 = vld [vmem:[#allocation2 + $0x9c] sm:$0xf]
        %v908 = vld [vmem:[#allocation2 + $0xa0] sm:$0xf]
        %v909 = vld [vmem:[#allocation2 + $0xa8] sm:$0xf]
        %v910 = vld [vmem:[#allocation2 + $0xac] sm:$0xf]
        %v911 = vld [vmem:[#allocation2 + $0xb4] sm:$0xf]
        %v912 = vld [vmem:[#allocation2 + $0xb8] sm:$0xf]
        %v913 = vld [vmem:[#allocation2 + $0x8] sm:$0x1]
        %v914 = vld [vmem:[#allocation2 + $0x14] sm:$0x1]
        %v915 = vld [vmem:[#allocation2 + $0x20] sm:$0x1]
        %v916 = vld [vmem:[#allocation2 + $0x2c] sm:$0x1]
        %v917 = vld [vmem:[#allocation2 + $0x38] sm:$0x1]
        %v918 = vld [vmem:[#allocation2 + $0x44] sm:$0x1]
        %v919 = vld [vmem:[#allocation2 + $0x50] sm:$0x1]
        %v920 = vld [vmem:[#allocation2 + $0x5c] sm:$0x1]
        %v921 = vld [vmem:[#allocation2 + $0x68] sm:$0x1]
        %v922 = vld [vmem:[#allocation2 + $0x74] sm:$0x1]
        %v923 = vld [vmem:[#allocation2 + $0x80] sm:$0x1]
        %v924 = vld [vmem:[#allocation2 + $0x8c] sm:$0x1]
        %v925 = vld [vmem:[#allocation2 + $0x98] sm:$0x1]
        %v926 = vld [vmem:[#allocation2 + $0xa4] sm:$0x1]
        %v927 = vld [vmem:[#allocation2 + $0xb0] sm:$0x1]
        %v928 = vld [vmem:[#allocation2 + $0xbc] sm:$0x1]
        %vm929 = vsmask.f32 3328
        %vm930 = vsmask.f32 7440
        %vm931 = vmor %vm929, %vm930
        %v933 = vshrl.u32 %v881, 16
        %v935 = vrot.slane %v933, 4
        %v936 = vshll.u32 %v881, 16
        %v938 = vrot.slane %v936, 5
        %v939 = vor.u32 %v935, %v938
        %v940 = vrot.slane %v939, 4
        %v942 = vshll.u32 %v882, 16
        %v944 = vrot.slane %v942, 5
        %v945 = vsel %vm931, %v940, %v944
        %v946 = vshrl.u32 %v882, 16
        %v948 = vrot.slane %v946, 4
        %v949 = vor.u32 %v948, %v944
        %v950 = vrot.slane %v949, 4
        %v952 = vshll.u32 %v913, 16
        %v954 = vrot.slane %v952, 5
        %v955 = vsel %vm931, %v950, %v954
        %v957 = vshrl.u32 %v883, 16
        %v959 = vrot.slane %v957, 4
        %v960 = vshll.u32 %v883, 16
        %v962 = vrot.slane %v960, 5
        %v963 = vor.u32 %v959, %v962
        %v964 = vrot.slane %v963, 4
        %v966 = vshll.u32 %v884, 16
        %v968 = vrot.slane %v966, 5
        %v969 = vsel %vm931, %v964, %v968
        %v970 = vshrl.u32 %v884, 16
        %v972 = vrot.slane %v970, 4
        %v973 = vor.u32 %v972, %v968
        %v974 = vrot.slane %v973, 4
        %v976 = vshll.u32 %v914, 16
        %v978 = vrot.slane %v976, 5
        %v979 = vsel %vm931, %v974, %v978
        %v981 = vshrl.u32 %v885, 16
        %v983 = vrot.slane %v981, 4
        %v984 = vshll.u32 %v885, 16
        %v986 = vrot.slane %v984, 5
        %v987 = vor.u32 %v983, %v986
        %v988 = vrot.slane %v987, 4
        %v990 = vshll.u32 %v886, 16
        %v992 = vrot.slane %v990, 5
        %v993 = vsel %vm931, %v988, %v992
        %v994 = vshrl.u32 %v886, 16
        %v996 = vrot.slane %v994, 4
        %v997 = vor.u32 %v996, %v992
        %v998 = vrot.slane %v997, 4
        %v1000 = vshll.u32 %v915, 16
        %v1002 = vrot.slane %v1000, 5
        %v1003 = vsel %vm931, %v998, %v1002
        %v1005 = vshrl.u32 %v887, 16
        %v1007 = vrot.slane %v1005, 4
        %v1008 = vshll.u32 %v887, 16
        %v1010 = vrot.slane %v1008, 5
        %v1011 = vor.u32 %v1007, %v1010
        %v1012 = vrot.slane %v1011, 4
        %v1014 = vshll.u32 %v888, 16
        %v1016 = vrot.slane %v1014, 5
        %v1017 = vsel %vm931, %v1012, %v1016
        %v1018 = vshrl.u32 %v888, 16
        %v1020 = vrot.slane %v1018, 4
        %v1021 = vor.u32 %v1020, %v1016
        %v1022 = vrot.slane %v1021, 4
        %v1024 = vshll.u32 %v916, 16
        %v1026 = vrot.slane %v1024, 5
        %v1027 = vsel %vm931, %v1022, %v1026
        %v1029 = vshrl.u32 %v889, 16
        %v1031 = vrot.slane %v1029, 4
        %v1032 = vshll.u32 %v889, 16
        %v1034 = vrot.slane %v1032, 5
        %v1035 = vor.u32 %v1031, %v1034
        %v1036 = vrot.slane %v1035, 4
        %v1038 = vshll.u32 %v890, 16
        %v1040 = vrot.slane %v1038, 5
        %v1041 = vsel %vm931, %v1036, %v1040
        %v1042 = vshrl.u32 %v890, 16
        %v1044 = vrot.slane %v1042, 4
        %v1045 = vor.u32 %v1044, %v1040
        %v1046 = vrot.slane %v1045, 4
        %v1048 = vshll.u32 %v917, 16
        %v1050 = vrot.slane %v1048, 5
        %v1051 = vsel %vm931, %v1046, %v1050
        %v1053 = vshrl.u32 %v891, 16
        %v1055 = vrot.slane %v1053, 4
        %v1056 = vshll.u32 %v891, 16
        %v1058 = vrot.slane %v1056, 5
        %v1059 = vor.u32 %v1055, %v1058
        %v1060 = vrot.slane %v1059, 4
        %v1062 = vshll.u32 %v892, 16
        %v1064 = vrot.slane %v1062, 5
        %v1065 = vsel %vm931, %v1060, %v1064
        %v1066 = vshrl.u32 %v892, 16
        %v1068 = vrot.slane %v1066, 4
        %v1069 = vor.u32 %v1068, %v1064
        %v1070 = vrot.slane %v1069, 4
        %v1072 = vshll.u32 %v918, 16
        %v1074 = vrot.slane %v1072, 5
        %v1075 = vsel %vm931, %v1070, %v1074
        %v1077 = vshrl.u32 %v893, 16
        %v1079 = vrot.slane %v1077, 4
        %v1080 = vshll.u32 %v893, 16
        %v1082 = vrot.slane %v1080, 5
        %v1083 = vor.u32 %v1079, %v1082
        %v1084 = vrot.slane %v1083, 4
        %v1086 = vshll.u32 %v894, 16
        %v1088 = vrot.slane %v1086, 5
        %v1089 = vsel %vm931, %v1084, %v1088
        %v1090 = vshrl.u32 %v894, 16
        %v1092 = vrot.slane %v1090, 4
        %v1093 = vor.u32 %v1092, %v1088
        %v1094 = vrot.slane %v1093, 4
        %v1096 = vshll.u32 %v919, 16
        %v1098 = vrot.slane %v1096, 5
        %v1099 = vsel %vm931, %v1094, %v1098
        %v1101 = vshrl.u32 %v895, 16
        %v1103 = vrot.slane %v1101, 4
        %v1104 = vshll.u32 %v895, 16
        %v1106 = vrot.slane %v1104, 5
        %v1107 = vor.u32 %v1103, %v1106
        %v1108 = vrot.slane %v1107, 4
        %v1110 = vshll.u32 %v896, 16
        %v1112 = vrot.slane %v1110, 5
        %v1113 = vsel %vm931, %v1108, %v1112
        %v1114 = vshrl.u32 %v896, 16
        %v1116 = vrot.slane %v1114, 4
        %v1117 = vor.u32 %v1116, %v1112
        %v1118 = vrot.slane %v1117, 4
        %v1120 = vshll.u32 %v920, 16
        %v1122 = vrot.slane %v1120, 5
        %v1123 = vsel %vm931, %v1118, %v1122
        %v1125 = vshrl.u32 %v897, 16
        %v1127 = vrot.slane %v1125, 4
        %v1128 = vshll.u32 %v897, 16
        %v1130 = vrot.slane %v1128, 5
        %v1131 = vor.u32 %v1127, %v1130
        %v1132 = vrot.slane %v1131, 4
        %v1134 = vshll.u32 %v898, 16
        %v1136 = vrot.slane %v1134, 5
        %v1137 = vsel %vm931, %v1132, %v1136
        %v1138 = vshrl.u32 %v898, 16
        %v1140 = vrot.slane %v1138, 4
        %v1141 = vor.u32 %v1140, %v1136
        %v1142 = vrot.slane %v1141, 4
        %v1144 = vshll.u32 %v921, 16
        %v1146 = vrot.slane %v1144, 5
        %v1147 = vsel %vm931, %v1142, %v1146
        %v1149 = vshrl.u32 %v899, 16
        %v1151 = vrot.slane %v1149, 4
        %v1152 = vshll.u32 %v899, 16
        %v1154 = vrot.slane %v1152, 5
        %v1155 = vor.u32 %v1151, %v1154
        %v1156 = vrot.slane %v1155, 4
        %v1158 = vshll.u32 %v900, 16
        %v1160 = vrot.slane %v1158, 5
        %v1161 = vsel %vm931, %v1156, %v1160
        %v1162 = vshrl.u32 %v900, 16
        %v1164 = vrot.slane %v1162, 4
        %v1165 = vor.u32 %v1164, %v1160
        %v1166 = vrot.slane %v1165, 4
        %v1168 = vshll.u32 %v922, 16
        %v1170 = vrot.slane %v1168, 5
        %v1171 = vsel %vm931, %v1166, %v1170
        %v1173 = vshrl.u32 %v901, 16
        %v1175 = vrot.slane %v1173, 4
        %v1176 = vshll.u32 %v901, 16
        %v1178 = vrot.slane %v1176, 5
        %v1179 = vor.u32 %v1175, %v1178
        %v1180 = vrot.slane %v1179, 4
        %v1182 = vshll.u32 %v902, 16
        %v1184 = vrot.slane %v1182, 5
        %v1185 = vsel %vm931, %v1180, %v1184
        %v1186 = vshrl.u32 %v902, 16
        %v1188 = vrot.slane %v1186, 4
        %v1189 = vor.u32 %v1188, %v1184
        %v1190 = vrot.slane %v1189, 4
        %v1192 = vshll.u32 %v923, 16
        %v1194 = vrot.slane %v1192, 5
        %v1195 = vsel %vm931, %v1190, %v1194
        %v1197 = vshrl.u32 %v903, 16
        %v1199 = vrot.slane %v1197, 4
        %v1200 = vshll.u32 %v903, 16
        %v1202 = vrot.slane %v1200, 5
        %v1203 = vor.u32 %v1199, %v1202
        %v1204 = vrot.slane %v1203, 4
        %v1206 = vshll.u32 %v904, 16
        %v1208 = vrot.slane %v1206, 5
        %v1209 = vsel %vm931, %v1204, %v1208
        %v1210 = vshrl.u32 %v904, 16
        %v1212 = vrot.slane %v1210, 4
        %v1213 = vor.u32 %v1212, %v1208
        %v1214 = vrot.slane %v1213, 4
        %v1216 = vshll.u32 %v924, 16
        %v1218 = vrot.slane %v1216, 5
        %v1219 = vsel %vm931, %v1214, %v1218
        %v1221 = vshrl.u32 %v905, 16
        %v1223 = vrot.slane %v1221, 4
        %v1224 = vshll.u32 %v905, 16
        %v1226 = vrot.slane %v1224, 5
        %v1227 = vor.u32 %v1223, %v1226
        %v1228 = vrot.slane %v1227, 4
        %v1230 = vshll.u32 %v906, 16
        %v1232 = vrot.slane %v1230, 5
        %v1233 = vsel %vm931, %v1228, %v1232
        %v1234 = vshrl.u32 %v906, 16
        %v1236 = vrot.slane %v1234, 4
        %v1237 = vor.u32 %v1236, %v1232
        %v1238 = vrot.slane %v1237, 4
        %v1240 = vshll.u32 %v925, 16
        %v1242 = vrot.slane %v1240, 5
        %v1243 = vsel %vm931, %v1238, %v1242
        %v1245 = vshrl.u32 %v907, 16
        %v1247 = vrot.slane %v1245, 4
        %v1248 = vshll.u32 %v907, 16
        %v1250 = vrot.slane %v1248, 5
        %v1251 = vor.u32 %v1247, %v1250
        %v1252 = vrot.slane %v1251, 4
        %v1254 = vshll.u32 %v908, 16
        %v1256 = vrot.slane %v1254, 5
        %v1257 = vsel %vm931, %v1252, %v1256
        %v1258 = vshrl.u32 %v908, 16
        %v1260 = vrot.slane %v1258, 4
        %v1261 = vor.u32 %v1260, %v1256
        %v1262 = vrot.slane %v1261, 4
        %v1264 = vshll.u32 %v926, 16
        %v1266 = vrot.slane %v1264, 5
        %v1267 = vsel %vm931, %v1262, %v1266
        %v1269 = vshrl.u32 %v909, 16
        %v1271 = vrot.slane %v1269, 4
        %v1272 = vshll.u32 %v909, 16
        %v1274 = vrot.slane %v1272, 5
        %v1275 = vor.u32 %v1271, %v1274
        %v1276 = vrot.slane %v1275, 4
        %v1278 = vshll.u32 %v910, 16
        %v1280 = vrot.slane %v1278, 5
        %v1281 = vsel %vm931, %v1276, %v1280
        %v1282 = vshrl.u32 %v910, 16
        %v1284 = vrot.slane %v1282, 4
        %v1285 = vor.u32 %v1284, %v1280
        %v1286 = vrot.slane %v1285, 4
        %v1288 = vshll.u32 %v927, 16
        %v1290 = vrot.slane %v1288, 5
        %v1291 = vsel %vm931, %v1286, %v1290
        %v1293 = vshrl.u32 %v911, 16
        %v1295 = vrot.slane %v1293, 4
        %v1296 = vshll.u32 %v911, 16
        %v1298 = vrot.slane %v1296, 5
        %v1299 = vor.u32 %v1295, %v1298
        %v1300 = vrot.slane %v1299, 4
        %v1302 = vshll.u32 %v912, 16
        %v1304 = vrot.slane %v1302, 5
        %v1305 = vsel %vm931, %v1300, %v1304
        %v1306 = vshrl.u32 %v912, 16
        %v1308 = vrot.slane %v1306, 4
        %v1309 = vor.u32 %v1308, %v1304
        %v1310 = vrot.slane %v1309, 4
        %v1312 = vshll.u32 %v928, 16
        %v1314 = vrot.slane %v1312, 5
        %v1315 = vsel %vm931, %v1310, %v1314
        %v1316 = vld [vmem:[#allocation2] sm:$0xe]
        %v1317 = vld [vmem:[#allocation2 + $0xc] sm:$0xe]
        %v1318 = vld [vmem:[#allocation2 + $0x18] sm:$0xe]
        %v1319 = vld [vmem:[#allocation2 + $0x24] sm:$0xe]
        %v1320 = vld [vmem:[#allocation2 + $0x30] sm:$0xe]
        %v1321 = vld [vmem:[#allocation2 + $0x3c] sm:$0xe]
        %v1322 = vld [vmem:[#allocation2 + $0x48] sm:$0xe]
        %v1323 = vld [vmem:[#allocation2 + $0x54] sm:$0xe]
        %v1324 = vld [vmem:[#allocation2 + $0x60] sm:$0xe]
        %v1325 = vld [vmem:[#allocation2 + $0x6c] sm:$0xe]
        %v1326 = vld [vmem:[#allocation2 + $0x78] sm:$0xe]
        %v1327 = vld [vmem:[#allocation2 + $0x84] sm:$0xe]
        %v1328 = vld [vmem:[#allocation2 + $0x90] sm:$0xe]
        %v1329 = vld [vmem:[#allocation2 + $0x9c] sm:$0xe]
        %v1330 = vld [vmem:[#allocation2 + $0xa8] sm:$0xe]
        %v1331 = vld [vmem:[#allocation2 + $0xb4] sm:$0xe]
        %vm1380 = vcmask 1042432
        %vm1381 = vcmask 1046532
        %vm1382 = vmor %vm1380, %vm1381
        %v1383 = vrot.slane %v1316, 5
        %v1384 = vrot.slane %v1383, 4
        %v1385 = vrot.slane %v882, 5
        %v1386 = vsel %vm1382, %v1384, %v1385
        %v1387 = vrot.slane %v1385, 4
        %v1388 = vrot.slane %v913, 5
        %v1389 = vsel %vm1382, %v1387, %v1388
        %v1390 = vrot.slane %v1317, 5
        %v1391 = vrot.slane %v1390, 4
        %v1392 = vrot.slane %v884, 5
        %v1393 = vsel %vm1382, %v1391, %v1392
        %v1394 = vrot.slane %v1392, 4
        %v1395 = vrot.slane %v914, 5
        %v1396 = vsel %vm1382, %v1394, %v1395
        %v1397 = vrot.slane %v1318, 5
        %v1398 = vrot.slane %v1397, 4
        %v1399 = vrot.slane %v886, 5
        %v1400 = vsel %vm1382, %v1398, %v1399
        %v1401 = vrot.slane %v1399, 4
        %v1402 = vrot.slane %v915, 5
        %v1403 = vsel %vm1382, %v1401, %v1402
        %v1404 = vrot.slane %v1319, 5
        %v1405 = vrot.slane %v1404, 4
        %v1406 = vrot.slane %v888, 5
        %v1407 = vsel %vm1382, %v1405, %v1406
        %v1408 = vrot.slane %v1406, 4
        %v1409 = vrot.slane %v916, 5
        %v1410 = vsel %vm1382, %v1408, %v1409
        %v1411 = vrot.slane %v1320, 5
        %v1412 = vrot.slane %v1411, 4
        %v1413 = vrot.slane %v890, 5
        %v1414 = vsel %vm1382, %v1412, %v1413
        %v1415 = vrot.slane %v1413, 4
        %v1416 = vrot.slane %v917, 5
        %v1417 = vsel %vm1382, %v1415, %v1416
        %v1418 = vrot.slane %v1321, 5
        %v1419 = vrot.slane %v1418, 4
        %v1420 = vrot.slane %v892, 5
        %v1421 = vsel %vm1382, %v1419, %v1420
        %v1422 = vrot.slane %v1420, 4
        %v1423 = vrot.slane %v918, 5
        %v1424 = vsel %vm1382, %v1422, %v1423
        %v1425 = vrot.slane %v1322, 5
        %v1426 = vrot.slane %v1425, 4
        %v1427 = vrot.slane %v894, 5
        %v1428 = vsel %vm1382, %v1426, %v1427
        %v1429 = vrot.slane %v1427, 4
        %v1430 = vrot.slane %v919, 5
        %v1431 = vsel %vm1382, %v1429, %v1430
        %v1432 = vrot.slane %v1323, 5
        %v1433 = vrot.slane %v1432, 4
        %v1434 = vrot.slane %v896, 5
        %v1435 = vsel %vm1382, %v1433, %v1434
        %v1436 = vrot.slane %v1434, 4
        %v1437 = vrot.slane %v920, 5
        %v1438 = vsel %vm1382, %v1436, %v1437
        %v1439 = vrot.slane %v1324, 5
        %v1440 = vrot.slane %v1439, 4
        %v1441 = vrot.slane %v898, 5
        %v1442 = vsel %vm1382, %v1440, %v1441
        %v1443 = vrot.slane %v1441, 4
        %v1444 = vrot.slane %v921, 5
        %v1445 = vsel %vm1382, %v1443, %v1444
        %v1446 = vrot.slane %v1325, 5
        %v1447 = vrot.slane %v1446, 4
        %v1448 = vrot.slane %v900, 5
        %v1449 = vsel %vm1382, %v1447, %v1448
        %v1450 = vrot.slane %v1448, 4
        %v1451 = vrot.slane %v922, 5
        %v1452 = vsel %vm1382, %v1450, %v1451
        %v1453 = vrot.slane %v1326, 5
        %v1454 = vrot.slane %v1453, 4
        %v1455 = vrot.slane %v902, 5
        %v1456 = vsel %vm1382, %v1454, %v1455
        %v1457 = vrot.slane %v1455, 4
        %v1458 = vrot.slane %v923, 5
        %v1459 = vsel %vm1382, %v1457, %v1458
        %v1460 = vrot.slane %v1327, 5
        %v1461 = vrot.slane %v1460, 4
        %v1462 = vrot.slane %v904, 5
        %v1463 = vsel %vm1382, %v1461, %v1462
        %v1464 = vrot.slane %v1462, 4
        %v1465 = vrot.slane %v924, 5
        %v1466 = vsel %vm1382, %v1464, %v1465
        %v1467 = vrot.slane %v1328, 5
        %v1468 = vrot.slane %v1467, 4
        %v1469 = vrot.slane %v906, 5
        %v1470 = vsel %vm1382, %v1468, %v1469
        %v1471 = vrot.slane %v1469, 4
        %v1472 = vrot.slane %v925, 5
        %v1473 = vsel %vm1382, %v1471, %v1472
        %v1474 = vrot.slane %v1329, 5
        %v1475 = vrot.slane %v1474, 4
        %v1476 = vrot.slane %v908, 5
        %v1477 = vsel %vm1382, %v1475, %v1476
        %v1478 = vrot.slane %v1476, 4
        %v1479 = vrot.slane %v926, 5
        %v1480 = vsel %vm1382, %v1478, %v1479
        %v1481 = vrot.slane %v1330, 5
        %v1482 = vrot.slane %v1481, 4
        %v1483 = vrot.slane %v910, 5
        %v1484 = vsel %vm1382, %v1482, %v1483
        %v1485 = vrot.slane %v1483, 4
        %v1486 = vrot.slane %v927, 5
        %v1487 = vsel %vm1382, %v1485, %v1486
        %v1488 = vrot.slane %v1331, 5
        %v1489 = vrot.slane %v1488, 4
        %v1490 = vrot.slane %v912, 5
        %v1491 = vsel %vm1382, %v1489, %v1490
        %v1492 = vrot.slane %v1490, 4
        %v1493 = vrot.slane %v928, 5
        %v1494 = vsel %vm1382, %v1492, %v1493
        %v1495 = vld [vmem:[%s763] sm:$0xf]
        %v1496 = vld [vmem:[%s763 + $0x4] sm:$0xf]
        %v1497 = vld [vmem:[%s763 + $0xc] sm:$0xf]
        %v1498 = vld [vmem:[%s763 + $0x10] sm:$0xf]
        %v1499 = vld [vmem:[%s763 + $0x18] sm:$0xf]
        %v1500 = vld [vmem:[%s763 + $0x1c] sm:$0xf]
        %v1501 = vld [vmem:[%s763 + $0x24] sm:$0xf]
        %v1502 = vld [vmem:[%s763 + $0x28] sm:$0xf]
        %v1503 = vld [vmem:[%s763 + $0x30] sm:$0xf]
        %v1504 = vld [vmem:[%s763 + $0x34] sm:$0xf]
        %v1505 = vld [vmem:[%s763 + $0x3c] sm:$0xf]
        %v1506 = vld [vmem:[%s763 + $0x40] sm:$0xf]
        %v1507 = vld [vmem:[%s763 + $0x48] sm:$0xf]
        %v1508 = vld [vmem:[%s763 + $0x4c] sm:$0xf]
        %v1509 = vld [vmem:[%s763 + $0x54] sm:$0xf]
        %v1510 = vld [vmem:[%s763 + $0x58] sm:$0xf]
        %v1511 = vld [vmem:[%s763 + $0x60] sm:$0xf]
        %v1512 = vld [vmem:[%s763 + $0x64] sm:$0xf]
        %v1513 = vld [vmem:[%s763 + $0x6c] sm:$0xf]
        %v1514 = vld [vmem:[%s763 + $0x70] sm:$0xf]
        %v1515 = vld [vmem:[%s763 + $0x78] sm:$0xf]
        %v1516 = vld [vmem:[%s763 + $0x7c] sm:$0xf]
        %v1517 = vld [vmem:[%s763 + $0x84] sm:$0xf]
        %v1518 = vld [vmem:[%s763 + $0x88] sm:$0xf]
        %v1519 = vld [vmem:[%s763 + $0x90] sm:$0xf]
        %v1520 = vld [vmem:[%s763 + $0x94] sm:$0xf]
        %v1521 = vld [vmem:[%s763 + $0x9c] sm:$0xf]
        %v1522 = vld [vmem:[%s763 + $0xa0] sm:$0xf]
        %v1523 = vld [vmem:[%s763 + $0xa8] sm:$0xf]
        %v1524 = vld [vmem:[%s763 + $0xac] sm:$0xf]
        %v1525 = vld [vmem:[%s763 + $0xb4] sm:$0xf]
        %v1526 = vld [vmem:[%s763 + $0xb8] sm:$0xf]
        %v1527 = vld [vmem:[%s763 + $0x8] sm:$0x1]
        %v1528 = vld [vmem:[%s763 + $0x14] sm:$0x1]
        %v1529 = vld [vmem:[%s763 + $0x20] sm:$0x1]
        %v1530 = vld [vmem:[%s763 + $0x2c] sm:$0x1]
        %v1531 = vld [vmem:[%s763 + $0x38] sm:$0x1]
        %v1532 = vld [vmem:[%s763 + $0x44] sm:$0x1]
        %v1533 = vld [vmem:[%s763 + $0x50] sm:$0x1]
        %v1534 = vld [vmem:[%s763 + $0x5c] sm:$0x1]
        %v1535 = vld [vmem:[%s763 + $0x68] sm:$0x1]
        %v1536 = vld [vmem:[%s763 + $0x74] sm:$0x1]
        %v1537 = vld [vmem:[%s763 + $0x80] sm:$0x1]
        %v1538 = vld [vmem:[%s763 + $0x8c] sm:$0x1]
        %v1539 = vld [vmem:[%s763 + $0x98] sm:$0x1]
        %v1540 = vld [vmem:[%s763 + $0xa4] sm:$0x1]
        %v1541 = vld [vmem:[%s763 + $0xb0] sm:$0x1]
        %v1542 = vld [vmem:[%s763 + $0xbc] sm:$0x1]
        %v1544 = vshrl.u32 %v1495, 16
        %v1546 = vrot.slane %v1544, 4
        %v1547 = vshll.u32 %v1495, 16
        %v1549 = vrot.slane %v1547, 5
        %v1550 = vor.u32 %v1546, %v1549
        %v1551 = vrot.slane %v1550, 4
        %v1553 = vshll.u32 %v1496, 16
        %v1555 = vrot.slane %v1553, 5
        %v1556 = vsel %vm931, %v1551, %v1555
        %v1557 = vshrl.u32 %v1496, 16
        %v1559 = vrot.slane %v1557, 4
        %v1560 = vor.u32 %v1559, %v1555
        %v1561 = vrot.slane %v1560, 4
        %v1563 = vshll.u32 %v1527, 16
        %v1565 = vrot.slane %v1563, 5
        %v1566 = vsel %vm931, %v1561, %v1565
        %v1568 = vshrl.u32 %v1497, 16
        %v1570 = vrot.slane %v1568, 4
        %v1571 = vshll.u32 %v1497, 16
        %v1573 = vrot.slane %v1571, 5
        %v1574 = vor.u32 %v1570, %v1573
        %v1575 = vrot.slane %v1574, 4
        %v1577 = vshll.u32 %v1498, 16
        %v1579 = vrot.slane %v1577, 5
        %v1580 = vsel %vm931, %v1575, %v1579
        %v1581 = vshrl.u32 %v1498, 16
        %v1583 = vrot.slane %v1581, 4
        %v1584 = vor.u32 %v1583, %v1579
        %v1585 = vrot.slane %v1584, 4
        %v1587 = vshll.u32 %v1528, 16
        %v1589 = vrot.slane %v1587, 5
        %v1590 = vsel %vm931, %v1585, %v1589
        %v1592 = vshrl.u32 %v1499, 16
        %v1594 = vrot.slane %v1592, 4
        %v1595 = vshll.u32 %v1499, 16
        %v1597 = vrot.slane %v1595, 5
        %v1598 = vor.u32 %v1594, %v1597
        %v1599 = vrot.slane %v1598, 4
        %v1601 = vshll.u32 %v1500, 16
        %v1603 = vrot.slane %v1601, 5
        %v1604 = vsel %vm931, %v1599, %v1603
        %v1605 = vshrl.u32 %v1500, 16
        %v1607 = vrot.slane %v1605, 4
        %v1608 = vor.u32 %v1607, %v1603
        %v1609 = vrot.slane %v1608, 4
        %v1611 = vshll.u32 %v1529, 16
        %v1613 = vrot.slane %v1611, 5
        %v1614 = vsel %vm931, %v1609, %v1613
        %v1616 = vshrl.u32 %v1501, 16
        %v1618 = vrot.slane %v1616, 4
        %v1619 = vshll.u32 %v1501, 16
        %v1621 = vrot.slane %v1619, 5
        %v1622 = vor.u32 %v1618, %v1621
        %v1623 = vrot.slane %v1622, 4
        %v1625 = vshll.u32 %v1502, 16
        %v1627 = vrot.slane %v1625, 5
        %v1628 = vsel %vm931, %v1623, %v1627
        %v1629 = vshrl.u32 %v1502, 16
        %v1631 = vrot.slane %v1629, 4
        %v1632 = vor.u32 %v1631, %v1627
        %v1633 = vrot.slane %v1632, 4
        %v1635 = vshll.u32 %v1530, 16
        %v1637 = vrot.slane %v1635, 5
        %v1638 = vsel %vm931, %v1633, %v1637
        %v1640 = vshrl.u32 %v1503, 16
        %v1642 = vrot.slane %v1640, 4
        %v1643 = vshll.u32 %v1503, 16
        %v1645 = vrot.slane %v1643, 5
        %v1646 = vor.u32 %v1642, %v1645
        %v1647 = vrot.slane %v1646, 4
        %v1649 = vshll.u32 %v1504, 16
        %v1651 = vrot.slane %v1649, 5
        %v1652 = vsel %vm931, %v1647, %v1651
        %v1653 = vshrl.u32 %v1504, 16
        %v1655 = vrot.slane %v1653, 4
        %v1656 = vor.u32 %v1655, %v1651
        %v1657 = vrot.slane %v1656, 4
        %v1659 = vshll.u32 %v1531, 16
        %v1661 = vrot.slane %v1659, 5
        %v1662 = vsel %vm931, %v1657, %v1661
        %v1664 = vshrl.u32 %v1505, 16
        %v1666 = vrot.slane %v1664, 4
        %v1667 = vshll.u32 %v1505, 16
        %v1669 = vrot.slane %v1667, 5
        %v1670 = vor.u32 %v1666, %v1669
        %v1671 = vrot.slane %v1670, 4
        %v1673 = vshll.u32 %v1506, 16
        %v1675 = vrot.slane %v1673, 5
        %v1676 = vsel %vm931, %v1671, %v1675
        %v1677 = vshrl.u32 %v1506, 16
        %v1679 = vrot.slane %v1677, 4
        %v1680 = vor.u32 %v1679, %v1675
        %v1681 = vrot.slane %v1680, 4
        %v1683 = vshll.u32 %v1532, 16
        %v1685 = vrot.slane %v1683, 5
        %v1686 = vsel %vm931, %v1681, %v1685
        %v1688 = vshrl.u32 %v1507, 16
        %v1690 = vrot.slane %v1688, 4
        %v1691 = vshll.u32 %v1507, 16
        %v1693 = vrot.slane %v1691, 5
        %v1694 = vor.u32 %v1690, %v1693
        %v1695 = vrot.slane %v1694, 4
        %v1697 = vshll.u32 %v1508, 16
        %v1699 = vrot.slane %v1697, 5
        %v1700 = vsel %vm931, %v1695, %v1699
        %v1701 = vshrl.u32 %v1508, 16
        %v1703 = vrot.slane %v1701, 4
        %v1704 = vor.u32 %v1703, %v1699
        %v1705 = vrot.slane %v1704, 4
        %v1707 = vshll.u32 %v1533, 16
        %v1709 = vrot.slane %v1707, 5
        %v1710 = vsel %vm931, %v1705, %v1709
        %v1712 = vshrl.u32 %v1509, 16
        %v1714 = vrot.slane %v1712, 4
        %v1715 = vshll.u32 %v1509, 16
        %v1717 = vrot.slane %v1715, 5
        %v1718 = vor.u32 %v1714, %v1717
        %v1719 = vrot.slane %v1718, 4
        %v1721 = vshll.u32 %v1510, 16
        %v1723 = vrot.slane %v1721, 5
        %v1724 = vsel %vm931, %v1719, %v1723
        %v1725 = vshrl.u32 %v1510, 16
        %v1727 = vrot.slane %v1725, 4
        %v1728 = vor.u32 %v1727, %v1723
        %v1729 = vrot.slane %v1728, 4
        %v1731 = vshll.u32 %v1534, 16
        %v1733 = vrot.slane %v1731, 5
        %v1734 = vsel %vm931, %v1729, %v1733
        %v1736 = vshrl.u32 %v1511, 16
        %v1738 = vrot.slane %v1736, 4
        %v1739 = vshll.u32 %v1511, 16
        %v1741 = vrot.slane %v1739, 5
        %v1742 = vor.u32 %v1738, %v1741
        %v1743 = vrot.slane %v1742, 4
        %v1745 = vshll.u32 %v1512, 16
        %v1747 = vrot.slane %v1745, 5
        %v1748 = vsel %vm931, %v1743, %v1747
        %v1749 = vshrl.u32 %v1512, 16
        %v1751 = vrot.slane %v1749, 4
        %v1752 = vor.u32 %v1751, %v1747
        %v1753 = vrot.slane %v1752, 4
        %v1755 = vshll.u32 %v1535, 16
        %v1757 = vrot.slane %v1755, 5
        %v1758 = vsel %vm931, %v1753, %v1757
        %v1760 = vshrl.u32 %v1513, 16
        %v1762 = vrot.slane %v1760, 4
        %v1763 = vshll.u32 %v1513, 16
        %v1765 = vrot.slane %v1763, 5
        %v1766 = vor.u32 %v1762, %v1765
        %v1767 = vrot.slane %v1766, 4
        %v1769 = vshll.u32 %v1514, 16
        %v1771 = vrot.slane %v1769, 5
        %v1772 = vsel %vm931, %v1767, %v1771
        %v1773 = vshrl.u32 %v1514, 16
        %v1775 = vrot.slane %v1773, 4
        %v1776 = vor.u32 %v1775, %v1771
        %v1777 = vrot.slane %v1776, 4
        %v1779 = vshll.u32 %v1536, 16
        %v1781 = vrot.slane %v1779, 5
        %v1782 = vsel %vm931, %v1777, %v1781
        %v1784 = vshrl.u32 %v1515, 16
        %v1786 = vrot.slane %v1784, 4
        %v1787 = vshll.u32 %v1515, 16
        %v1789 = vrot.slane %v1787, 5
        %v1790 = vor.u32 %v1786, %v1789
        %v1791 = vrot.slane %v1790, 4
        %v1793 = vshll.u32 %v1516, 16
        %v1795 = vrot.slane %v1793, 5
        %v1796 = vsel %vm931, %v1791, %v1795
        %v1797 = vshrl.u32 %v1516, 16
        %v1799 = vrot.slane %v1797, 4
        %v1800 = vor.u32 %v1799, %v1795
        %v1801 = vrot.slane %v1800, 4
        %v1803 = vshll.u32 %v1537, 16
        %v1805 = vrot.slane %v1803, 5
        %v1806 = vsel %vm931, %v1801, %v1805
        %v1808 = vshrl.u32 %v1517, 16
        %v1810 = vrot.slane %v1808, 4
        %v1811 = vshll.u32 %v1517, 16
        %v1813 = vrot.slane %v1811, 5
        %v1814 = vor.u32 %v1810, %v1813
        %v1815 = vrot.slane %v1814, 4
        %v1817 = vshll.u32 %v1518, 16
        %v1819 = vrot.slane %v1817, 5
        %v1820 = vsel %vm931, %v1815, %v1819
        %v1821 = vshrl.u32 %v1518, 16
        %v1823 = vrot.slane %v1821, 4
        %v1824 = vor.u32 %v1823, %v1819
        %v1825 = vrot.slane %v1824, 4
        %v1827 = vshll.u32 %v1538, 16
        %v1829 = vrot.slane %v1827, 5
        %v1830 = vsel %vm931, %v1825, %v1829
        %v1832 = vshrl.u32 %v1519, 16
        %v1834 = vrot.slane %v1832, 4
        %v1835 = vshll.u32 %v1519, 16
        %v1837 = vrot.slane %v1835, 5
        %v1838 = vor.u32 %v1834, %v1837
        %v1839 = vrot.slane %v1838, 4
        %v1841 = vshll.u32 %v1520, 16
        %v1843 = vrot.slane %v1841, 5
        %v1844 = vsel %vm931, %v1839, %v1843
        %v1845 = vshrl.u32 %v1520, 16
        %v1847 = vrot.slane %v1845, 4
        %v1848 = vor.u32 %v1847, %v1843
        %v1849 = vrot.slane %v1848, 4
        %v1851 = vshll.u32 %v1539, 16
        %v1853 = vrot.slane %v1851, 5
        %v1854 = vsel %vm931, %v1849, %v1853
        %v1856 = vshrl.u32 %v1521, 16
        %v1858 = vrot.slane %v1856, 4
        %v1859 = vshll.u32 %v1521, 16
        %v1861 = vrot.slane %v1859, 5
        %v1862 = vor.u32 %v1858, %v1861
        %v1863 = vrot.slane %v1862, 4
        %v1865 = vshll.u32 %v1522, 16
        %v1867 = vrot.slane %v1865, 5
        %v1868 = vsel %vm931, %v1863, %v1867
        %v1869 = vshrl.u32 %v1522, 16
        %v1871 = vrot.slane %v1869, 4
        %v1872 = vor.u32 %v1871, %v1867
        %v1873 = vrot.slane %v1872, 4
        %v1875 = vshll.u32 %v1540, 16
        %v1877 = vrot.slane %v1875, 5
        %v1878 = vsel %vm931, %v1873, %v1877
        %v1880 = vshrl.u32 %v1523, 16
        %v1882 = vrot.slane %v1880, 4
        %v1883 = vshll.u32 %v1523, 16
        %v1885 = vrot.slane %v1883, 5
        %v1886 = vor.u32 %v1882, %v1885
        %v1887 = vrot.slane %v1886, 4
        %v1889 = vshll.u32 %v1524, 16
        %v1891 = vrot.slane %v1889, 5
        %v1892 = vsel %vm931, %v1887, %v1891
        %v1893 = vshrl.u32 %v1524, 16
        %v1895 = vrot.slane %v1893, 4
        %v1896 = vor.u32 %v1895, %v1891
        %v1897 = vrot.slane %v1896, 4
        %v1899 = vshll.u32 %v1541, 16
        %v1901 = vrot.slane %v1899, 5
        %v1902 = vsel %vm931, %v1897, %v1901
        %v1904 = vshrl.u32 %v1525, 16
        %v1906 = vrot.slane %v1904, 4
        %v1907 = vshll.u32 %v1525, 16
        %v1909 = vrot.slane %v1907, 5
        %v1910 = vor.u32 %v1906, %v1909
        %v1911 = vrot.slane %v1910, 4
        %v1913 = vshll.u32 %v1526, 16
        %v1915 = vrot.slane %v1913, 5
        %v1916 = vsel %vm931, %v1911, %v1915
        %v1917 = vshrl.u32 %v1526, 16
        %v1919 = vrot.slane %v1917, 4
        %v1920 = vor.u32 %v1919, %v1915
        %v1921 = vrot.slane %v1920, 4
        %v1923 = vshll.u32 %v1542, 16
        %v1925 = vrot.slane %v1923, 5
        %v1926 = vsel %vm931, %v1921, %v1925
        %v1927 = vld [vmem:[%s763] sm:$0xe]
        %v1928 = vld [vmem:[%s763 + $0xc] sm:$0xe]
        %v1929 = vld [vmem:[%s763 + $0x18] sm:$0xe]
        %v1930 = vld [vmem:[%s763 + $0x24] sm:$0xe]
        %v1931 = vld [vmem:[%s763 + $0x30] sm:$0xe]
        %v1932 = vld [vmem:[%s763 + $0x3c] sm:$0xe]
        %v1933 = vld [vmem:[%s763 + $0x48] sm:$0xe]
        %v1934 = vld [vmem:[%s763 + $0x54] sm:$0xe]
        %v1935 = vld [vmem:[%s763 + $0x60] sm:$0xe]
        %v1936 = vld [vmem:[%s763 + $0x6c] sm:$0xe]
        %v1937 = vld [vmem:[%s763 + $0x78] sm:$0xe]
        %v1938 = vld [vmem:[%s763 + $0x84] sm:$0xe]
        %v1939 = vld [vmem:[%s763 + $0x90] sm:$0xe]
        %v1940 = vld [vmem:[%s763 + $0x9c] sm:$0xe]
        %v1941 = vld [vmem:[%s763 + $0xa8] sm:$0xe]
        %v1942 = vld [vmem:[%s763 + $0xb4] sm:$0xe]
        %v1991 = vrot.slane %v1927, 5
        %v1992 = vrot.slane %v1991, 4
        %v1993 = vrot.slane %v1496, 5
        %v1994 = vsel %vm1382, %v1992, %v1993
        %v1995 = vrot.slane %v1993, 4
        %v1996 = vrot.slane %v1527, 5
        %v1997 = vsel %vm1382, %v1995, %v1996
        %v1998 = vrot.slane %v1928, 5
        %v1999 = vrot.slane %v1998, 4
        %v2000 = vrot.slane %v1498, 5
        %v2001 = vsel %vm1382, %v1999, %v2000
        %v2002 = vrot.slane %v2000, 4
        %v2003 = vrot.slane %v1528, 5
        %v2004 = vsel %vm1382, %v2002, %v2003
        %v2005 = vrot.slane %v1929, 5
        %v2006 = vrot.slane %v2005, 4
        %v2007 = vrot.slane %v1500, 5
        %v2008 = vsel %vm1382, %v2006, %v2007
        %v2009 = vrot.slane %v2007, 4
        %v2010 = vrot.slane %v1529, 5
        %v2011 = vsel %vm1382, %v2009, %v2010
        %v2012 = vrot.slane %v1930, 5
        %v2013 = vrot.slane %v2012, 4
        %v2014 = vrot.slane %v1502, 5
        %v2015 = vsel %vm1382, %v2013, %v2014
        %v2016 = vrot.slane %v2014, 4
        %v2017 = vrot.slane %v1530, 5
        %v2018 = vsel %vm1382, %v2016, %v2017
        %v2019 = vrot.slane %v1931, 5
        %v2020 = vrot.slane %v2019, 4
        %v2021 = vrot.slane %v1504, 5
        %v2022 = vsel %vm1382, %v2020, %v2021
        %v2023 = vrot.slane %v2021, 4
        %v2024 = vrot.slane %v1531, 5
        %v2025 = vsel %vm1382, %v2023, %v2024
        %v2026 = vrot.slane %v1932, 5
        %v2027 = vrot.slane %v2026, 4
        %v2028 = vrot.slane %v1506, 5
        %v2029 = vsel %vm1382, %v2027, %v2028
        %v2030 = vrot.slane %v2028, 4
        %v2031 = vrot.slane %v1532, 5
        %v2032 = vsel %vm1382, %v2030, %v2031
        %v2033 = vrot.slane %v1933, 5
        %v2034 = vrot.slane %v2033, 4
        %v2035 = vrot.slane %v1508, 5
        %v2036 = vsel %vm1382, %v2034, %v2035
        %v2037 = vrot.slane %v2035, 4
        %v2038 = vrot.slane %v1533, 5
        %v2039 = vsel %vm1382, %v2037, %v2038
        %v2040 = vrot.slane %v1934, 5
        %v2041 = vrot.slane %v2040, 4
        %v2042 = vrot.slane %v1510, 5
        %v2043 = vsel %vm1382, %v2041, %v2042
        %v2044 = vrot.slane %v2042, 4
        %v2045 = vrot.slane %v1534, 5
        %v2046 = vsel %vm1382, %v2044, %v2045
        %v2047 = vrot.slane %v1935, 5
        %v2048 = vrot.slane %v2047, 4
        %v2049 = vrot.slane %v1512, 5
        %v2050 = vsel %vm1382, %v2048, %v2049
        %v2051 = vrot.slane %v2049, 4
        %v2052 = vrot.slane %v1535, 5
        %v2053 = vsel %vm1382, %v2051, %v2052
        %v2054 = vrot.slane %v1936, 5
        %v2055 = vrot.slane %v2054, 4
        %v2056 = vrot.slane %v1514, 5
        %v2057 = vsel %vm1382, %v2055, %v2056
        %v2058 = vrot.slane %v2056, 4
        %v2059 = vrot.slane %v1536, 5
        %v2060 = vsel %vm1382, %v2058, %v2059
        %v2061 = vrot.slane %v1937, 5
        %v2062 = vrot.slane %v2061, 4
        %v2063 = vrot.slane %v1516, 5
        %v2064 = vsel %vm1382, %v2062, %v2063
        %v2065 = vrot.slane %v2063, 4
        %v2066 = vrot.slane %v1537, 5
        %v2067 = vsel %vm1382, %v2065, %v2066
        %v2068 = vrot.slane %v1938, 5
        %v2069 = vrot.slane %v2068, 4
        %v2070 = vrot.slane %v1518, 5
        %v2071 = vsel %vm1382, %v2069, %v2070
        %v2072 = vrot.slane %v2070, 4
        %v2073 = vrot.slane %v1538, 5
        %v2074 = vsel %vm1382, %v2072, %v2073
        %v2075 = vrot.slane %v1939, 5
        %v2076 = vrot.slane %v2075, 4
        %v2077 = vrot.slane %v1520, 5
        %v2078 = vsel %vm1382, %v2076, %v2077
        %v2079 = vrot.slane %v2077, 4
        %v2080 = vrot.slane %v1539, 5
        %v2081 = vsel %vm1382, %v2079, %v2080
        %v2082 = vrot.slane %v1940, 5
        %v2083 = vrot.slane %v2082, 4
        %v2084 = vrot.slane %v1522, 5
        %v2085 = vsel %vm1382, %v2083, %v2084
        %v2086 = vrot.slane %v2084, 4
        %v2087 = vrot.slane %v1540, 5
        %v2088 = vsel %vm1382, %v2086, %v2087
        %v2089 = vrot.slane %v1941, 5
        %v2090 = vrot.slane %v2089, 4
        %v2091 = vrot.slane %v1524, 5
        %v2092 = vsel %vm1382, %v2090, %v2091
        %v2093 = vrot.slane %v2091, 4
        %v2094 = vrot.slane %v1541, 5
        %v2095 = vsel %vm1382, %v2093, %v2094
        %v2096 = vrot.slane %v1942, 5
        %v2097 = vrot.slane %v2096, 4
        %v2098 = vrot.slane %v1526, 5
        %v2099 = vsel %vm1382, %v2097, %v2098
        %v2100 = vrot.slane %v2098, 4
        %v2101 = vrot.slane %v1542, 5
        %v2102 = vsel %vm1382, %v2100, %v2101
        %s2103 = scalar_lea.vmem [#allocation2], 24
        %v2104 = vld [vmem:[%s2103] sm:$0xf]
        %v2105 = vld [vmem:[%s2103 + $0x4] sm:$0xf]
        %v2106 = vld [vmem:[%s2103 + $0xc] sm:$0xf]
        %v2107 = vld [vmem:[%s2103 + $0x10] sm:$0xf]
        %v2108 = vld [vmem:[%s2103 + $0x18] sm:$0xf]
        %v2109 = vld [vmem:[%s2103 + $0x1c] sm:$0xf]
        %v2110 = vld [vmem:[%s2103 + $0x24] sm:$0xf]
        %v2111 = vld [vmem:[%s2103 + $0x28] sm:$0xf]
        %v2112 = vld [vmem:[%s2103 + $0x30] sm:$0xf]
        %v2113 = vld [vmem:[%s2103 + $0x34] sm:$0xf]
        %v2114 = vld [vmem:[%s2103 + $0x3c] sm:$0xf]
        %v2115 = vld [vmem:[%s2103 + $0x40] sm:$0xf]
        %v2116 = vld [vmem:[%s2103 + $0x48] sm:$0xf]
        %v2117 = vld [vmem:[%s2103 + $0x4c] sm:$0xf]
        %v2118 = vld [vmem:[%s2103 + $0x54] sm:$0xf]
        %v2119 = vld [vmem:[%s2103 + $0x58] sm:$0xf]
        %v2120 = vld [vmem:[%s2103 + $0x60] sm:$0xf]
        %v2121 = vld [vmem:[%s2103 + $0x64] sm:$0xf]
        %v2122 = vld [vmem:[%s2103 + $0x6c] sm:$0xf]
        %v2123 = vld [vmem:[%s2103 + $0x70] sm:$0xf]
        %v2124 = vld [vmem:[%s2103 + $0x78] sm:$0xf]
        %v2125 = vld [vmem:[%s2103 + $0x7c] sm:$0xf]
        %v2126 = vld [vmem:[%s2103 + $0x84] sm:$0xf]
        %v2127 = vld [vmem:[%s2103 + $0x88] sm:$0xf]
        %v2128 = vld [vmem:[%s2103 + $0x90] sm:$0xf]
        %v2129 = vld [vmem:[%s2103 + $0x94] sm:$0xf]
        %v2130 = vld [vmem:[%s2103 + $0x9c] sm:$0xf]
        %v2131 = vld [vmem:[%s2103 + $0xa0] sm:$0xf]
        %v2132 = vld [vmem:[%s2103 + $0xa8] sm:$0xf]
        %v2133 = vld [vmem:[%s2103 + $0xac] sm:$0xf]
        %v2134 = vld [vmem:[%s2103 + $0xb4] sm:$0xf]
        %v2135 = vld [vmem:[%s2103 + $0xb8] sm:$0xf]
        %v2136 = vld [vmem:[%s2103 + $0x8] sm:$0x1]
        %v2137 = vld [vmem:[%s2103 + $0x14] sm:$0x1]
        %v2138 = vld [vmem:[%s2103 + $0x20] sm:$0x1]
        %v2139 = vld [vmem:[%s2103 + $0x2c] sm:$0x1]
        %v2140 = vld [vmem:[%s2103 + $0x38] sm:$0x1]
        %v2141 = vld [vmem:[%s2103 + $0x44] sm:$0x1]
        %v2142 = vld [vmem:[%s2103 + $0x50] sm:$0x1]
        %v2143 = vld [vmem:[%s2103 + $0x5c] sm:$0x1]
        %v2144 = vld [vmem:[%s2103 + $0x68] sm:$0x1]
        %v2145 = vld [vmem:[%s2103 + $0x74] sm:$0x1]
        %v2146 = vld [vmem:[%s2103 + $0x80] sm:$0x1]
        %v2147 = vld [vmem:[%s2103 + $0x8c] sm:$0x1]
        %v2148 = vld [vmem:[%s2103 + $0x98] sm:$0x1]
        %v2149 = vld [vmem:[%s2103 + $0xa4] sm:$0x1]
        %v2150 = vld [vmem:[%s2103 + $0xb0] sm:$0x1]
        %v2151 = vld [vmem:[%s2103 + $0xbc] sm:$0x1]
        %v2153 = vshrl.u32 %v2104, 16
        %v2155 = vrot.slane %v2153, 4
        %v2156 = vshll.u32 %v2104, 16
        %v2158 = vrot.slane %v2156, 5
        %v2159 = vor.u32 %v2155, %v2158
        %v2160 = vrot.slane %v2159, 4
        %v2162 = vshll.u32 %v2105, 16
        %v2164 = vrot.slane %v2162, 5
        %v2165 = vsel %vm931, %v2160, %v2164
        %v2166 = vshrl.u32 %v2105, 16
        %v2168 = vrot.slane %v2166, 4
        %v2169 = vor.u32 %v2168, %v2164
        %v2170 = vrot.slane %v2169, 4
        %v2172 = vshll.u32 %v2136, 16
        %v2174 = vrot.slane %v2172, 5
        %v2175 = vsel %vm931, %v2170, %v2174
        %v2177 = vshrl.u32 %v2106, 16
        %v2179 = vrot.slane %v2177, 4
        %v2180 = vshll.u32 %v2106, 16
        %v2182 = vrot.slane %v2180, 5
        %v2183 = vor.u32 %v2179, %v2182
        %v2184 = vrot.slane %v2183, 4
        %v2186 = vshll.u32 %v2107, 16
        %v2188 = vrot.slane %v2186, 5
        %v2189 = vsel %vm931, %v2184, %v2188
        %v2190 = vshrl.u32 %v2107, 16
        %v2192 = vrot.slane %v2190, 4
        %v2193 = vor.u32 %v2192, %v2188
        %v2194 = vrot.slane %v2193, 4
        %v2196 = vshll.u32 %v2137, 16
        %v2198 = vrot.slane %v2196, 5
        %v2199 = vsel %vm931, %v2194, %v2198
        %v2201 = vshrl.u32 %v2108, 16
        %v2203 = vrot.slane %v2201, 4
        %v2204 = vshll.u32 %v2108, 16
        %v2206 = vrot.slane %v2204, 5
        %v2207 = vor.u32 %v2203, %v2206
        %v2208 = vrot.slane %v2207, 4
        %v2210 = vshll.u32 %v2109, 16
        %v2212 = vrot.slane %v2210, 5
        %v2213 = vsel %vm931, %v2208, %v2212
        %v2214 = vshrl.u32 %v2109, 16
        %v2216 = vrot.slane %v2214, 4
        %v2217 = vor.u32 %v2216, %v2212
        %v2218 = vrot.slane %v2217, 4
        %v2220 = vshll.u32 %v2138, 16
        %v2222 = vrot.slane %v2220, 5
        %v2223 = vsel %vm931, %v2218, %v2222
        %v2225 = vshrl.u32 %v2110, 16
        %v2227 = vrot.slane %v2225, 4
        %v2228 = vshll.u32 %v2110, 16
        %v2230 = vrot.slane %v2228, 5
        %v2231 = vor.u32 %v2227, %v2230
        %v2232 = vrot.slane %v2231, 4
        %v2234 = vshll.u32 %v2111, 16
        %v2236 = vrot.slane %v2234, 5
        %v2237 = vsel %vm931, %v2232, %v2236
        %v2238 = vshrl.u32 %v2111, 16
        %v2240 = vrot.slane %v2238, 4
        %v2241 = vor.u32 %v2240, %v2236
        %v2242 = vrot.slane %v2241, 4
        %v2244 = vshll.u32 %v2139, 16
        %v2246 = vrot.slane %v2244, 5
        %v2247 = vsel %vm931, %v2242, %v2246
        %v2249 = vshrl.u32 %v2112, 16
        %v2251 = vrot.slane %v2249, 4
        %v2252 = vshll.u32 %v2112, 16
        %v2254 = vrot.slane %v2252, 5
        %v2255 = vor.u32 %v2251, %v2254
        %v2256 = vrot.slane %v2255, 4
        %v2258 = vshll.u32 %v2113, 16
        %v2260 = vrot.slane %v2258, 5
        %v2261 = vsel %vm931, %v2256, %v2260
        %v2262 = vshrl.u32 %v2113, 16
        %v2264 = vrot.slane %v2262, 4
        %v2265 = vor.u32 %v2264, %v2260
        %v2266 = vrot.slane %v2265, 4
        %v2268 = vshll.u32 %v2140, 16
        %v2270 = vrot.slane %v2268, 5
        %v2271 = vsel %vm931, %v2266, %v2270
        %v2273 = vshrl.u32 %v2114, 16
        %v2275 = vrot.slane %v2273, 4
        %v2276 = vshll.u32 %v2114, 16
        %v2278 = vrot.slane %v2276, 5
        %v2279 = vor.u32 %v2275, %v2278
        %v2280 = vrot.slane %v2279, 4
        %v2282 = vshll.u32 %v2115, 16
        %v2284 = vrot.slane %v2282, 5
        %v2285 = vsel %vm931, %v2280, %v2284
        %v2286 = vshrl.u32 %v2115, 16
        %v2288 = vrot.slane %v2286, 4
        %v2289 = vor.u32 %v2288, %v2284
        %v2290 = vrot.slane %v2289, 4
        %v2292 = vshll.u32 %v2141, 16
        %v2294 = vrot.slane %v2292, 5
        %v2295 = vsel %vm931, %v2290, %v2294
        %v2297 = vshrl.u32 %v2116, 16
        %v2299 = vrot.slane %v2297, 4
        %v2300 = vshll.u32 %v2116, 16
        %v2302 = vrot.slane %v2300, 5
        %v2303 = vor.u32 %v2299, %v2302
        %v2304 = vrot.slane %v2303, 4
        %v2306 = vshll.u32 %v2117, 16
        %v2308 = vrot.slane %v2306, 5
        %v2309 = vsel %vm931, %v2304, %v2308
        %v2310 = vshrl.u32 %v2117, 16
        %v2312 = vrot.slane %v2310, 4
        %v2313 = vor.u32 %v2312, %v2308
        %v2314 = vrot.slane %v2313, 4
        %v2316 = vshll.u32 %v2142, 16
        %v2318 = vrot.slane %v2316, 5
        %v2319 = vsel %vm931, %v2314, %v2318
        %v2321 = vshrl.u32 %v2118, 16
        %v2323 = vrot.slane %v2321, 4
        %v2324 = vshll.u32 %v2118, 16
        %v2326 = vrot.slane %v2324, 5
        %v2327 = vor.u32 %v2323, %v2326
        %v2328 = vrot.slane %v2327, 4
        %v2330 = vshll.u32 %v2119, 16
        %v2332 = vrot.slane %v2330, 5
        %v2333 = vsel %vm931, %v2328, %v2332
        %v2334 = vshrl.u32 %v2119, 16
        %v2336 = vrot.slane %v2334, 4
        %v2337 = vor.u32 %v2336, %v2332
        %v2338 = vrot.slane %v2337, 4
        %v2340 = vshll.u32 %v2143, 16
        %v2342 = vrot.slane %v2340, 5
        %v2343 = vsel %vm931, %v2338, %v2342
        %v2345 = vshrl.u32 %v2120, 16
        %v2347 = vrot.slane %v2345, 4
        %v2348 = vshll.u32 %v2120, 16
        %v2350 = vrot.slane %v2348, 5
        %v2351 = vor.u32 %v2347, %v2350
        %v2352 = vrot.slane %v2351, 4
        %v2354 = vshll.u32 %v2121, 16
        %v2356 = vrot.slane %v2354, 5
        %v2357 = vsel %vm931, %v2352, %v2356
        %v2358 = vshrl.u32 %v2121, 16
        %v2360 = vrot.slane %v2358, 4
        %v2361 = vor.u32 %v2360, %v2356
        %v2362 = vrot.slane %v2361, 4
        %v2364 = vshll.u32 %v2144, 16
        %v2366 = vrot.slane %v2364, 5
        %v2367 = vsel %vm931, %v2362, %v2366
        %v2369 = vshrl.u32 %v2122, 16
        %v2371 = vrot.slane %v2369, 4
        %v2372 = vshll.u32 %v2122, 16
        %v2374 = vrot.slane %v2372, 5
        %v2375 = vor.u32 %v2371, %v2374
        %v2376 = vrot.slane %v2375, 4
        %v2378 = vshll.u32 %v2123, 16
        %v2380 = vrot.slane %v2378, 5
        %v2381 = vsel %vm931, %v2376, %v2380
        %v2382 = vshrl.u32 %v2123, 16
        %v2384 = vrot.slane %v2382, 4
        %v2385 = vor.u32 %v2384, %v2380
        %v2386 = vrot.slane %v2385, 4
        %v2388 = vshll.u32 %v2145, 16
        %v2390 = vrot.slane %v2388, 5
        %v2391 = vsel %vm931, %v2386, %v2390
        %v2393 = vshrl.u32 %v2124, 16
        %v2395 = vrot.slane %v2393, 4
        %v2396 = vshll.u32 %v2124, 16
        %v2398 = vrot.slane %v2396, 5
        %v2399 = vor.u32 %v2395, %v2398
        %v2400 = vrot.slane %v2399, 4
        %v2402 = vshll.u32 %v2125, 16
        %v2404 = vrot.slane %v2402, 5
        %v2405 = vsel %vm931, %v2400, %v2404
        %v2406 = vshrl.u32 %v2125, 16
        %v2408 = vrot.slane %v2406, 4
        %v2409 = vor.u32 %v2408, %v2404
        %v2410 = vrot.slane %v2409, 4
        %v2412 = vshll.u32 %v2146, 16
        %v2414 = vrot.slane %v2412, 5
        %v2415 = vsel %vm931, %v2410, %v2414
        %v2417 = vshrl.u32 %v2126, 16
        %v2419 = vrot.slane %v2417, 4
        %v2420 = vshll.u32 %v2126, 16
        %v2422 = vrot.slane %v2420, 5
        %v2423 = vor.u32 %v2419, %v2422
        %v2424 = vrot.slane %v2423, 4
        %v2426 = vshll.u32 %v2127, 16
        %v2428 = vrot.slane %v2426, 5
        %v2429 = vsel %vm931, %v2424, %v2428
        %v2430 = vshrl.u32 %v2127, 16
        %v2432 = vrot.slane %v2430, 4
        %v2433 = vor.u32 %v2432, %v2428
        %v2434 = vrot.slane %v2433, 4
        %v2436 = vshll.u32 %v2147, 16
        %v2438 = vrot.slane %v2436, 5
        %v2439 = vsel %vm931, %v2434, %v2438
        %v2441 = vshrl.u32 %v2128, 16
        %v2443 = vrot.slane %v2441, 4
        %v2444 = vshll.u32 %v2128, 16
        %v2446 = vrot.slane %v2444, 5
        %v2447 = vor.u32 %v2443, %v2446
        %v2448 = vrot.slane %v2447, 4
        %v2450 = vshll.u32 %v2129, 16
        %v2452 = vrot.slane %v2450, 5
        %v2453 = vsel %vm931, %v2448, %v2452
        %v2454 = vshrl.u32 %v2129, 16
        %v2456 = vrot.slane %v2454, 4
        %v2457 = vor.u32 %v2456, %v2452
        %v2458 = vrot.slane %v2457, 4
        %v2460 = vshll.u32 %v2148, 16
        %v2462 = vrot.slane %v2460, 5
        %v2463 = vsel %vm931, %v2458, %v2462
        %v2465 = vshrl.u32 %v2130, 16
        %v2467 = vrot.slane %v2465, 4
        %v2468 = vshll.u32 %v2130, 16
        %v2470 = vrot.slane %v2468, 5
        %v2471 = vor.u32 %v2467, %v2470
        %v2472 = vrot.slane %v2471, 4
        %v2474 = vshll.u32 %v2131, 16
        %v2476 = vrot.slane %v2474, 5
        %v2477 = vsel %vm931, %v2472, %v2476
        %v2478 = vshrl.u32 %v2131, 16
        %v2480 = vrot.slane %v2478, 4
        %v2481 = vor.u32 %v2480, %v2476
        %v2482 = vrot.slane %v2481, 4
        %v2484 = vshll.u32 %v2149, 16
        %v2486 = vrot.slane %v2484, 5
        %v2487 = vsel %vm931, %v2482, %v2486
        %v2489 = vshrl.u32 %v2132, 16
        %v2491 = vrot.slane %v2489, 4
        %v2492 = vshll.u32 %v2132, 16
        %v2494 = vrot.slane %v2492, 5
        %v2495 = vor.u32 %v2491, %v2494
        %v2496 = vrot.slane %v2495, 4
        %v2498 = vshll.u32 %v2133, 16
        %v2500 = vrot.slane %v2498, 5
        %v2501 = vsel %vm931, %v2496, %v2500
        %v2502 = vshrl.u32 %v2133, 16
        %v2504 = vrot.slane %v2502, 4
        %v2505 = vor.u32 %v2504, %v2500
        %v2506 = vrot.slane %v2505, 4
        %v2508 = vshll.u32 %v2150, 16
        %v2510 = vrot.slane %v2508, 5
        %v2511 = vsel %vm931, %v2506, %v2510
        %v2513 = vshrl.u32 %v2134, 16
        %v2515 = vrot.slane %v2513, 4
        %v2516 = vshll.u32 %v2134, 16
        %v2518 = vrot.slane %v2516, 5
        %v2519 = vor.u32 %v2515, %v2518
        %v2520 = vrot.slane %v2519, 4
        %v2522 = vshll.u32 %v2135, 16
        %v2524 = vrot.slane %v2522, 5
        %v2525 = vsel %vm931, %v2520, %v2524
        %v2526 = vshrl.u32 %v2135, 16
        %v2528 = vrot.slane %v2526, 4
        %v2529 = vor.u32 %v2528, %v2524
        %v2530 = vrot.slane %v2529, 4
        %v2532 = vshll.u32 %v2151, 16
        %v2534 = vrot.slane %v2532, 5
        %v2535 = vsel %vm931, %v2530, %v2534
        %v2536 = vld [vmem:[%s2103] sm:$0xe]
        %v2537 = vld [vmem:[%s2103 + $0xc] sm:$0xe]
        %v2538 = vld [vmem:[%s2103 + $0x18] sm:$0xe]
        %v2539 = vld [vmem:[%s2103 + $0x24] sm:$0xe]
        %v2540 = vld [vmem:[%s2103 + $0x30] sm:$0xe]
        %v2541 = vld [vmem:[%s2103 + $0x3c] sm:$0xe]
        %v2542 = vld [vmem:[%s2103 + $0x48] sm:$0xe]
        %v2543 = vld [vmem:[%s2103 + $0x54] sm:$0xe]
        %v2544 = vld [vmem:[%s2103 + $0x60] sm:$0xe]
        %v2545 = vld [vmem:[%s2103 + $0x6c] sm:$0xe]
        %v2546 = vld [vmem:[%s2103 + $0x78] sm:$0xe]
        %v2547 = vld [vmem:[%s2103 + $0x84] sm:$0xe]
        %v2548 = vld [vmem:[%s2103 + $0x90] sm:$0xe]
        %v2549 = vld [vmem:[%s2103 + $0x9c] sm:$0xe]
        %v2550 = vld [vmem:[%s2103 + $0xa8] sm:$0xe]
        %v2551 = vld [vmem:[%s2103 + $0xb4] sm:$0xe]
        %v2600 = vrot.slane %v2536, 5
        %v2601 = vrot.slane %v2600, 4
        %v2602 = vrot.slane %v2105, 5
        %v2603 = vsel %vm1382, %v2601, %v2602
        %v2604 = vrot.slane %v2602, 4
        %v2605 = vrot.slane %v2136, 5
        %v2606 = vsel %vm1382, %v2604, %v2605
        %v2607 = vrot.slane %v2537, 5
        %v2608 = vrot.slane %v2607, 4
        %v2609 = vrot.slane %v2107, 5
        %v2610 = vsel %vm1382, %v2608, %v2609
        %v2611 = vrot.slane %v2609, 4
        %v2612 = vrot.slane %v2137, 5
        %v2613 = vsel %vm1382, %v2611, %v2612
        %v2614 = vrot.slane %v2538, 5
        %v2615 = vrot.slane %v2614, 4
        %v2616 = vrot.slane %v2109, 5
        %v2617 = vsel %vm1382, %v2615, %v2616
        %v2618 = vrot.slane %v2616, 4
        %v2619 = vrot.slane %v2138, 5
        %v2620 = vsel %vm1382, %v2618, %v2619
        %v2621 = vrot.slane %v2539, 5
        %v2622 = vrot.slane %v2621, 4
        %v2623 = vrot.slane %v2111, 5
        %v2624 = vsel %vm1382, %v2622, %v2623
        %v2625 = vrot.slane %v2623, 4
        %v2626 = vrot.slane %v2139, 5
        %v2627 = vsel %vm1382, %v2625, %v2626
        %v2628 = vrot.slane %v2540, 5
        %v2629 = vrot.slane %v2628, 4
        %v2630 = vrot.slane %v2113, 5
        %v2631 = vsel %vm1382, %v2629, %v2630
        %v2632 = vrot.slane %v2630, 4
        %v2633 = vrot.slane %v2140, 5
        %v2634 = vsel %vm1382, %v2632, %v2633
        %v2635 = vrot.slane %v2541, 5
        %v2636 = vrot.slane %v2635, 4
        %v2637 = vrot.slane %v2115, 5
        %v2638 = vsel %vm1382, %v2636, %v2637
        %v2639 = vrot.slane %v2637, 4
        %v2640 = vrot.slane %v2141, 5
        %v2641 = vsel %vm1382, %v2639, %v2640
        %v2642 = vrot.slane %v2542, 5
        %v2643 = vrot.slane %v2642, 4
        %v2644 = vrot.slane %v2117, 5
        %v2645 = vsel %vm1382, %v2643, %v2644
        %v2646 = vrot.slane %v2644, 4
        %v2647 = vrot.slane %v2142, 5
        %v2648 = vsel %vm1382, %v2646, %v2647
        %v2649 = vrot.slane %v2543, 5
        %v2650 = vrot.slane %v2649, 4
        %v2651 = vrot.slane %v2119, 5
        %v2652 = vsel %vm1382, %v2650, %v2651
        %v2653 = vrot.slane %v2651, 4
        %v2654 = vrot.slane %v2143, 5
        %v2655 = vsel %vm1382, %v2653, %v2654
        %v2656 = vrot.slane %v2544, 5
        %v2657 = vrot.slane %v2656, 4
        %v2658 = vrot.slane %v2121, 5
        %v2659 = vsel %vm1382, %v2657, %v2658
        %v2660 = vrot.slane %v2658, 4
        %v2661 = vrot.slane %v2144, 5
        %v2662 = vsel %vm1382, %v2660, %v2661
        %v2663 = vrot.slane %v2545, 5
        %v2664 = vrot.slane %v2663, 4
        %v2665 = vrot.slane %v2123, 5
        %v2666 = vsel %vm1382, %v2664, %v2665
        %v2667 = vrot.slane %v2665, 4
        %v2668 = vrot.slane %v2145, 5
        %v2669 = vsel %vm1382, %v2667, %v2668
        %v2670 = vrot.slane %v2546, 5
        %v2671 = vrot.slane %v2670, 4
        %v2672 = vrot.slane %v2125, 5
        %v2673 = vsel %vm1382, %v2671, %v2672
        %v2674 = vrot.slane %v2672, 4
        %v2675 = vrot.slane %v2146, 5
        %v2676 = vsel %vm1382, %v2674, %v2675
        %v2677 = vrot.slane %v2547, 5
        %v2678 = vrot.slane %v2677, 4
        %v2679 = vrot.slane %v2127, 5
        %v2680 = vsel %vm1382, %v2678, %v2679
        %v2681 = vrot.slane %v2679, 4
        %v2682 = vrot.slane %v2147, 5
        %v2683 = vsel %vm1382, %v2681, %v2682
        %v2684 = vrot.slane %v2548, 5
        %v2685 = vrot.slane %v2684, 4
        %v2686 = vrot.slane %v2129, 5
        %v2687 = vsel %vm1382, %v2685, %v2686
        %v2688 = vrot.slane %v2686, 4
        %v2689 = vrot.slane %v2148, 5
        %v2690 = vsel %vm1382, %v2688, %v2689
        %v2691 = vrot.slane %v2549, 5
        %v2692 = vrot.slane %v2691, 4
        %v2693 = vrot.slane %v2131, 5
        %v2694 = vsel %vm1382, %v2692, %v2693
        %v2695 = vrot.slane %v2693, 4
        %v2696 = vrot.slane %v2149, 5
        %v2697 = vsel %vm1382, %v2695, %v2696
        %v2698 = vrot.slane %v2550, 5
        %v2699 = vrot.slane %v2698, 4
        %v2700 = vrot.slane %v2133, 5
        %v2701 = vsel %vm1382, %v2699, %v2700
        %v2702 = vrot.slane %v2700, 4
        %v2703 = vrot.slane %v2150, 5
        %v2704 = vsel %vm1382, %v2702, %v2703
        %v2705 = vrot.slane %v2551, 5
        %v2706 = vrot.slane %v2705, 4
        %v2707 = vrot.slane %v2135, 5
        %v2708 = vsel %vm1382, %v2706, %v2707
        %v2709 = vrot.slane %v2707, 4
        %v2710 = vrot.slane %v2151, 5
        %v2711 = vsel %vm1382, %v2709, %v2710
        %v2728 = vunpack.c.l.b16 %v881
        %v2729 = vunpack.c.l.b16 %v882
        %v2730 = vunpack.c.l.b16 %v883
        %v2731 = vunpack.c.l.b16 %v884
        %v2732 = vunpack.c.l.b16 %v885
        %v2733 = vunpack.c.l.b16 %v886
        %v2734 = vunpack.c.l.b16 %v887
        %v2735 = vunpack.c.l.b16 %v888
        %v2736 = vunpack.c.l.b16 %v889
        %v2737 = vunpack.c.l.b16 %v890
        %v2738 = vunpack.c.l.b16 %v891
        %v2739 = vunpack.c.l.b16 %v892
        %v2740 = vunpack.c.l.b16 %v893
        %v2741 = vunpack.c.l.b16 %v894
        %v2742 = vunpack.c.l.b16 %v895
        %v2743 = vunpack.c.l.b16 %v896
        %v2744 = vunpack.c.l.b16 %v897
        %v2745 = vunpack.c.l.b16 %v898
        %v2746 = vunpack.c.l.b16 %v899
        %v2747 = vunpack.c.l.b16 %v900
        %v2748 = vunpack.c.l.b16 %v901
        %v2749 = vunpack.c.l.b16 %v902
        %v2750 = vunpack.c.l.b16 %v903
        %v2751 = vunpack.c.l.b16 %v904
        %v2752 = vunpack.c.l.b16 %v905
        %v2753 = vunpack.c.l.b16 %v906
        %v2754 = vunpack.c.l.b16 %v907
        %v2755 = vunpack.c.l.b16 %v908
        %v2756 = vunpack.c.l.b16 %v909
        %v2757 = vunpack.c.l.b16 %v910
        %v2758 = vunpack.c.l.b16 %v911
        %v2759 = vunpack.c.l.b16 %v912
        %v2760 = vpack.c.b16 %v2729, %v2728
        %v2761 = vpack.c.b16 %v2731, %v2730
        %v2762 = vpack.c.b16 %v2733, %v2732
        %v2763 = vpack.c.b16 %v2735, %v2734
        %v2764 = vpack.c.b16 %v2737, %v2736
        %v2765 = vpack.c.b16 %v2739, %v2738
        %v2766 = vpack.c.b16 %v2741, %v2740
        %v2767 = vpack.c.b16 %v2743, %v2742
        %v2768 = vpack.c.b16 %v2745, %v2744
        %v2769 = vpack.c.b16 %v2747, %v2746
        %v2770 = vpack.c.b16 %v2749, %v2748
        %v2771 = vpack.c.b16 %v2751, %v2750
        %v2772 = vpack.c.b16 %v2753, %v2752
        %v2773 = vpack.c.b16 %v2755, %v2754
        %v2774 = vpack.c.b16 %v2757, %v2756
        %v2775 = vpack.c.b16 %v2759, %v2758
        %v2776 = vunpack.c.l.b16 %v945
        %v2777 = vunpack.c.l.b16 %v955
        %v2778 = vunpack.c.l.b16 %v969
        %v2779 = vunpack.c.l.b16 %v979
        %v2780 = vunpack.c.l.b16 %v993
        %v2781 = vunpack.c.l.b16 %v1003
        %v2782 = vunpack.c.l.b16 %v1017
        %v2783 = vunpack.c.l.b16 %v1027
        %v2784 = vunpack.c.l.b16 %v1041
        %v2785 = vunpack.c.l.b16 %v1051
        %v2786 = vunpack.c.l.b16 %v1065
        %v2787 = vunpack.c.l.b16 %v1075
        %v2788 = vunpack.c.l.b16 %v1089
        %v2789 = vunpack.c.l.b16 %v1099
        %v2790 = vunpack.c.l.b16 %v1113
        %v2791 = vunpack.c.l.b16 %v1123
        %v2792 = vunpack.c.l.b16 %v1137
        %v2793 = vunpack.c.l.b16 %v1147
        %v2794 = vunpack.c.l.b16 %v1161
        %v2795 = vunpack.c.l.b16 %v1171
        %v2796 = vunpack.c.l.b16 %v1185
        %v2797 = vunpack.c.l.b16 %v1195
        %v2798 = vunpack.c.l.b16 %v1209
        %v2799 = vunpack.c.l.b16 %v1219
        %v2800 = vunpack.c.l.b16 %v1233
        %v2801 = vunpack.c.l.b16 %v1243
        %v2802 = vunpack.c.l.b16 %v1257
        %v2803 = vunpack.c.l.b16 %v1267
        %v2804 = vunpack.c.l.b16 %v1281
        %v2805 = vunpack.c.l.b16 %v1291
        %v2806 = vunpack.c.l.b16 %v1305
        %v2807 = vunpack.c.l.b16 %v1315
        %v2808 = vpack.c.b16 %v2777, %v2776
        %v2809 = vpack.c.b16 %v2779, %v2778
        %v2810 = vpack.c.b16 %v2781, %v2780
        %v2811 = vpack.c.b16 %v2783, %v2782
        %v2812 = vpack.c.b16 %v2785, %v2784
        %v2813 = vpack.c.b16 %v2787, %v2786
        %v2814 = vpack.c.b16 %v2789, %v2788
        %v2815 = vpack.c.b16 %v2791, %v2790
        %v2816 = vpack.c.b16 %v2793, %v2792
        %v2817 = vpack.c.b16 %v2795, %v2794
        %v2818 = vpack.c.b16 %v2797, %v2796
        %v2819 = vpack.c.b16 %v2799, %v2798
        %v2820 = vpack.c.b16 %v2801, %v2800
        %v2821 = vpack.c.b16 %v2803, %v2802
        %v2822 = vpack.c.b16 %v2805, %v2804
        %v2823 = vpack.c.b16 %v2807, %v2806
        %2824 = vrot.lane.b32.xlu0 %v2808, 4
        %v2825 = vpop.permute.xlu0 %2824
        %2826 = vrot.lane.b32.xlu0 %v2809, 4
        %v2827 = vpop.permute.xlu0 %2826
        %2828 = vrot.lane.b32.xlu0 %v2810, 4
        %v2829 = vpop.permute.xlu0 %2828
        %2830 = vrot.lane.b32.xlu0 %v2811, 4
        %v2831 = vpop.permute.xlu0 %2830
        %2832 = vrot.lane.b32.xlu0 %v2812, 4
        %v2833 = vpop.permute.xlu0 %2832
        %2834 = vrot.lane.b32.xlu0 %v2813, 4
        %v2835 = vpop.permute.xlu0 %2834
        %2836 = vrot.lane.b32.xlu0 %v2814, 4
        %v2837 = vpop.permute.xlu0 %2836
        %2838 = vrot.lane.b32.xlu0 %v2815, 4
        %v2839 = vpop.permute.xlu0 %2838
        %2840 = vrot.lane.b32.xlu0 %v2816, 4
        %v2841 = vpop.permute.xlu0 %2840
        %2842 = vrot.lane.b32.xlu0 %v2817, 4
        %v2843 = vpop.permute.xlu0 %2842
        %2844 = vrot.lane.b32.xlu0 %v2818, 4
        %v2845 = vpop.permute.xlu0 %2844
        %2846 = vrot.lane.b32.xlu0 %v2819, 4
        %v2847 = vpop.permute.xlu0 %2846
        %2848 = vrot.lane.b32.xlu0 %v2820, 4
        %v2849 = vpop.permute.xlu0 %2848
        %2850 = vrot.lane.b32.xlu0 %v2821, 4
        %v2851 = vpop.permute.xlu0 %2850
        %2852 = vrot.lane.b32.xlu0 %v2822, 4
        %v2853 = vpop.permute.xlu0 %2852
        %2854 = vrot.lane.b32.xlu0 %v2823, 4
        %v2855 = vpop.permute.xlu0 %2854
        %v2856 = vunpack.c.l.b16 %v1386
        %v2857 = vunpack.c.l.b16 %v1389
        %v2858 = vunpack.c.l.b16 %v1393
        %v2859 = vunpack.c.l.b16 %v1396
        %v2860 = vunpack.c.l.b16 %v1400
        %v2861 = vunpack.c.l.b16 %v1403
        %v2862 = vunpack.c.l.b16 %v1407
        %v2863 = vunpack.c.l.b16 %v1410
        %v2864 = vunpack.c.l.b16 %v1414
        %v2865 = vunpack.c.l.b16 %v1417
        %v2866 = vunpack.c.l.b16 %v1421
        %v2867 = vunpack.c.l.b16 %v1424
        %v2868 = vunpack.c.l.b16 %v1428
        %v2869 = vunpack.c.l.b16 %v1431
        %v2870 = vunpack.c.l.b16 %v1435
        %v2871 = vunpack.c.l.b16 %v1438
        %v2872 = vunpack.c.l.b16 %v1442
        %v2873 = vunpack.c.l.b16 %v1445
        %v2874 = vunpack.c.l.b16 %v1449
        %v2875 = vunpack.c.l.b16 %v1452
        %v2876 = vunpack.c.l.b16 %v1456
        %v2877 = vunpack.c.l.b16 %v1459
        %v2878 = vunpack.c.l.b16 %v1463
        %v2879 = vunpack.c.l.b16 %v1466
        %v2880 = vunpack.c.l.b16 %v1470
        %v2881 = vunpack.c.l.b16 %v1473
        %v2882 = vunpack.c.l.b16 %v1477
        %v2883 = vunpack.c.l.b16 %v1480
        %v2884 = vunpack.c.l.b16 %v1484
        %v2885 = vunpack.c.l.b16 %v1487
        %v2886 = vunpack.c.l.b16 %v1491
        %v2887 = vunpack.c.l.b16 %v1494
        %v2888 = vpack.c.b16 %v2857, %v2856
        %v2889 = vpack.c.b16 %v2859, %v2858
        %v2890 = vpack.c.b16 %v2861, %v2860
        %v2891 = vpack.c.b16 %v2863, %v2862
        %v2892 = vpack.c.b16 %v2865, %v2864
        %v2893 = vpack.c.b16 %v2867, %v2866
        %v2894 = vpack.c.b16 %v2869, %v2868
        %v2895 = vpack.c.b16 %v2871, %v2870
        %v2896 = vpack.c.b16 %v2873, %v2872
        %v2897 = vpack.c.b16 %v2875, %v2874
        %v2898 = vpack.c.b16 %v2877, %v2876
        %v2899 = vpack.c.b16 %v2879, %v2878
        %v2900 = vpack.c.b16 %v2881, %v2880
        %v2901 = vpack.c.b16 %v2883, %v2882
        %v2902 = vpack.c.b16 %v2885, %v2884
        %v2903 = vpack.c.b16 %v2887, %v2886
        %2904 = vrot.lane.b32.xlu0 %v2888, 8
        %v2905 = vpop.permute.xlu0 %2904
        %2906 = vrot.lane.b32.xlu0 %v2889, 8
        %v2907 = vpop.permute.xlu0 %2906
        %2908 = vrot.lane.b32.xlu0 %v2890, 8
        %v2909 = vpop.permute.xlu0 %2908
        %2910 = vrot.lane.b32.xlu0 %v2891, 8
        %v2911 = vpop.permute.xlu0 %2910
        %2912 = vrot.lane.b32.xlu0 %v2892, 8
        %v2913 = vpop.permute.xlu0 %2912
        %2914 = vrot.lane.b32.xlu0 %v2893, 8
        %v2915 = vpop.permute.xlu0 %2914
        %2916 = vrot.lane.b32.xlu0 %v2894, 8
        %v2917 = vpop.permute.xlu0 %2916
        %2918 = vrot.lane.b32.xlu0 %v2895, 8
        %v2919 = vpop.permute.xlu0 %2918
        %2920 = vrot.lane.b32.xlu0 %v2896, 8
        %v2921 = vpop.permute.xlu0 %2920
        %2922 = vrot.lane.b32.xlu0 %v2897, 8
        %v2923 = vpop.permute.xlu0 %2922
        %2924 = vrot.lane.b32.xlu0 %v2898, 8
        %v2925 = vpop.permute.xlu0 %2924
        %2926 = vrot.lane.b32.xlu0 %v2899, 8
        %v2927 = vpop.permute.xlu0 %2926
        %2928 = vrot.lane.b32.xlu0 %v2900, 8
        %v2929 = vpop.permute.xlu0 %2928
        %2930 = vrot.lane.b32.xlu0 %v2901, 8
        %v2931 = vpop.permute.xlu0 %2930
        %2932 = vrot.lane.b32.xlu0 %v2902, 8
        %v2933 = vpop.permute.xlu0 %2932
        %2934 = vrot.lane.b32.xlu0 %v2903, 8
        %v2935 = vpop.permute.xlu0 %2934
        %v2952 = vunpack.c.l.b16 %v1495
        %v2953 = vunpack.c.l.b16 %v1496
        %v2954 = vunpack.c.l.b16 %v1497
        %v2955 = vunpack.c.l.b16 %v1498
        %v2956 = vunpack.c.l.b16 %v1499
        %v2957 = vunpack.c.l.b16 %v1500
        %v2958 = vunpack.c.l.b16 %v1501
        %v2959 = vunpack.c.l.b16 %v1502
        %v2960 = vunpack.c.l.b16 %v1503
        %v2961 = vunpack.c.l.b16 %v1504
        %v2962 = vunpack.c.l.b16 %v1505
        %v2963 = vunpack.c.l.b16 %v1506
        %v2964 = vunpack.c.l.b16 %v1507
        %v2965 = vunpack.c.l.b16 %v1508
        %v2966 = vunpack.c.l.b16 %v1509
        %v2967 = vunpack.c.l.b16 %v1510
        %v2968 = vunpack.c.l.b16 %v1511
        %v2969 = vunpack.c.l.b16 %v1512
        %v2970 = vunpack.c.l.b16 %v1513
        %v2971 = vunpack.c.l.b16 %v1514
        %v2972 = vunpack.c.l.b16 %v1515
        %v2973 = vunpack.c.l.b16 %v1516
        %v2974 = vunpack.c.l.b16 %v1517
        %v2975 = vunpack.c.l.b16 %v1518
        %v2976 = vunpack.c.l.b16 %v1519
        %v2977 = vunpack.c.l.b16 %v1520
        %v2978 = vunpack.c.l.b16 %v1521
        %v2979 = vunpack.c.l.b16 %v1522
        %v2980 = vunpack.c.l.b16 %v1523
        %v2981 = vunpack.c.l.b16 %v1524
        %v2982 = vunpack.c.l.b16 %v1525
        %v2983 = vunpack.c.l.b16 %v1526
        %v2984 = vpack.c.b16 %v2953, %v2952
        %v2985 = vpack.c.b16 %v2955, %v2954
        %v2986 = vpack.c.b16 %v2957, %v2956
        %v2987 = vpack.c.b16 %v2959, %v2958
        %v2988 = vpack.c.b16 %v2961, %v2960
        %v2989 = vpack.c.b16 %v2963, %v2962
        %v2990 = vpack.c.b16 %v2965, %v2964
        %v2991 = vpack.c.b16 %v2967, %v2966
        %v2992 = vpack.c.b16 %v2969, %v2968
        %v2993 = vpack.c.b16 %v2971, %v2970
        %v2994 = vpack.c.b16 %v2973, %v2972
        %v2995 = vpack.c.b16 %v2975, %v2974
        %v2996 = vpack.c.b16 %v2977, %v2976
        %v2997 = vpack.c.b16 %v2979, %v2978
        %v2998 = vpack.c.b16 %v2981, %v2980
        %v2999 = vpack.c.b16 %v2983, %v2982
        %3000 = vrot.lane.b32.xlu0 %v2984, 12
        %v3001 = vpop.permute.xlu0 %3000
        %3002 = vrot.lane.b32.xlu0 %v2985, 12
        %v3003 = vpop.permute.xlu0 %3002
        %3004 = vrot.lane.b32.xlu0 %v2986, 12
        %v3005 = vpop.permute.xlu0 %3004
        %3006 = vrot.lane.b32.xlu0 %v2987, 12
        %v3007 = vpop.permute.xlu0 %3006
        %3008 = vrot.lane.b32.xlu0 %v2988, 12
        %v3009 = vpop.permute.xlu0 %3008
        %3010 = vrot.lane.b32.xlu0 %v2989, 12
        %v3011 = vpop.permute.xlu0 %3010
        %3012 = vrot.lane.b32.xlu0 %v2990, 12
        %v3013 = vpop.permute.xlu0 %3012
        %3014 = vrot.lane.b32.xlu0 %v2991, 12
        %v3015 = vpop.permute.xlu0 %3014
        %3016 = vrot.lane.b32.xlu0 %v2992, 12
        %v3017 = vpop.permute.xlu0 %3016
        %3018 = vrot.lane.b32.xlu0 %v2993, 12
        %v3019 = vpop.permute.xlu0 %3018
        %3020 = vrot.lane.b32.xlu0 %v2994, 12
        %v3021 = vpop.permute.xlu0 %3020
        %3022 = vrot.lane.b32.xlu0 %v2995, 12
        %v3023 = vpop.permute.xlu0 %3022
        %3024 = vrot.lane.b32.xlu0 %v2996, 12
        %v3025 = vpop.permute.xlu0 %3024
        %3026 = vrot.lane.b32.xlu0 %v2997, 12
        %v3027 = vpop.permute.xlu0 %3026
        %3028 = vrot.lane.b32.xlu0 %v2998, 12
        %v3029 = vpop.permute.xlu0 %3028
        %3030 = vrot.lane.b32.xlu0 %v2999, 12
        %v3031 = vpop.permute.xlu0 %3030
        %v3032 = vunpack.c.l.b16 %v1556
        %v3033 = vunpack.c.l.b16 %v1566
        %v3034 = vunpack.c.l.b16 %v1580
        %v3035 = vunpack.c.l.b16 %v1590
        %v3036 = vunpack.c.l.b16 %v1604
        %v3037 = vunpack.c.l.b16 %v1614
        %v3038 = vunpack.c.l.b16 %v1628
        %v3039 = vunpack.c.l.b16 %v1638
        %v3040 = vunpack.c.l.b16 %v1652
        %v3041 = vunpack.c.l.b16 %v1662
        %v3042 = vunpack.c.l.b16 %v1676
        %v3043 = vunpack.c.l.b16 %v1686
        %v3044 = vunpack.c.l.b16 %v1700
        %v3045 = vunpack.c.l.b16 %v1710
        %v3046 = vunpack.c.l.b16 %v1724
        %v3047 = vunpack.c.l.b16 %v1734
        %v3048 = vunpack.c.l.b16 %v1748
        %v3049 = vunpack.c.l.b16 %v1758
        %v3050 = vunpack.c.l.b16 %v1772
        %v3051 = vunpack.c.l.b16 %v1782
        %v3052 = vunpack.c.l.b16 %v1796
        %v3053 = vunpack.c.l.b16 %v1806
        %v3054 = vunpack.c.l.b16 %v1820
        %v3055 = vunpack.c.l.b16 %v1830
        %v3056 = vunpack.c.l.b16 %v1844
        %v3057 = vunpack.c.l.b16 %v1854
        %v3058 = vunpack.c.l.b16 %v1868
        %v3059 = vunpack.c.l.b16 %v1878
        %v3060 = vunpack.c.l.b16 %v1892
        %v3061 = vunpack.c.l.b16 %v1902
        %v3062 = vunpack.c.l.b16 %v1916
        %v3063 = vunpack.c.l.b16 %v1926
        %v3064 = vpack.c.b16 %v3033, %v3032
        %v3065 = vpack.c.b16 %v3035, %v3034
        %v3066 = vpack.c.b16 %v3037, %v3036
        %v3067 = vpack.c.b16 %v3039, %v3038
        %v3068 = vpack.c.b16 %v3041, %v3040
        %v3069 = vpack.c.b16 %v3043, %v3042
        %v3070 = vpack.c.b16 %v3045, %v3044
        %v3071 = vpack.c.b16 %v3047, %v3046
        %v3072 = vpack.c.b16 %v3049, %v3048
        %v3073 = vpack.c.b16 %v3051, %v3050
        %v3074 = vpack.c.b16 %v3053, %v3052
        %v3075 = vpack.c.b16 %v3055, %v3054
        %v3076 = vpack.c.b16 %v3057, %v3056
        %v3077 = vpack.c.b16 %v3059, %v3058
        %v3078 = vpack.c.b16 %v3061, %v3060
        %v3079 = vpack.c.b16 %v3063, %v3062
        %3080 = vrot.lane.b32.xlu0 %v3064, 16
        %v3081 = vpop.permute.xlu0 %3080
        %3082 = vrot.lane.b32.xlu0 %v3065, 16
        %v3083 = vpop.permute.xlu0 %3082
        %3084 = vrot.lane.b32.xlu0 %v3066, 16
        %v3085 = vpop.permute.xlu0 %3084
        %3086 = vrot.lane.b32.xlu0 %v3067, 16
        %v3087 = vpop.permute.xlu0 %3086
        %3088 = vrot.lane.b32.xlu0 %v3068, 16
        %v3089 = vpop.permute.xlu0 %3088
        %3090 = vrot.lane.b32.xlu0 %v3069, 16
        %v3091 = vpop.permute.xlu0 %3090
        %3092 = vrot.lane.b32.xlu0 %v3070, 16
        %v3093 = vpop.permute.xlu0 %3092
        %3094 = vrot.lane.b32.xlu0 %v3071, 16
        %v3095 = vpop.permute.xlu0 %3094
        %3096 = vrot.lane.b32.xlu0 %v3072, 16
        %v3097 = vpop.permute.xlu0 %3096
        %3098 = vrot.lane.b32.xlu0 %v3073, 16
        %v3099 = vpop.permute.xlu0 %3098
        %3100 = vrot.lane.b32.xlu0 %v3074, 16
        %v3101 = vpop.permute.xlu0 %3100
        %3102 = vrot.lane.b32.xlu0 %v3075, 16
        %v3103 = vpop.permute.xlu0 %3102
        %3104 = vrot.lane.b32.xlu0 %v3076, 16
        %v3105 = vpop.permute.xlu0 %3104
        %3106 = vrot.lane.b32.xlu0 %v3077, 16
        %v3107 = vpop.permute.xlu0 %3106
        %3108 = vrot.lane.b32.xlu0 %v3078, 16
        %v3109 = vpop.permute.xlu0 %3108
        %3110 = vrot.lane.b32.xlu0 %v3079, 16
        %v3111 = vpop.permute.xlu0 %3110
        %v3112 = vunpack.c.l.b16 %v1994
        %v3113 = vunpack.c.l.b16 %v1997
        %v3114 = vunpack.c.l.b16 %v2001
        %v3115 = vunpack.c.l.b16 %v2004
        %v3116 = vunpack.c.l.b16 %v2008
        %v3117 = vunpack.c.l.b16 %v2011
        %v3118 = vunpack.c.l.b16 %v2015
        %v3119 = vunpack.c.l.b16 %v2018
        %v3120 = vunpack.c.l.b16 %v2022
        %v3121 = vunpack.c.l.b16 %v2025
        %v3122 = vunpack.c.l.b16 %v2029
        %v3123 = vunpack.c.l.b16 %v2032
        %v3124 = vunpack.c.l.b16 %v2036
        %v3125 = vunpack.c.l.b16 %v2039
        %v3126 = vunpack.c.l.b16 %v2043
        %v3127 = vunpack.c.l.b16 %v2046
        %v3128 = vunpack.c.l.b16 %v2050
        %v3129 = vunpack.c.l.b16 %v2053
        %v3130 = vunpack.c.l.b16 %v2057
        %v3131 = vunpack.c.l.b16 %v2060
        %v3132 = vunpack.c.l.b16 %v2064
        %v3133 = vunpack.c.l.b16 %v2067
        %v3134 = vunpack.c.l.b16 %v2071
        %v3135 = vunpack.c.l.b16 %v2074
        %v3136 = vunpack.c.l.b16 %v2078
        %v3137 = vunpack.c.l.b16 %v2081
        %v3138 = vunpack.c.l.b16 %v2085
        %v3139 = vunpack.c.l.b16 %v2088
        %v3140 = vunpack.c.l.b16 %v2092
        %v3141 = vunpack.c.l.b16 %v2095
        %v3142 = vunpack.c.l.b16 %v2099
        %v3143 = vunpack.c.l.b16 %v2102
        %v3144 = vpack.c.b16 %v3113, %v3112
        %v3145 = vpack.c.b16 %v3115, %v3114
        %v3146 = vpack.c.b16 %v3117, %v3116
        %v3147 = vpack.c.b16 %v3119, %v3118
        %v3148 = vpack.c.b16 %v3121, %v3120
        %v3149 = vpack.c.b16 %v3123, %v3122
        %v3150 = vpack.c.b16 %v3125, %v3124
        %v3151 = vpack.c.b16 %v3127, %v3126
        %v3152 = vpack.c.b16 %v3129, %v3128
        %v3153 = vpack.c.b16 %v3131, %v3130
        %v3154 = vpack.c.b16 %v3133, %v3132
        %v3155 = vpack.c.b16 %v3135, %v3134
        %v3156 = vpack.c.b16 %v3137, %v3136
        %v3157 = vpack.c.b16 %v3139, %v3138
        %v3158 = vpack.c.b16 %v3141, %v3140
        %v3159 = vpack.c.b16 %v3143, %v3142
        %3160 = vrot.lane.b32.xlu0 %v3144, 20
        %v3161 = vpop.permute.xlu0 %3160
        %3162 = vrot.lane.b32.xlu0 %v3145, 20
        %v3163 = vpop.permute.xlu0 %3162
        %3164 = vrot.lane.b32.xlu0 %v3146, 20
        %v3165 = vpop.permute.xlu0 %3164
        %3166 = vrot.lane.b32.xlu0 %v3147, 20
        %v3167 = vpop.permute.xlu0 %3166
        %3168 = vrot.lane.b32.xlu0 %v3148, 20
        %v3169 = vpop.permute.xlu0 %3168
        %3170 = vrot.lane.b32.xlu0 %v3149, 20
        %v3171 = vpop.permute.xlu0 %3170
        %3172 = vrot.lane.b32.xlu0 %v3150, 20
        %v3173 = vpop.permute.xlu0 %3172
        %3174 = vrot.lane.b32.xlu0 %v3151, 20
        %v3175 = vpop.permute.xlu0 %3174
        %3176 = vrot.lane.b32.xlu0 %v3152, 20
        %v3177 = vpop.permute.xlu0 %3176
        %3178 = vrot.lane.b32.xlu0 %v3153, 20
        %v3179 = vpop.permute.xlu0 %3178
        %3180 = vrot.lane.b32.xlu0 %v3154, 20
        %v3181 = vpop.permute.xlu0 %3180
        %3182 = vrot.lane.b32.xlu0 %v3155, 20
        %v3183 = vpop.permute.xlu0 %3182
        %3184 = vrot.lane.b32.xlu0 %v3156, 20
        %v3185 = vpop.permute.xlu0 %3184
        %3186 = vrot.lane.b32.xlu0 %v3157, 20
        %v3187 = vpop.permute.xlu0 %3186
        %3188 = vrot.lane.b32.xlu0 %v3158, 20
        %v3189 = vpop.permute.xlu0 %3188
        %3190 = vrot.lane.b32.xlu0 %v3159, 20
        %v3191 = vpop.permute.xlu0 %3190
        %v3208 = vunpack.c.l.b16 %v2104
        %v3209 = vunpack.c.l.b16 %v2105
        %v3210 = vunpack.c.l.b16 %v2106
        %v3211 = vunpack.c.l.b16 %v2107
        %v3212 = vunpack.c.l.b16 %v2108
        %v3213 = vunpack.c.l.b16 %v2109
        %v3214 = vunpack.c.l.b16 %v2110
        %v3215 = vunpack.c.l.b16 %v2111
        %v3216 = vunpack.c.l.b16 %v2112
        %v3217 = vunpack.c.l.b16 %v2113
        %v3218 = vunpack.c.l.b16 %v2114
        %v3219 = vunpack.c.l.b16 %v2115
        %v3220 = vunpack.c.l.b16 %v2116
        %v3221 = vunpack.c.l.b16 %v2117
        %v3222 = vunpack.c.l.b16 %v2118
        %v3223 = vunpack.c.l.b16 %v2119
        %v3224 = vunpack.c.l.b16 %v2120
        %v3225 = vunpack.c.l.b16 %v2121
        %v3226 = vunpack.c.l.b16 %v2122
        %v3227 = vunpack.c.l.b16 %v2123
        %v3228 = vunpack.c.l.b16 %v2124
        %v3229 = vunpack.c.l.b16 %v2125
        %v3230 = vunpack.c.l.b16 %v2126
        %v3231 = vunpack.c.l.b16 %v2127
        %v3232 = vunpack.c.l.b16 %v2128
        %v3233 = vunpack.c.l.b16 %v2129
        %v3234 = vunpack.c.l.b16 %v2130
        %v3235 = vunpack.c.l.b16 %v2131
        %v3236 = vunpack.c.l.b16 %v2132
        %v3237 = vunpack.c.l.b16 %v2133
        %v3238 = vunpack.c.l.b16 %v2134
        %v3239 = vunpack.c.l.b16 %v2135
        %v3240 = vpack.c.b16 %v3209, %v3208
        %v3241 = vpack.c.b16 %v3211, %v3210
        %v3242 = vpack.c.b16 %v3213, %v3212
        %v3243 = vpack.c.b16 %v3215, %v3214
        %v3244 = vpack.c.b16 %v3217, %v3216
        %v3245 = vpack.c.b16 %v3219, %v3218
        %v3246 = vpack.c.b16 %v3221, %v3220
        %v3247 = vpack.c.b16 %v3223, %v3222
        %v3248 = vpack.c.b16 %v3225, %v3224
        %v3249 = vpack.c.b16 %v3227, %v3226
        %v3250 = vpack.c.b16 %v3229, %v3228
        %v3251 = vpack.c.b16 %v3231, %v3230
        %v3252 = vpack.c.b16 %v3233, %v3232
        %v3253 = vpack.c.b16 %v3235, %v3234
        %v3254 = vpack.c.b16 %v3237, %v3236
        %v3255 = vpack.c.b16 %v3239, %v3238
        %3256 = vrot.lane.b32.xlu0 %v3240, 24
        %v3257 = vpop.permute.xlu0 %3256
        %3258 = vrot.lane.b32.xlu0 %v3241, 24
        %v3259 = vpop.permute.xlu0 %3258
        %3260 = vrot.lane.b32.xlu0 %v3242, 24
        %v3261 = vpop.permute.xlu0 %3260
        %3262 = vrot.lane.b32.xlu0 %v3243, 24
        %v3263 = vpop.permute.xlu0 %3262
        %3264 = vrot.lane.b32.xlu0 %v3244, 24
        %v3265 = vpop.permute.xlu0 %3264
        %3266 = vrot.lane.b32.xlu0 %v3245, 24
        %v3267 = vpop.permute.xlu0 %3266
        %3268 = vrot.lane.b32.xlu0 %v3246, 24
        %v3269 = vpop.permute.xlu0 %3268
        %3270 = vrot.lane.b32.xlu0 %v3247, 24
        %v3271 = vpop.permute.xlu0 %3270
        %3272 = vrot.lane.b32.xlu0 %v3248, 24
        %v3273 = vpop.permute.xlu0 %3272
        %3274 = vrot.lane.b32.xlu0 %v3249, 24
        %v3275 = vpop.permute.xlu0 %3274
        %3276 = vrot.lane.b32.xlu0 %v3250, 24
        %v3277 = vpop.permute.xlu0 %3276
        %3278 = vrot.lane.b32.xlu0 %v3251, 24
        %v3279 = vpop.permute.xlu0 %3278
        %3280 = vrot.lane.b32.xlu0 %v3252, 24
        %v3281 = vpop.permute.xlu0 %3280
        %3282 = vrot.lane.b32.xlu0 %v3253, 24
        %v3283 = vpop.permute.xlu0 %3282
        %3284 = vrot.lane.b32.xlu0 %v3254, 24
        %v3285 = vpop.permute.xlu0 %3284
        %3286 = vrot.lane.b32.xlu0 %v3255, 24
        %v3287 = vpop.permute.xlu0 %3286
        %v3288 = vunpack.c.l.b16 %v2165
        %v3289 = vunpack.c.l.b16 %v2175
        %v3290 = vunpack.c.l.b16 %v2189
        %v3291 = vunpack.c.l.b16 %v2199
        %v3292 = vunpack.c.l.b16 %v2213
        %v3293 = vunpack.c.l.b16 %v2223
        %v3294 = vunpack.c.l.b16 %v2237
        %v3295 = vunpack.c.l.b16 %v2247
        %v3296 = vunpack.c.l.b16 %v2261
        %v3297 = vunpack.c.l.b16 %v2271
        %v3298 = vunpack.c.l.b16 %v2285
        %v3299 = vunpack.c.l.b16 %v2295
        %v3300 = vunpack.c.l.b16 %v2309
        %v3301 = vunpack.c.l.b16 %v2319
        %v3302 = vunpack.c.l.b16 %v2333
        %v3303 = vunpack.c.l.b16 %v2343
        %v3304 = vunpack.c.l.b16 %v2357
        %v3305 = vunpack.c.l.b16 %v2367
        %v3306 = vunpack.c.l.b16 %v2381
        %v3307 = vunpack.c.l.b16 %v2391
        %v3308 = vunpack.c.l.b16 %v2405
        %v3309 = vunpack.c.l.b16 %v2415
        %v3310 = vunpack.c.l.b16 %v2429
        %v3311 = vunpack.c.l.b16 %v2439
        %v3312 = vunpack.c.l.b16 %v2453
        %v3313 = vunpack.c.l.b16 %v2463
        %v3314 = vunpack.c.l.b16 %v2477
        %v3315 = vunpack.c.l.b16 %v2487
        %v3316 = vunpack.c.l.b16 %v2501
        %v3317 = vunpack.c.l.b16 %v2511
        %v3318 = vunpack.c.l.b16 %v2525
        %v3319 = vunpack.c.l.b16 %v2535
        %v3320 = vpack.c.b16 %v3289, %v3288
        %v3321 = vpack.c.b16 %v3291, %v3290
        %v3322 = vpack.c.b16 %v3293, %v3292
        %v3323 = vpack.c.b16 %v3295, %v3294
        %v3324 = vpack.c.b16 %v3297, %v3296
        %v3325 = vpack.c.b16 %v3299, %v3298
        %v3326 = vpack.c.b16 %v3301, %v3300
        %v3327 = vpack.c.b16 %v3303, %v3302
        %v3328 = vpack.c.b16 %v3305, %v3304
        %v3329 = vpack.c.b16 %v3307, %v3306
        %v3330 = vpack.c.b16 %v3309, %v3308
        %v3331 = vpack.c.b16 %v3311, %v3310
        %v3332 = vpack.c.b16 %v3313, %v3312
        %v3333 = vpack.c.b16 %v3315, %v3314
        %v3334 = vpack.c.b16 %v3317, %v3316
        %v3335 = vpack.c.b16 %v3319, %v3318
        %3336 = vrot.lane.b32.xlu0 %v3320, 28
        %v3337 = vpop.permute.xlu0 %3336
        %3338 = vrot.lane.b32.xlu0 %v3321, 28
        %v3339 = vpop.permute.xlu0 %3338
        %3340 = vrot.lane.b32.xlu0 %v3322, 28
        %v3341 = vpop.permute.xlu0 %3340
        %3342 = vrot.lane.b32.xlu0 %v3323, 28
        %v3343 = vpop.permute.xlu0 %3342
        %3344 = vrot.lane.b32.xlu0 %v3324, 28
        %v3345 = vpop.permute.xlu0 %3344
        %3346 = vrot.lane.b32.xlu0 %v3325, 28
        %v3347 = vpop.permute.xlu0 %3346
        %3348 = vrot.lane.b32.xlu0 %v3326, 28
        %v3349 = vpop.permute.xlu0 %3348
        %3350 = vrot.lane.b32.xlu0 %v3327, 28
        %v3351 = vpop.permute.xlu0 %3350
        %3352 = vrot.lane.b32.xlu0 %v3328, 28
        %v3353 = vpop.permute.xlu0 %3352
        %3354 = vrot.lane.b32.xlu0 %v3329, 28
        %v3355 = vpop.permute.xlu0 %3354
        %3356 = vrot.lane.b32.xlu0 %v3330, 28
        %v3357 = vpop.permute.xlu0 %3356
        %3358 = vrot.lane.b32.xlu0 %v3331, 28
        %v3359 = vpop.permute.xlu0 %3358
        %3360 = vrot.lane.b32.xlu0 %v3332, 28
        %v3361 = vpop.permute.xlu0 %3360
        %3362 = vrot.lane.b32.xlu0 %v3333, 28
        %v3363 = vpop.permute.xlu0 %3362
        %3364 = vrot.lane.b32.xlu0 %v3334, 28
        %v3365 = vpop.permute.xlu0 %3364
        %3366 = vrot.lane.b32.xlu0 %v3335, 28
        %v3367 = vpop.permute.xlu0 %3366
        %v3368 = vunpack.c.l.b16 %v2603
        %v3369 = vunpack.c.l.b16 %v2606
        %v3370 = vunpack.c.l.b16 %v2610
        %v3371 = vunpack.c.l.b16 %v2613
        %v3372 = vunpack.c.l.b16 %v2617
        %v3373 = vunpack.c.l.b16 %v2620
        %v3374 = vunpack.c.l.b16 %v2624
        %v3375 = vunpack.c.l.b16 %v2627
        %v3376 = vunpack.c.l.b16 %v2631
        %v3377 = vunpack.c.l.b16 %v2634
        %v3378 = vunpack.c.l.b16 %v2638
        %v3379 = vunpack.c.l.b16 %v2641
        %v3380 = vunpack.c.l.b16 %v2645
        %v3381 = vunpack.c.l.b16 %v2648
        %v3382 = vunpack.c.l.b16 %v2652
        %v3383 = vunpack.c.l.b16 %v2655
        %v3384 = vunpack.c.l.b16 %v2659
        %v3385 = vunpack.c.l.b16 %v2662
        %v3386 = vunpack.c.l.b16 %v2666
        %v3387 = vunpack.c.l.b16 %v2669
        %v3388 = vunpack.c.l.b16 %v2673
        %v3389 = vunpack.c.l.b16 %v2676
        %v3390 = vunpack.c.l.b16 %v2680
        %v3391 = vunpack.c.l.b16 %v2683
        %v3392 = vunpack.c.l.b16 %v2687
        %v3393 = vunpack.c.l.b16 %v2690
        %v3394 = vunpack.c.l.b16 %v2694
        %v3395 = vunpack.c.l.b16 %v2697
        %v3396 = vunpack.c.l.b16 %v2701
        %v3397 = vunpack.c.l.b16 %v2704
        %v3398 = vunpack.c.l.b16 %v2708
        %v3399 = vunpack.c.l.b16 %v2711
        %v3400 = vpack.c.b16 %v3369, %v3368
        %v3401 = vpack.c.b16 %v3371, %v3370
        %v3402 = vpack.c.b16 %v3373, %v3372
        %v3403 = vpack.c.b16 %v3375, %v3374
        %v3404 = vpack.c.b16 %v3377, %v3376
        %v3405 = vpack.c.b16 %v3379, %v3378
        %v3406 = vpack.c.b16 %v3381, %v3380
        %v3407 = vpack.c.b16 %v3383, %v3382
        %v3408 = vpack.c.b16 %v3385, %v3384
        %v3409 = vpack.c.b16 %v3387, %v3386
        %v3410 = vpack.c.b16 %v3389, %v3388
        %v3411 = vpack.c.b16 %v3391, %v3390
        %v3412 = vpack.c.b16 %v3393, %v3392
        %v3413 = vpack.c.b16 %v3395, %v3394
        %v3414 = vpack.c.b16 %v3397, %v3396
        %v3415 = vpack.c.b16 %v3399, %v3398
        %3416 = vrot.lane.b32.xlu0 %v3400, 32
        %v3417 = vpop.permute.xlu0 %3416
        %3418 = vrot.lane.b32.xlu0 %v3401, 32
        %v3419 = vpop.permute.xlu0 %3418
        %3420 = vrot.lane.b32.xlu0 %v3402, 32
        %v3421 = vpop.permute.xlu0 %3420
        %3422 = vrot.lane.b32.xlu0 %v3403, 32
        %v3423 = vpop.permute.xlu0 %3422
        %3424 = vrot.lane.b32.xlu0 %v3404, 32
        %v3425 = vpop.permute.xlu0 %3424
        %3426 = vrot.lane.b32.xlu0 %v3405, 32
        %v3427 = vpop.permute.xlu0 %3426
        %3428 = vrot.lane.b32.xlu0 %v3406, 32
        %v3429 = vpop.permute.xlu0 %3428
        %3430 = vrot.lane.b32.xlu0 %v3407, 32
        %v3431 = vpop.permute.xlu0 %3430
        %3432 = vrot.lane.b32.xlu0 %v3408, 32
        %v3433 = vpop.permute.xlu0 %3432
        %3434 = vrot.lane.b32.xlu0 %v3409, 32
        %v3435 = vpop.permute.xlu0 %3434
        %3436 = vrot.lane.b32.xlu0 %v3410, 32
        %v3437 = vpop.permute.xlu0 %3436
        %3438 = vrot.lane.b32.xlu0 %v3411, 32
        %v3439 = vpop.permute.xlu0 %3438
        %3440 = vrot.lane.b32.xlu0 %v3412, 32
        %v3441 = vpop.permute.xlu0 %3440
        %3442 = vrot.lane.b32.xlu0 %v3413, 32
        %v3443 = vpop.permute.xlu0 %3442
        %3444 = vrot.lane.b32.xlu0 %v3414, 32
        %v3445 = vpop.permute.xlu0 %3444
        %3446 = vrot.lane.b32.xlu0 %v3415, 32
        %v3447 = vpop.permute.xlu0 %3446
        %vm3448 = vcmask 31744
        %v3451 = vsel %vm3448, %v2760, %v2825
        %v3454 = vsel %vm3448, %v2761, %v2827
        %v3457 = vsel %vm3448, %v2762, %v2829
        %v3460 = vsel %vm3448, %v2763, %v2831
        %v3463 = vsel %vm3448, %v2764, %v2833
        %v3466 = vsel %vm3448, %v2765, %v2835
        %v3469 = vsel %vm3448, %v2766, %v2837
        %v3472 = vsel %vm3448, %v2767, %v2839
        %v3475 = vsel %vm3448, %v2768, %v2841
        %v3478 = vsel %vm3448, %v2769, %v2843
        %v3481 = vsel %vm3448, %v2770, %v2845
        %v3484 = vsel %vm3448, %v2771, %v2847
        %v3487 = vsel %vm3448, %v2772, %v2849
        %v3490 = vsel %vm3448, %v2773, %v2851
        %v3493 = vsel %vm3448, %v2774, %v2853
        %v3496 = vsel %vm3448, %v2775, %v2855
        %vm3497 = vcmask 64512
        %v3499 = vsel %vm3497, %v3451, %v2905
        %v3501 = vsel %vm3497, %v3454, %v2907
        %v3503 = vsel %vm3497, %v3457, %v2909
        %v3505 = vsel %vm3497, %v3460, %v2911
        %v3507 = vsel %vm3497, %v3463, %v2913
        %v3509 = vsel %vm3497, %v3466, %v2915
        %v3511 = vsel %vm3497, %v3469, %v2917
        %v3513 = vsel %vm3497, %v3472, %v2919
        %v3515 = vsel %vm3497, %v3475, %v2921
        %v3517 = vsel %vm3497, %v3478, %v2923
        %v3519 = vsel %vm3497, %v3481, %v2925
        %v3521 = vsel %vm3497, %v3484, %v2927
        %v3523 = vsel %vm3497, %v3487, %v2929
        %v3525 = vsel %vm3497, %v3490, %v2931
        %v3527 = vsel %vm3497, %v3493, %v2933
        %v3529 = vsel %vm3497, %v3496, %v2935
        %vm3530 = vcmask 97280
        %v3532 = vsel %vm3530, %v3499, %v3001
        %v3534 = vsel %vm3530, %v3501, %v3003
        %v3536 = vsel %vm3530, %v3503, %v3005
        %v3538 = vsel %vm3530, %v3505, %v3007
        %v3540 = vsel %vm3530, %v3507, %v3009
        %v3542 = vsel %vm3530, %v3509, %v3011
        %v3544 = vsel %vm3530, %v3511, %v3013
        %v3546 = vsel %vm3530, %v3513, %v3015
        %v3548 = vsel %vm3530, %v3515, %v3017
        %v3550 = vsel %vm3530, %v3517, %v3019
        %v3552 = vsel %vm3530, %v3519, %v3021
        %v3554 = vsel %vm3530, %v3521, %v3023
        %v3556 = vsel %vm3530, %v3523, %v3025
        %v3558 = vsel %vm3530, %v3525, %v3027
        %v3560 = vsel %vm3530, %v3527, %v3029
        %v3562 = vsel %vm3530, %v3529, %v3031
        %vm3563 = vcmask 130048
        %v3565 = vsel %vm3563, %v3532, %v3081
        %v3567 = vsel %vm3563, %v3534, %v3083
        %v3569 = vsel %vm3563, %v3536, %v3085
        %v3571 = vsel %vm3563, %v3538, %v3087
        %v3573 = vsel %vm3563, %v3540, %v3089
        %v3575 = vsel %vm3563, %v3542, %v3091
        %v3577 = vsel %vm3563, %v3544, %v3093
        %v3579 = vsel %vm3563, %v3546, %v3095
        %v3581 = vsel %vm3563, %v3548, %v3097
        %v3583 = vsel %vm3563, %v3550, %v3099
        %v3585 = vsel %vm3563, %v3552, %v3101
        %v3587 = vsel %vm3563, %v3554, %v3103
        %v3589 = vsel %vm3563, %v3556, %v3105
        %v3591 = vsel %vm3563, %v3558, %v3107
        %v3593 = vsel %vm3563, %v3560, %v3109
        %v3595 = vsel %vm3563, %v3562, %v3111
        %vm3596 = vcmask 162816
        %v3598 = vsel %vm3596, %v3565, %v3161
        %v3600 = vsel %vm3596, %v3567, %v3163
        %v3602 = vsel %vm3596, %v3569, %v3165
        %v3604 = vsel %vm3596, %v3571, %v3167
        %v3606 = vsel %vm3596, %v3573, %v3169
        %v3608 = vsel %vm3596, %v3575, %v3171
        %v3610 = vsel %vm3596, %v3577, %v3173
        %v3612 = vsel %vm3596, %v3579, %v3175
        %v3614 = vsel %vm3596, %v3581, %v3177
        %v3616 = vsel %vm3596, %v3583, %v3179
        %v3618 = vsel %vm3596, %v3585, %v3181
        %v3620 = vsel %vm3596, %v3587, %v3183
        %v3622 = vsel %vm3596, %v3589, %v3185
        %v3624 = vsel %vm3596, %v3591, %v3187
        %v3626 = vsel %vm3596, %v3593, %v3189
        %v3628 = vsel %vm3596, %v3595, %v3191
        %vm3629 = vcmask 195584
        %v3631 = vsel %vm3629, %v3598, %v3257
        %v3633 = vsel %vm3629, %v3600, %v3259
        %v3635 = vsel %vm3629, %v3602, %v3261
        %v3637 = vsel %vm3629, %v3604, %v3263
        %v3639 = vsel %vm3629, %v3606, %v3265
        %v3641 = vsel %vm3629, %v3608, %v3267
        %v3643 = vsel %vm3629, %v3610, %v3269
        %v3645 = vsel %vm3629, %v3612, %v3271
        %v3647 = vsel %vm3629, %v3614, %v3273
        %v3649 = vsel %vm3629, %v3616, %v3275
        %v3651 = vsel %vm3629, %v3618, %v3277
        %v3653 = vsel %vm3629, %v3620, %v3279
        %v3655 = vsel %vm3629, %v3622, %v3281
        %v3657 = vsel %vm3629, %v3624, %v3283
        %v3659 = vsel %vm3629, %v3626, %v3285
        %v3661 = vsel %vm3629, %v3628, %v3287
        %vm3662 = vcmask 228352
        %v3664 = vsel %vm3662, %v3631, %v3337
        %v3666 = vsel %vm3662, %v3633, %v3339
        %v3668 = vsel %vm3662, %v3635, %v3341
        %v3670 = vsel %vm3662, %v3637, %v3343
        %v3672 = vsel %vm3662, %v3639, %v3345
        %v3674 = vsel %vm3662, %v3641, %v3347
        %v3676 = vsel %vm3662, %v3643, %v3349
        %v3678 = vsel %vm3662, %v3645, %v3351
        %v3680 = vsel %vm3662, %v3647, %v3353
        %v3682 = vsel %vm3662, %v3649, %v3355
        %v3684 = vsel %vm3662, %v3651, %v3357
        %v3686 = vsel %vm3662, %v3653, %v3359
        %v3688 = vsel %vm3662, %v3655, %v3361
        %v3690 = vsel %vm3662, %v3657, %v3363
        %v3692 = vsel %vm3662, %v3659, %v3365
        %v3694 = vsel %vm3662, %v3661, %v3367
        %vm3695 = vcmask 261120
        %v3697 = vsel %vm3695, %v3664, %v3417
        %v3699 = vsel %vm3695, %v3666, %v3419
        %v3701 = vsel %vm3695, %v3668, %v3421
        %v3703 = vsel %vm3695, %v3670, %v3423
        %v3705 = vsel %vm3695, %v3672, %v3425
        %v3707 = vsel %vm3695, %v3674, %v3427
        %v3709 = vsel %vm3695, %v3676, %v3429
        %v3711 = vsel %vm3695, %v3678, %v3431
        %v3713 = vsel %vm3695, %v3680, %v3433
        %v3715 = vsel %vm3695, %v3682, %v3435
        %v3717 = vsel %vm3695, %v3684, %v3437
        %v3719 = vsel %vm3695, %v3686, %v3439
        %v3721 = vsel %vm3695, %v3688, %v3441
        %v3723 = vsel %vm3695, %v3690, %v3443
        %v3725 = vsel %vm3695, %v3692, %v3445
        %v3727 = vsel %vm3695, %v3694, %v3447
        %vm3728 = vcmask 293888
        %v3730 = vsel %vm3728, %v3697, 0
        %v3732 = vsel %vm3728, %v3699, 0
        %v3734 = vsel %vm3728, %v3701, 0
        %v3736 = vsel %vm3728, %v3703, 0
        %v3738 = vsel %vm3728, %v3705, 0
        %v3740 = vsel %vm3728, %v3707, 0
        %v3742 = vsel %vm3728, %v3709, 0
        %v3744 = vsel %vm3728, %v3711, 0
        %v3746 = vsel %vm3728, %v3713, 0
        %v3748 = vsel %vm3728, %v3715, 0
        %v3750 = vsel %vm3728, %v3717, 0
        %v3752 = vsel %vm3728, %v3719, 0
        %v3754 = vsel %vm3728, %v3721, 0
        %v3756 = vsel %vm3728, %v3723, 0
        %v3758 = vsel %vm3728, %v3725, 0
        %v3760 = vsel %vm3728, %v3727, 0
        %v3762 = vld [vmem:[#allocation7] sm:$0xf]
        %v3763 = vld [vmem:[#allocation7 + $0x4] sm:$0xf]
        %v3764 = vld [vmem:[#allocation7 + $0x8] sm:$0xf]
        %v3765 = vld [vmem:[#allocation7 + $0xc] sm:$0xf]
        %v3766 = vld [vmem:[#allocation7 + $0x10] sm:$0xf]
        %v3767 = vld [vmem:[#allocation7 + $0x14] sm:$0xf]
        %v3768 = vld [vmem:[#allocation7 + $0x18] sm:$0xf]
        %v3769 = vld [vmem:[#allocation7 + $0x1c] sm:$0xf]
        %v3770 = vld [vmem:[#allocation7 + $0x20] sm:$0xf]
        %v3771 = vld [vmem:[#allocation7 + $0x24] sm:$0xf]
        %v3772 = vld [vmem:[#allocation7 + $0x28] sm:$0xf]
        %v3773 = vld [vmem:[#allocation7 + $0x2c] sm:$0xf]
        %v3774 = vld [vmem:[#allocation7 + $0x30] sm:$0xf]
        %v3775 = vld [vmem:[#allocation7 + $0x34] sm:$0xf]
        %v3776 = vld [vmem:[#allocation7 + $0x38] sm:$0xf]
        %v3777 = vld [vmem:[#allocation7 + $0x3c] sm:$0xf]
        %v3778 = vld [vmem:[#allocation9] sm:$0x1]
        %v3780 = vlaneseq
        %v3781 = vshrl.u32 %v3780, 7
        %v3782 = vsub.s32 0, %v3781
        %v3783 = vrot.slane %v3778, %v3782
        %v3801 = vunpack.c.l.b16 %v3762
        %v3802 = vunpack.c.l.b16 %v3763
        %v3803 = vunpack.c.l.b16 %v3764
        %v3804 = vunpack.c.l.b16 %v3765
        %v3805 = vunpack.c.l.b16 %v3766
        %v3806 = vunpack.c.l.b16 %v3767
        %v3807 = vunpack.c.l.b16 %v3768
        %v3808 = vunpack.c.l.b16 %v3769
        %v3809 = vunpack.c.l.b16 %v3770
        %v3810 = vunpack.c.l.b16 %v3771
        %v3811 = vunpack.c.l.b16 %v3772
        %v3812 = vunpack.c.l.b16 %v3773
        %v3813 = vunpack.c.l.b16 %v3774
        %v3814 = vunpack.c.l.b16 %v3775
        %v3815 = vunpack.c.l.b16 %v3776
        %v3816 = vunpack.c.l.b16 %v3777
        %v3817 = vpack.c.b16 %v3802, %v3801
        %v3818 = vpack.c.b16 %v3804, %v3803
        %v3819 = vpack.c.b16 %v3806, %v3805
        %v3820 = vpack.c.b16 %v3808, %v3807
        %v3821 = vpack.c.b16 %v3810, %v3809
        %v3822 = vpack.c.b16 %v3812, %v3811
        %v3823 = vpack.c.b16 %v3814, %v3813
        %v3824 = vpack.c.b16 %v3816, %v3815
        %3833 = vmatprep.subr.bf16.mxu0 0
        %3834 = vmatpush1.bf16.msra.mxu0 %v3817
        %3835 = vmatprep.subr.bf16.mxu0 0
        %3836 = vmatpush1.bf16.msra.mxu0 %v3818
        %3837 = vmatprep.subr.bf16.mxu0 0
        %3838 = vmatpush1.bf16.msra.mxu0 %v3819
        %3839 = vmatprep.subr.bf16.mxu0 0
        %3840 = vmatpush1.bf16.msra.mxu0 %v3820
        %3841 = vmatprep.subr.bf16.mxu0 0
        %3842 = vmatpush1.bf16.msra.mxu0 %v3821
        %3843 = vmatprep.subr.bf16.mxu0 0
        %3844 = vmatpush1.bf16.msra.mxu0 %v3822
        %3845 = vmatprep.subr.bf16.mxu0 0
        %3846 = vmatpush1.bf16.msra.mxu0 %v3823
        %3847 = vmatprep.subr.bf16.mxu0 0
        %3848 = vmatpush1.bf16.msra.mxu0 %v3824
        %3849 = vmatprep.subr.bf16.mxu0 0
        %3850 = vmatpush1.bf16.msra.mxu0 0
        %3851 = vmatprep.subr.bf16.mxu0 0
        %3852 = vmatpush1.bf16.msra.mxu0 0
        %3853 = vmatprep.subr.bf16.mxu0 0
        %3854 = vmatpush1.bf16.msra.mxu0 0
        %3855 = vmatprep.subr.bf16.mxu0 0
        %3856 = vmatpush1.bf16.msra.mxu0 0
        %3857 = vmatprep.subr.bf16.mxu0 0
        %3858 = vmatpush1.bf16.msra.mxu0 0
        %3859 = vmatprep.subr.bf16.mxu0 0
        %3860 = vmatpush1.bf16.msra.mxu0 0
        %3861 = vmatprep.subr.bf16.mxu0 0
        %3862 = vmatpush1.bf16.msra.mxu0 0
        %3863 = vmatprep.subr.bf16.mxu0 0
        %3864 = vmatpush1.bf16.msra.mxu0 0
        %3865 = vmatprep.mubr.bf16.mxu0 0
        %3866 = vmatmul.mubr.bf16.gmra.mrb[0].mxu0 %v3730
        %v3867 = vpop.f32.mrb[0].mxu0
        %v3868 = vadd.f32 %v3783, %v3867
        %v3869 = vpop.f32.mrb[0].mxu0
        %v3870 = vpop.f32.mrb[0].mxu0
        %v3871 = vadd.f32 %v3783, %v3870
        %v3872 = vpop.f32.mrb[0].mxu0
        %3873 = vmatprep.mubr.bf16.mxu0 0
        %3874 = vmatmul.mubr.bf16.gmra.mrb[0].mxu0 %v3732
        %v3875 = vpop.f32.mrb[0].mxu0
        %v3876 = vadd.f32 %v3783, %v3875
        %v3877 = vpop.f32.mrb[0].mxu0
        %v3878 = vpop.f32.mrb[0].mxu0
        %v3879 = vadd.f32 %v3783, %v3878
        %v3880 = vpop.f32.mrb[0].mxu0
        %3881 = vmatprep.mubr.bf16.mxu0 0
        %3882 = vmatmul.mubr.bf16.gmra.mrb[0].mxu0 %v3734
        %v3883 = vpop.f32.mrb[0].mxu0
        %v3884 = vadd.f32 %v3783, %v3883
        %v3885 = vpop.f32.mrb[0].mxu0
        %v3886 = vpop.f32.mrb[0].mxu0
        %v3887 = vadd.f32 %v3783, %v3886
        %v3888 = vpop.f32.mrb[0].mxu0
        %3889 = vmatprep.mubr.bf16.mxu0 0
        %3890 = vmatmul.mubr.bf16.gmra.mrb[0].mxu0 %v3736
        %v3891 = vpop.f32.mrb[0].mxu0
        %v3892 = vadd.f32 %v3783, %v3891
        %v3893 = vpop.f32.mrb[0].mxu0
        %v3894 = vpop.f32.mrb[0].mxu0
        %v3895 = vadd.f32 %v3783, %v3894
        %v3896 = vpop.f32.mrb[0].mxu0
        %3897 = vmatprep.mubr.bf16.mxu0 0
        %3898 = vmatmul.mubr.bf16.gmra.mrb[0].mxu0 %v3738
        %v3899 = vpop.f32.mrb[0].mxu0
        %v3900 = vadd.f32 %v3783, %v3899
        %v3901 = vpop.f32.mrb[0].mxu0
        %v3902 = vpop.f32.mrb[0].mxu0
        %v3903 = vadd.f32 %v3783, %v3902
        %v3904 = vpop.f32.mrb[0].mxu0
        %3905 = vmatprep.mubr.bf16.mxu0 0
        %3906 = vmatmul.mubr.bf16.gmra.mrb[0].mxu0 %v3740
        %v3907 = vpop.f32.mrb[0].mxu0
        %v3908 = vadd.f32 %v3783, %v3907
        %v3909 = vpop.f32.mrb[0].mxu0
        %v3910 = vpop.f32.mrb[0].mxu0
        %v3911 = vadd.f32 %v3783, %v3910
        %v3912 = vpop.f32.mrb[0].mxu0
        %3913 = vmatprep.mubr.bf16.mxu0 0
        %3914 = vmatmul.mubr.bf16.gmra.mrb[0].mxu0 %v3742
        %v3915 = vpop.f32.mrb[0].mxu0
        %v3916 = vadd.f32 %v3783, %v3915
        %v3917 = vpop.f32.mrb[0].mxu0
        %v3918 = vpop.f32.mrb[0].mxu0
        %v3919 = vadd.f32 %v3783, %v3918
        %v3920 = vpop.f32.mrb[0].mxu0
        %3921 = vmatprep.mubr.bf16.mxu0 0
        %3922 = vmatmul.mubr.bf16.gmra.mrb[0].mxu0 %v3744
        %v3923 = vpop.f32.mrb[0].mxu0
        %v3924 = vadd.f32 %v3783, %v3923
        %v3925 = vpop.f32.mrb[0].mxu0
        %v3926 = vpop.f32.mrb[0].mxu0
        %v3927 = vadd.f32 %v3783, %v3926
        %v3928 = vpop.f32.mrb[0].mxu0
        %3929 = vmatprep.mubr.bf16.mxu0 0
        %3930 = vmatmul.mubr.bf16.gmra.mrb[0].mxu0 %v3746
        %v3931 = vpop.f32.mrb[0].mxu0
        %v3932 = vadd.f32 %v3783, %v3931
        %v3933 = vpop.f32.mrb[0].mxu0
        %v3934 = vpop.f32.mrb[0].mxu0
        %v3935 = vadd.f32 %v3783, %v3934
        %v3936 = vpop.f32.mrb[0].mxu0
        %3937 = vmatprep.mubr.bf16.mxu0 0
        %3938 = vmatmul.mubr.bf16.gmra.mrb[0].mxu0 %v3748
        %v3939 = vpop.f32.mrb[0].mxu0
        %v3940 = vadd.f32 %v3783, %v3939
        %v3941 = vpop.f32.mrb[0].mxu0
        %v3942 = vpop.f32.mrb[0].mxu0
        %v3943 = vadd.f32 %v3783, %v3942
        %v3944 = vpop.f32.mrb[0].mxu0
        %3945 = vmatprep.mubr.bf16.mxu0 0
        %3946 = vmatmul.mubr.bf16.gmra.mrb[0].mxu0 %v3750
        %v3947 = vpop.f32.mrb[0].mxu0
        %v3948 = vadd.f32 %v3783, %v3947
        %v3949 = vpop.f32.mrb[0].mxu0
        %v3950 = vpop.f32.mrb[0].mxu0
        %v3951 = vadd.f32 %v3783, %v3950
        %v3952 = vpop.f32.mrb[0].mxu0
        %3953 = vmatprep.mubr.bf16.mxu0 0
        %3954 = vmatmul.mubr.bf16.gmra.mrb[0].mxu0 %v3752
        %v3955 = vpop.f32.mrb[0].mxu0
        %v3956 = vadd.f32 %v3783, %v3955
        %v3957 = vpop.f32.mrb[0].mxu0
        %v3958 = vpop.f32.mrb[0].mxu0
        %v3959 = vadd.f32 %v3783, %v3958
        %v3960 = vpop.f32.mrb[0].mxu0
        %3961 = vmatprep.mubr.bf16.mxu0 0
        %3962 = vmatmul.mubr.bf16.gmra.mrb[0].mxu0 %v3754
        %v3963 = vpop.f32.mrb[0].mxu0
        %v3964 = vadd.f32 %v3783, %v3963
        %v3965 = vpop.f32.mrb[0].mxu0
        %v3966 = vpop.f32.mrb[0].mxu0
        %v3967 = vadd.f32 %v3783, %v3966
        %v3968 = vpop.f32.mrb[0].mxu0
        %3969 = vmatprep.mubr.bf16.mxu0 0
        %3970 = vmatmul.mubr.bf16.gmra.mrb[0].mxu0 %v3756
        %v3971 = vpop.f32.mrb[0].mxu0
        %v3972 = vadd.f32 %v3783, %v3971
        %v3973 = vpop.f32.mrb[0].mxu0
        %v3974 = vpop.f32.mrb[0].mxu0
        %v3975 = vadd.f32 %v3783, %v3974
        %v3976 = vpop.f32.mrb[0].mxu0
        %3977 = vmatprep.mubr.bf16.mxu0 0
        %3978 = vmatmul.mubr.bf16.gmra.mrb[0].mxu0 %v3758
        %v3979 = vpop.f32.mrb[0].mxu0
        %v3980 = vadd.f32 %v3783, %v3979
        %v3981 = vpop.f32.mrb[0].mxu0
        %v3982 = vpop.f32.mrb[0].mxu0
        %v3983 = vadd.f32 %v3783, %v3982
        %v3984 = vpop.f32.mrb[0].mxu0
        %3985 = vmatprep.mubr.bf16.mxu0 0
        %3986 = vmatmul.mubr.bf16.gmra.mrb[0].mxu0 %v3760
        %v3987 = vpop.f32.mrb[0].mxu0
        %v3988 = vadd.f32 %v3783, %v3987
        %v3989 = vpop.f32.mrb[0].mxu0
        %v3990 = vpop.f32.mrb[0].mxu0
        %v3991 = vadd.f32 %v3783, %v3990
        %v3992 = vpop.f32.mrb[0].mxu0
        %3993 = vdwg.mxu0
        %v3994 = vmax.f32 %v3868, 0.0
        %v3995 = vmax.f32 %v3871, 0.0
        %v3996 = vmax.f32 %v3876, 0.0
        %v3997 = vmax.f32 %v3879, 0.0
        %v3998 = vmax.f32 %v3884, 0.0
        %v3999 = vmax.f32 %v3887, 0.0
        %v4000 = vmax.f32 %v3892, 0.0
        %v4001 = vmax.f32 %v3895, 0.0
        %v4002 = vmax.f32 %v3900, 0.0
        %v4003 = vmax.f32 %v3903, 0.0
        %v4004 = vmax.f32 %v3908, 0.0
        %v4005 = vmax.f32 %v3911, 0.0
        %v4006 = vmax.f32 %v3916, 0.0
        %v4007 = vmax.f32 %v3919, 0.0
        %v4008 = vmax.f32 %v3924, 0.0
        %v4009 = vmax.f32 %v3927, 0.0
        %v4010 = vmax.f32 %v3932, 0.0
        %v4011 = vmax.f32 %v3935, 0.0
        %v4012 = vmax.f32 %v3940, 0.0
        %v4013 = vmax.f32 %v3943, 0.0
        %v4014 = vmax.f32 %v3948, 0.0
        %v4015 = vmax.f32 %v3951, 0.0
        %v4016 = vmax.f32 %v3956, 0.0
        %v4017 = vmax.f32 %v3959, 0.0
        %v4018 = vmax.f32 %v3964, 0.0
        %v4019 = vmax.f32 %v3967, 0.0
        %v4020 = vmax.f32 %v3972, 0.0
        %v4021 = vmax.f32 %v3975, 0.0
        %v4022 = vmax.f32 %v3980, 0.0
        %v4023 = vmax.f32 %v3983, 0.0
        %v4024 = vmax.f32 %v3988, 0.0
        %v4025 = vmax.f32 %v3991, 0.0
        %v4026 = vpack.c.bf16 %v3995, %v3994
        %v4027 = vpack.c.bf16 %v3997, %v3996
        %v4028 = vpack.c.bf16 %v3999, %v3998
        %v4029 = vpack.c.bf16 %v4001, %v4000
        %v4030 = vpack.c.bf16 %v4003, %v4002
        %v4031 = vpack.c.bf16 %v4005, %v4004
        %v4032 = vpack.c.bf16 %v4007, %v4006
        %v4033 = vpack.c.bf16 %v4009, %v4008
        %v4034 = vpack.c.bf16 %v4011, %v4010
        %v4035 = vpack.c.bf16 %v4013, %v4012
        %v4036 = vpack.c.bf16 %v4015, %v4014
        %v4037 = vpack.c.bf16 %v4017, %v4016
        %v4038 = vpack.c.bf16 %v4019, %v4018
        %v4039 = vpack.c.bf16 %v4021, %v4020
        %v4040 = vpack.c.bf16 %v4023, %v4022
        %v4041 = vpack.c.bf16 %v4025, %v4024
        %v4058 = vunpack.c.l.b16 %v4026
        %v4059 = vunpack.c.h.b16 %v4026
        %v4060 = vunpack.c.l.b16 %v4027
        %v4061 = vunpack.c.h.b16 %v4027
        %v4062 = vunpack.c.l.b16 %v4028
        %v4063 = vunpack.c.h.b16 %v4028
        %v4064 = vunpack.c.l.b16 %v4029
        %v4065 = vunpack.c.h.b16 %v4029
        %v4066 = vunpack.c.l.b16 %v4030
        %v4067 = vunpack.c.h.b16 %v4030
        %v4068 = vunpack.c.l.b16 %v4031
        %v4069 = vunpack.c.h.b16 %v4031
        %v4070 = vunpack.c.l.b16 %v4032
        %v4071 = vunpack.c.h.b16 %v4032
        %v4072 = vunpack.c.l.b16 %v4033
        %v4073 = vunpack.c.h.b16 %v4033
        %v4074 = vunpack.c.l.b16 %v4034
        %v4075 = vunpack.c.h.b16 %v4034
        %v4076 = vunpack.c.l.b16 %v4035
        %v4077 = vunpack.c.h.b16 %v4035
        %v4078 = vunpack.c.l.b16 %v4036
        %v4079 = vunpack.c.h.b16 %v4036
        %v4080 = vunpack.c.l.b16 %v4037
        %v4081 = vunpack.c.h.b16 %v4037
        %v4082 = vunpack.c.l.b16 %v4038
        %v4083 = vunpack.c.h.b16 %v4038
        %v4084 = vunpack.c.l.b16 %v4039
        %v4085 = vunpack.c.h.b16 %v4039
        %v4086 = vunpack.c.l.b16 %v4040
        %v4087 = vunpack.c.h.b16 %v4040
        %v4088 = vunpack.c.l.b16 %v4041
        %v4089 = vunpack.c.h.b16 %v4041
        %v4090 = vpack.c.b16 %v4058, %v4058
        %v4091 = vpack.c.b16 %v4059, %v4059
        %v4092 = vpack.c.b16 %v4060, %v4060
        %v4093 = vpack.c.b16 %v4061, %v4061
        %v4094 = vpack.c.b16 %v4062, %v4062
        %v4095 = vpack.c.b16 %v4063, %v4063
        %v4096 = vpack.c.b16 %v4064, %v4064
        %v4097 = vpack.c.b16 %v4065, %v4065
        %v4098 = vpack.c.b16 %v4066, %v4066
        %v4099 = vpack.c.b16 %v4067, %v4067
        %v4100 = vpack.c.b16 %v4068, %v4068
        %v4101 = vpack.c.b16 %v4069, %v4069
        %v4102 = vpack.c.b16 %v4070, %v4070
        %v4103 = vpack.c.b16 %v4071, %v4071
        %v4104 = vpack.c.b16 %v4072, %v4072
        %v4105 = vpack.c.b16 %v4073, %v4073
        %v4106 = vpack.c.b16 %v4074, %v4074
        %v4107 = vpack.c.b16 %v4075, %v4075
        %v4108 = vpack.c.b16 %v4076, %v4076
        %v4109 = vpack.c.b16 %v4077, %v4077
        %v4110 = vpack.c.b16 %v4078, %v4078
        %v4111 = vpack.c.b16 %v4079, %v4079
        %v4112 = vpack.c.b16 %v4080, %v4080
        %v4113 = vpack.c.b16 %v4081, %v4081
        %v4114 = vpack.c.b16 %v4082, %v4082
        %v4115 = vpack.c.b16 %v4083, %v4083
        %v4116 = vpack.c.b16 %v4084, %v4084
        %v4117 = vpack.c.b16 %v4085, %v4085
        %v4118 = vpack.c.b16 %v4086, %v4086
        %v4119 = vpack.c.b16 %v4087, %v4087
        %v4120 = vpack.c.b16 %v4088, %v4088
        %v4121 = vpack.c.b16 %v4089, %v4089
        %v4123 = vshrl.u32 %v4090, 16
        %v4125 = vrot.slane %v4123, 7
        %v4126 = vshll.u32 %v4090, 16
        %v4128 = vor.u32 %v4125, %v4126
        %v4129 = vrot.slane %v4125, 4
        %v4131 = vshrl.u32 %v4091, 16
        %v4133 = vrot.slane %v4131, 7
        %v4134 = vshll.u32 %v4091, 16
        %v4136 = vor.u32 %v4133, %v4134
        %v4137 = vsel %vm442, %v4129, %v4136
        %v4138 = vrot.slane %v4133, 4
        %v4140 = vshrl.u32 %v4092, 16
        %v4142 = vrot.slane %v4140, 7
        %v4143 = vshll.u32 %v4092, 16
        %v4145 = vor.u32 %v4142, %v4143
        %v4146 = vrot.slane %v4142, 4
        %v4148 = vshrl.u32 %v4093, 16
        %v4150 = vrot.slane %v4148, 7
        %v4151 = vshll.u32 %v4093, 16
        %v4153 = vor.u32 %v4150, %v4151
        %v4154 = vsel %vm442, %v4146, %v4153
        %v4155 = vrot.slane %v4150, 4
        %v4157 = vshrl.u32 %v4094, 16
        %v4159 = vrot.slane %v4157, 7
        %v4160 = vshll.u32 %v4094, 16
        %v4162 = vor.u32 %v4159, %v4160
        %v4163 = vrot.slane %v4159, 4
        %v4165 = vshrl.u32 %v4095, 16
        %v4167 = vrot.slane %v4165, 7
        %v4168 = vshll.u32 %v4095, 16
        %v4170 = vor.u32 %v4167, %v4168
        %v4171 = vsel %vm442, %v4163, %v4170
        %v4172 = vrot.slane %v4167, 4
        %v4174 = vshrl.u32 %v4096, 16
        %v4176 = vrot.slane %v4174, 7
        %v4177 = vshll.u32 %v4096, 16
        %v4179 = vor.u32 %v4176, %v4177
        %v4180 = vrot.slane %v4176, 4
        %v4182 = vshrl.u32 %v4097, 16
        %v4184 = vrot.slane %v4182, 7
        %v4185 = vshll.u32 %v4097, 16
        %v4187 = vor.u32 %v4184, %v4185
        %v4188 = vsel %vm442, %v4180, %v4187
        %v4189 = vrot.slane %v4184, 4
        %v4191 = vshrl.u32 %v4098, 16
        %v4193 = vrot.slane %v4191, 7
        %v4194 = vshll.u32 %v4098, 16
        %v4196 = vor.u32 %v4193, %v4194
        %v4197 = vrot.slane %v4193, 4
        %v4199 = vshrl.u32 %v4099, 16
        %v4201 = vrot.slane %v4199, 7
        %v4202 = vshll.u32 %v4099, 16
        %v4204 = vor.u32 %v4201, %v4202
        %v4205 = vsel %vm442, %v4197, %v4204
        %v4206 = vrot.slane %v4201, 4
        %v4208 = vshrl.u32 %v4100, 16
        %v4210 = vrot.slane %v4208, 7
        %v4211 = vshll.u32 %v4100, 16
        %v4213 = vor.u32 %v4210, %v4211
        %v4214 = vrot.slane %v4210, 4
        %v4216 = vshrl.u32 %v4101, 16
        %v4218 = vrot.slane %v4216, 7
        %v4219 = vshll.u32 %v4101, 16
        %v4221 = vor.u32 %v4218, %v4219
        %v4222 = vsel %vm442, %v4214, %v4221
        %v4223 = vrot.slane %v4218, 4
        %v4225 = vshrl.u32 %v4102, 16
        %v4227 = vrot.slane %v4225, 7
        %v4228 = vshll.u32 %v4102, 16
        %v4230 = vor.u32 %v4227, %v4228
        %v4231 = vrot.slane %v4227, 4
        %v4233 = vshrl.u32 %v4103, 16
        %v4235 = vrot.slane %v4233, 7
        %v4236 = vshll.u32 %v4103, 16
        %v4238 = vor.u32 %v4235, %v4236
        %v4239 = vsel %vm442, %v4231, %v4238
        %v4240 = vrot.slane %v4235, 4
        %v4242 = vshrl.u32 %v4104, 16
        %v4244 = vrot.slane %v4242, 7
        %v4245 = vshll.u32 %v4104, 16
        %v4247 = vor.u32 %v4244, %v4245
        %v4248 = vrot.slane %v4244, 4
        %v4250 = vshrl.u32 %v4105, 16
        %v4252 = vrot.slane %v4250, 7
        %v4253 = vshll.u32 %v4105, 16
        %v4255 = vor.u32 %v4252, %v4253
        %v4256 = vsel %vm442, %v4248, %v4255
        %v4257 = vrot.slane %v4252, 4
        %v4259 = vshrl.u32 %v4106, 16
        %v4261 = vrot.slane %v4259, 7
        %v4262 = vshll.u32 %v4106, 16
        %v4264 = vor.u32 %v4261, %v4262
        %v4265 = vrot.slane %v4261, 4
        %v4267 = vshrl.u32 %v4107, 16
        %v4269 = vrot.slane %v4267, 7
        %v4270 = vshll.u32 %v4107, 16
        %v4272 = vor.u32 %v4269, %v4270
        %v4273 = vsel %vm442, %v4265, %v4272
        %v4274 = vrot.slane %v4269, 4
        %v4276 = vshrl.u32 %v4108, 16
        %v4278 = vrot.slane %v4276, 7
        %v4279 = vshll.u32 %v4108, 16
        %v4281 = vor.u32 %v4278, %v4279
        %v4282 = vrot.slane %v4278, 4
        %v4284 = vshrl.u32 %v4109, 16
        %v4286 = vrot.slane %v4284, 7
        %v4287 = vshll.u32 %v4109, 16
        %v4289 = vor.u32 %v4286, %v4287
        %v4290 = vsel %vm442, %v4282, %v4289
        %v4291 = vrot.slane %v4286, 4
        %v4293 = vshrl.u32 %v4110, 16
        %v4295 = vrot.slane %v4293, 7
        %v4296 = vshll.u32 %v4110, 16
        %v4298 = vor.u32 %v4295, %v4296
        %v4299 = vrot.slane %v4295, 4
        %v4301 = vshrl.u32 %v4111, 16
        %v4303 = vrot.slane %v4301, 7
        %v4304 = vshll.u32 %v4111, 16
        %v4306 = vor.u32 %v4303, %v4304
        %v4307 = vsel %vm442, %v4299, %v4306
        %v4308 = vrot.slane %v4303, 4
        %v4310 = vshrl.u32 %v4112, 16
        %v4312 = vrot.slane %v4310, 7
        %v4313 = vshll.u32 %v4112, 16
        %v4315 = vor.u32 %v4312, %v4313
        %v4316 = vrot.slane %v4312, 4
        %v4318 = vshrl.u32 %v4113, 16
        %v4320 = vrot.slane %v4318, 7
        %v4321 = vshll.u32 %v4113, 16
        %v4323 = vor.u32 %v4320, %v4321
        %v4324 = vsel %vm442, %v4316, %v4323
        %v4325 = vrot.slane %v4320, 4
        %v4327 = vshrl.u32 %v4114, 16
        %v4329 = vrot.slane %v4327, 7
        %v4330 = vshll.u32 %v4114, 16
        %v4332 = vor.u32 %v4329, %v4330
        %v4333 = vrot.slane %v4329, 4
        %v4335 = vshrl.u32 %v4115, 16
        %v4337 = vrot.slane %v4335, 7
        %v4338 = vshll.u32 %v4115, 16
        %v4340 = vor.u32 %v4337, %v4338
        %v4341 = vsel %vm442, %v4333, %v4340
        %v4342 = vrot.slane %v4337, 4
        %v4344 = vshrl.u32 %v4116, 16
        %v4346 = vrot.slane %v4344, 7
        %v4347 = vshll.u32 %v4116, 16
        %v4349 = vor.u32 %v4346, %v4347
        %v4350 = vrot.slane %v4346, 4
        %v4352 = vshrl.u32 %v4117, 16
        %v4354 = vrot.slane %v4352, 7
        %v4355 = vshll.u32 %v4117, 16
        %v4357 = vor.u32 %v4354, %v4355
        %v4358 = vsel %vm442, %v4350, %v4357
        %v4359 = vrot.slane %v4354, 4
        %v4361 = vshrl.u32 %v4118, 16
        %v4363 = vrot.slane %v4361, 7
        %v4364 = vshll.u32 %v4118, 16
        %v4366 = vor.u32 %v4363, %v4364
        %v4367 = vrot.slane %v4363, 4
        %v4369 = vshrl.u32 %v4119, 16
        %v4371 = vrot.slane %v4369, 7
        %v4372 = vshll.u32 %v4119, 16
        %v4374 = vor.u32 %v4371, %v4372
        %v4375 = vsel %vm442, %v4367, %v4374
        %v4376 = vrot.slane %v4371, 4
        %v4378 = vshrl.u32 %v4120, 16
        %v4380 = vrot.slane %v4378, 7
        %v4381 = vshll.u32 %v4120, 16
        %v4383 = vor.u32 %v4380, %v4381
        %v4384 = vrot.slane %v4380, 4
        %v4386 = vshrl.u32 %v4121, 16
        %v4388 = vrot.slane %v4386, 7
        %v4389 = vshll.u32 %v4121, 16
        %v4391 = vor.u32 %v4388, %v4389
        %v4392 = vsel %vm442, %v4384, %v4391
        %v4393 = vrot.slane %v4388, 4
        %s4442 = scalar_lea.vmem [#allocation3], 12
        %vm4443 = vcmask 1043456
        %vm4444 = vmand %vm4443, %vm765
        %v4445 = vld [vmem:[%s4442] sm:$0xf]
        %v4446 = vsel %vm4444, %v4128, %v4445
        %4447 = vst [vmem:[%s4442] sm:$0xf] %v4446
        %4448 = vst [vmem:[%s4442 + $0x4] sm:$0xf] %v4137
        %vm4449 = vcmask 1040384
        %vm4450 = vmand %vm4449, %vm440
        %v4451 = vld [vmem:[%s4442 + $0x8] sm:$0x1]
        %v4452 = vsel %vm4450, %v4138, %v4451
        %4453 = vst [vmem:[%s4442 + $0x8] sm:$0x1] %v4452
        %v4454 = vld [vmem:[%s4442 + $0xc] sm:$0xf]
        %v4455 = vsel %vm4444, %v4145, %v4454
        %4456 = vst [vmem:[%s4442 + $0xc] sm:$0xf] %v4455
        %4457 = vst [vmem:[%s4442 + $0x10] sm:$0xf] %v4154
        %v4458 = vld [vmem:[%s4442 + $0x14] sm:$0x1]
        %v4459 = vsel %vm4450, %v4155, %v4458
        %4460 = vst [vmem:[%s4442 + $0x14] sm:$0x1] %v4459
        %v4461 = vld [vmem:[%s4442 + $0x18] sm:$0xf]
        %v4462 = vsel %vm4444, %v4162, %v4461
        %4463 = vst [vmem:[%s4442 + $0x18] sm:$0xf] %v4462
        %4464 = vst [vmem:[%s4442 + $0x1c] sm:$0xf] %v4171
        %v4465 = vld [vmem:[%s4442 + $0x20] sm:$0x1]
        %v4466 = vsel %vm4450, %v4172, %v4465
        %4467 = vst [vmem:[%s4442 + $0x20] sm:$0x1] %v4466
        %v4468 = vld [vmem:[%s4442 + $0x24] sm:$0xf]
        %v4469 = vsel %vm4444, %v4179, %v4468
        %4470 = vst [vmem:[%s4442 + $0x24] sm:$0xf] %v4469
        %4471 = vst [vmem:[%s4442 + $0x28] sm:$0xf] %v4188
        %v4472 = vld [vmem:[%s4442 + $0x2c] sm:$0x1]
        %v4473 = vsel %vm4450, %v4189, %v4472
        %4474 = vst [vmem:[%s4442 + $0x2c] sm:$0x1] %v4473
        %v4475 = vld [vmem:[%s4442 + $0x30] sm:$0xf]
        %v4476 = vsel %vm4444, %v4196, %v4475
        %4477 = vst [vmem:[%s4442 + $0x30] sm:$0xf] %v4476
        %4478 = vst [vmem:[%s4442 + $0x34] sm:$0xf] %v4205
        %v4479 = vld [vmem:[%s4442 + $0x38] sm:$0x1]
        %v4480 = vsel %vm4450, %v4206, %v4479
        %4481 = vst [vmem:[%s4442 + $0x38] sm:$0x1] %v4480
        %v4482 = vld [vmem:[%s4442 + $0x3c] sm:$0xf]
        %v4483 = vsel %vm4444, %v4213, %v4482
        %4484 = vst [vmem:[%s4442 + $0x3c] sm:$0xf] %v4483
        %4485 = vst [vmem:[%s4442 + $0x40] sm:$0xf] %v4222
        %v4486 = vld [vmem:[%s4442 + $0x44] sm:$0x1]
        %v4487 = vsel %vm4450, %v4223, %v4486
        %4488 = vst [vmem:[%s4442 + $0x44] sm:$0x1] %v4487
        %v4489 = vld [vmem:[%s4442 + $0x48] sm:$0xf]
        %v4490 = vsel %vm4444, %v4230, %v4489
        %4491 = vst [vmem:[%s4442 + $0x48] sm:$0xf] %v4490
        %4492 = vst [vmem:[%s4442 + $0x4c] sm:$0xf] %v4239
        %v4493 = vld [vmem:[%s4442 + $0x50] sm:$0x1]
        %v4494 = vsel %vm4450, %v4240, %v4493
        %4495 = vst [vmem:[%s4442 + $0x50] sm:$0x1] %v4494
        %v4496 = vld [vmem:[%s4442 + $0x54] sm:$0xf]
        %v4497 = vsel %vm4444, %v4247, %v4496
        %4498 = vst [vmem:[%s4442 + $0x54] sm:$0xf] %v4497
        %4499 = vst [vmem:[%s4442 + $0x58] sm:$0xf] %v4256
        %v4500 = vld [vmem:[%s4442 + $0x5c] sm:$0x1]
        %v4501 = vsel %vm4450, %v4257, %v4500
        %4502 = vst [vmem:[%s4442 + $0x5c] sm:$0x1] %v4501
        %v4503 = vld [vmem:[%s4442 + $0x60] sm:$0xf]
        %v4504 = vsel %vm4444, %v4264, %v4503
        %4505 = vst [vmem:[%s4442 + $0x60] sm:$0xf] %v4504
        %4506 = vst [vmem:[%s4442 + $0x64] sm:$0xf] %v4273
        %v4507 = vld [vmem:[%s4442 + $0x68] sm:$0x1]
        %v4508 = vsel %vm4450, %v4274, %v4507
        %4509 = vst [vmem:[%s4442 + $0x68] sm:$0x1] %v4508
        %v4510 = vld [vmem:[%s4442 + $0x6c] sm:$0xf]
        %v4511 = vsel %vm4444, %v4281, %v4510
        %4512 = vst [vmem:[%s4442 + $0x6c] sm:$0xf] %v4511
        %4513 = vst [vmem:[%s4442 + $0x70] sm:$0xf] %v4290
        %v4514 = vld [vmem:[%s4442 + $0x74] sm:$0x1]
        %v4515 = vsel %vm4450, %v4291, %v4514
        %4516 = vst [vmem:[%s4442 + $0x74] sm:$0x1] %v4515
        %v4517 = vld [vmem:[%s4442 + $0x78] sm:$0xf]
        %v4518 = vsel %vm4444, %v4298, %v4517
        %4519 = vst [vmem:[%s4442 + $0x78] sm:$0xf] %v4518
        %4520 = vst [vmem:[%s4442 + $0x7c] sm:$0xf] %v4307
        %v4521 = vld [vmem:[%s4442 + $0x80] sm:$0x1]
        %v4522 = vsel %vm4450, %v4308, %v4521
        %4523 = vst [vmem:[%s4442 + $0x80] sm:$0x1] %v4522
        %v4524 = vld [vmem:[%s4442 + $0x84] sm:$0xf]
        %v4525 = vsel %vm4444, %v4315, %v4524
        %4526 = vst [vmem:[%s4442 + $0x84] sm:$0xf] %v4525
        %4527 = vst [vmem:[%s4442 + $0x88] sm:$0xf] %v4324
        %v4528 = vld [vmem:[%s4442 + $0x8c] sm:$0x1]
        %v4529 = vsel %vm4450, %v4325, %v4528
        %4530 = vst [vmem:[%s4442 + $0x8c] sm:$0x1] %v4529
        %v4531 = vld [vmem:[%s4442 + $0x90] sm:$0xf]
        %v4532 = vsel %vm4444, %v4332, %v4531
        %4533 = vst [vmem:[%s4442 + $0x90] sm:$0xf] %v4532
        %4534 = vst [vmem:[%s4442 + $0x94] sm:$0xf] %v4341
        %v4535 = vld [vmem:[%s4442 + $0x98] sm:$0x1]
        %v4536 = vsel %vm4450, %v4342, %v4535
        %4537 = vst [vmem:[%s4442 + $0x98] sm:$0x1] %v4536
        %v4538 = vld [vmem:[%s4442 + $0x9c] sm:$0xf]
        %v4539 = vsel %vm4444, %v4349, %v4538
        %4540 = vst [vmem:[%s4442 + $0x9c] sm:$0xf] %v4539
        %4541 = vst [vmem:[%s4442 + $0xa0] sm:$0xf] %v4358
        %v4542 = vld [vmem:[%s4442 + $0xa4] sm:$0x1]
        %v4543 = vsel %vm4450, %v4359, %v4542
        %4544 = vst [vmem:[%s4442 + $0xa4] sm:$0x1] %v4543
        %v4545 = vld [vmem:[%s4442 + $0xa8] sm:$0xf]
        %v4546 = vsel %vm4444, %v4366, %v4545
        %4547 = vst [vmem:[%s4442 + $0xa8] sm:$0xf] %v4546
        %4548 = vst [vmem:[%s4442 + $0xac] sm:$0xf] %v4375
        %v4549 = vld [vmem:[%s4442 + $0xb0] sm:$0x1]
        %v4550 = vsel %vm4450, %v4376, %v4549
        %4551 = vst [vmem:[%s4442 + $0xb0] sm:$0x1] %v4550
        %v4552 = vld [vmem:[%s4442 + $0xb4] sm:$0xf]
        %v4553 = vsel %vm4444, %v4383, %v4552
        %4554 = vst [vmem:[%s4442 + $0xb4] sm:$0xf] %v4553
        %4555 = vst [vmem:[%s4442 + $0xb8] sm:$0xf] %v4392
        %v4556 = vld [vmem:[%s4442 + $0xbc] sm:$0x1]
        %v4557 = vsel %vm4450, %v4393, %v4556
        %4558 = vst [vmem:[%s4442 + $0xbc] sm:$0x1] %v4557
        %v4559 = vld [vmem:[#allocation3] sm:$0xf]
        %v4560 = vld [vmem:[#allocation3 + $0x4] sm:$0xf]
        %v4561 = vld [vmem:[#allocation3 + $0xc] sm:$0xf]
        %v4562 = vld [vmem:[#allocation3 + $0x10] sm:$0xf]
        %v4563 = vld [vmem:[#allocation3 + $0x18] sm:$0xf]
        %v4564 = vld [vmem:[#allocation3 + $0x1c] sm:$0xf]
        %v4565 = vld [vmem:[#allocation3 + $0x24] sm:$0xf]
        %v4566 = vld [vmem:[#allocation3 + $0x28] sm:$0xf]
        %v4567 = vld [vmem:[#allocation3 + $0x30] sm:$0xf]
        %v4568 = vld [vmem:[#allocation3 + $0x34] sm:$0xf]
        %v4569 = vld [vmem:[#allocation3 + $0x3c] sm:$0xf]
        %v4570 = vld [vmem:[#allocation3 + $0x40] sm:$0xf]
        %v4571 = vld [vmem:[#allocation3 + $0x48] sm:$0xf]
        %v4572 = vld [vmem:[#allocation3 + $0x4c] sm:$0xf]
        %v4573 = vld [vmem:[#allocation3 + $0x54] sm:$0xf]
        %v4574 = vld [vmem:[#allocation3 + $0x58] sm:$0xf]
        %v4575 = vld [vmem:[#allocation3 + $0x60] sm:$0xf]
        %v4576 = vld [vmem:[#allocation3 + $0x64] sm:$0xf]
        %v4577 = vld [vmem:[#allocation3 + $0x6c] sm:$0xf]
        %v4578 = vld [vmem:[#allocation3 + $0x70] sm:$0xf]
        %v4579 = vld [vmem:[#allocation3 + $0x78] sm:$0xf]
        %v4580 = vld [vmem:[#allocation3 + $0x7c] sm:$0xf]
        %v4581 = vld [vmem:[#allocation3 + $0x84] sm:$0xf]
        %v4582 = vld [vmem:[#allocation3 + $0x88] sm:$0xf]
        %v4583 = vld [vmem:[#allocation3 + $0x90] sm:$0xf]
        %v4584 = vld [vmem:[#allocation3 + $0x94] sm:$0xf]
        %v4585 = vld [vmem:[#allocation3 + $0x9c] sm:$0xf]
        %v4586 = vld [vmem:[#allocation3 + $0xa0] sm:$0xf]
        %v4587 = vld [vmem:[#allocation3 + $0xa8] sm:$0xf]
        %v4588 = vld [vmem:[#allocation3 + $0xac] sm:$0xf]
        %v4589 = vld [vmem:[#allocation3 + $0xb4] sm:$0xf]
        %v4590 = vld [vmem:[#allocation3 + $0xb8] sm:$0xf]
        %v4591 = vld [vmem:[#allocation3 + $0x8] sm:$0x1]
        %v4592 = vld [vmem:[#allocation3 + $0x14] sm:$0x1]
        %v4593 = vld [vmem:[#allocation3 + $0x20] sm:$0x1]
        %v4594 = vld [vmem:[#allocation3 + $0x2c] sm:$0x1]
        %v4595 = vld [vmem:[#allocation3 + $0x38] sm:$0x1]
        %v4596 = vld [vmem:[#allocation3 + $0x44] sm:$0x1]
        %v4597 = vld [vmem:[#allocation3 + $0x50] sm:$0x1]
        %v4598 = vld [vmem:[#allocation3 + $0x5c] sm:$0x1]
        %v4599 = vld [vmem:[#allocation3 + $0x68] sm:$0x1]
        %v4600 = vld [vmem:[#allocation3 + $0x74] sm:$0x1]
        %v4601 = vld [vmem:[#allocation3 + $0x80] sm:$0x1]
        %v4602 = vld [vmem:[#allocation3 + $0x8c] sm:$0x1]
        %v4603 = vld [vmem:[#allocation3 + $0x98] sm:$0x1]
        %v4604 = vld [vmem:[#allocation3 + $0xa4] sm:$0x1]
        %v4605 = vld [vmem:[#allocation3 + $0xb0] sm:$0x1]
        %v4606 = vld [vmem:[#allocation3 + $0xbc] sm:$0x1]
        %v4608 = vshrl.u32 %v4559, 16
        %v4610 = vrot.slane %v4608, 4
        %v4611 = vshll.u32 %v4559, 16
        %v4613 = vrot.slane %v4611, 5
        %v4614 = vor.u32 %v4610, %v4613
        %v4615 = vrot.slane %v4614, 4
        %v4617 = vshll.u32 %v4560, 16
        %v4619 = vrot.slane %v4617, 5
        %v4620 = vsel %vm931, %v4615, %v4619
        %v4621 = vshrl.u32 %v4560, 16
        %v4623 = vrot.slane %v4621, 4
        %v4624 = vor.u32 %v4623, %v4619
        %v4625 = vrot.slane %v4624, 4
        %v4627 = vshll.u32 %v4591, 16
        %v4629 = vrot.slane %v4627, 5
        %v4630 = vsel %vm931, %v4625, %v4629
        %v4632 = vshrl.u32 %v4561, 16
        %v4634 = vrot.slane %v4632, 4
        %v4635 = vshll.u32 %v4561, 16
        %v4637 = vrot.slane %v4635, 5
        %v4638 = vor.u32 %v4634, %v4637
        %v4639 = vrot.slane %v4638, 4
        %v4641 = vshll.u32 %v4562, 16
        %v4643 = vrot.slane %v4641, 5
        %v4644 = vsel %vm931, %v4639, %v4643
        %v4645 = vshrl.u32 %v4562, 16
        %v4647 = vrot.slane %v4645, 4
        %v4648 = vor.u32 %v4647, %v4643
        %v4649 = vrot.slane %v4648, 4
        %v4651 = vshll.u32 %v4592, 16
        %v4653 = vrot.slane %v4651, 5
        %v4654 = vsel %vm931, %v4649, %v4653
        %v4656 = vshrl.u32 %v4563, 16
        %v4658 = vrot.slane %v4656, 4
        %v4659 = vshll.u32 %v4563, 16
        %v4661 = vrot.slane %v4659, 5
        %v4662 = vor.u32 %v4658, %v4661
        %v4663 = vrot.slane %v4662, 4
        %v4665 = vshll.u32 %v4564, 16
        %v4667 = vrot.slane %v4665, 5
        %v4668 = vsel %vm931, %v4663, %v4667
        %v4669 = vshrl.u32 %v4564, 16
        %v4671 = vrot.slane %v4669, 4
        %v4672 = vor.u32 %v4671, %v4667
        %v4673 = vrot.slane %v4672, 4
        %v4675 = vshll.u32 %v4593, 16
        %v4677 = vrot.slane %v4675, 5
        %v4678 = vsel %vm931, %v4673, %v4677
        %v4680 = vshrl.u32 %v4565, 16
        %v4682 = vrot.slane %v4680, 4
        %v4683 = vshll.u32 %v4565, 16
        %v4685 = vrot.slane %v4683, 5
        %v4686 = vor.u32 %v4682, %v4685
        %v4687 = vrot.slane %v4686, 4
        %v4689 = vshll.u32 %v4566, 16
        %v4691 = vrot.slane %v4689, 5
        %v4692 = vsel %vm931, %v4687, %v4691
        %v4693 = vshrl.u32 %v4566, 16
        %v4695 = vrot.slane %v4693, 4
        %v4696 = vor.u32 %v4695, %v4691
        %v4697 = vrot.slane %v4696, 4
        %v4699 = vshll.u32 %v4594, 16
        %v4701 = vrot.slane %v4699, 5
        %v4702 = vsel %vm931, %v4697, %v4701
        %v4704 = vshrl.u32 %v4567, 16
        %v4706 = vrot.slane %v4704, 4
        %v4707 = vshll.u32 %v4567, 16
        %v4709 = vrot.slane %v4707, 5
        %v4710 = vor.u32 %v4706, %v4709
        %v4711 = vrot.slane %v4710, 4
        %v4713 = vshll.u32 %v4568, 16
        %v4715 = vrot.slane %v4713, 5
        %v4716 = vsel %vm931, %v4711, %v4715
        %v4717 = vshrl.u32 %v4568, 16
        %v4719 = vrot.slane %v4717, 4
        %v4720 = vor.u32 %v4719, %v4715
        %v4721 = vrot.slane %v4720, 4
        %v4723 = vshll.u32 %v4595, 16
        %v4725 = vrot.slane %v4723, 5
        %v4726 = vsel %vm931, %v4721, %v4725
        %v4728 = vshrl.u32 %v4569, 16
        %v4730 = vrot.slane %v4728, 4
        %v4731 = vshll.u32 %v4569, 16
        %v4733 = vrot.slane %v4731, 5
        %v4734 = vor.u32 %v4730, %v4733
        %v4735 = vrot.slane %v4734, 4
        %v4737 = vshll.u32 %v4570, 16
        %v4739 = vrot.slane %v4737, 5
        %v4740 = vsel %vm931, %v4735, %v4739
        %v4741 = vshrl.u32 %v4570, 16
        %v4743 = vrot.slane %v4741, 4
        %v4744 = vor.u32 %v4743, %v4739
        %v4745 = vrot.slane %v4744, 4
        %v4747 = vshll.u32 %v4596, 16
        %v4749 = vrot.slane %v4747, 5
        %v4750 = vsel %vm931, %v4745, %v4749
        %v4752 = vshrl.u32 %v4571, 16
        %v4754 = vrot.slane %v4752, 4
        %v4755 = vshll.u32 %v4571, 16
        %v4757 = vrot.slane %v4755, 5
        %v4758 = vor.u32 %v4754, %v4757
        %v4759 = vrot.slane %v4758, 4
        %v4761 = vshll.u32 %v4572, 16
        %v4763 = vrot.slane %v4761, 5
        %v4764 = vsel %vm931, %v4759, %v4763
        %v4765 = vshrl.u32 %v4572, 16
        %v4767 = vrot.slane %v4765, 4
        %v4768 = vor.u32 %v4767, %v4763
        %v4769 = vrot.slane %v4768, 4
        %v4771 = vshll.u32 %v4597, 16
        %v4773 = vrot.slane %v4771, 5
        %v4774 = vsel %vm931, %v4769, %v4773
        %v4776 = vshrl.u32 %v4573, 16
        %v4778 = vrot.slane %v4776, 4
        %v4779 = vshll.u32 %v4573, 16
        %v4781 = vrot.slane %v4779, 5
        %v4782 = vor.u32 %v4778, %v4781
        %v4783 = vrot.slane %v4782, 4
        %v4785 = vshll.u32 %v4574, 16
        %v4787 = vrot.slane %v4785, 5
        %v4788 = vsel %vm931, %v4783, %v4787
        %v4789 = vshrl.u32 %v4574, 16
        %v4791 = vrot.slane %v4789, 4
        %v4792 = vor.u32 %v4791, %v4787
        %v4793 = vrot.slane %v4792, 4
        %v4795 = vshll.u32 %v4598, 16
        %v4797 = vrot.slane %v4795, 5
        %v4798 = vsel %vm931, %v4793, %v4797
        %v4800 = vshrl.u32 %v4575, 16
        %v4802 = vrot.slane %v4800, 4
        %v4803 = vshll.u32 %v4575, 16
        %v4805 = vrot.slane %v4803, 5
        %v4806 = vor.u32 %v4802, %v4805
        %v4807 = vrot.slane %v4806, 4
        %v4809 = vshll.u32 %v4576, 16
        %v4811 = vrot.slane %v4809, 5
        %v4812 = vsel %vm931, %v4807, %v4811
        %v4813 = vshrl.u32 %v4576, 16
        %v4815 = vrot.slane %v4813, 4
        %v4816 = vor.u32 %v4815, %v4811
        %v4817 = vrot.slane %v4816, 4
        %v4819 = vshll.u32 %v4599, 16
        %v4821 = vrot.slane %v4819, 5
        %v4822 = vsel %vm931, %v4817, %v4821
        %v4824 = vshrl.u32 %v4577, 16
        %v4826 = vrot.slane %v4824, 4
        %v4827 = vshll.u32 %v4577, 16
        %v4829 = vrot.slane %v4827, 5
        %v4830 = vor.u32 %v4826, %v4829
        %v4831 = vrot.slane %v4830, 4
        %v4833 = vshll.u32 %v4578, 16
        %v4835 = vrot.slane %v4833, 5
        %v4836 = vsel %vm931, %v4831, %v4835
        %v4837 = vshrl.u32 %v4578, 16
        %v4839 = vrot.slane %v4837, 4
        %v4840 = vor.u32 %v4839, %v4835
        %v4841 = vrot.slane %v4840, 4
        %v4843 = vshll.u32 %v4600, 16
        %v4845 = vrot.slane %v4843, 5
        %v4846 = vsel %vm931, %v4841, %v4845
        %v4848 = vshrl.u32 %v4579, 16
        %v4850 = vrot.slane %v4848, 4
        %v4851 = vshll.u32 %v4579, 16
        %v4853 = vrot.slane %v4851, 5
        %v4854 = vor.u32 %v4850, %v4853
        %v4855 = vrot.slane %v4854, 4
        %v4857 = vshll.u32 %v4580, 16
        %v4859 = vrot.slane %v4857, 5
        %v4860 = vsel %vm931, %v4855, %v4859
        %v4861 = vshrl.u32 %v4580, 16
        %v4863 = vrot.slane %v4861, 4
        %v4864 = vor.u32 %v4863, %v4859
        %v4865 = vrot.slane %v4864, 4
        %v4867 = vshll.u32 %v4601, 16
        %v4869 = vrot.slane %v4867, 5
        %v4870 = vsel %vm931, %v4865, %v4869
        %v4872 = vshrl.u32 %v4581, 16
        %v4874 = vrot.slane %v4872, 4
        %v4875 = vshll.u32 %v4581, 16
        %v4877 = vrot.slane %v4875, 5
        %v4878 = vor.u32 %v4874, %v4877
        %v4879 = vrot.slane %v4878, 4
        %v4881 = vshll.u32 %v4582, 16
        %v4883 = vrot.slane %v4881, 5
        %v4884 = vsel %vm931, %v4879, %v4883
        %v4885 = vshrl.u32 %v4582, 16
        %v4887 = vrot.slane %v4885, 4
        %v4888 = vor.u32 %v4887, %v4883
        %v4889 = vrot.slane %v4888, 4
        %v4891 = vshll.u32 %v4602, 16
        %v4893 = vrot.slane %v4891, 5
        %v4894 = vsel %vm931, %v4889, %v4893
        %v4896 = vshrl.u32 %v4583, 16
        %v4898 = vrot.slane %v4896, 4
        %v4899 = vshll.u32 %v4583, 16
        %v4901 = vrot.slane %v4899, 5
        %v4902 = vor.u32 %v4898, %v4901
        %v4903 = vrot.slane %v4902, 4
        %v4905 = vshll.u32 %v4584, 16
        %v4907 = vrot.slane %v4905, 5
        %v4908 = vsel %vm931, %v4903, %v4907
        %v4909 = vshrl.u32 %v4584, 16
        %v4911 = vrot.slane %v4909, 4
        %v4912 = vor.u32 %v4911, %v4907
        %v4913 = vrot.slane %v4912, 4
        %v4915 = vshll.u32 %v4603, 16
        %v4917 = vrot.slane %v4915, 5
        %v4918 = vsel %vm931, %v4913, %v4917
        %v4920 = vshrl.u32 %v4585, 16
        %v4922 = vrot.slane %v4920, 4
        %v4923 = vshll.u32 %v4585, 16
        %v4925 = vrot.slane %v4923, 5
        %v4926 = vor.u32 %v4922, %v4925
        %v4927 = vrot.slane %v4926, 4
        %v4929 = vshll.u32 %v4586, 16
        %v4931 = vrot.slane %v4929, 5
        %v4932 = vsel %vm931, %v4927, %v4931
        %v4933 = vshrl.u32 %v4586, 16
        %v4935 = vrot.slane %v4933, 4
        %v4936 = vor.u32 %v4935, %v4931
        %v4937 = vrot.slane %v4936, 4
        %v4939 = vshll.u32 %v4604, 16
        %v4941 = vrot.slane %v4939, 5
        %v4942 = vsel %vm931, %v4937, %v4941
        %v4944 = vshrl.u32 %v4587, 16
        %v4946 = vrot.slane %v4944, 4
        %v4947 = vshll.u32 %v4587, 16
        %v4949 = vrot.slane %v4947, 5
        %v4950 = vor.u32 %v4946, %v4949
        %v4951 = vrot.slane %v4950, 4
        %v4953 = vshll.u32 %v4588, 16
        %v4955 = vrot.slane %v4953, 5
        %v4956 = vsel %vm931, %v4951, %v4955
        %v4957 = vshrl.u32 %v4588, 16
        %v4959 = vrot.slane %v4957, 4
        %v4960 = vor.u32 %v4959, %v4955
        %v4961 = vrot.slane %v4960, 4
        %v4963 = vshll.u32 %v4605, 16
        %v4965 = vrot.slane %v4963, 5
        %v4966 = vsel %vm931, %v4961, %v4965
        %v4968 = vshrl.u32 %v4589, 16
        %v4970 = vrot.slane %v4968, 4
        %v4971 = vshll.u32 %v4589, 16
        %v4973 = vrot.slane %v4971, 5
        %v4974 = vor.u32 %v4970, %v4973
        %v4975 = vrot.slane %v4974, 4
        %v4977 = vshll.u32 %v4590, 16
        %v4979 = vrot.slane %v4977, 5
        %v4980 = vsel %vm931, %v4975, %v4979
        %v4981 = vshrl.u32 %v4590, 16
        %v4983 = vrot.slane %v4981, 4
        %v4984 = vor.u32 %v4983, %v4979
        %v4985 = vrot.slane %v4984, 4
        %v4987 = vshll.u32 %v4606, 16
        %v4989 = vrot.slane %v4987, 5
        %v4990 = vsel %vm931, %v4985, %v4989
        %v4991 = vld [vmem:[#allocation3] sm:$0xe]
        %v4992 = vld [vmem:[#allocation3 + $0xc] sm:$0xe]
        %v4993 = vld [vmem:[#allocation3 + $0x18] sm:$0xe]
        %v4994 = vld [vmem:[#allocation3 + $0x24] sm:$0xe]
        %v4995 = vld [vmem:[#allocation3 + $0x30] sm:$0xe]
        %v4996 = vld [vmem:[#allocation3 + $0x3c] sm:$0xe]
        %v4997 = vld [vmem:[#allocation3 + $0x48] sm:$0xe]
        %v4998 = vld [vmem:[#allocation3 + $0x54] sm:$0xe]
        %v4999 = vld [vmem:[#allocation3 + $0x60] sm:$0xe]
        %v5000 = vld [vmem:[#allocation3 + $0x6c] sm:$0xe]
        %v5001 = vld [vmem:[#allocation3 + $0x78] sm:$0xe]
        %v5002 = vld [vmem:[#allocation3 + $0x84] sm:$0xe]
        %v5003 = vld [vmem:[#allocation3 + $0x90] sm:$0xe]
        %v5004 = vld [vmem:[#allocation3 + $0x9c] sm:$0xe]
        %v5005 = vld [vmem:[#allocation3 + $0xa8] sm:$0xe]
        %v5006 = vld [vmem:[#allocation3 + $0xb4] sm:$0xe]
        %v5055 = vrot.slane %v4991, 5
        %v5056 = vrot.slane %v5055, 4
        %v5057 = vrot.slane %v4560, 5
        %v5058 = vsel %vm1382, %v5056, %v5057
        %v5059 = vrot.slane %v5057, 4
        %v5060 = vrot.slane %v4591, 5
        %v5061 = vsel %vm1382, %v5059, %v5060
        %v5062 = vrot.slane %v4992, 5
        %v5063 = vrot.slane %v5062, 4
        %v5064 = vrot.slane %v4562, 5
        %v5065 = vsel %vm1382, %v5063, %v5064
        %v5066 = vrot.slane %v5064, 4
        %v5067 = vrot.slane %v4592, 5
        %v5068 = vsel %vm1382, %v5066, %v5067
        %v5069 = vrot.slane %v4993, 5
        %v5070 = vrot.slane %v5069, 4
        %v5071 = vrot.slane %v4564, 5
        %v5072 = vsel %vm1382, %v5070, %v5071
        %v5073 = vrot.slane %v5071, 4
        %v5074 = vrot.slane %v4593, 5
        %v5075 = vsel %vm1382, %v5073, %v5074
        %v5076 = vrot.slane %v4994, 5
        %v5077 = vrot.slane %v5076, 4
        %v5078 = vrot.slane %v4566, 5
        %v5079 = vsel %vm1382, %v5077, %v5078
        %v5080 = vrot.slane %v5078, 4
        %v5081 = vrot.slane %v4594, 5
        %v5082 = vsel %vm1382, %v5080, %v5081
        %v5083 = vrot.slane %v4995, 5
        %v5084 = vrot.slane %v5083, 4
        %v5085 = vrot.slane %v4568, 5
        %v5086 = vsel %vm1382, %v5084, %v5085
        %v5087 = vrot.slane %v5085, 4
        %v5088 = vrot.slane %v4595, 5
        %v5089 = vsel %vm1382, %v5087, %v5088
        %v5090 = vrot.slane %v4996, 5
        %v5091 = vrot.slane %v5090, 4
        %v5092 = vrot.slane %v4570, 5
        %v5093 = vsel %vm1382, %v5091, %v5092
        %v5094 = vrot.slane %v5092, 4
        %v5095 = vrot.slane %v4596, 5
        %v5096 = vsel %vm1382, %v5094, %v5095
        %v5097 = vrot.slane %v4997, 5
        %v5098 = vrot.slane %v5097, 4
        %v5099 = vrot.slane %v4572, 5
        %v5100 = vsel %vm1382, %v5098, %v5099
        %v5101 = vrot.slane %v5099, 4
        %v5102 = vrot.slane %v4597, 5
        %v5103 = vsel %vm1382, %v5101, %v5102
        %v5104 = vrot.slane %v4998, 5
        %v5105 = vrot.slane %v5104, 4
        %v5106 = vrot.slane %v4574, 5
        %v5107 = vsel %vm1382, %v5105, %v5106
        %v5108 = vrot.slane %v5106, 4
        %v5109 = vrot.slane %v4598, 5
        %v5110 = vsel %vm1382, %v5108, %v5109
        %v5111 = vrot.slane %v4999, 5
        %v5112 = vrot.slane %v5111, 4
        %v5113 = vrot.slane %v4576, 5
        %v5114 = vsel %vm1382, %v5112, %v5113
        %v5115 = vrot.slane %v5113, 4
        %v5116 = vrot.slane %v4599, 5
        %v5117 = vsel %vm1382, %v5115, %v5116
        %v5118 = vrot.slane %v5000, 5
        %v5119 = vrot.slane %v5118, 4
        %v5120 = vrot.slane %v4578, 5
        %v5121 = vsel %vm1382, %v5119, %v5120
        %v5122 = vrot.slane %v5120, 4
        %v5123 = vrot.slane %v4600, 5
        %v5124 = vsel %vm1382, %v5122, %v5123
        %v5125 = vrot.slane %v5001, 5
        %v5126 = vrot.slane %v5125, 4
        %v5127 = vrot.slane %v4580, 5
        %v5128 = vsel %vm1382, %v5126, %v5127
        %v5129 = vrot.slane %v5127, 4
        %v5130 = vrot.slane %v4601, 5
        %v5131 = vsel %vm1382, %v5129, %v5130
        %v5132 = vrot.slane %v5002, 5
        %v5133 = vrot.slane %v5132, 4
        %v5134 = vrot.slane %v4582, 5
        %v5135 = vsel %vm1382, %v5133, %v5134
        %v5136 = vrot.slane %v5134, 4
        %v5137 = vrot.slane %v4602, 5
        %v5138 = vsel %vm1382, %v5136, %v5137
        %v5139 = vrot.slane %v5003, 5
        %v5140 = vrot.slane %v5139, 4
        %v5141 = vrot.slane %v4584, 5
        %v5142 = vsel %vm1382, %v5140, %v5141
        %v5143 = vrot.slane %v5141, 4
        %v5144 = vrot.slane %v4603, 5
        %v5145 = vsel %vm1382, %v5143, %v5144
        %v5146 = vrot.slane %v5004, 5
        %v5147 = vrot.slane %v5146, 4
        %v5148 = vrot.slane %v4586, 5
        %v5149 = vsel %vm1382, %v5147, %v5148
        %v5150 = vrot.slane %v5148, 4
        %v5151 = vrot.slane %v4604, 5
        %v5152 = vsel %vm1382, %v5150, %v5151
        %v5153 = vrot.slane %v5005, 5
        %v5154 = vrot.slane %v5153, 4
        %v5155 = vrot.slane %v4588, 5
        %v5156 = vsel %vm1382, %v5154, %v5155
        %v5157 = vrot.slane %v5155, 4
        %v5158 = vrot.slane %v4605, 5
        %v5159 = vsel %vm1382, %v5157, %v5158
        %v5160 = vrot.slane %v5006, 5
        %v5161 = vrot.slane %v5160, 4
        %v5162 = vrot.slane %v4590, 5
        %v5163 = vsel %vm1382, %v5161, %v5162
        %v5164 = vrot.slane %v5162, 4
        %v5165 = vrot.slane %v4606, 5
        %v5166 = vsel %vm1382, %v5164, %v5165
        %v5167 = vld [vmem:[%s4442] sm:$0xf]
        %v5168 = vld [vmem:[%s4442 + $0x4] sm:$0xf]
        %v5169 = vld [vmem:[%s4442 + $0xc] sm:$0xf]
        %v5170 = vld [vmem:[%s4442 + $0x10] sm:$0xf]
        %v5171 = vld [vmem:[%s4442 + $0x18] sm:$0xf]
        %v5172 = vld [vmem:[%s4442 + $0x1c] sm:$0xf]
        %v5173 = vld [vmem:[%s4442 + $0x24] sm:$0xf]
        %v5174 = vld [vmem:[%s4442 + $0x28] sm:$0xf]
        %v5175 = vld [vmem:[%s4442 + $0x30] sm:$0xf]
        %v5176 = vld [vmem:[%s4442 + $0x34] sm:$0xf]
        %v5177 = vld [vmem:[%s4442 + $0x3c] sm:$0xf]
        %v5178 = vld [vmem:[%s4442 + $0x40] sm:$0xf]
        %v5179 = vld [vmem:[%s4442 + $0x48] sm:$0xf]
        %v5180 = vld [vmem:[%s4442 + $0x4c] sm:$0xf]
        %v5181 = vld [vmem:[%s4442 + $0x54] sm:$0xf]
        %v5182 = vld [vmem:[%s4442 + $0x58] sm:$0xf]
        %v5183 = vld [vmem:[%s4442 + $0x60] sm:$0xf]
        %v5184 = vld [vmem:[%s4442 + $0x64] sm:$0xf]
        %v5185 = vld [vmem:[%s4442 + $0x6c] sm:$0xf]
        %v5186 = vld [vmem:[%s4442 + $0x70] sm:$0xf]
        %v5187 = vld [vmem:[%s4442 + $0x78] sm:$0xf]
        %v5188 = vld [vmem:[%s4442 + $0x7c] sm:$0xf]
        %v5189 = vld [vmem:[%s4442 + $0x84] sm:$0xf]
        %v5190 = vld [vmem:[%s4442 + $0x88] sm:$0xf]
        %v5191 = vld [vmem:[%s4442 + $0x90] sm:$0xf]
        %v5192 = vld [vmem:[%s4442 + $0x94] sm:$0xf]
        %v5193 = vld [vmem:[%s4442 + $0x9c] sm:$0xf]
        %v5194 = vld [vmem:[%s4442 + $0xa0] sm:$0xf]
        %v5195 = vld [vmem:[%s4442 + $0xa8] sm:$0xf]
        %v5196 = vld [vmem:[%s4442 + $0xac] sm:$0xf]
        %v5197 = vld [vmem:[%s4442 + $0xb4] sm:$0xf]
        %v5198 = vld [vmem:[%s4442 + $0xb8] sm:$0xf]
        %v5199 = vld [vmem:[%s4442 + $0x8] sm:$0x1]
        %v5200 = vld [vmem:[%s4442 + $0x14] sm:$0x1]
        %v5201 = vld [vmem:[%s4442 + $0x20] sm:$0x1]
        %v5202 = vld [vmem:[%s4442 + $0x2c] sm:$0x1]
        %v5203 = vld [vmem:[%s4442 + $0x38] sm:$0x1]
        %v5204 = vld [vmem:[%s4442 + $0x44] sm:$0x1]
        %v5205 = vld [vmem:[%s4442 + $0x50] sm:$0x1]
        %v5206 = vld [vmem:[%s4442 + $0x5c] sm:$0x1]
        %v5207 = vld [vmem:[%s4442 + $0x68] sm:$0x1]
        %v5208 = vld [vmem:[%s4442 + $0x74] sm:$0x1]
        %v5209 = vld [vmem:[%s4442 + $0x80] sm:$0x1]
        %v5210 = vld [vmem:[%s4442 + $0x8c] sm:$0x1]
        %v5211 = vld [vmem:[%s4442 + $0x98] sm:$0x1]
        %v5212 = vld [vmem:[%s4442 + $0xa4] sm:$0x1]
        %v5213 = vld [vmem:[%s4442 + $0xb0] sm:$0x1]
        %v5214 = vld [vmem:[%s4442 + $0xbc] sm:$0x1]
        %v5216 = vshrl.u32 %v5167, 16
        %v5218 = vrot.slane %v5216, 4
        %v5219 = vshll.u32 %v5167, 16
        %v5221 = vrot.slane %v5219, 5
        %v5222 = vor.u32 %v5218, %v5221
        %v5223 = vrot.slane %v5222, 4
        %v5225 = vshll.u32 %v5168, 16
        %v5227 = vrot.slane %v5225, 5
        %v5228 = vsel %vm931, %v5223, %v5227
        %v5229 = vshrl.u32 %v5168, 16
        %v5231 = vrot.slane %v5229, 4
        %v5232 = vor.u32 %v5231, %v5227
        %v5233 = vrot.slane %v5232, 4
        %v5235 = vshll.u32 %v5199, 16
        %v5237 = vrot.slane %v5235, 5
        %v5238 = vsel %vm931, %v5233, %v5237
        %v5240 = vshrl.u32 %v5169, 16
        %v5242 = vrot.slane %v5240, 4
        %v5243 = vshll.u32 %v5169, 16
        %v5245 = vrot.slane %v5243, 5
        %v5246 = vor.u32 %v5242, %v5245
        %v5247 = vrot.slane %v5246, 4
        %v5249 = vshll.u32 %v5170, 16
        %v5251 = vrot.slane %v5249, 5
        %v5252 = vsel %vm931, %v5247, %v5251
        %v5253 = vshrl.u32 %v5170, 16
        %v5255 = vrot.slane %v5253, 4
        %v5256 = vor.u32 %v5255, %v5251
        %v5257 = vrot.slane %v5256, 4
        %v5259 = vshll.u32 %v5200, 16
        %v5261 = vrot.slane %v5259, 5
        %v5262 = vsel %vm931, %v5257, %v5261
        %v5264 = vshrl.u32 %v5171, 16
        %v5266 = vrot.slane %v5264, 4
        %v5267 = vshll.u32 %v5171, 16
        %v5269 = vrot.slane %v5267, 5
        %v5270 = vor.u32 %v5266, %v5269
        %v5271 = vrot.slane %v5270, 4
        %v5273 = vshll.u32 %v5172, 16
        %v5275 = vrot.slane %v5273, 5
        %v5276 = vsel %vm931, %v5271, %v5275
        %v5277 = vshrl.u32 %v5172, 16
        %v5279 = vrot.slane %v5277, 4
        %v5280 = vor.u32 %v5279, %v5275
        %v5281 = vrot.slane %v5280, 4
        %v5283 = vshll.u32 %v5201, 16
        %v5285 = vrot.slane %v5283, 5
        %v5286 = vsel %vm931, %v5281, %v5285
        %v5288 = vshrl.u32 %v5173, 16
        %v5290 = vrot.slane %v5288, 4
        %v5291 = vshll.u32 %v5173, 16
        %v5293 = vrot.slane %v5291, 5
        %v5294 = vor.u32 %v5290, %v5293
        %v5295 = vrot.slane %v5294, 4
        %v5297 = vshll.u32 %v5174, 16
        %v5299 = vrot.slane %v5297, 5
        %v5300 = vsel %vm931, %v5295, %v5299
        %v5301 = vshrl.u32 %v5174, 16
        %v5303 = vrot.slane %v5301, 4
        %v5304 = vor.u32 %v5303, %v5299
        %v5305 = vrot.slane %v5304, 4
        %v5307 = vshll.u32 %v5202, 16
        %v5309 = vrot.slane %v5307, 5
        %v5310 = vsel %vm931, %v5305, %v5309
        %v5312 = vshrl.u32 %v5175, 16
        %v5314 = vrot.slane %v5312, 4
        %v5315 = vshll.u32 %v5175, 16
        %v5317 = vrot.slane %v5315, 5
        %v5318 = vor.u32 %v5314, %v5317
        %v5319 = vrot.slane %v5318, 4
        %v5321 = vshll.u32 %v5176, 16
        %v5323 = vrot.slane %v5321, 5
        %v5324 = vsel %vm931, %v5319, %v5323
        %v5325 = vshrl.u32 %v5176, 16
        %v5327 = vrot.slane %v5325, 4
        %v5328 = vor.u32 %v5327, %v5323
        %v5329 = vrot.slane %v5328, 4
        %v5331 = vshll.u32 %v5203, 16
        %v5333 = vrot.slane %v5331, 5
        %v5334 = vsel %vm931, %v5329, %v5333
        %v5336 = vshrl.u32 %v5177, 16
        %v5338 = vrot.slane %v5336, 4
        %v5339 = vshll.u32 %v5177, 16
        %v5341 = vrot.slane %v5339, 5
        %v5342 = vor.u32 %v5338, %v5341
        %v5343 = vrot.slane %v5342, 4
        %v5345 = vshll.u32 %v5178, 16
        %v5347 = vrot.slane %v5345, 5
        %v5348 = vsel %vm931, %v5343, %v5347
        %v5349 = vshrl.u32 %v5178, 16
        %v5351 = vrot.slane %v5349, 4
        %v5352 = vor.u32 %v5351, %v5347
        %v5353 = vrot.slane %v5352, 4
        %v5355 = vshll.u32 %v5204, 16
        %v5357 = vrot.slane %v5355, 5
        %v5358 = vsel %vm931, %v5353, %v5357
        %v5360 = vshrl.u32 %v5179, 16
        %v5362 = vrot.slane %v5360, 4
        %v5363 = vshll.u32 %v5179, 16
        %v5365 = vrot.slane %v5363, 5
        %v5366 = vor.u32 %v5362, %v5365
        %v5367 = vrot.slane %v5366, 4
        %v5369 = vshll.u32 %v5180, 16
        %v5371 = vrot.slane %v5369, 5
        %v5372 = vsel %vm931, %v5367, %v5371
        %v5373 = vshrl.u32 %v5180, 16
        %v5375 = vrot.slane %v5373, 4
        %v5376 = vor.u32 %v5375, %v5371
        %v5377 = vrot.slane %v5376, 4
        %v5379 = vshll.u32 %v5205, 16
        %v5381 = vrot.slane %v5379, 5
        %v5382 = vsel %vm931, %v5377, %v5381
        %v5384 = vshrl.u32 %v5181, 16
        %v5386 = vrot.slane %v5384, 4
        %v5387 = vshll.u32 %v5181, 16
        %v5389 = vrot.slane %v5387, 5
        %v5390 = vor.u32 %v5386, %v5389
        %v5391 = vrot.slane %v5390, 4
        %v5393 = vshll.u32 %v5182, 16
        %v5395 = vrot.slane %v5393, 5
        %v5396 = vsel %vm931, %v5391, %v5395
        %v5397 = vshrl.u32 %v5182, 16
        %v5399 = vrot.slane %v5397, 4
        %v5400 = vor.u32 %v5399, %v5395
        %v5401 = vrot.slane %v5400, 4
        %v5403 = vshll.u32 %v5206, 16
        %v5405 = vrot.slane %v5403, 5
        %v5406 = vsel %vm931, %v5401, %v5405
        %v5408 = vshrl.u32 %v5183, 16
        %v5410 = vrot.slane %v5408, 4
        %v5411 = vshll.u32 %v5183, 16
        %v5413 = vrot.slane %v5411, 5
        %v5414 = vor.u32 %v5410, %v5413
        %v5415 = vrot.slane %v5414, 4
        %v5417 = vshll.u32 %v5184, 16
        %v5419 = vrot.slane %v5417, 5
        %v5420 = vsel %vm931, %v5415, %v5419
        %v5421 = vshrl.u32 %v5184, 16
        %v5423 = vrot.slane %v5421, 4
        %v5424 = vor.u32 %v5423, %v5419
        %v5425 = vrot.slane %v5424, 4
        %v5427 = vshll.u32 %v5207, 16
        %v5429 = vrot.slane %v5427, 5
        %v5430 = vsel %vm931, %v5425, %v5429
        %v5432 = vshrl.u32 %v5185, 16
        %v5434 = vrot.slane %v5432, 4
        %v5435 = vshll.u32 %v5185, 16
        %v5437 = vrot.slane %v5435, 5
        %v5438 = vor.u32 %v5434, %v5437
        %v5439 = vrot.slane %v5438, 4
        %v5441 = vshll.u32 %v5186, 16
        %v5443 = vrot.slane %v5441, 5
        %v5444 = vsel %vm931, %v5439, %v5443
        %v5445 = vshrl.u32 %v5186, 16
        %v5447 = vrot.slane %v5445, 4
        %v5448 = vor.u32 %v5447, %v5443
        %v5449 = vrot.slane %v5448, 4
        %v5451 = vshll.u32 %v5208, 16
        %v5453 = vrot.slane %v5451, 5
        %v5454 = vsel %vm931, %v5449, %v5453
        %v5456 = vshrl.u32 %v5187, 16
        %v5458 = vrot.slane %v5456, 4
        %v5459 = vshll.u32 %v5187, 16
        %v5461 = vrot.slane %v5459, 5
        %v5462 = vor.u32 %v5458, %v5461
        %v5463 = vrot.slane %v5462, 4
        %v5465 = vshll.u32 %v5188, 16
        %v5467 = vrot.slane %v5465, 5
        %v5468 = vsel %vm931, %v5463, %v5467
        %v5469 = vshrl.u32 %v5188, 16
        %v5471 = vrot.slane %v5469, 4
        %v5472 = vor.u32 %v5471, %v5467
        %v5473 = vrot.slane %v5472, 4
        %v5475 = vshll.u32 %v5209, 16
        %v5477 = vrot.slane %v5475, 5
        %v5478 = vsel %vm931, %v5473, %v5477
        %v5480 = vshrl.u32 %v5189, 16
        %v5482 = vrot.slane %v5480, 4
        %v5483 = vshll.u32 %v5189, 16
        %v5485 = vrot.slane %v5483, 5
        %v5486 = vor.u32 %v5482, %v5485
        %v5487 = vrot.slane %v5486, 4
        %v5489 = vshll.u32 %v5190, 16
        %v5491 = vrot.slane %v5489, 5
        %v5492 = vsel %vm931, %v5487, %v5491
        %v5493 = vshrl.u32 %v5190, 16
        %v5495 = vrot.slane %v5493, 4
        %v5496 = vor.u32 %v5495, %v5491
        %v5497 = vrot.slane %v5496, 4
        %v5499 = vshll.u32 %v5210, 16
        %v5501 = vrot.slane %v5499, 5
        %v5502 = vsel %vm931, %v5497, %v5501
        %v5504 = vshrl.u32 %v5191, 16
        %v5506 = vrot.slane %v5504, 4
        %v5507 = vshll.u32 %v5191, 16
        %v5509 = vrot.slane %v5507, 5
        %v5510 = vor.u32 %v5506, %v5509
        %v5511 = vrot.slane %v5510, 4
        %v5513 = vshll.u32 %v5192, 16
        %v5515 = vrot.slane %v5513, 5
        %v5516 = vsel %vm931, %v5511, %v5515
        %v5517 = vshrl.u32 %v5192, 16
        %v5519 = vrot.slane %v5517, 4
        %v5520 = vor.u32 %v5519, %v5515
        %v5521 = vrot.slane %v5520, 4
        %v5523 = vshll.u32 %v5211, 16
        %v5525 = vrot.slane %v5523, 5
        %v5526 = vsel %vm931, %v5521, %v5525
        %v5528 = vshrl.u32 %v5193, 16
        %v5530 = vrot.slane %v5528, 4
        %v5531 = vshll.u32 %v5193, 16
        %v5533 = vrot.slane %v5531, 5
        %v5534 = vor.u32 %v5530, %v5533
        %v5535 = vrot.slane %v5534, 4
        %v5537 = vshll.u32 %v5194, 16
        %v5539 = vrot.slane %v5537, 5
        %v5540 = vsel %vm931, %v5535, %v5539
        %v5541 = vshrl.u32 %v5194, 16
        %v5543 = vrot.slane %v5541, 4
        %v5544 = vor.u32 %v5543, %v5539
        %v5545 = vrot.slane %v5544, 4
        %v5547 = vshll.u32 %v5212, 16
        %v5549 = vrot.slane %v5547, 5
        %v5550 = vsel %vm931, %v5545, %v5549
        %v5552 = vshrl.u32 %v5195, 16
        %v5554 = vrot.slane %v5552, 4
        %v5555 = vshll.u32 %v5195, 16
        %v5557 = vrot.slane %v5555, 5
        %v5558 = vor.u32 %v5554, %v5557
        %v5559 = vrot.slane %v5558, 4
        %v5561 = vshll.u32 %v5196, 16
        %v5563 = vrot.slane %v5561, 5
        %v5564 = vsel %vm931, %v5559, %v5563
        %v5565 = vshrl.u32 %v5196, 16
        %v5567 = vrot.slane %v5565, 4
        %v5568 = vor.u32 %v5567, %v5563
        %v5569 = vrot.slane %v5568, 4
        %v5571 = vshll.u32 %v5213, 16
        %v5573 = vrot.slane %v5571, 5
        %v5574 = vsel %vm931, %v5569, %v5573
        %v5576 = vshrl.u32 %v5197, 16
        %v5578 = vrot.slane %v5576, 4
        %v5579 = vshll.u32 %v5197, 16
        %v5581 = vrot.slane %v5579, 5
        %v5582 = vor.u32 %v5578, %v5581
        %v5583 = vrot.slane %v5582, 4
        %v5585 = vshll.u32 %v5198, 16
        %v5587 = vrot.slane %v5585, 5
        %v5588 = vsel %vm931, %v5583, %v5587
        %v5589 = vshrl.u32 %v5198, 16
        %v5591 = vrot.slane %v5589, 4
        %v5592 = vor.u32 %v5591, %v5587
        %v5593 = vrot.slane %v5592, 4
        %v5595 = vshll.u32 %v5214, 16
        %v5597 = vrot.slane %v5595, 5
        %v5598 = vsel %vm931, %v5593, %v5597
        %v5599 = vld [vmem:[%s4442] sm:$0xe]
        %v5600 = vld [vmem:[%s4442 + $0xc] sm:$0xe]
        %v5601 = vld [vmem:[%s4442 + $0x18] sm:$0xe]
        %v5602 = vld [vmem:[%s4442 + $0x24] sm:$0xe]
        %v5603 = vld [vmem:[%s4442 + $0x30] sm:$0xe]
        %v5604 = vld [vmem:[%s4442 + $0x3c] sm:$0xe]
        %v5605 = vld [vmem:[%s4442 + $0x48] sm:$0xe]
        %v5606 = vld [vmem:[%s4442 + $0x54] sm:$0xe]
        %v5607 = vld [vmem:[%s4442 + $0x60] sm:$0xe]
        %v5608 = vld [vmem:[%s4442 + $0x6c] sm:$0xe]
        %v5609 = vld [vmem:[%s4442 + $0x78] sm:$0xe]
        %v5610 = vld [vmem:[%s4442 + $0x84] sm:$0xe]
        %v5611 = vld [vmem:[%s4442 + $0x90] sm:$0xe]
        %v5612 = vld [vmem:[%s4442 + $0x9c] sm:$0xe]
        %v5613 = vld [vmem:[%s4442 + $0xa8] sm:$0xe]
        %v5614 = vld [vmem:[%s4442 + $0xb4] sm:$0xe]
        %v5663 = vrot.slane %v5599, 5
        %v5664 = vrot.slane %v5663, 4
        %v5665 = vrot.slane %v5168, 5
        %v5666 = vsel %vm1382, %v5664, %v5665
        %v5667 = vrot.slane %v5665, 4
        %v5668 = vrot.slane %v5199, 5
        %v5669 = vsel %vm1382, %v5667, %v5668
        %v5670 = vrot.slane %v5600, 5
        %v5671 = vrot.slane %v5670, 4
        %v5672 = vrot.slane %v5170, 5
        %v5673 = vsel %vm1382, %v5671, %v5672
        %v5674 = vrot.slane %v5672, 4
        %v5675 = vrot.slane %v5200, 5
        %v5676 = vsel %vm1382, %v5674, %v5675
        %v5677 = vrot.slane %v5601, 5
        %v5678 = vrot.slane %v5677, 4
        %v5679 = vrot.slane %v5172, 5
        %v5680 = vsel %vm1382, %v5678, %v5679
        %v5681 = vrot.slane %v5679, 4
        %v5682 = vrot.slane %v5201, 5
        %v5683 = vsel %vm1382, %v5681, %v5682
        %v5684 = vrot.slane %v5602, 5
        %v5685 = vrot.slane %v5684, 4
        %v5686 = vrot.slane %v5174, 5
        %v5687 = vsel %vm1382, %v5685, %v5686
        %v5688 = vrot.slane %v5686, 4
        %v5689 = vrot.slane %v5202, 5
        %v5690 = vsel %vm1382, %v5688, %v5689
        %v5691 = vrot.slane %v5603, 5
        %v5692 = vrot.slane %v5691, 4
        %v5693 = vrot.slane %v5176, 5
        %v5694 = vsel %vm1382, %v5692, %v5693
        %v5695 = vrot.slane %v5693, 4
        %v5696 = vrot.slane %v5203, 5
        %v5697 = vsel %vm1382, %v5695, %v5696
        %v5698 = vrot.slane %v5604, 5
        %v5699 = vrot.slane %v5698, 4
        %v5700 = vrot.slane %v5178, 5
        %v5701 = vsel %vm1382, %v5699, %v5700
        %v5702 = vrot.slane %v5700, 4
        %v5703 = vrot.slane %v5204, 5
        %v5704 = vsel %vm1382, %v5702, %v5703
        %v5705 = vrot.slane %v5605, 5
        %v5706 = vrot.slane %v5705, 4
        %v5707 = vrot.slane %v5180, 5
        %v5708 = vsel %vm1382, %v5706, %v5707
        %v5709 = vrot.slane %v5707, 4
        %v5710 = vrot.slane %v5205, 5
        %v5711 = vsel %vm1382, %v5709, %v5710
        %v5712 = vrot.slane %v5606, 5
        %v5713 = vrot.slane %v5712, 4
        %v5714 = vrot.slane %v5182, 5
        %v5715 = vsel %vm1382, %v5713, %v5714
        %v5716 = vrot.slane %v5714, 4
        %v5717 = vrot.slane %v5206, 5
        %v5718 = vsel %vm1382, %v5716, %v5717
        %v5719 = vrot.slane %v5607, 5
        %v5720 = vrot.slane %v5719, 4
        %v5721 = vrot.slane %v5184, 5
        %v5722 = vsel %vm1382, %v5720, %v5721
        %v5723 = vrot.slane %v5721, 4
        %v5724 = vrot.slane %v5207, 5
        %v5725 = vsel %vm1382, %v5723, %v5724
        %v5726 = vrot.slane %v5608, 5
        %v5727 = vrot.slane %v5726, 4
        %v5728 = vrot.slane %v5186, 5
        %v5729 = vsel %vm1382, %v5727, %v5728
        %v5730 = vrot.slane %v5728, 4
        %v5731 = vrot.slane %v5208, 5
        %v5732 = vsel %vm1382, %v5730, %v5731
        %v5733 = vrot.slane %v5609, 5
        %v5734 = vrot.slane %v5733, 4
        %v5735 = vrot.slane %v5188, 5
        %v5736 = vsel %vm1382, %v5734, %v5735
        %v5737 = vrot.slane %v5735, 4
        %v5738 = vrot.slane %v5209, 5
        %v5739 = vsel %vm1382, %v5737, %v5738
        %v5740 = vrot.slane %v5610, 5
        %v5741 = vrot.slane %v5740, 4
        %v5742 = vrot.slane %v5190, 5
        %v5743 = vsel %vm1382, %v5741, %v5742
        %v5744 = vrot.slane %v5742, 4
        %v5745 = vrot.slane %v5210, 5
        %v5746 = vsel %vm1382, %v5744, %v5745
        %v5747 = vrot.slane %v5611, 5
        %v5748 = vrot.slane %v5747, 4
        %v5749 = vrot.slane %v5192, 5
        %v5750 = vsel %vm1382, %v5748, %v5749
        %v5751 = vrot.slane %v5749, 4
        %v5752 = vrot.slane %v5211, 5
        %v5753 = vsel %vm1382, %v5751, %v5752
        %v5754 = vrot.slane %v5612, 5
        %v5755 = vrot.slane %v5754, 4
        %v5756 = vrot.slane %v5194, 5
        %v5757 = vsel %vm1382, %v5755, %v5756
        %v5758 = vrot.slane %v5756, 4
        %v5759 = vrot.slane %v5212, 5
        %v5760 = vsel %vm1382, %v5758, %v5759
        %v5761 = vrot.slane %v5613, 5
        %v5762 = vrot.slane %v5761, 4
        %v5763 = vrot.slane %v5196, 5
        %v5764 = vsel %vm1382, %v5762, %v5763
        %v5765 = vrot.slane %v5763, 4
        %v5766 = vrot.slane %v5213, 5
        %v5767 = vsel %vm1382, %v5765, %v5766
        %v5768 = vrot.slane %v5614, 5
        %v5769 = vrot.slane %v5768, 4
        %v5770 = vrot.slane %v5198, 5
        %v5771 = vsel %vm1382, %v5769, %v5770
        %v5772 = vrot.slane %v5770, 4
        %v5773 = vrot.slane %v5214, 5
        %v5774 = vsel %vm1382, %v5772, %v5773
        %s5775 = scalar_lea.vmem [#allocation3], 24
        %v5776 = vld [vmem:[%s5775] sm:$0xf]
        %v5777 = vld [vmem:[%s5775 + $0x4] sm:$0xf]
        %v5778 = vld [vmem:[%s5775 + $0xc] sm:$0xf]
        %v5779 = vld [vmem:[%s5775 + $0x10] sm:$0xf]
        %v5780 = vld [vmem:[%s5775 + $0x18] sm:$0xf]
        %v5781 = vld [vmem:[%s5775 + $0x1c] sm:$0xf]
        %v5782 = vld [vmem:[%s5775 + $0x24] sm:$0xf]
        %v5783 = vld [vmem:[%s5775 + $0x28] sm:$0xf]
        %v5784 = vld [vmem:[%s5775 + $0x30] sm:$0xf]
        %v5785 = vld [vmem:[%s5775 + $0x34] sm:$0xf]
        %v5786 = vld [vmem:[%s5775 + $0x3c] sm:$0xf]
        %v5787 = vld [vmem:[%s5775 + $0x40] sm:$0xf]
        %v5788 = vld [vmem:[%s5775 + $0x48] sm:$0xf]
        %v5789 = vld [vmem:[%s5775 + $0x4c] sm:$0xf]
        %v5790 = vld [vmem:[%s5775 + $0x54] sm:$0xf]
        %v5791 = vld [vmem:[%s5775 + $0x58] sm:$0xf]
        %v5792 = vld [vmem:[%s5775 + $0x60] sm:$0xf]
        %v5793 = vld [vmem:[%s5775 + $0x64] sm:$0xf]
        %v5794 = vld [vmem:[%s5775 + $0x6c] sm:$0xf]
        %v5795 = vld [vmem:[%s5775 + $0x70] sm:$0xf]
        %v5796 = vld [vmem:[%s5775 + $0x78] sm:$0xf]
        %v5797 = vld [vmem:[%s5775 + $0x7c] sm:$0xf]
        %v5798 = vld [vmem:[%s5775 + $0x84] sm:$0xf]
        %v5799 = vld [vmem:[%s5775 + $0x88] sm:$0xf]
        %v5800 = vld [vmem:[%s5775 + $0x90] sm:$0xf]
        %v5801 = vld [vmem:[%s5775 + $0x94] sm:$0xf]
        %v5802 = vld [vmem:[%s5775 + $0x9c] sm:$0xf]
        %v5803 = vld [vmem:[%s5775 + $0xa0] sm:$0xf]
        %v5804 = vld [vmem:[%s5775 + $0xa8] sm:$0xf]
        %v5805 = vld [vmem:[%s5775 + $0xac] sm:$0xf]
        %v5806 = vld [vmem:[%s5775 + $0xb4] sm:$0xf]
        %v5807 = vld [vmem:[%s5775 + $0xb8] sm:$0xf]
        %v5808 = vld [vmem:[%s5775 + $0x8] sm:$0x1]
        %v5809 = vld [vmem:[%s5775 + $0x14] sm:$0x1]
        %v5810 = vld [vmem:[%s5775 + $0x20] sm:$0x1]
        %v5811 = vld [vmem:[%s5775 + $0x2c] sm:$0x1]
        %v5812 = vld [vmem:[%s5775 + $0x38] sm:$0x1]
        %v5813 = vld [vmem:[%s5775 + $0x44] sm:$0x1]
        %v5814 = vld [vmem:[%s5775 + $0x50] sm:$0x1]
        %v5815 = vld [vmem:[%s5775 + $0x5c] sm:$0x1]
        %v5816 = vld [vmem:[%s5775 + $0x68] sm:$0x1]
        %v5817 = vld [vmem:[%s5775 + $0x74] sm:$0x1]
        %v5818 = vld [vmem:[%s5775 + $0x80] sm:$0x1]
        %v5819 = vld [vmem:[%s5775 + $0x8c] sm:$0x1]
        %v5820 = vld [vmem:[%s5775 + $0x98] sm:$0x1]
        %v5821 = vld [vmem:[%s5775 + $0xa4] sm:$0x1]
        %v5822 = vld [vmem:[%s5775 + $0xb0] sm:$0x1]
        %v5823 = vld [vmem:[%s5775 + $0xbc] sm:$0x1]
        %v5825 = vshrl.u32 %v5776, 16
        %v5827 = vrot.slane %v5825, 4
        %v5828 = vshll.u32 %v5776, 16
        %v5830 = vrot.slane %v5828, 5
        %v5831 = vor.u32 %v5827, %v5830
        %v5832 = vrot.slane %v5831, 4
        %v5834 = vshll.u32 %v5777, 16
        %v5836 = vrot.slane %v5834, 5
        %v5837 = vsel %vm931, %v5832, %v5836
        %v5838 = vshrl.u32 %v5777, 16
        %v5840 = vrot.slane %v5838, 4
        %v5841 = vor.u32 %v5840, %v5836
        %v5842 = vrot.slane %v5841, 4
        %v5844 = vshll.u32 %v5808, 16
        %v5846 = vrot.slane %v5844, 5
        %v5847 = vsel %vm931, %v5842, %v5846
        %v5849 = vshrl.u32 %v5778, 16
        %v5851 = vrot.slane %v5849, 4
        %v5852 = vshll.u32 %v5778, 16
        %v5854 = vrot.slane %v5852, 5
        %v5855 = vor.u32 %v5851, %v5854
        %v5856 = vrot.slane %v5855, 4
        %v5858 = vshll.u32 %v5779, 16
        %v5860 = vrot.slane %v5858, 5
        %v5861 = vsel %vm931, %v5856, %v5860
        %v5862 = vshrl.u32 %v5779, 16
        %v5864 = vrot.slane %v5862, 4
        %v5865 = vor.u32 %v5864, %v5860
        %v5866 = vrot.slane %v5865, 4
        %v5868 = vshll.u32 %v5809, 16
        %v5870 = vrot.slane %v5868, 5
        %v5871 = vsel %vm931, %v5866, %v5870
        %v5873 = vshrl.u32 %v5780, 16
        %v5875 = vrot.slane %v5873, 4
        %v5876 = vshll.u32 %v5780, 16
        %v5878 = vrot.slane %v5876, 5
        %v5879 = vor.u32 %v5875, %v5878
        %v5880 = vrot.slane %v5879, 4
        %v5882 = vshll.u32 %v5781, 16
        %v5884 = vrot.slane %v5882, 5
        %v5885 = vsel %vm931, %v5880, %v5884
        %v5886 = vshrl.u32 %v5781, 16
        %v5888 = vrot.slane %v5886, 4
        %v5889 = vor.u32 %v5888, %v5884
        %v5890 = vrot.slane %v5889, 4
        %v5892 = vshll.u32 %v5810, 16
        %v5894 = vrot.slane %v5892, 5
        %v5895 = vsel %vm931, %v5890, %v5894
        %v5897 = vshrl.u32 %v5782, 16
        %v5899 = vrot.slane %v5897, 4
        %v5900 = vshll.u32 %v5782, 16
        %v5902 = vrot.slane %v5900, 5
        %v5903 = vor.u32 %v5899, %v5902
        %v5904 = vrot.slane %v5903, 4
        %v5906 = vshll.u32 %v5783, 16
        %v5908 = vrot.slane %v5906, 5
        %v5909 = vsel %vm931, %v5904, %v5908
        %v5910 = vshrl.u32 %v5783, 16
        %v5912 = vrot.slane %v5910, 4
        %v5913 = vor.u32 %v5912, %v5908
        %v5914 = vrot.slane %v5913, 4
        %v5916 = vshll.u32 %v5811, 16
        %v5918 = vrot.slane %v5916, 5
        %v5919 = vsel %vm931, %v5914, %v5918
        %v5921 = vshrl.u32 %v5784, 16
        %v5923 = vrot.slane %v5921, 4
        %v5924 = vshll.u32 %v5784, 16
        %v5926 = vrot.slane %v5924, 5
        %v5927 = vor.u32 %v5923, %v5926
        %v5928 = vrot.slane %v5927, 4
        %v5930 = vshll.u32 %v5785, 16
        %v5932 = vrot.slane %v5930, 5
        %v5933 = vsel %vm931, %v5928, %v5932
        %v5934 = vshrl.u32 %v5785, 16
        %v5936 = vrot.slane %v5934, 4
        %v5937 = vor.u32 %v5936, %v5932
        %v5938 = vrot.slane %v5937, 4
        %v5940 = vshll.u32 %v5812, 16
        %v5942 = vrot.slane %v5940, 5
        %v5943 = vsel %vm931, %v5938, %v5942
        %v5945 = vshrl.u32 %v5786, 16
        %v5947 = vrot.slane %v5945, 4
        %v5948 = vshll.u32 %v5786, 16
        %v5950 = vrot.slane %v5948, 5
        %v5951 = vor.u32 %v5947, %v5950
        %v5952 = vrot.slane %v5951, 4
        %v5954 = vshll.u32 %v5787, 16
        %v5956 = vrot.slane %v5954, 5
        %v5957 = vsel %vm931, %v5952, %v5956
        %v5958 = vshrl.u32 %v5787, 16
        %v5960 = vrot.slane %v5958, 4
        %v5961 = vor.u32 %v5960, %v5956
        %v5962 = vrot.slane %v5961, 4
        %v5964 = vshll.u32 %v5813, 16
        %v5966 = vrot.slane %v5964, 5
        %v5967 = vsel %vm931, %v5962, %v5966
        %v5969 = vshrl.u32 %v5788, 16
        %v5971 = vrot.slane %v5969, 4
        %v5972 = vshll.u32 %v5788, 16
        %v5974 = vrot.slane %v5972, 5
        %v5975 = vor.u32 %v5971, %v5974
        %v5976 = vrot.slane %v5975, 4
        %v5978 = vshll.u32 %v5789, 16
        %v5980 = vrot.slane %v5978, 5
        %v5981 = vsel %vm931, %v5976, %v5980
        %v5982 = vshrl.u32 %v5789, 16
        %v5984 = vrot.slane %v5982, 4
        %v5985 = vor.u32 %v5984, %v5980
        %v5986 = vrot.slane %v5985, 4
        %v5988 = vshll.u32 %v5814, 16
        %v5990 = vrot.slane %v5988, 5
        %v5991 = vsel %vm931, %v5986, %v5990
        %v5993 = vshrl.u32 %v5790, 16
        %v5995 = vrot.slane %v5993, 4
        %v5996 = vshll.u32 %v5790, 16
        %v5998 = vrot.slane %v5996, 5
        %v5999 = vor.u32 %v5995, %v5998
        %v6000 = vrot.slane %v5999, 4
        %v6002 = vshll.u32 %v5791, 16
        %v6004 = vrot.slane %v6002, 5
        %v6005 = vsel %vm931, %v6000, %v6004
        %v6006 = vshrl.u32 %v5791, 16
        %v6008 = vrot.slane %v6006, 4
        %v6009 = vor.u32 %v6008, %v6004
        %v6010 = vrot.slane %v6009, 4
        %v6012 = vshll.u32 %v5815, 16
        %v6014 = vrot.slane %v6012, 5
        %v6015 = vsel %vm931, %v6010, %v6014
        %v6017 = vshrl.u32 %v5792, 16
        %v6019 = vrot.slane %v6017, 4
        %v6020 = vshll.u32 %v5792, 16
        %v6022 = vrot.slane %v6020, 5
        %v6023 = vor.u32 %v6019, %v6022
        %v6024 = vrot.slane %v6023, 4
        %v6026 = vshll.u32 %v5793, 16
        %v6028 = vrot.slane %v6026, 5
        %v6029 = vsel %vm931, %v6024, %v6028
        %v6030 = vshrl.u32 %v5793, 16
        %v6032 = vrot.slane %v6030, 4
        %v6033 = vor.u32 %v6032, %v6028
        %v6034 = vrot.slane %v6033, 4
        %v6036 = vshll.u32 %v5816, 16
        %v6038 = vrot.slane %v6036, 5
        %v6039 = vsel %vm931, %v6034, %v6038
        %v6041 = vshrl.u32 %v5794, 16
        %v6043 = vrot.slane %v6041, 4
        %v6044 = vshll.u32 %v5794, 16
        %v6046 = vrot.slane %v6044, 5
        %v6047 = vor.u32 %v6043, %v6046
        %v6048 = vrot.slane %v6047, 4
        %v6050 = vshll.u32 %v5795, 16
        %v6052 = vrot.slane %v6050, 5
        %v6053 = vsel %vm931, %v6048, %v6052
        %v6054 = vshrl.u32 %v5795, 16
        %v6056 = vrot.slane %v6054, 4
        %v6057 = vor.u32 %v6056, %v6052
        %v6058 = vrot.slane %v6057, 4
        %v6060 = vshll.u32 %v5817, 16
        %v6062 = vrot.slane %v6060, 5
        %v6063 = vsel %vm931, %v6058, %v6062
        %v6065 = vshrl.u32 %v5796, 16
        %v6067 = vrot.slane %v6065, 4
        %v6068 = vshll.u32 %v5796, 16
        %v6070 = vrot.slane %v6068, 5
        %v6071 = vor.u32 %v6067, %v6070
        %v6072 = vrot.slane %v6071, 4
        %v6074 = vshll.u32 %v5797, 16
        %v6076 = vrot.slane %v6074, 5
        %v6077 = vsel %vm931, %v6072, %v6076
        %v6078 = vshrl.u32 %v5797, 16
        %v6080 = vrot.slane %v6078, 4
        %v6081 = vor.u32 %v6080, %v6076
        %v6082 = vrot.slane %v6081, 4
        %v6084 = vshll.u32 %v5818, 16
        %v6086 = vrot.slane %v6084, 5
        %v6087 = vsel %vm931, %v6082, %v6086
        %v6089 = vshrl.u32 %v5798, 16
        %v6091 = vrot.slane %v6089, 4
        %v6092 = vshll.u32 %v5798, 16
        %v6094 = vrot.slane %v6092, 5
        %v6095 = vor.u32 %v6091, %v6094
        %v6096 = vrot.slane %v6095, 4
        %v6098 = vshll.u32 %v5799, 16
        %v6100 = vrot.slane %v6098, 5
        %v6101 = vsel %vm931, %v6096, %v6100
        %v6102 = vshrl.u32 %v5799, 16
        %v6104 = vrot.slane %v6102, 4
        %v6105 = vor.u32 %v6104, %v6100
        %v6106 = vrot.slane %v6105, 4
        %v6108 = vshll.u32 %v5819, 16
        %v6110 = vrot.slane %v6108, 5
        %v6111 = vsel %vm931, %v6106, %v6110
        %v6113 = vshrl.u32 %v5800, 16
        %v6115 = vrot.slane %v6113, 4
        %v6116 = vshll.u32 %v5800, 16
        %v6118 = vrot.slane %v6116, 5
        %v6119 = vor.u32 %v6115, %v6118
        %v6120 = vrot.slane %v6119, 4
        %v6122 = vshll.u32 %v5801, 16
        %v6124 = vrot.slane %v6122, 5
        %v6125 = vsel %vm931, %v6120, %v6124
        %v6126 = vshrl.u32 %v5801, 16
        %v6128 = vrot.slane %v6126, 4
        %v6129 = vor.u32 %v6128, %v6124
        %v6130 = vrot.slane %v6129, 4
        %v6132 = vshll.u32 %v5820, 16
        %v6134 = vrot.slane %v6132, 5
        %v6135 = vsel %vm931, %v6130, %v6134
        %v6137 = vshrl.u32 %v5802, 16
        %v6139 = vrot.slane %v6137, 4
        %v6140 = vshll.u32 %v5802, 16
        %v6142 = vrot.slane %v6140, 5
        %v6143 = vor.u32 %v6139, %v6142
        %v6144 = vrot.slane %v6143, 4
        %v6146 = vshll.u32 %v5803, 16
        %v6148 = vrot.slane %v6146, 5
        %v6149 = vsel %vm931, %v6144, %v6148
        %v6150 = vshrl.u32 %v5803, 16
        %v6152 = vrot.slane %v6150, 4
        %v6153 = vor.u32 %v6152, %v6148
        %v6154 = vrot.slane %v6153, 4
        %v6156 = vshll.u32 %v5821, 16
        %v6158 = vrot.slane %v6156, 5
        %v6159 = vsel %vm931, %v6154, %v6158
        %v6161 = vshrl.u32 %v5804, 16
        %v6163 = vrot.slane %v6161, 4
        %v6164 = vshll.u32 %v5804, 16
        %v6166 = vrot.slane %v6164, 5
        %v6167 = vor.u32 %v6163, %v6166
        %v6168 = vrot.slane %v6167, 4
        %v6170 = vshll.u32 %v5805, 16
        %v6172 = vrot.slane %v6170, 5
        %v6173 = vsel %vm931, %v6168, %v6172
        %v6174 = vshrl.u32 %v5805, 16
        %v6176 = vrot.slane %v6174, 4
        %v6177 = vor.u32 %v6176, %v6172
        %v6178 = vrot.slane %v6177, 4
        %v6180 = vshll.u32 %v5822, 16
        %v6182 = vrot.slane %v6180, 5
        %v6183 = vsel %vm931, %v6178, %v6182
        %v6185 = vshrl.u32 %v5806, 16
        %v6187 = vrot.slane %v6185, 4
        %v6188 = vshll.u32 %v5806, 16
        %v6190 = vrot.slane %v6188, 5
        %v6191 = vor.u32 %v6187, %v6190
        %v6192 = vrot.slane %v6191, 4
        %v6194 = vshll.u32 %v5807, 16
        %v6196 = vrot.slane %v6194, 5
        %v6197 = vsel %vm931, %v6192, %v6196
        %v6198 = vshrl.u32 %v5807, 16
        %v6200 = vrot.slane %v6198, 4
        %v6201 = vor.u32 %v6200, %v6196
        %v6202 = vrot.slane %v6201, 4
        %v6204 = vshll.u32 %v5823, 16
        %v6206 = vrot.slane %v6204, 5
        %v6207 = vsel %vm931, %v6202, %v6206
        %v6208 = vld [vmem:[%s5775] sm:$0xe]
        %v6209 = vld [vmem:[%s5775 + $0xc] sm:$0xe]
        %v6210 = vld [vmem:[%s5775 + $0x18] sm:$0xe]
        %v6211 = vld [vmem:[%s5775 + $0x24] sm:$0xe]
        %v6212 = vld [vmem:[%s5775 + $0x30] sm:$0xe]
        %v6213 = vld [vmem:[%s5775 + $0x3c] sm:$0xe]
        %v6214 = vld [vmem:[%s5775 + $0x48] sm:$0xe]
        %v6215 = vld [vmem:[%s5775 + $0x54] sm:$0xe]
        %v6216 = vld [vmem:[%s5775 + $0x60] sm:$0xe]
        %v6217 = vld [vmem:[%s5775 + $0x6c] sm:$0xe]
        %v6218 = vld [vmem:[%s5775 + $0x78] sm:$0xe]
        %v6219 = vld [vmem:[%s5775 + $0x84] sm:$0xe]
        %v6220 = vld [vmem:[%s5775 + $0x90] sm:$0xe]
        %v6221 = vld [vmem:[%s5775 + $0x9c] sm:$0xe]
        %v6222 = vld [vmem:[%s5775 + $0xa8] sm:$0xe]
        %v6223 = vld [vmem:[%s5775 + $0xb4] sm:$0xe]
        %v6272 = vrot.slane %v6208, 5
        %v6273 = vrot.slane %v6272, 4
        %v6274 = vrot.slane %v5777, 5
        %v6275 = vsel %vm1382, %v6273, %v6274
        %v6276 = vrot.slane %v6274, 4
        %v6277 = vrot.slane %v5808, 5
        %v6278 = vsel %vm1382, %v6276, %v6277
        %v6279 = vrot.slane %v6209, 5
        %v6280 = vrot.slane %v6279, 4
        %v6281 = vrot.slane %v5779, 5
        %v6282 = vsel %vm1382, %v6280, %v6281
        %v6283 = vrot.slane %v6281, 4
        %v6284 = vrot.slane %v5809, 5
        %v6285 = vsel %vm1382, %v6283, %v6284
        %v6286 = vrot.slane %v6210, 5
        %v6287 = vrot.slane %v6286, 4
        %v6288 = vrot.slane %v5781, 5
        %v6289 = vsel %vm1382, %v6287, %v6288
        %v6290 = vrot.slane %v6288, 4
        %v6291 = vrot.slane %v5810, 5
        %v6292 = vsel %vm1382, %v6290, %v6291
        %v6293 = vrot.slane %v6211, 5
        %v6294 = vrot.slane %v6293, 4
        %v6295 = vrot.slane %v5783, 5
        %v6296 = vsel %vm1382, %v6294, %v6295
        %v6297 = vrot.slane %v6295, 4
        %v6298 = vrot.slane %v5811, 5
        %v6299 = vsel %vm1382, %v6297, %v6298
        %v6300 = vrot.slane %v6212, 5
        %v6301 = vrot.slane %v6300, 4
        %v6302 = vrot.slane %v5785, 5
        %v6303 = vsel %vm1382, %v6301, %v6302
        %v6304 = vrot.slane %v6302, 4
        %v6305 = vrot.slane %v5812, 5
        %v6306 = vsel %vm1382, %v6304, %v6305
        %v6307 = vrot.slane %v6213, 5
        %v6308 = vrot.slane %v6307, 4
        %v6309 = vrot.slane %v5787, 5
        %v6310 = vsel %vm1382, %v6308, %v6309
        %v6311 = vrot.slane %v6309, 4
        %v6312 = vrot.slane %v5813, 5
        %v6313 = vsel %vm1382, %v6311, %v6312
        %v6314 = vrot.slane %v6214, 5
        %v6315 = vrot.slane %v6314, 4
        %v6316 = vrot.slane %v5789, 5
        %v6317 = vsel %vm1382, %v6315, %v6316
        %v6318 = vrot.slane %v6316, 4
        %v6319 = vrot.slane %v5814, 5
        %v6320 = vsel %vm1382, %v6318, %v6319
        %v6321 = vrot.slane %v6215, 5
        %v6322 = vrot.slane %v6321, 4
        %v6323 = vrot.slane %v5791, 5
        %v6324 = vsel %vm1382, %v6322, %v6323
        %v6325 = vrot.slane %v6323, 4
        %v6326 = vrot.slane %v5815, 5
        %v6327 = vsel %vm1382, %v6325, %v6326
        %v6328 = vrot.slane %v6216, 5
        %v6329 = vrot.slane %v6328, 4
        %v6330 = vrot.slane %v5793, 5
        %v6331 = vsel %vm1382, %v6329, %v6330
        %v6332 = vrot.slane %v6330, 4
        %v6333 = vrot.slane %v5816, 5
        %v6334 = vsel %vm1382, %v6332, %v6333
        %v6335 = vrot.slane %v6217, 5
        %v6336 = vrot.slane %v6335, 4
        %v6337 = vrot.slane %v5795, 5
        %v6338 = vsel %vm1382, %v6336, %v6337
        %v6339 = vrot.slane %v6337, 4
        %v6340 = vrot.slane %v5817, 5
        %v6341 = vsel %vm1382, %v6339, %v6340
        %v6342 = vrot.slane %v6218, 5
        %v6343 = vrot.slane %v6342, 4
        %v6344 = vrot.slane %v5797, 5
        %v6345 = vsel %vm1382, %v6343, %v6344
        %v6346 = vrot.slane %v6344, 4
        %v6347 = vrot.slane %v5818, 5
        %v6348 = vsel %vm1382, %v6346, %v6347
        %v6349 = vrot.slane %v6219, 5
        %v6350 = vrot.slane %v6349, 4
        %v6351 = vrot.slane %v5799, 5
        %v6352 = vsel %vm1382, %v6350, %v6351
        %v6353 = vrot.slane %v6351, 4
        %v6354 = vrot.slane %v5819, 5
        %v6355 = vsel %vm1382, %v6353, %v6354
        %v6356 = vrot.slane %v6220, 5
        %v6357 = vrot.slane %v6356, 4
        %v6358 = vrot.slane %v5801, 5
        %v6359 = vsel %vm1382, %v6357, %v6358
        %v6360 = vrot.slane %v6358, 4
        %v6361 = vrot.slane %v5820, 5
        %v6362 = vsel %vm1382, %v6360, %v6361
        %v6363 = vrot.slane %v6221, 5
        %v6364 = vrot.slane %v6363, 4
        %v6365 = vrot.slane %v5803, 5
        %v6366 = vsel %vm1382, %v6364, %v6365
        %v6367 = vrot.slane %v6365, 4
        %v6368 = vrot.slane %v5821, 5
        %v6369 = vsel %vm1382, %v6367, %v6368
        %v6370 = vrot.slane %v6222, 5
        %v6371 = vrot.slane %v6370, 4
        %v6372 = vrot.slane %v5805, 5
        %v6373 = vsel %vm1382, %v6371, %v6372
        %v6374 = vrot.slane %v6372, 4
        %v6375 = vrot.slane %v5822, 5
        %v6376 = vsel %vm1382, %v6374, %v6375
        %v6377 = vrot.slane %v6223, 5
        %v6378 = vrot.slane %v6377, 4
        %v6379 = vrot.slane %v5807, 5
        %v6380 = vsel %vm1382, %v6378, %v6379
        %v6381 = vrot.slane %v6379, 4
        %v6382 = vrot.slane %v5823, 5
        %v6383 = vsel %vm1382, %v6381, %v6382
        %v6400 = vunpack.c.l.b16 %v4559
        %v6401 = vunpack.c.l.b16 %v4560
        %v6402 = vunpack.c.l.b16 %v4561
        %v6403 = vunpack.c.l.b16 %v4562
        %v6404 = vunpack.c.l.b16 %v4563
        %v6405 = vunpack.c.l.b16 %v4564
        %v6406 = vunpack.c.l.b16 %v4565
        %v6407 = vunpack.c.l.b16 %v4566
        %v6408 = vunpack.c.l.b16 %v4567
        %v6409 = vunpack.c.l.b16 %v4568
        %v6410 = vunpack.c.l.b16 %v4569
        %v6411 = vunpack.c.l.b16 %v4570
        %v6412 = vunpack.c.l.b16 %v4571
        %v6413 = vunpack.c.l.b16 %v4572
        %v6414 = vunpack.c.l.b16 %v4573
        %v6415 = vunpack.c.l.b16 %v4574
        %v6416 = vunpack.c.l.b16 %v4575
        %v6417 = vunpack.c.l.b16 %v4576
        %v6418 = vunpack.c.l.b16 %v4577
        %v6419 = vunpack.c.l.b16 %v4578
        %v6420 = vunpack.c.l.b16 %v4579
        %v6421 = vunpack.c.l.b16 %v4580
        %v6422 = vunpack.c.l.b16 %v4581
        %v6423 = vunpack.c.l.b16 %v4582
        %v6424 = vunpack.c.l.b16 %v4583
        %v6425 = vunpack.c.l.b16 %v4584
        %v6426 = vunpack.c.l.b16 %v4585
        %v6427 = vunpack.c.l.b16 %v4586
        %v6428 = vunpack.c.l.b16 %v4587
        %v6429 = vunpack.c.l.b16 %v4588
        %v6430 = vunpack.c.l.b16 %v4589
        %v6431 = vunpack.c.l.b16 %v4590
        %v6432 = vpack.c.b16 %v6401, %v6400
        %v6433 = vpack.c.b16 %v6403, %v6402
        %v6434 = vpack.c.b16 %v6405, %v6404
        %v6435 = vpack.c.b16 %v6407, %v6406
        %v6436 = vpack.c.b16 %v6409, %v6408
        %v6437 = vpack.c.b16 %v6411, %v6410
        %v6438 = vpack.c.b16 %v6413, %v6412
        %v6439 = vpack.c.b16 %v6415, %v6414
        %v6440 = vpack.c.b16 %v6417, %v6416
        %v6441 = vpack.c.b16 %v6419, %v6418
        %v6442 = vpack.c.b16 %v6421, %v6420
        %v6443 = vpack.c.b16 %v6423, %v6422
        %v6444 = vpack.c.b16 %v6425, %v6424
        %v6445 = vpack.c.b16 %v6427, %v6426
        %v6446 = vpack.c.b16 %v6429, %v6428
        %v6447 = vpack.c.b16 %v6431, %v6430
        %v6464 = vunpack.c.l.b16 %v4620
        %v6465 = vunpack.c.l.b16 %v4630
        %v6466 = vunpack.c.l.b16 %v4644
        %v6467 = vunpack.c.l.b16 %v4654
        %v6468 = vunpack.c.l.b16 %v4668
        %v6469 = vunpack.c.l.b16 %v4678
        %v6470 = vunpack.c.l.b16 %v4692
        %v6471 = vunpack.c.l.b16 %v4702
        %v6472 = vunpack.c.l.b16 %v4716
        %v6473 = vunpack.c.l.b16 %v4726
        %v6474 = vunpack.c.l.b16 %v4740
        %v6475 = vunpack.c.l.b16 %v4750
        %v6476 = vunpack.c.l.b16 %v4764
        %v6477 = vunpack.c.l.b16 %v4774
        %v6478 = vunpack.c.l.b16 %v4788
        %v6479 = vunpack.c.l.b16 %v4798
        %v6480 = vunpack.c.l.b16 %v4812
        %v6481 = vunpack.c.l.b16 %v4822
        %v6482 = vunpack.c.l.b16 %v4836
        %v6483 = vunpack.c.l.b16 %v4846
        %v6484 = vunpack.c.l.b16 %v4860
        %v6485 = vunpack.c.l.b16 %v4870
        %v6486 = vunpack.c.l.b16 %v4884
        %v6487 = vunpack.c.l.b16 %v4894
        %v6488 = vunpack.c.l.b16 %v4908
        %v6489 = vunpack.c.l.b16 %v4918
        %v6490 = vunpack.c.l.b16 %v4932
        %v6491 = vunpack.c.l.b16 %v4942
        %v6492 = vunpack.c.l.b16 %v4956
        %v6493 = vunpack.c.l.b16 %v4966
        %v6494 = vunpack.c.l.b16 %v4980
        %v6495 = vunpack.c.l.b16 %v4990
        %v6496 = vpack.c.b16 %v6465, %v6464
        %v6497 = vpack.c.b16 %v6467, %v6466
        %v6498 = vpack.c.b16 %v6469, %v6468
        %v6499 = vpack.c.b16 %v6471, %v6470
        %v6500 = vpack.c.b16 %v6473, %v6472
        %v6501 = vpack.c.b16 %v6475, %v6474
        %v6502 = vpack.c.b16 %v6477, %v6476
        %v6503 = vpack.c.b16 %v6479, %v6478
        %v6504 = vpack.c.b16 %v6481, %v6480
        %v6505 = vpack.c.b16 %v6483, %v6482
        %v6506 = vpack.c.b16 %v6485, %v6484
        %v6507 = vpack.c.b16 %v6487, %v6486
        %v6508 = vpack.c.b16 %v6489, %v6488
        %v6509 = vpack.c.b16 %v6491, %v6490
        %v6510 = vpack.c.b16 %v6493, %v6492
        %v6511 = vpack.c.b16 %v6495, %v6494
        %v6528 = vunpack.c.l.b16 %v5058
        %v6529 = vunpack.c.l.b16 %v5061
        %v6530 = vunpack.c.l.b16 %v5065
        %v6531 = vunpack.c.l.b16 %v5068
        %v6532 = vunpack.c.l.b16 %v5072
        %v6533 = vunpack.c.l.b16 %v5075
        %v6534 = vunpack.c.l.b16 %v5079
        %v6535 = vunpack.c.l.b16 %v5082
        %v6536 = vunpack.c.l.b16 %v5086
        %v6537 = vunpack.c.l.b16 %v5089
        %v6538 = vunpack.c.l.b16 %v5093
        %v6539 = vunpack.c.l.b16 %v5096
        %v6540 = vunpack.c.l.b16 %v5100
        %v6541 = vunpack.c.l.b16 %v5103
        %v6542 = vunpack.c.l.b16 %v5107
        %v6543 = vunpack.c.l.b16 %v5110
        %v6544 = vunpack.c.l.b16 %v5114
        %v6545 = vunpack.c.l.b16 %v5117
        %v6546 = vunpack.c.l.b16 %v5121
        %v6547 = vunpack.c.l.b16 %v5124
        %v6548 = vunpack.c.l.b16 %v5128
        %v6549 = vunpack.c.l.b16 %v5131
        %v6550 = vunpack.c.l.b16 %v5135
        %v6551 = vunpack.c.l.b16 %v5138
        %v6552 = vunpack.c.l.b16 %v5142
        %v6553 = vunpack.c.l.b16 %v5145
        %v6554 = vunpack.c.l.b16 %v5149
        %v6555 = vunpack.c.l.b16 %v5152
        %v6556 = vunpack.c.l.b16 %v5156
        %v6557 = vunpack.c.l.b16 %v5159
        %v6558 = vunpack.c.l.b16 %v5163
        %v6559 = vunpack.c.l.b16 %v5166
        %v6560 = vpack.c.b16 %v6529, %v6528
        %v6561 = vpack.c.b16 %v6531, %v6530
        %v6562 = vpack.c.b16 %v6533, %v6532
        %v6563 = vpack.c.b16 %v6535, %v6534
        %v6564 = vpack.c.b16 %v6537, %v6536
        %v6565 = vpack.c.b16 %v6539, %v6538
        %v6566 = vpack.c.b16 %v6541, %v6540
        %v6567 = vpack.c.b16 %v6543, %v6542
        %v6568 = vpack.c.b16 %v6545, %v6544
        %v6569 = vpack.c.b16 %v6547, %v6546
        %v6570 = vpack.c.b16 %v6549, %v6548
        %v6571 = vpack.c.b16 %v6551, %v6550
        %v6572 = vpack.c.b16 %v6553, %v6552
        %v6573 = vpack.c.b16 %v6555, %v6554
        %v6574 = vpack.c.b16 %v6557, %v6556
        %v6575 = vpack.c.b16 %v6559, %v6558
        %v6608 = vunpack.c.l.b16 %v5167
        %v6609 = vunpack.c.l.b16 %v5168
        %v6610 = vunpack.c.l.b16 %v5169
        %v6611 = vunpack.c.l.b16 %v5170
        %v6612 = vunpack.c.l.b16 %v5171
        %v6613 = vunpack.c.l.b16 %v5172
        %v6614 = vunpack.c.l.b16 %v5173
        %v6615 = vunpack.c.l.b16 %v5174
        %v6616 = vunpack.c.l.b16 %v5175
        %v6617 = vunpack.c.l.b16 %v5176
        %v6618 = vunpack.c.l.b16 %v5177
        %v6619 = vunpack.c.l.b16 %v5178
        %v6620 = vunpack.c.l.b16 %v5179
        %v6621 = vunpack.c.l.b16 %v5180
        %v6622 = vunpack.c.l.b16 %v5181
        %v6623 = vunpack.c.l.b16 %v5182
        %v6624 = vunpack.c.l.b16 %v5183
        %v6625 = vunpack.c.l.b16 %v5184
        %v6626 = vunpack.c.l.b16 %v5185
        %v6627 = vunpack.c.l.b16 %v5186
        %v6628 = vunpack.c.l.b16 %v5187
        %v6629 = vunpack.c.l.b16 %v5188
        %v6630 = vunpack.c.l.b16 %v5189
        %v6631 = vunpack.c.l.b16 %v5190
        %v6632 = vunpack.c.l.b16 %v5191
        %v6633 = vunpack.c.l.b16 %v5192
        %v6634 = vunpack.c.l.b16 %v5193
        %v6635 = vunpack.c.l.b16 %v5194
        %v6636 = vunpack.c.l.b16 %v5195
        %v6637 = vunpack.c.l.b16 %v5196
        %v6638 = vunpack.c.l.b16 %v5197
        %v6639 = vunpack.c.l.b16 %v5198
        %v6640 = vpack.c.b16 %v6609, %v6608
        %v6641 = vpack.c.b16 %v6611, %v6610
        %v6642 = vpack.c.b16 %v6613, %v6612
        %v6643 = vpack.c.b16 %v6615, %v6614
        %v6644 = vpack.c.b16 %v6617, %v6616
        %v6645 = vpack.c.b16 %v6619, %v6618
        %v6646 = vpack.c.b16 %v6621, %v6620
        %v6647 = vpack.c.b16 %v6623, %v6622
        %v6648 = vpack.c.b16 %v6625, %v6624
        %v6649 = vpack.c.b16 %v6627, %v6626
        %v6650 = vpack.c.b16 %v6629, %v6628
        %v6651 = vpack.c.b16 %v6631, %v6630
        %v6652 = vpack.c.b16 %v6633, %v6632
        %v6653 = vpack.c.b16 %v6635, %v6634
        %v6654 = vpack.c.b16 %v6637, %v6636
        %v6655 = vpack.c.b16 %v6639, %v6638
        %v6672 = vunpack.c.l.b16 %v5228
        %v6673 = vunpack.c.l.b16 %v5238
        %v6674 = vunpack.c.l.b16 %v5252
        %v6675 = vunpack.c.l.b16 %v5262
        %v6676 = vunpack.c.l.b16 %v5276
        %v6677 = vunpack.c.l.b16 %v5286
        %v6678 = vunpack.c.l.b16 %v5300
        %v6679 = vunpack.c.l.b16 %v5310
        %v6680 = vunpack.c.l.b16 %v5324
        %v6681 = vunpack.c.l.b16 %v5334
        %v6682 = vunpack.c.l.b16 %v5348
        %v6683 = vunpack.c.l.b16 %v5358
        %v6684 = vunpack.c.l.b16 %v5372
        %v6685 = vunpack.c.l.b16 %v5382
        %v6686 = vunpack.c.l.b16 %v5396
        %v6687 = vunpack.c.l.b16 %v5406
        %v6688 = vunpack.c.l.b16 %v5420
        %v6689 = vunpack.c.l.b16 %v5430
        %v6690 = vunpack.c.l.b16 %v5444
        %v6691 = vunpack.c.l.b16 %v5454
        %v6692 = vunpack.c.l.b16 %v5468
        %v6693 = vunpack.c.l.b16 %v5478
        %v6694 = vunpack.c.l.b16 %v5492
        %v6695 = vunpack.c.l.b16 %v5502
        %v6696 = vunpack.c.l.b16 %v5516
        %v6697 = vunpack.c.l.b16 %v5526
        %v6698 = vunpack.c.l.b16 %v5540
        %v6699 = vunpack.c.l.b16 %v5550
        %v6700 = vunpack.c.l.b16 %v5564
        %v6701 = vunpack.c.l.b16 %v5574
        %v6702 = vunpack.c.l.b16 %v5588
        %v6703 = vunpack.c.l.b16 %v5598
        %v6704 = vpack.c.b16 %v6673, %v6672
        %v6705 = vpack.c.b16 %v6675, %v6674
        %v6706 = vpack.c.b16 %v6677, %v6676
        %v6707 = vpack.c.b16 %v6679, %v6678
        %v6708 = vpack.c.b16 %v6681, %v6680
        %v6709 = vpack.c.b16 %v6683, %v6682
        %v6710 = vpack.c.b16 %v6685, %v6684
        %v6711 = vpack.c.b16 %v6687, %v6686
        %v6712 = vpack.c.b16 %v6689, %v6688
        %v6713 = vpack.c.b16 %v6691, %v6690
        %v6714 = vpack.c.b16 %v6693, %v6692
        %v6715 = vpack.c.b16 %v6695, %v6694
        %v6716 = vpack.c.b16 %v6697, %v6696
        %v6717 = vpack.c.b16 %v6699, %v6698
        %v6718 = vpack.c.b16 %v6701, %v6700
        %v6719 = vpack.c.b16 %v6703, %v6702
        %v6736 = vunpack.c.l.b16 %v5666
        %v6737 = vunpack.c.l.b16 %v5669
        %v6738 = vunpack.c.l.b16 %v5673
        %v6739 = vunpack.c.l.b16 %v5676
        %v6740 = vunpack.c.l.b16 %v5680
        %v6741 = vunpack.c.l.b16 %v5683
        %v6742 = vunpack.c.l.b16 %v5687
        %v6743 = vunpack.c.l.b16 %v5690
        %v6744 = vunpack.c.l.b16 %v5694
        %v6745 = vunpack.c.l.b16 %v5697
        %v6746 = vunpack.c.l.b16 %v5701
        %v6747 = vunpack.c.l.b16 %v5704
        %v6748 = vunpack.c.l.b16 %v5708
        %v6749 = vunpack.c.l.b16 %v5711
        %v6750 = vunpack.c.l.b16 %v5715
        %v6751 = vunpack.c.l.b16 %v5718
        %v6752 = vunpack.c.l.b16 %v5722
        %v6753 = vunpack.c.l.b16 %v5725
        %v6754 = vunpack.c.l.b16 %v5729
        %v6755 = vunpack.c.l.b16 %v5732
        %v6756 = vunpack.c.l.b16 %v5736
        %v6757 = vunpack.c.l.b16 %v5739
        %v6758 = vunpack.c.l.b16 %v5743
        %v6759 = vunpack.c.l.b16 %v5746
        %v6760 = vunpack.c.l.b16 %v5750
        %v6761 = vunpack.c.l.b16 %v5753
        %v6762 = vunpack.c.l.b16 %v5757
        %v6763 = vunpack.c.l.b16 %v5760
        %v6764 = vunpack.c.l.b16 %v5764
        %v6765 = vunpack.c.l.b16 %v5767
        %v6766 = vunpack.c.l.b16 %v5771
        %v6767 = vunpack.c.l.b16 %v5774
        %v6768 = vpack.c.b16 %v6737, %v6736
        %v6769 = vpack.c.b16 %v6739, %v6738
        %v6770 = vpack.c.b16 %v6741, %v6740
        %v6771 = vpack.c.b16 %v6743, %v6742
        %v6772 = vpack.c.b16 %v6745, %v6744
        %v6773 = vpack.c.b16 %v6747, %v6746
        %v6774 = vpack.c.b16 %v6749, %v6748
        %v6775 = vpack.c.b16 %v6751, %v6750
        %v6776 = vpack.c.b16 %v6753, %v6752
        %v6777 = vpack.c.b16 %v6755, %v6754
        %v6778 = vpack.c.b16 %v6757, %v6756
        %v6779 = vpack.c.b16 %v6759, %v6758
        %v6780 = vpack.c.b16 %v6761, %v6760
        %v6781 = vpack.c.b16 %v6763, %v6762
        %v6782 = vpack.c.b16 %v6765, %v6764
        %v6783 = vpack.c.b16 %v6767, %v6766
        %v6816 = vunpack.c.l.b16 %v5776
        %v6817 = vunpack.c.l.b16 %v5777
        %v6818 = vunpack.c.l.b16 %v5778
        %v6819 = vunpack.c.l.b16 %v5779
        %v6820 = vunpack.c.l.b16 %v5780
        %v6821 = vunpack.c.l.b16 %v5781
        %v6822 = vunpack.c.l.b16 %v5782
        %v6823 = vunpack.c.l.b16 %v5783
        %v6824 = vunpack.c.l.b16 %v5784
        %v6825 = vunpack.c.l.b16 %v5785
        %v6826 = vunpack.c.l.b16 %v5786
        %v6827 = vunpack.c.l.b16 %v5787
        %v6828 = vunpack.c.l.b16 %v5788
        %v6829 = vunpack.c.l.b16 %v5789
        %v6830 = vunpack.c.l.b16 %v5790
        %v6831 = vunpack.c.l.b16 %v5791
        %v6832 = vunpack.c.l.b16 %v5792
        %v6833 = vunpack.c.l.b16 %v5793
        %v6834 = vunpack.c.l.b16 %v5794
        %v6835 = vunpack.c.l.b16 %v5795
        %v6836 = vunpack.c.l.b16 %v5796
        %v6837 = vunpack.c.l.b16 %v5797
        %v6838 = vunpack.c.l.b16 %v5798
        %v6839 = vunpack.c.l.b16 %v5799
        %v6840 = vunpack.c.l.b16 %v5800
        %v6841 = vunpack.c.l.b16 %v5801
        %v6842 = vunpack.c.l.b16 %v5802
        %v6843 = vunpack.c.l.b16 %v5803
        %v6844 = vunpack.c.l.b16 %v5804
        %v6845 = vunpack.c.l.b16 %v5805
        %v6846 = vunpack.c.l.b16 %v5806
        %v6847 = vunpack.c.l.b16 %v5807
        %v6848 = vpack.c.b16 %v6817, %v6816
        %v6849 = vpack.c.b16 %v6819, %v6818
        %v6850 = vpack.c.b16 %v6821, %v6820
        %v6851 = vpack.c.b16 %v6823, %v6822
        %v6852 = vpack.c.b16 %v6825, %v6824
        %v6853 = vpack.c.b16 %v6827, %v6826
        %v6854 = vpack.c.b16 %v6829, %v6828
        %v6855 = vpack.c.b16 %v6831, %v6830
        %v6856 = vpack.c.b16 %v6833, %v6832
        %v6857 = vpack.c.b16 %v6835, %v6834
        %v6858 = vpack.c.b16 %v6837, %v6836
        %v6859 = vpack.c.b16 %v6839, %v6838
        %v6860 = vpack.c.b16 %v6841, %v6840
        %v6861 = vpack.c.b16 %v6843, %v6842
        %v6862 = vpack.c.b16 %v6845, %v6844
        %v6863 = vpack.c.b16 %v6847, %v6846
        %v6880 = vunpack.c.l.b16 %v5837
        %v6881 = vunpack.c.l.b16 %v5847
        %v6882 = vunpack.c.l.b16 %v5861
        %v6883 = vunpack.c.l.b16 %v5871
        %v6884 = vunpack.c.l.b16 %v5885
        %v6885 = vunpack.c.l.b16 %v5895
        %v6886 = vunpack.c.l.b16 %v5909
        %v6887 = vunpack.c.l.b16 %v5919
        %v6888 = vunpack.c.l.b16 %v5933
        %v6889 = vunpack.c.l.b16 %v5943
        %v6890 = vunpack.c.l.b16 %v5957
        %v6891 = vunpack.c.l.b16 %v5967
        %v6892 = vunpack.c.l.b16 %v5981
        %v6893 = vunpack.c.l.b16 %v5991
        %v6894 = vunpack.c.l.b16 %v6005
        %v6895 = vunpack.c.l.b16 %v6015
        %v6896 = vunpack.c.l.b16 %v6029
        %v6897 = vunpack.c.l.b16 %v6039
        %v6898 = vunpack.c.l.b16 %v6053
        %v6899 = vunpack.c.l.b16 %v6063
        %v6900 = vunpack.c.l.b16 %v6077
        %v6901 = vunpack.c.l.b16 %v6087
        %v6902 = vunpack.c.l.b16 %v6101
        %v6903 = vunpack.c.l.b16 %v6111
        %v6904 = vunpack.c.l.b16 %v6125
        %v6905 = vunpack.c.l.b16 %v6135
        %v6906 = vunpack.c.l.b16 %v6149
        %v6907 = vunpack.c.l.b16 %v6159
        %v6908 = vunpack.c.l.b16 %v6173
        %v6909 = vunpack.c.l.b16 %v6183
        %v6910 = vunpack.c.l.b16 %v6197
        %v6911 = vunpack.c.l.b16 %v6207
        %v6912 = vpack.c.b16 %v6881, %v6880
        %v6913 = vpack.c.b16 %v6883, %v6882
        %v6914 = vpack.c.b16 %v6885, %v6884
        %v6915 = vpack.c.b16 %v6887, %v6886
        %v6916 = vpack.c.b16 %v6889, %v6888
        %v6917 = vpack.c.b16 %v6891, %v6890
        %v6918 = vpack.c.b16 %v6893, %v6892
        %v6919 = vpack.c.b16 %v6895, %v6894
        %v6920 = vpack.c.b16 %v6897, %v6896
        %v6921 = vpack.c.b16 %v6899, %v6898
        %v6922 = vpack.c.b16 %v6901, %v6900
        %v6923 = vpack.c.b16 %v6903, %v6902
        %v6924 = vpack.c.b16 %v6905, %v6904
        %v6925 = vpack.c.b16 %v6907, %v6906
        %v6926 = vpack.c.b16 %v6909, %v6908
        %v6927 = vpack.c.b16 %v6911, %v6910
        %v6944 = vunpack.c.l.b16 %v6275
        %v6945 = vunpack.c.l.b16 %v6278
        %v6946 = vunpack.c.l.b16 %v6282
        %v6947 = vunpack.c.l.b16 %v6285
        %v6948 = vunpack.c.l.b16 %v6289
        %v6949 = vunpack.c.l.b16 %v6292
        %v6950 = vunpack.c.l.b16 %v6296
        %v6951 = vunpack.c.l.b16 %v6299
        %v6952 = vunpack.c.l.b16 %v6303
        %v6953 = vunpack.c.l.b16 %v6306
        %v6954 = vunpack.c.l.b16 %v6310
        %v6955 = vunpack.c.l.b16 %v6313
        %v6956 = vunpack.c.l.b16 %v6317
        %v6957 = vunpack.c.l.b16 %v6320
        %v6958 = vunpack.c.l.b16 %v6324
        %v6959 = vunpack.c.l.b16 %v6327
        %v6960 = vunpack.c.l.b16 %v6331
        %v6961 = vunpack.c.l.b16 %v6334
        %v6962 = vunpack.c.l.b16 %v6338
        %v6963 = vunpack.c.l.b16 %v6341
        %v6964 = vunpack.c.l.b16 %v6345
        %v6965 = vunpack.c.l.b16 %v6348
        %v6966 = vunpack.c.l.b16 %v6352
        %v6967 = vunpack.c.l.b16 %v6355
        %v6968 = vunpack.c.l.b16 %v6359
        %v6969 = vunpack.c.l.b16 %v6362
        %v6970 = vunpack.c.l.b16 %v6366
        %v6971 = vunpack.c.l.b16 %v6369
        %v6972 = vunpack.c.l.b16 %v6373
        %v6973 = vunpack.c.l.b16 %v6376
        %v6974 = vunpack.c.l.b16 %v6380
        %v6975 = vunpack.c.l.b16 %v6383
        %v6976 = vpack.c.b16 %v6945, %v6944
        %v6977 = vpack.c.b16 %v6947, %v6946
        %v6978 = vpack.c.b16 %v6949, %v6948
        %v6979 = vpack.c.b16 %v6951, %v6950
        %v6980 = vpack.c.b16 %v6953, %v6952
        %v6981 = vpack.c.b16 %v6955, %v6954
        %v6982 = vpack.c.b16 %v6957, %v6956
        %v6983 = vpack.c.b16 %v6959, %v6958
        %v6984 = vpack.c.b16 %v6961, %v6960
        %v6985 = vpack.c.b16 %v6963, %v6962
        %v6986 = vpack.c.b16 %v6965, %v6964
        %v6987 = vpack.c.b16 %v6967, %v6966
        %v6988 = vpack.c.b16 %v6969, %v6968
        %v6989 = vpack.c.b16 %v6971, %v6970
        %v6990 = vpack.c.b16 %v6973, %v6972
        %v6991 = vpack.c.b16 %v6975, %v6974
        %v7008 = vld [vmem:[#allocation10] sm:$0xf]
        %v7009 = vld [vmem:[#allocation10 + $0x4] sm:$0xf]
        %v7010 = vld [vmem:[#allocation10 + $0x8] sm:$0xf]
        %v7011 = vld [vmem:[#allocation10 + $0xc] sm:$0xf]
        %v7012 = vld [vmem:[#allocation10 + $0x10] sm:$0xf]
        %v7013 = vld [vmem:[#allocation10 + $0x14] sm:$0xf]
        %v7014 = vld [vmem:[#allocation10 + $0x18] sm:$0xf]
        %v7015 = vld [vmem:[#allocation10 + $0x1c] sm:$0xf]
        %v7016 = vld [vmem:[#allocation10 + $0x20] sm:$0xf]
        %v7017 = vld [vmem:[#allocation10 + $0x24] sm:$0xf]
        %v7018 = vld [vmem:[#allocation10 + $0x28] sm:$0xf]
        %v7019 = vld [vmem:[#allocation10 + $0x2c] sm:$0xf]
        %v7020 = vld [vmem:[#allocation10 + $0x30] sm:$0xf]
        %v7021 = vld [vmem:[#allocation10 + $0x34] sm:$0xf]
        %v7022 = vld [vmem:[#allocation10 + $0x38] sm:$0xf]
        %v7023 = vld [vmem:[#allocation10 + $0x3c] sm:$0xf]
        %v7024 = vld [vmem:[#allocation10 + $0x40] sm:$0xf]
        %v7025 = vld [vmem:[#allocation10 + $0x44] sm:$0xf]
        %v7026 = vld [vmem:[#allocation10 + $0x48] sm:$0xf]
        %v7027 = vld [vmem:[#allocation10 + $0x4c] sm:$0xf]
        %v7028 = vld [vmem:[#allocation10 + $0x50] sm:$0xf]
        %v7029 = vld [vmem:[#allocation10 + $0x54] sm:$0xf]
        %v7030 = vld [vmem:[#allocation10 + $0x58] sm:$0xf]
        %v7031 = vld [vmem:[#allocation10 + $0x5c] sm:$0xf]
        %v7032 = vld [vmem:[#allocation10 + $0x60] sm:$0xf]
        %v7033 = vld [vmem:[#allocation10 + $0x64] sm:$0xf]
        %v7034 = vld [vmem:[#allocation10 + $0x68] sm:$0xf]
        %v7035 = vld [vmem:[#allocation10 + $0x6c] sm:$0xf]
        %v7036 = vld [vmem:[#allocation10 + $0x70] sm:$0xf]
        %v7037 = vld [vmem:[#allocation10 + $0x74] sm:$0xf]
        %v7038 = vld [vmem:[#allocation10 + $0x78] sm:$0xf]
        %v7039 = vld [vmem:[#allocation10 + $0x7c] sm:$0xf]
        %v7040 = vld [vmem:[#allocation10 + $0x80] sm:$0xf]
        %v7041 = vld [vmem:[#allocation10 + $0x84] sm:$0xf]
        %v7042 = vld [vmem:[#allocation10 + $0x88] sm:$0xf]
        %v7043 = vld [vmem:[#allocation10 + $0x8c] sm:$0xf]
        %v7044 = vld [vmem:[#allocation10 + $0x90] sm:$0xf]
        %v7045 = vld [vmem:[#allocation10 + $0x94] sm:$0xf]
        %v7046 = vld [vmem:[#allocation10 + $0x98] sm:$0xf]
        %v7047 = vld [vmem:[#allocation10 + $0x9c] sm:$0xf]
        %v7048 = vld [vmem:[#allocation10 + $0xa0] sm:$0xf]
        %v7049 = vld [vmem:[#allocation10 + $0xa4] sm:$0xf]
        %v7050 = vld [vmem:[#allocation10 + $0xa8] sm:$0xf]
        %v7051 = vld [vmem:[#allocation10 + $0xac] sm:$0xf]
        %v7052 = vld [vmem:[#allocation10 + $0xb0] sm:$0xf]
        %v7053 = vld [vmem:[#allocation10 + $0xb4] sm:$0xf]
        %v7054 = vld [vmem:[#allocation10 + $0xb8] sm:$0xf]
        %v7055 = vld [vmem:[#allocation10 + $0xbc] sm:$0xf]
        %v7056 = vld [vmem:[#allocation10 + $0xc0] sm:$0xf]
        %v7057 = vld [vmem:[#allocation10 + $0xc4] sm:$0xf]
        %v7058 = vld [vmem:[#allocation10 + $0xc8] sm:$0xf]
        %v7059 = vld [vmem:[#allocation10 + $0xcc] sm:$0xf]
        %v7060 = vld [vmem:[#allocation10 + $0xd0] sm:$0xf]
        %v7061 = vld [vmem:[#allocation10 + $0xd4] sm:$0xf]
        %v7062 = vld [vmem:[#allocation10 + $0xd8] sm:$0xf]
        %v7063 = vld [vmem:[#allocation10 + $0xdc] sm:$0xf]
        %v7064 = vld [vmem:[#allocation10 + $0xe0] sm:$0xf]
        %v7065 = vld [vmem:[#allocation10 + $0xe4] sm:$0xf]
        %v7066 = vld [vmem:[#allocation10 + $0xe8] sm:$0xf]
        %v7067 = vld [vmem:[#allocation10 + $0xec] sm:$0xf]
        %v7068 = vld [vmem:[#allocation10 + $0xf0] sm:$0xf]
        %v7069 = vld [vmem:[#allocation10 + $0xf4] sm:$0xf]
        %v7070 = vld [vmem:[#allocation10 + $0xf8] sm:$0xf]
        %v7071 = vld [vmem:[#allocation10 + $0xfc] sm:$0xf]
        %v7072 = vld [vmem:[#allocation10 + $0x100] sm:$0xf]
        %v7073 = vld [vmem:[#allocation10 + $0x104] sm:$0xf]
        %v7074 = vld [vmem:[#allocation10 + $0x108] sm:$0xf]
        %v7075 = vld [vmem:[#allocation10 + $0x10c] sm:$0xf]
        %v7076 = vld [vmem:[#allocation10 + $0x110] sm:$0xf]
        %v7077 = vld [vmem:[#allocation10 + $0x114] sm:$0xf]
        %v7078 = vld [vmem:[#allocation10 + $0x118] sm:$0xf]
        %v7079 = vld [vmem:[#allocation10 + $0x11c] sm:$0xf]
        %v7080 = vld [vmem:[#allocation10 + $0x120] sm:$0xf]
        %v7081 = vld [vmem:[#allocation10 + $0x124] sm:$0xf]
        %v7082 = vld [vmem:[#allocation10 + $0x128] sm:$0xf]
        %v7083 = vld [vmem:[#allocation10 + $0x12c] sm:$0xf]
        %v7084 = vld [vmem:[#allocation10 + $0x130] sm:$0xf]
        %v7085 = vld [vmem:[#allocation10 + $0x134] sm:$0xf]
        %v7086 = vld [vmem:[#allocation10 + $0x138] sm:$0xf]
        %v7087 = vld [vmem:[#allocation10 + $0x13c] sm:$0xf]
        %v7088 = vld [vmem:[#allocation10 + $0x140] sm:$0xf]
        %v7089 = vld [vmem:[#allocation10 + $0x144] sm:$0xf]
        %v7090 = vld [vmem:[#allocation10 + $0x148] sm:$0xf]
        %v7091 = vld [vmem:[#allocation10 + $0x14c] sm:$0xf]
        %v7092 = vld [vmem:[#allocation10 + $0x150] sm:$0xf]
        %v7093 = vld [vmem:[#allocation10 + $0x154] sm:$0xf]
        %v7094 = vld [vmem:[#allocation10 + $0x158] sm:$0xf]
        %v7095 = vld [vmem:[#allocation10 + $0x15c] sm:$0xf]
        %v7096 = vld [vmem:[#allocation10 + $0x160] sm:$0xf]
        %v7097 = vld [vmem:[#allocation10 + $0x164] sm:$0xf]
        %v7098 = vld [vmem:[#allocation10 + $0x168] sm:$0xf]
        %v7099 = vld [vmem:[#allocation10 + $0x16c] sm:$0xf]
        %v7100 = vld [vmem:[#allocation10 + $0x170] sm:$0xf]
        %v7101 = vld [vmem:[#allocation10 + $0x174] sm:$0xf]
        %v7102 = vld [vmem:[#allocation10 + $0x178] sm:$0xf]
        %v7103 = vld [vmem:[#allocation10 + $0x17c] sm:$0xf]
        %v7104 = vld [vmem:[#allocation10 + $0x180] sm:$0xf]
        %v7105 = vld [vmem:[#allocation10 + $0x184] sm:$0xf]
        %v7106 = vld [vmem:[#allocation10 + $0x188] sm:$0xf]
        %v7107 = vld [vmem:[#allocation10 + $0x18c] sm:$0xf]
        %v7108 = vld [vmem:[#allocation10 + $0x190] sm:$0xf]
        %v7109 = vld [vmem:[#allocation10 + $0x194] sm:$0xf]
        %v7110 = vld [vmem:[#allocation10 + $0x198] sm:$0xf]
        %v7111 = vld [vmem:[#allocation10 + $0x19c] sm:$0xf]
        %v7112 = vld [vmem:[#allocation10 + $0x1a0] sm:$0xf]
        %v7113 = vld [vmem:[#allocation10 + $0x1a4] sm:$0xf]
        %v7114 = vld [vmem:[#allocation10 + $0x1a8] sm:$0xf]
        %v7115 = vld [vmem:[#allocation10 + $0x1ac] sm:$0xf]
        %v7116 = vld [vmem:[#allocation10 + $0x1b0] sm:$0xf]
        %v7117 = vld [vmem:[#allocation10 + $0x1b4] sm:$0xf]
        %v7118 = vld [vmem:[#allocation10 + $0x1b8] sm:$0xf]
        %v7119 = vld [vmem:[#allocation10 + $0x1bc] sm:$0xf]
        %v7120 = vld [vmem:[#allocation10 + $0x1c0] sm:$0xf]
        %v7121 = vld [vmem:[#allocation10 + $0x1c4] sm:$0xf]
        %v7122 = vld [vmem:[#allocation10 + $0x1c8] sm:$0xf]
        %v7123 = vld [vmem:[#allocation10 + $0x1cc] sm:$0xf]
        %v7124 = vld [vmem:[#allocation10 + $0x1d0] sm:$0xf]
        %v7125 = vld [vmem:[#allocation10 + $0x1d4] sm:$0xf]
        %v7126 = vld [vmem:[#allocation10 + $0x1d8] sm:$0xf]
        %v7127 = vld [vmem:[#allocation10 + $0x1dc] sm:$0xf]
        %v7128 = vld [vmem:[#allocation10 + $0x1e0] sm:$0xf]
        %v7129 = vld [vmem:[#allocation10 + $0x1e4] sm:$0xf]
        %v7130 = vld [vmem:[#allocation10 + $0x1e8] sm:$0xf]
        %v7131 = vld [vmem:[#allocation10 + $0x1ec] sm:$0xf]
        %v7132 = vld [vmem:[#allocation10 + $0x1f0] sm:$0xf]
        %v7133 = vld [vmem:[#allocation10 + $0x1f4] sm:$0xf]
        %v7134 = vld [vmem:[#allocation10 + $0x1f8] sm:$0xf]
        %v7135 = vld [vmem:[#allocation10 + $0x1fc] sm:$0xf]
        %v7136 = vld [vmem:[#allocation10 + $0x200] sm:$0xf]
        %v7137 = vld [vmem:[#allocation10 + $0x204] sm:$0xf]
        %v7138 = vld [vmem:[#allocation10 + $0x208] sm:$0xf]
        %v7139 = vld [vmem:[#allocation10 + $0x20c] sm:$0xf]
        %v7140 = vld [vmem:[#allocation10 + $0x210] sm:$0xf]
        %v7141 = vld [vmem:[#allocation10 + $0x214] sm:$0xf]
        %v7142 = vld [vmem:[#allocation10 + $0x218] sm:$0xf]
        %v7143 = vld [vmem:[#allocation10 + $0x21c] sm:$0xf]
        %v7144 = vld [vmem:[#allocation10 + $0x220] sm:$0xf]
        %v7145 = vld [vmem:[#allocation10 + $0x224] sm:$0xf]
        %v7146 = vld [vmem:[#allocation10 + $0x228] sm:$0xf]
        %v7147 = vld [vmem:[#allocation10 + $0x22c] sm:$0xf]
        %v7148 = vld [vmem:[#allocation10 + $0x230] sm:$0xf]
        %v7149 = vld [vmem:[#allocation10 + $0x234] sm:$0xf]
        %v7150 = vld [vmem:[#allocation10 + $0x238] sm:$0xf]
        %v7151 = vld [vmem:[#allocation10 + $0x23c] sm:$0xf]
        %v7152 = vld [vmem:[#allocation12] sm:$0x1]
        %v7154 = vlaneseq
        %v7155 = vshrl.u32 %v7154, 7
        %v7156 = vsub.s32 0, %v7155
        %v7157 = vrot.slane %v7152, %v7156
        %v7303 = vunpack.c.l.b16 %v7008
        %v7304 = vunpack.c.l.b16 %v7009
        %v7305 = vunpack.c.l.b16 %v7010
        %v7306 = vunpack.c.l.b16 %v7011
        %v7307 = vunpack.c.l.b16 %v7012
        %v7308 = vunpack.c.l.b16 %v7013
        %v7309 = vunpack.c.l.b16 %v7014
        %v7310 = vunpack.c.l.b16 %v7015
        %v7311 = vunpack.c.l.b16 %v7016
        %v7312 = vunpack.c.l.b16 %v7017
        %v7313 = vunpack.c.l.b16 %v7018
        %v7314 = vunpack.c.l.b16 %v7019
        %v7315 = vunpack.c.l.b16 %v7020
        %v7316 = vunpack.c.l.b16 %v7021
        %v7317 = vunpack.c.l.b16 %v7022
        %v7318 = vunpack.c.l.b16 %v7023
        %v7319 = vunpack.c.l.b16 %v7024
        %v7320 = vunpack.c.l.b16 %v7025
        %v7321 = vunpack.c.l.b16 %v7026
        %v7322 = vunpack.c.l.b16 %v7027
        %v7323 = vunpack.c.l.b16 %v7028
        %v7324 = vunpack.c.l.b16 %v7029
        %v7325 = vunpack.c.l.b16 %v7030
        %v7326 = vunpack.c.l.b16 %v7031
        %v7327 = vunpack.c.l.b16 %v7032
        %v7328 = vunpack.c.l.b16 %v7033
        %v7329 = vunpack.c.l.b16 %v7034
        %v7330 = vunpack.c.l.b16 %v7035
        %v7331 = vunpack.c.l.b16 %v7036
        %v7332 = vunpack.c.l.b16 %v7037
        %v7333 = vunpack.c.l.b16 %v7038
        %v7334 = vunpack.c.l.b16 %v7039
        %v7335 = vunpack.c.l.b16 %v7040
        %v7336 = vunpack.c.l.b16 %v7041
        %v7337 = vunpack.c.l.b16 %v7042
        %v7338 = vunpack.c.l.b16 %v7043
        %v7339 = vunpack.c.l.b16 %v7044
        %v7340 = vunpack.c.l.b16 %v7045
        %v7341 = vunpack.c.l.b16 %v7046
        %v7342 = vunpack.c.l.b16 %v7047
        %v7343 = vunpack.c.l.b16 %v7048
        %v7344 = vunpack.c.l.b16 %v7049
        %v7345 = vunpack.c.l.b16 %v7050
        %v7346 = vunpack.c.l.b16 %v7051
        %v7347 = vunpack.c.l.b16 %v7052
        %v7348 = vunpack.c.l.b16 %v7053
        %v7349 = vunpack.c.l.b16 %v7054
        %v7350 = vunpack.c.l.b16 %v7055
        %v7351 = vunpack.c.l.b16 %v7056
        %v7352 = vunpack.c.l.b16 %v7057
        %v7353 = vunpack.c.l.b16 %v7058
        %v7354 = vunpack.c.l.b16 %v7059
        %v7355 = vunpack.c.l.b16 %v7060
        %v7356 = vunpack.c.l.b16 %v7061
        %v7357 = vunpack.c.l.b16 %v7062
        %v7358 = vunpack.c.l.b16 %v7063
        %v7359 = vunpack.c.l.b16 %v7064
        %v7360 = vunpack.c.l.b16 %v7065
        %v7361 = vunpack.c.l.b16 %v7066
        %v7362 = vunpack.c.l.b16 %v7067
        %v7363 = vunpack.c.l.b16 %v7068
        %v7364 = vunpack.c.l.b16 %v7069
        %v7365 = vunpack.c.l.b16 %v7070
        %v7366 = vunpack.c.l.b16 %v7071
        %v7367 = vunpack.c.l.b16 %v7072
        %v7368 = vunpack.c.l.b16 %v7073
        %v7369 = vunpack.c.l.b16 %v7074
        %v7370 = vunpack.c.l.b16 %v7075
        %v7371 = vunpack.c.l.b16 %v7076
        %v7372 = vunpack.c.l.b16 %v7077
        %v7373 = vunpack.c.l.b16 %v7078
        %v7374 = vunpack.c.l.b16 %v7079
        %v7375 = vunpack.c.l.b16 %v7080
        %v7376 = vunpack.c.l.b16 %v7081
        %v7377 = vunpack.c.l.b16 %v7082
        %v7378 = vunpack.c.l.b16 %v7083
        %v7379 = vunpack.c.l.b16 %v7084
        %v7380 = vunpack.c.l.b16 %v7085
        %v7381 = vunpack.c.l.b16 %v7086
        %v7382 = vunpack.c.l.b16 %v7087
        %v7383 = vunpack.c.l.b16 %v7088
        %v7384 = vunpack.c.l.b16 %v7089
        %v7385 = vunpack.c.l.b16 %v7090
        %v7386 = vunpack.c.l.b16 %v7091
        %v7387 = vunpack.c.l.b16 %v7092
        %v7388 = vunpack.c.l.b16 %v7093
        %v7389 = vunpack.c.l.b16 %v7094
        %v7390 = vunpack.c.l.b16 %v7095
        %v7391 = vunpack.c.l.b16 %v7096
        %v7392 = vunpack.c.l.b16 %v7097
        %v7393 = vunpack.c.l.b16 %v7098
        %v7394 = vunpack.c.l.b16 %v7099
        %v7395 = vunpack.c.l.b16 %v7100
        %v7396 = vunpack.c.l.b16 %v7101
        %v7397 = vunpack.c.l.b16 %v7102
        %v7398 = vunpack.c.l.b16 %v7103
        %v7399 = vunpack.c.l.b16 %v7104
        %v7400 = vunpack.c.l.b16 %v7105
        %v7401 = vunpack.c.l.b16 %v7106
        %v7402 = vunpack.c.l.b16 %v7107
        %v7403 = vunpack.c.l.b16 %v7108
        %v7404 = vunpack.c.l.b16 %v7109
        %v7405 = vunpack.c.l.b16 %v7110
        %v7406 = vunpack.c.l.b16 %v7111
        %v7407 = vunpack.c.l.b16 %v7112
        %v7408 = vunpack.c.l.b16 %v7113
        %v7409 = vunpack.c.l.b16 %v7114
        %v7410 = vunpack.c.l.b16 %v7115
        %v7411 = vunpack.c.l.b16 %v7116
        %v7412 = vunpack.c.l.b16 %v7117
        %v7413 = vunpack.c.l.b16 %v7118
        %v7414 = vunpack.c.l.b16 %v7119
        %v7415 = vunpack.c.l.b16 %v7120
        %v7416 = vunpack.c.l.b16 %v7121
        %v7417 = vunpack.c.l.b16 %v7122
        %v7418 = vunpack.c.l.b16 %v7123
        %v7419 = vunpack.c.l.b16 %v7124
        %v7420 = vunpack.c.l.b16 %v7125
        %v7421 = vunpack.c.l.b16 %v7126
        %v7422 = vunpack.c.l.b16 %v7127
        %v7423 = vunpack.c.l.b16 %v7128
        %v7424 = vunpack.c.l.b16 %v7129
        %v7425 = vunpack.c.l.b16 %v7130
        %v7426 = vunpack.c.l.b16 %v7131
        %v7427 = vunpack.c.l.b16 %v7132
        %v7428 = vunpack.c.l.b16 %v7133
        %v7429 = vunpack.c.l.b16 %v7134
        %v7430 = vunpack.c.l.b16 %v7135
        %v7431 = vunpack.c.l.b16 %v7136
        %v7432 = vunpack.c.l.b16 %v7137
        %v7433 = vunpack.c.l.b16 %v7138
        %v7434 = vunpack.c.l.b16 %v7139
        %v7435 = vunpack.c.l.b16 %v7140
        %v7436 = vunpack.c.l.b16 %v7141
        %v7437 = vunpack.c.l.b16 %v7142
        %v7438 = vunpack.c.l.b16 %v7143
        %v7439 = vunpack.c.l.b16 %v7144
        %v7440 = vunpack.c.l.b16 %v7145
        %v7441 = vunpack.c.l.b16 %v7146
        %v7442 = vunpack.c.l.b16 %v7147
        %v7443 = vunpack.c.l.b16 %v7148
        %v7444 = vunpack.c.l.b16 %v7149
        %v7445 = vunpack.c.l.b16 %v7150
        %v7446 = vunpack.c.l.b16 %v7151
        %v7447 = vpack.c.b16 %v7304, %v7303
        %v7448 = vpack.c.b16 %v7306, %v7305
        %v7449 = vpack.c.b16 %v7308, %v7307
        %v7450 = vpack.c.b16 %v7310, %v7309
        %v7451 = vpack.c.b16 %v7312, %v7311
        %v7452 = vpack.c.b16 %v7314, %v7313
        %v7453 = vpack.c.b16 %v7316, %v7315
        %v7454 = vpack.c.b16 %v7318, %v7317
        %v7455 = vpack.c.b16 %v7320, %v7319
        %v7456 = vpack.c.b16 %v7322, %v7321
        %v7457 = vpack.c.b16 %v7324, %v7323
        %v7458 = vpack.c.b16 %v7326, %v7325
        %v7459 = vpack.c.b16 %v7328, %v7327
        %v7460 = vpack.c.b16 %v7330, %v7329
        %v7461 = vpack.c.b16 %v7332, %v7331
        %v7462 = vpack.c.b16 %v7334, %v7333
        %v7463 = vpack.c.b16 %v7336, %v7335
        %v7464 = vpack.c.b16 %v7338, %v7337
        %v7465 = vpack.c.b16 %v7340, %v7339
        %v7466 = vpack.c.b16 %v7342, %v7341
        %v7467 = vpack.c.b16 %v7344, %v7343
        %v7468 = vpack.c.b16 %v7346, %v7345
        %v7469 = vpack.c.b16 %v7348, %v7347
        %v7470 = vpack.c.b16 %v7350, %v7349
        %v7471 = vpack.c.b16 %v7352, %v7351
        %v7472 = vpack.c.b16 %v7354, %v7353
        %v7473 = vpack.c.b16 %v7356, %v7355
        %v7474 = vpack.c.b16 %v7358, %v7357
        %v7475 = vpack.c.b16 %v7360, %v7359
        %v7476 = vpack.c.b16 %v7362, %v7361
        %v7477 = vpack.c.b16 %v7364, %v7363
        %v7478 = vpack.c.b16 %v7366, %v7365
        %v7479 = vpack.c.b16 %v7368, %v7367
        %v7480 = vpack.c.b16 %v7370, %v7369
        %v7481 = vpack.c.b16 %v7372, %v7371
        %v7482 = vpack.c.b16 %v7374, %v7373
        %v7483 = vpack.c.b16 %v7376, %v7375
        %v7484 = vpack.c.b16 %v7378, %v7377
        %v7485 = vpack.c.b16 %v7380, %v7379
        %v7486 = vpack.c.b16 %v7382, %v7381
        %v7487 = vpack.c.b16 %v7384, %v7383
        %v7488 = vpack.c.b16 %v7386, %v7385
        %v7489 = vpack.c.b16 %v7388, %v7387
        %v7490 = vpack.c.b16 %v7390, %v7389
        %v7491 = vpack.c.b16 %v7392, %v7391
        %v7492 = vpack.c.b16 %v7394, %v7393
        %v7493 = vpack.c.b16 %v7396, %v7395
        %v7494 = vpack.c.b16 %v7398, %v7397
        %v7495 = vpack.c.b16 %v7400, %v7399
        %v7496 = vpack.c.b16 %v7402, %v7401
        %v7497 = vpack.c.b16 %v7404, %v7403
        %v7498 = vpack.c.b16 %v7406, %v7405
        %v7499 = vpack.c.b16 %v7408, %v7407
        %v7500 = vpack.c.b16 %v7410, %v7409
        %v7501 = vpack.c.b16 %v7412, %v7411
        %v7502 = vpack.c.b16 %v7414, %v7413
        %v7503 = vpack.c.b16 %v7416, %v7415
        %v7504 = vpack.c.b16 %v7418, %v7417
        %v7505 = vpack.c.b16 %v7420, %v7419
        %v7506 = vpack.c.b16 %v7422, %v7421
        %v7507 = vpack.c.b16 %v7424, %v7423
        %v7508 = vpack.c.b16 %v7426, %v7425
        %v7509 = vpack.c.b16 %v7428, %v7427
        %v7510 = vpack.c.b16 %v7430, %v7429
        %v7511 = vpack.c.b16 %v7432, %v7431
        %v7512 = vpack.c.b16 %v7434, %v7433
        %v7513 = vpack.c.b16 %v7436, %v7435
        %v7514 = vpack.c.b16 %v7438, %v7437
        %v7515 = vpack.c.b16 %v7440, %v7439
        %v7516 = vpack.c.b16 %v7442, %v7441
        %v7517 = vpack.c.b16 %v7444, %v7443
        %v7518 = vpack.c.b16 %v7446, %v7445
        %7591 = vmatprep.subr.bf16.mxu0 0
        %7592 = vmatpush1.bf16.msra.mxu0 %v7447
        %7593 = vmatprep.subr.bf16.mxu0 0
        %7594 = vmatpush1.bf16.msra.mxu0 %v7448
        %7595 = vmatprep.subr.bf16.mxu0 0
        %7596 = vmatpush1.bf16.msra.mxu0 %v7449
        %7597 = vmatprep.subr.bf16.mxu0 0
        %7598 = vmatpush1.bf16.msra.mxu0 %v7450
        %7599 = vmatprep.subr.bf16.mxu0 0
        %7600 = vmatpush1.bf16.msra.mxu0 %v7451
        %7601 = vmatprep.subr.bf16.mxu0 0
        %7602 = vmatpush1.bf16.msra.mxu0 %v7452
        %7603 = vmatprep.subr.bf16.mxu0 0
        %7604 = vmatpush1.bf16.msra.mxu0 %v7453
        %7605 = vmatprep.subr.bf16.mxu0 0
        %7606 = vmatpush1.bf16.msra.mxu0 %v7454
        %7607 = vmatprep.subr.bf16.mxu0 0
        %7608 = vmatpush1.bf16.msra.mxu0 %v7455
        %7609 = vmatprep.subr.bf16.mxu0 0
        %7610 = vmatpush1.bf16.msra.mxu0 %v7456
        %7611 = vmatprep.subr.bf16.mxu0 0
        %7612 = vmatpush1.bf16.msra.mxu0 %v7457
        %7613 = vmatprep.subr.bf16.mxu0 0
        %7614 = vmatpush1.bf16.msra.mxu0 %v7458
        %7615 = vmatprep.subr.bf16.mxu0 0
        %7616 = vmatpush1.bf16.msra.mxu0 %v7459
        %7617 = vmatprep.subr.bf16.mxu0 0
        %7618 = vmatpush1.bf16.msra.mxu0 %v7460
        %7619 = vmatprep.subr.bf16.mxu0 0
        %7620 = vmatpush1.bf16.msra.mxu0 %v7461
        %7621 = vmatprep.subr.bf16.mxu0 0
        %7622 = vmatpush1.bf16.msra.mxu0 %v7462
        %7623 = vmatprep.mubr.bf16.mxu0 %v6496
        %7624 = vmatmul.mubr.bf16.gmra.mrb[0].mxu0 %v6432
        %v7625 = vpop.f32.mrb[0].mxu0
        %v7626 = vadd.f32 %v7157, %v7625
        %v7627 = vpop.f32.mrb[0].mxu0
        %v7628 = vpop.f32.mrb[0].mxu0
        %v7629 = vadd.f32 %v7157, %v7628
        %v7630 = vpop.f32.mrb[0].mxu0
        %7631 = vmatprep.mubr.bf16.mxu0 %v6497
        %7632 = vmatmul.mubr.bf16.gmra.mrb[0].mxu0 %v6433
        %v7633 = vpop.f32.mrb[0].mxu0
        %v7634 = vadd.f32 %v7157, %v7633
        %v7635 = vpop.f32.mrb[0].mxu0
        %v7636 = vpop.f32.mrb[0].mxu0
        %v7637 = vadd.f32 %v7157, %v7636
        %v7638 = vpop.f32.mrb[0].mxu0
        %7639 = vmatprep.mubr.bf16.mxu0 %v6498
        %7640 = vmatmul.mubr.bf16.gmra.mrb[0].mxu0 %v6434
        %v7641 = vpop.f32.mrb[0].mxu0
        %v7642 = vadd.f32 %v7157, %v7641
        %v7643 = vpop.f32.mrb[0].mxu0
        %v7644 = vpop.f32.mrb[0].mxu0
        %v7645 = vadd.f32 %v7157, %v7644
        %v7646 = vpop.f32.mrb[0].mxu0
        %7647 = vmatprep.mubr.bf16.mxu0 %v6499
        %7648 = vmatmul.mubr.bf16.gmra.mrb[0].mxu0 %v6435
        %v7649 = vpop.f32.mrb[0].mxu0
        %v7650 = vadd.f32 %v7157, %v7649
        %v7651 = vpop.f32.mrb[0].mxu0
        %v7652 = vpop.f32.mrb[0].mxu0
        %v7653 = vadd.f32 %v7157, %v7652
        %v7654 = vpop.f32.mrb[0].mxu0
        %7655 = vmatprep.mubr.bf16.mxu0 %v6500
        %7656 = vmatmul.mubr.bf16.gmra.mrb[0].mxu0 %v6436
        %v7657 = vpop.f32.mrb[0].mxu0
        %v7658 = vadd.f32 %v7157, %v7657
        %v7659 = vpop.f32.mrb[0].mxu0
        %v7660 = vpop.f32.mrb[0].mxu0
        %v7661 = vadd.f32 %v7157, %v7660
        %v7662 = vpop.f32.mrb[0].mxu0
        %7663 = vmatprep.mubr.bf16.mxu0 %v6501
        %7664 = vmatmul.mubr.bf16.gmra.mrb[0].mxu0 %v6437
        %v7665 = vpop.f32.mrb[0].mxu0
        %v7666 = vadd.f32 %v7157, %v7665
        %v7667 = vpop.f32.mrb[0].mxu0
        %v7668 = vpop.f32.mrb[0].mxu0
        %v7669 = vadd.f32 %v7157, %v7668
        %v7670 = vpop.f32.mrb[0].mxu0
        %7671 = vmatprep.mubr.bf16.mxu0 %v6502
        %7672 = vmatmul.mubr.bf16.gmra.mrb[0].mxu0 %v6438
        %v7673 = vpop.f32.mrb[0].mxu0
        %v7674 = vadd.f32 %v7157, %v7673
        %v7675 = vpop.f32.mrb[0].mxu0
        %v7676 = vpop.f32.mrb[0].mxu0
        %v7677 = vadd.f32 %v7157, %v7676
        %v7678 = vpop.f32.mrb[0].mxu0
        %7679 = vmatprep.mubr.bf16.mxu0 %v6503
        %7680 = vmatmul.mubr.bf16.gmra.mrb[0].mxu0 %v6439
        %v7681 = vpop.f32.mrb[0].mxu0
        %v7682 = vadd.f32 %v7157, %v7681
        %v7683 = vpop.f32.mrb[0].mxu0
        %v7684 = vpop.f32.mrb[0].mxu0
        %v7685 = vadd.f32 %v7157, %v7684
        %v7686 = vpop.f32.mrb[0].mxu0
        %7687 = vmatprep.mubr.bf16.mxu0 %v6504
        %7688 = vmatmul.mubr.bf16.gmra.mrb[0].mxu0 %v6440
        %v7689 = vpop.f32.mrb[0].mxu0
        %v7690 = vadd.f32 %v7157, %v7689
        %v7691 = vpop.f32.mrb[0].mxu0
        %v7692 = vpop.f32.mrb[0].mxu0
        %v7693 = vadd.f32 %v7157, %v7692
        %v7694 = vpop.f32.mrb[0].mxu0
        %7695 = vmatprep.mubr.bf16.mxu0 %v6505
        %7696 = vmatmul.mubr.bf16.gmra.mrb[0].mxu0 %v6441
        %v7697 = vpop.f32.mrb[0].mxu0
        %v7698 = vadd.f32 %v7157, %v7697
        %v7699 = vpop.f32.mrb[0].mxu0
        %v7700 = vpop.f32.mrb[0].mxu0
        %v7701 = vadd.f32 %v7157, %v7700
        %v7702 = vpop.f32.mrb[0].mxu0
        %7703 = vmatprep.mubr.bf16.mxu0 %v6506
        %7704 = vmatmul.mubr.bf16.gmra.mrb[0].mxu0 %v6442
        %v7705 = vpop.f32.mrb[0].mxu0
        %v7706 = vadd.f32 %v7157, %v7705
        %v7707 = vpop.f32.mrb[0].mxu0
        %v7708 = vpop.f32.mrb[0].mxu0
        %v7709 = vadd.f32 %v7157, %v7708
        %v7710 = vpop.f32.mrb[0].mxu0
        %7711 = vmatprep.mubr.bf16.mxu0 %v6507
        %7712 = vmatmul.mubr.bf16.gmra.mrb[0].mxu0 %v6443
        %v7713 = vpop.f32.mrb[0].mxu0
        %v7714 = vadd.f32 %v7157, %v7713
        %v7715 = vpop.f32.mrb[0].mxu0
        %v7716 = vpop.f32.mrb[0].mxu0
        %v7717 = vadd.f32 %v7157, %v7716
        %v7718 = vpop.f32.mrb[0].mxu0
        %7719 = vmatprep.mubr.bf16.mxu0 %v6508
        %7720 = vmatmul.mubr.bf16.gmra.mrb[0].mxu0 %v6444
        %v7721 = vpop.f32.mrb[0].mxu0
        %v7722 = vadd.f32 %v7157, %v7721
        %v7723 = vpop.f32.mrb[0].mxu0
        %v7724 = vpop.f32.mrb[0].mxu0
        %v7725 = vadd.f32 %v7157, %v7724
        %v7726 = vpop.f32.mrb[0].mxu0
        %7727 = vmatprep.mubr.bf16.mxu0 %v6509
        %7728 = vmatmul.mubr.bf16.gmra.mrb[0].mxu0 %v6445
        %v7729 = vpop.f32.mrb[0].mxu0
        %v7730 = vadd.f32 %v7157, %v7729
        %v7731 = vpop.f32.mrb[0].mxu0
        %v7732 = vpop.f32.mrb[0].mxu0
        %v7733 = vadd.f32 %v7157, %v7732
        %v7734 = vpop.f32.mrb[0].mxu0
        %7735 = vmatprep.mubr.bf16.mxu0 %v6510
        %7736 = vmatmul.mubr.bf16.gmra.mrb[0].mxu0 %v6446
        %v7737 = vpop.f32.mrb[0].mxu0
        %v7738 = vadd.f32 %v7157, %v7737
        %v7739 = vpop.f32.mrb[0].mxu0
        %v7740 = vpop.f32.mrb[0].mxu0
        %v7741 = vadd.f32 %v7157, %v7740
        %v7742 = vpop.f32.mrb[0].mxu0
        %7743 = vmatprep.mubr.bf16.mxu0 %v6511
        %7744 = vmatmul.mubr.bf16.gmra.mrb[0].mxu0 %v6447
        %v7745 = vpop.f32.mrb[0].mxu0
        %v7746 = vadd.f32 %v7157, %v7745
        %v7747 = vpop.f32.mrb[0].mxu0
        %v7748 = vpop.f32.mrb[0].mxu0
        %v7749 = vadd.f32 %v7157, %v7748
        %v7750 = vpop.f32.mrb[0].mxu0
        %7751 = vdwg.mxu0
        %7752 = vmatprep.subr.bf16.mxu0 0
        %7753 = vmatpush1.bf16.msra.mxu0 %v7463
        %7754 = vmatprep.subr.bf16.mxu0 0
        %7755 = vmatpush1.bf16.msra.mxu0 %v7464
        %7756 = vmatprep.subr.bf16.mxu0 0
        %7757 = vmatpush1.bf16.msra.mxu0 %v7465
        %7758 = vmatprep.subr.bf16.mxu0 0
        %7759 = vmatpush1.bf16.msra.mxu0 %v7466
        %7760 = vmatprep.subr.bf16.mxu0 0
        %7761 = vmatpush1.bf16.msra.mxu0 %v7467
        %7762 = vmatprep.subr.bf16.mxu0 0
        %7763 = vmatpush1.bf16.msra.mxu0 %v7468
        %7764 = vmatprep.subr.bf16.mxu0 0
        %7765 = vmatpush1.bf16.msra.mxu0 %v7469
        %7766 = vmatprep.subr.bf16.mxu0 0
        %7767 = vmatpush1.bf16.msra.mxu0 %v7470
        %7768 = vmatprep.subr.bf16.mxu0 0
        %7769 = vmatpush1.bf16.msra.mxu0 %v7471
        %7770 = vmatprep.subr.bf16.mxu0 0
        %7771 = vmatpush1.bf16.msra.mxu0 %v7472
        %7772 = vmatprep.subr.bf16.mxu0 0
        %7773 = vmatpush1.bf16.msra.mxu0 %v7473
        %7774 = vmatprep.subr.bf16.mxu0 0
        %7775 = vmatpush1.bf16.msra.mxu0 %v7474
        %7776 = vmatprep.subr.bf16.mxu0 0
        %7777 = vmatpush1.bf16.msra.mxu0 %v7475
        %7778 = vmatprep.subr.bf16.mxu0 0
        %7779 = vmatpush1.bf16.msra.mxu0 %v7476
        %7780 = vmatprep.subr.bf16.mxu0 0
        %7781 = vmatpush1.bf16.msra.mxu0 %v7477
        %7782 = vmatprep.subr.bf16.mxu0 0
        %7783 = vmatpush1.bf16.msra.mxu0 %v7478
        %7784 = vmatprep.mubr.bf16.mxu0 %v6640
        %7785 = vmatmul.mubr.bf16.gmra.mrb[0].mxu0 %v6560
        %v7786 = vpop.f32.mrb[0].mxu0
        %v7787 = vadd.f32 %v7626, %v7786
        %v7788 = vpop.f32.mrb[0].mxu0
        %v7789 = vpop.f32.mrb[0].mxu0
        %v7790 = vadd.f32 %v7629, %v7789
        %v7791 = vpop.f32.mrb[0].mxu0
        %7792 = vmatprep.mubr.bf16.mxu0 %v6641
        %7793 = vmatmul.mubr.bf16.gmra.mrb[0].mxu0 %v6561
        %v7794 = vpop.f32.mrb[0].mxu0
        %v7795 = vadd.f32 %v7634, %v7794
        %v7796 = vpop.f32.mrb[0].mxu0
        %v7797 = vpop.f32.mrb[0].mxu0
        %v7798 = vadd.f32 %v7637, %v7797
        %v7799 = vpop.f32.mrb[0].mxu0
        %7800 = vmatprep.mubr.bf16.mxu0 %v6642
        %7801 = vmatmul.mubr.bf16.gmra.mrb[0].mxu0 %v6562
        %v7802 = vpop.f32.mrb[0].mxu0
        %v7803 = vadd.f32 %v7642, %v7802
        %v7804 = vpop.f32.mrb[0].mxu0
        %v7805 = vpop.f32.mrb[0].mxu0
        %v7806 = vadd.f32 %v7645, %v7805
        %v7807 = vpop.f32.mrb[0].mxu0
        %7808 = vmatprep.mubr.bf16.mxu0 %v6643
        %7809 = vmatmul.mubr.bf16.gmra.mrb[0].mxu0 %v6563
        %v7810 = vpop.f32.mrb[0].mxu0
        %v7811 = vadd.f32 %v7650, %v7810
        %v7812 = vpop.f32.mrb[0].mxu0
        %v7813 = vpop.f32.mrb[0].mxu0
        %v7814 = vadd.f32 %v7653, %v7813
        %v7815 = vpop.f32.mrb[0].mxu0
        %7816 = vmatprep.mubr.bf16.mxu0 %v6644
        %7817 = vmatmul.mubr.bf16.gmra.mrb[0].mxu0 %v6564
        %v7818 = vpop.f32.mrb[0].mxu0
        %v7819 = vadd.f32 %v7658, %v7818
        %v7820 = vpop.f32.mrb[0].mxu0
        %v7821 = vpop.f32.mrb[0].mxu0
        %v7822 = vadd.f32 %v7661, %v7821
        %v7823 = vpop.f32.mrb[0].mxu0
        %7824 = vmatprep.mubr.bf16.mxu0 %v6645
        %7825 = vmatmul.mubr.bf16.gmra.mrb[0].mxu0 %v6565
        %v7826 = vpop.f32.mrb[0].mxu0
        %v7827 = vadd.f32 %v7666, %v7826
        %v7828 = vpop.f32.mrb[0].mxu0
        %v7829 = vpop.f32.mrb[0].mxu0
        %v7830 = vadd.f32 %v7669, %v7829
        %v7831 = vpop.f32.mrb[0].mxu0
        %7832 = vmatprep.mubr.bf16.mxu0 %v6646
        %7833 = vmatmul.mubr.bf16.gmra.mrb[0].mxu0 %v6566
        %v7834 = vpop.f32.mrb[0].mxu0
        %v7835 = vadd.f32 %v7674, %v7834
        %v7836 = vpop.f32.mrb[0].mxu0
        %v7837 = vpop.f32.mrb[0].mxu0
        %v7838 = vadd.f32 %v7677, %v7837
        %v7839 = vpop.f32.mrb[0].mxu0
        %7840 = vmatprep.mubr.bf16.mxu0 %v6647
        %7841 = vmatmul.mubr.bf16.gmra.mrb[0].mxu0 %v6567
        %v7842 = vpop.f32.mrb[0].mxu0
        %v7843 = vadd.f32 %v7682, %v7842
        %v7844 = vpop.f32.mrb[0].mxu0
        %v7845 = vpop.f32.mrb[0].mxu0
        %v7846 = vadd.f32 %v7685, %v7845
        %v7847 = vpop.f32.mrb[0].mxu0
        %7848 = vmatprep.mubr.bf16.mxu0 %v6648
        %7849 = vmatmul.mubr.bf16.gmra.mrb[0].mxu0 %v6568
        %v7850 = vpop.f32.mrb[0].mxu0
        %v7851 = vadd.f32 %v7690, %v7850
        %v7852 = vpop.f32.mrb[0].mxu0
        %v7853 = vpop.f32.mrb[0].mxu0
        %v7854 = vadd.f32 %v7693, %v7853
        %v7855 = vpop.f32.mrb[0].mxu0
        %7856 = vmatprep.mubr.bf16.mxu0 %v6649
        %7857 = vmatmul.mubr.bf16.gmra.mrb[0].mxu0 %v6569
        %v7858 = vpop.f32.mrb[0].mxu0
        %v7859 = vadd.f32 %v7698, %v7858
        %v7860 = vpop.f32.mrb[0].mxu0
        %v7861 = vpop.f32.mrb[0].mxu0
        %v7862 = vadd.f32 %v7701, %v7861
        %v7863 = vpop.f32.mrb[0].mxu0
        %7864 = vmatprep.mubr.bf16.mxu0 %v6650
        %7865 = vmatmul.mubr.bf16.gmra.mrb[0].mxu0 %v6570
        %v7866 = vpop.f32.mrb[0].mxu0
        %v7867 = vadd.f32 %v7706, %v7866
        %v7868 = vpop.f32.mrb[0].mxu0
        %v7869 = vpop.f32.mrb[0].mxu0
        %v7870 = vadd.f32 %v7709, %v7869
        %v7871 = vpop.f32.mrb[0].mxu0
        %7872 = vmatprep.mubr.bf16.mxu0 %v6651
        %7873 = vmatmul.mubr.bf16.gmra.mrb[0].mxu0 %v6571
        %v7874 = vpop.f32.mrb[0].mxu0
        %v7875 = vadd.f32 %v7714, %v7874
        %v7876 = vpop.f32.mrb[0].mxu0
        %v7877 = vpop.f32.mrb[0].mxu0
        %v7878 = vadd.f32 %v7717, %v7877
        %v7879 = vpop.f32.mrb[0].mxu0
        %7880 = vmatprep.mubr.bf16.mxu0 %v6652
        %7881 = vmatmul.mubr.bf16.gmra.mrb[0].mxu0 %v6572
        %v7882 = vpop.f32.mrb[0].mxu0
        %v7883 = vadd.f32 %v7722, %v7882
        %v7884 = vpop.f32.mrb[0].mxu0
        %v7885 = vpop.f32.mrb[0].mxu0
        %v7886 = vadd.f32 %v7725, %v7885
        %v7887 = vpop.f32.mrb[0].mxu0
        %7888 = vmatprep.mubr.bf16.mxu0 %v6653
        %7889 = vmatmul.mubr.bf16.gmra.mrb[0].mxu0 %v6573
        %v7890 = vpop.f32.mrb[0].mxu0
        %v7891 = vadd.f32 %v7730, %v7890
        %v7892 = vpop.f32.mrb[0].mxu0
        %v7893 = vpop.f32.mrb[0].mxu0
        %v7894 = vadd.f32 %v7733, %v7893
        %v7895 = vpop.f32.mrb[0].mxu0
        %7896 = vmatprep.mubr.bf16.mxu0 %v6654
        %7897 = vmatmul.mubr.bf16.gmra.mrb[0].mxu0 %v6574
        %v7898 = vpop.f32.mrb[0].mxu0
        %v7899 = vadd.f32 %v7738, %v7898
        %v7900 = vpop.f32.mrb[0].mxu0
        %v7901 = vpop.f32.mrb[0].mxu0
        %v7902 = vadd.f32 %v7741, %v7901
        %v7903 = vpop.f32.mrb[0].mxu0
        %7904 = vmatprep.mubr.bf16.mxu0 %v6655
        %7905 = vmatmul.mubr.bf16.gmra.mrb[0].mxu0 %v6575
        %v7906 = vpop.f32.mrb[0].mxu0
        %v7907 = vadd.f32 %v7746, %v7906
        %v7908 = vpop.f32.mrb[0].mxu0
        %v7909 = vpop.f32.mrb[0].mxu0
        %v7910 = vadd.f32 %v7749, %v7909
        %v7911 = vpop.f32.mrb[0].mxu0
        %7912 = vdwg.mxu0
        %7913 = vmatprep.subr.bf16.mxu0 0
        %7914 = vmatpush1.bf16.msra.mxu0 %v7479
        %7915 = vmatprep.subr.bf16.mxu0 0
        %7916 = vmatpush1.bf16.msra.mxu0 %v7480
        %7917 = vmatprep.subr.bf16.mxu0 0
        %7918 = vmatpush1.bf16.msra.mxu0 %v7481
        %7919 = vmatprep.subr.bf16.mxu0 0
        %7920 = vmatpush1.bf16.msra.mxu0 %v7482
        %7921 = vmatprep.subr.bf16.mxu0 0
        %7922 = vmatpush1.bf16.msra.mxu0 %v7483
        %7923 = vmatprep.subr.bf16.mxu0 0
        %7924 = vmatpush1.bf16.msra.mxu0 %v7484
        %7925 = vmatprep.subr.bf16.mxu0 0
        %7926 = vmatpush1.bf16.msra.mxu0 %v7485
        %7927 = vmatprep.subr.bf16.mxu0 0
        %7928 = vmatpush1.bf16.msra.mxu0 %v7486
        %7929 = vmatprep.subr.bf16.mxu0 0
        %7930 = vmatpush1.bf16.msra.mxu0 %v7487
        %7931 = vmatprep.subr.bf16.mxu0 0
        %7932 = vmatpush1.bf16.msra.mxu0 %v7488
        %7933 = vmatprep.subr.bf16.mxu0 0
        %7934 = vmatpush1.bf16.msra.mxu0 %v7489
        %7935 = vmatprep.subr.bf16.mxu0 0
        %7936 = vmatpush1.bf16.msra.mxu0 %v7490
        %7937 = vmatprep.subr.bf16.mxu0 0
        %7938 = vmatpush1.bf16.msra.mxu0 %v7491
        %7939 = vmatprep.subr.bf16.mxu0 0
        %7940 = vmatpush1.bf16.msra.mxu0 %v7492
        %7941 = vmatprep.subr.bf16.mxu0 0
        %7942 = vmatpush1.bf16.msra.mxu0 %v7493
        %7943 = vmatprep.subr.bf16.mxu0 0
        %7944 = vmatpush1.bf16.msra.mxu0 %v7494
        %7945 = vmatprep.mubr.bf16.mxu0 %v6768
        %7946 = vmatmul.mubr.bf16.gmra.mrb[0].mxu0 %v6704
        %v7947 = vpop.f32.mrb[0].mxu0
        %v7948 = vadd.f32 %v7787, %v7947
        %v7949 = vpop.f32.mrb[0].mxu0
        %v7950 = vpop.f32.mrb[0].mxu0
        %v7951 = vadd.f32 %v7790, %v7950
        %v7952 = vpop.f32.mrb[0].mxu0
        %7953 = vmatprep.mubr.bf16.mxu0 %v6769
        %7954 = vmatmul.mubr.bf16.gmra.mrb[0].mxu0 %v6705
        %v7955 = vpop.f32.mrb[0].mxu0
        %v7956 = vadd.f32 %v7795, %v7955
        %v7957 = vpop.f32.mrb[0].mxu0
        %v7958 = vpop.f32.mrb[0].mxu0
        %v7959 = vadd.f32 %v7798, %v7958
        %v7960 = vpop.f32.mrb[0].mxu0
        %7961 = vmatprep.mubr.bf16.mxu0 %v6770
        %7962 = vmatmul.mubr.bf16.gmra.mrb[0].mxu0 %v6706
        %v7963 = vpop.f32.mrb[0].mxu0
        %v7964 = vadd.f32 %v7803, %v7963
        %v7965 = vpop.f32.mrb[0].mxu0
        %v7966 = vpop.f32.mrb[0].mxu0
        %v7967 = vadd.f32 %v7806, %v7966
        %v7968 = vpop.f32.mrb[0].mxu0
        %7969 = vmatprep.mubr.bf16.mxu0 %v6771
        %7970 = vmatmul.mubr.bf16.gmra.mrb[0].mxu0 %v6707
        %v7971 = vpop.f32.mrb[0].mxu0
        %v7972 = vadd.f32 %v7811, %v7971
        %v7973 = vpop.f32.mrb[0].mxu0
        %v7974 = vpop.f32.mrb[0].mxu0
        %v7975 = vadd.f32 %v7814, %v7974
        %v7976 = vpop.f32.mrb[0].mxu0
        %7977 = vmatprep.mubr.bf16.mxu0 %v6772
        %7978 = vmatmul.mubr.bf16.gmra.mrb[0].mxu0 %v6708
        %v7979 = vpop.f32.mrb[0].mxu0
        %v7980 = vadd.f32 %v7819, %v7979
        %v7981 = vpop.f32.mrb[0].mxu0
        %v7982 = vpop.f32.mrb[0].mxu0
        %v7983 = vadd.f32 %v7822, %v7982
        %v7984 = vpop.f32.mrb[0].mxu0
        %7985 = vmatprep.mubr.bf16.mxu0 %v6773
        %7986 = vmatmul.mubr.bf16.gmra.mrb[0].mxu0 %v6709
        %v7987 = vpop.f32.mrb[0].mxu0
        %v7988 = vadd.f32 %v7827, %v7987
        %v7989 = vpop.f32.mrb[0].mxu0
        %v7990 = vpop.f32.mrb[0].mxu0
        %v7991 = vadd.f32 %v7830, %v7990
        %v7992 = vpop.f32.mrb[0].mxu0
        %7993 = vmatprep.mubr.bf16.mxu0 %v6774
        %7994 = vmatmul.mubr.bf16.gmra.mrb[0].mxu0 %v6710
        %v7995 = vpop.f32.mrb[0].mxu0
        %v7996 = vadd.f32 %v7835, %v7995
        %v7997 = vpop.f32.mrb[0].mxu0
        %v7998 = vpop.f32.mrb[0].mxu0
        %v7999 = vadd.f32 %v7838, %v7998
        %v8000 = vpop.f32.mrb[0].mxu0
        %8001 = vmatprep.mubr.bf16.mxu0 %v6775
        %8002 = vmatmul.mubr.bf16.gmra.mrb[0].mxu0 %v6711
        %v8003 = vpop.f32.mrb[0].mxu0
        %v8004 = vadd.f32 %v7843, %v8003
        %v8005 = vpop.f32.mrb[0].mxu0
        %v8006 = vpop.f32.mrb[0].mxu0
        %v8007 = vadd.f32 %v7846, %v8006
        %v8008 = vpop.f32.mrb[0].mxu0
        %8009 = vmatprep.mubr.bf16.mxu0 %v6776
        %8010 = vmatmul.mubr.bf16.gmra.mrb[0].mxu0 %v6712
        %v8011 = vpop.f32.mrb[0].mxu0
        %v8012 = vadd.f32 %v7851, %v8011
        %v8013 = vpop.f32.mrb[0].mxu0
        %v8014 = vpop.f32.mrb[0].mxu0
        %v8015 = vadd.f32 %v7854, %v8014
        %v8016 = vpop.f32.mrb[0].mxu0
        %8017 = vmatprep.mubr.bf16.mxu0 %v6777
        %8018 = vmatmul.mubr.bf16.gmra.mrb[0].mxu0 %v6713
        %v8019 = vpop.f32.mrb[0].mxu0
        %v8020 = vadd.f32 %v7859, %v8019
        %v8021 = vpop.f32.mrb[0].mxu0
        %v8022 = vpop.f32.mrb[0].mxu0
        %v8023 = vadd.f32 %v7862, %v8022
        %v8024 = vpop.f32.mrb[0].mxu0
        %8025 = vmatprep.mubr.bf16.mxu0 %v6778
        %8026 = vmatmul.mubr.bf16.gmra.mrb[0].mxu0 %v6714
        %v8027 = vpop.f32.mrb[0].mxu0
        %v8028 = vadd.f32 %v7867, %v8027
        %v8029 = vpop.f32.mrb[0].mxu0
        %v8030 = vpop.f32.mrb[0].mxu0
        %v8031 = vadd.f32 %v7870, %v8030
        %v8032 = vpop.f32.mrb[0].mxu0
        %8033 = vmatprep.mubr.bf16.mxu0 %v6779
        %8034 = vmatmul.mubr.bf16.gmra.mrb[0].mxu0 %v6715
        %v8035 = vpop.f32.mrb[0].mxu0
        %v8036 = vadd.f32 %v7875, %v8035
        %v8037 = vpop.f32.mrb[0].mxu0
        %v8038 = vpop.f32.mrb[0].mxu0
        %v8039 = vadd.f32 %v7878, %v8038
        %v8040 = vpop.f32.mrb[0].mxu0
        %8041 = vmatprep.mubr.bf16.mxu0 %v6780
        %8042 = vmatmul.mubr.bf16.gmra.mrb[0].mxu0 %v6716
        %v8043 = vpop.f32.mrb[0].mxu0
        %v8044 = vadd.f32 %v7883, %v8043
        %v8045 = vpop.f32.mrb[0].mxu0
        %v8046 = vpop.f32.mrb[0].mxu0
        %v8047 = vadd.f32 %v7886, %v8046
        %v8048 = vpop.f32.mrb[0].mxu0
        %8049 = vmatprep.mubr.bf16.mxu0 %v6781
        %8050 = vmatmul.mubr.bf16.gmra.mrb[0].mxu0 %v6717
        %v8051 = vpop.f32.mrb[0].mxu0
        %v8052 = vadd.f32 %v7891, %v8051
        %v8053 = vpop.f32.mrb[0].mxu0
        %v8054 = vpop.f32.mrb[0].mxu0
        %v8055 = vadd.f32 %v7894, %v8054
        %v8056 = vpop.f32.mrb[0].mxu0
        %8057 = vmatprep.mubr.bf16.mxu0 %v6782
        %8058 = vmatmul.mubr.bf16.gmra.mrb[0].mxu0 %v6718
        %v8059 = vpop.f32.mrb[0].mxu0
        %v8060 = vadd.f32 %v7899, %v8059
        %v8061 = vpop.f32.mrb[0].mxu0
        %v8062 = vpop.f32.mrb[0].mxu0
        %v8063 = vadd.f32 %v7902, %v8062
        %v8064 = vpop.f32.mrb[0].mxu0
        %8065 = vmatprep.mubr.bf16.mxu0 %v6783
        %8066 = vmatmul.mubr.bf16.gmra.mrb[0].mxu0 %v6719
        %v8067 = vpop.f32.mrb[0].mxu0
        %v8068 = vadd.f32 %v7907, %v8067
        %v8069 = vpop.f32.mrb[0].mxu0
        %v8070 = vpop.f32.mrb[0].mxu0
        %v8071 = vadd.f32 %v7910, %v8070
        %v8072 = vpop.f32.mrb[0].mxu0
        %8073 = vdwg.mxu0
        %8074 = vmatprep.subr.bf16.mxu0 0
        %8075 = vmatpush1.bf16.msra.mxu0 %v7495
        %8076 = vmatprep.subr.bf16.mxu0 0
        %8077 = vmatpush1.bf16.msra.mxu0 %v7496
        %8078 = vmatprep.subr.bf16.mxu0 0
        %8079 = vmatpush1.bf16.msra.mxu0 %v7497
        %8080 = vmatprep.subr.bf16.mxu0 0
        %8081 = vmatpush1.bf16.msra.mxu0 %v7498
        %8082 = vmatprep.subr.bf16.mxu0 0
        %8083 = vmatpush1.bf16.msra.mxu0 %v7499
        %8084 = vmatprep.subr.bf16.mxu0 0
        %8085 = vmatpush1.bf16.msra.mxu0 %v7500
        %8086 = vmatprep.subr.bf16.mxu0 0
        %8087 = vmatpush1.bf16.msra.mxu0 %v7501
        %8088 = vmatprep.subr.bf16.mxu0 0
        %8089 = vmatpush1.bf16.msra.mxu0 %v7502
        %8090 = vmatprep.subr.bf16.mxu0 0
        %8091 = vmatpush1.bf16.msra.mxu0 %v7503
        %8092 = vmatprep.subr.bf16.mxu0 0
        %8093 = vmatpush1.bf16.msra.mxu0 %v7504
        %8094 = vmatprep.subr.bf16.mxu0 0
        %8095 = vmatpush1.bf16.msra.mxu0 %v7505
        %8096 = vmatprep.subr.bf16.mxu0 0
        %8097 = vmatpush1.bf16.msra.mxu0 %v7506
        %8098 = vmatprep.subr.bf16.mxu0 0
        %8099 = vmatpush1.bf16.msra.mxu0 %v7507
        %8100 = vmatprep.subr.bf16.mxu0 0
        %8101 = vmatpush1.bf16.msra.mxu0 %v7508
        %8102 = vmatprep.subr.bf16.mxu0 0
        %8103 = vmatpush1.bf16.msra.mxu0 %v7509
        %8104 = vmatprep.subr.bf16.mxu0 0
        %8105 = vmatpush1.bf16.msra.mxu0 %v7510
        %8106 = vmatprep.mubr.bf16.mxu0 %v6912
        %8107 = vmatmul.mubr.bf16.gmra.mrb[0].mxu0 %v6848
        %v8108 = vpop.f32.mrb[0].mxu0
        %v8109 = vadd.f32 %v7948, %v8108
        %v8110 = vpop.f32.mrb[0].mxu0
        %v8111 = vpop.f32.mrb[0].mxu0
        %v8112 = vadd.f32 %v7951, %v8111
        %v8113 = vpop.f32.mrb[0].mxu0
        %8114 = vmatprep.mubr.bf16.mxu0 %v6913
        %8115 = vmatmul.mubr.bf16.gmra.mrb[0].mxu0 %v6849
        %v8116 = vpop.f32.mrb[0].mxu0
        %v8117 = vadd.f32 %v7956, %v8116
        %v8118 = vpop.f32.mrb[0].mxu0
        %v8119 = vpop.f32.mrb[0].mxu0
        %v8120 = vadd.f32 %v7959, %v8119
        %v8121 = vpop.f32.mrb[0].mxu0
        %8122 = vmatprep.mubr.bf16.mxu0 %v6914
        %8123 = vmatmul.mubr.bf16.gmra.mrb[0].mxu0 %v6850
        %v8124 = vpop.f32.mrb[0].mxu0
        %v8125 = vadd.f32 %v7964, %v8124
        %v8126 = vpop.f32.mrb[0].mxu0
        %v8127 = vpop.f32.mrb[0].mxu0
        %v8128 = vadd.f32 %v7967, %v8127
        %v8129 = vpop.f32.mrb[0].mxu0
        %8130 = vmatprep.mubr.bf16.mxu0 %v6915
        %8131 = vmatmul.mubr.bf16.gmra.mrb[0].mxu0 %v6851
        %v8132 = vpop.f32.mrb[0].mxu0
        %v8133 = vadd.f32 %v7972, %v8132
        %v8134 = vpop.f32.mrb[0].mxu0
        %v8135 = vpop.f32.mrb[0].mxu0
        %v8136 = vadd.f32 %v7975, %v8135
        %v8137 = vpop.f32.mrb[0].mxu0
        %8138 = vmatprep.mubr.bf16.mxu0 %v6916
        %8139 = vmatmul.mubr.bf16.gmra.mrb[0].mxu0 %v6852
        %v8140 = vpop.f32.mrb[0].mxu0
        %v8141 = vadd.f32 %v7980, %v8140
        %v8142 = vpop.f32.mrb[0].mxu0
        %v8143 = vpop.f32.mrb[0].mxu0
        %v8144 = vadd.f32 %v7983, %v8143
        %v8145 = vpop.f32.mrb[0].mxu0
        %8146 = vmatprep.mubr.bf16.mxu0 %v6917
        %8147 = vmatmul.mubr.bf16.gmra.mrb[0].mxu0 %v6853
        %v8148 = vpop.f32.mrb[0].mxu0
        %v8149 = vadd.f32 %v7988, %v8148
        %v8150 = vpop.f32.mrb[0].mxu0
        %v8151 = vpop.f32.mrb[0].mxu0
        %v8152 = vadd.f32 %v7991, %v8151
        %v8153 = vpop.f32.mrb[0].mxu0
        %8154 = vmatprep.mubr.bf16.mxu0 %v6918
        %8155 = vmatmul.mubr.bf16.gmra.mrb[0].mxu0 %v6854
        %v8156 = vpop.f32.mrb[0].mxu0
        %v8157 = vadd.f32 %v7996, %v8156
        %v8158 = vpop.f32.mrb[0].mxu0
        %v8159 = vpop.f32.mrb[0].mxu0
        %v8160 = vadd.f32 %v7999, %v8159
        %v8161 = vpop.f32.mrb[0].mxu0
        %8162 = vmatprep.mubr.bf16.mxu0 %v6919
        %8163 = vmatmul.mubr.bf16.gmra.mrb[0].mxu0 %v6855
        %v8164 = vpop.f32.mrb[0].mxu0
        %v8165 = vadd.f32 %v8004, %v8164
        %v8166 = vpop.f32.mrb[0].mxu0
        %v8167 = vpop.f32.mrb[0].mxu0
        %v8168 = vadd.f32 %v8007, %v8167
        %v8169 = vpop.f32.mrb[0].mxu0
        %8170 = vmatprep.mubr.bf16.mxu0 %v6920
        %8171 = vmatmul.mubr.bf16.gmra.mrb[0].mxu0 %v6856
        %v8172 = vpop.f32.mrb[0].mxu0
        %v8173 = vadd.f32 %v8012, %v8172
        %v8174 = vpop.f32.mrb[0].mxu0
        %v8175 = vpop.f32.mrb[0].mxu0
        %v8176 = vadd.f32 %v8015, %v8175
        %v8177 = vpop.f32.mrb[0].mxu0
        %8178 = vmatprep.mubr.bf16.mxu0 %v6921
        %8179 = vmatmul.mubr.bf16.gmra.mrb[0].mxu0 %v6857
        %v8180 = vpop.f32.mrb[0].mxu0
        %v8181 = vadd.f32 %v8020, %v8180
        %v8182 = vpop.f32.mrb[0].mxu0
        %v8183 = vpop.f32.mrb[0].mxu0
        %v8184 = vadd.f32 %v8023, %v8183
        %v8185 = vpop.f32.mrb[0].mxu0
        %8186 = vmatprep.mubr.bf16.mxu0 %v6922
        %8187 = vmatmul.mubr.bf16.gmra.mrb[0].mxu0 %v6858
        %v8188 = vpop.f32.mrb[0].mxu0
        %v8189 = vadd.f32 %v8028, %v8188
        %v8190 = vpop.f32.mrb[0].mxu0
        %v8191 = vpop.f32.mrb[0].mxu0
        %v8192 = vadd.f32 %v8031, %v8191
        %v8193 = vpop.f32.mrb[0].mxu0
        %8194 = vmatprep.mubr.bf16.mxu0 %v6923
        %8195 = vmatmul.mubr.bf16.gmra.mrb[0].mxu0 %v6859
        %v8196 = vpop.f32.mrb[0].mxu0
        %v8197 = vadd.f32 %v8036, %v8196
        %v8198 = vpop.f32.mrb[0].mxu0
        %v8199 = vpop.f32.mrb[0].mxu0
        %v8200 = vadd.f32 %v8039, %v8199
        %v8201 = vpop.f32.mrb[0].mxu0
        %8202 = vmatprep.mubr.bf16.mxu0 %v6924
        %8203 = vmatmul.mubr.bf16.gmra.mrb[0].mxu0 %v6860
        %v8204 = vpop.f32.mrb[0].mxu0
        %v8205 = vadd.f32 %v8044, %v8204
        %v8206 = vpop.f32.mrb[0].mxu0
        %v8207 = vpop.f32.mrb[0].mxu0
        %v8208 = vadd.f32 %v8047, %v8207
        %v8209 = vpop.f32.mrb[0].mxu0
        %8210 = vmatprep.mubr.bf16.mxu0 %v6925
        %8211 = vmatmul.mubr.bf16.gmra.mrb[0].mxu0 %v6861
        %v8212 = vpop.f32.mrb[0].mxu0
        %v8213 = vadd.f32 %v8052, %v8212
        %v8214 = vpop.f32.mrb[0].mxu0
        %v8215 = vpop.f32.mrb[0].mxu0
        %v8216 = vadd.f32 %v8055, %v8215
        %v8217 = vpop.f32.mrb[0].mxu0
        %8218 = vmatprep.mubr.bf16.mxu0 %v6926
        %8219 = vmatmul.mubr.bf16.gmra.mrb[0].mxu0 %v6862
        %v8220 = vpop.f32.mrb[0].mxu0
        %v8221 = vadd.f32 %v8060, %v8220
        %v8222 = vpop.f32.mrb[0].mxu0
        %v8223 = vpop.f32.mrb[0].mxu0
        %v8224 = vadd.f32 %v8063, %v8223
        %v8225 = vpop.f32.mrb[0].mxu0
        %8226 = vmatprep.mubr.bf16.mxu0 %v6927
        %8227 = vmatmul.mubr.bf16.gmra.mrb[0].mxu0 %v6863
        %v8228 = vpop.f32.mrb[0].mxu0
        %v8229 = vadd.f32 %v8068, %v8228
        %v8230 = vpop.f32.mrb[0].mxu0
        %v8231 = vpop.f32.mrb[0].mxu0
        %v8232 = vadd.f32 %v8071, %v8231
        %v8233 = vpop.f32.mrb[0].mxu0
        %8234 = vdwg.mxu0
        %8235 = vmatprep.subr.bf16.mxu0 0
        %8236 = vmatpush1.bf16.msra.mxu0 %v7511
        %8237 = vmatprep.subr.bf16.mxu0 0
        %8238 = vmatpush1.bf16.msra.mxu0 %v7512
        %8239 = vmatprep.subr.bf16.mxu0 0
        %8240 = vmatpush1.bf16.msra.mxu0 %v7513
        %8241 = vmatprep.subr.bf16.mxu0 0
        %8242 = vmatpush1.bf16.msra.mxu0 %v7514
        %8243 = vmatprep.subr.bf16.mxu0 0
        %8244 = vmatpush1.bf16.msra.mxu0 %v7515
        %8245 = vmatprep.subr.bf16.mxu0 0
        %8246 = vmatpush1.bf16.msra.mxu0 %v7516
        %8247 = vmatprep.subr.bf16.mxu0 0
        %8248 = vmatpush1.bf16.msra.mxu0 %v7517
        %8249 = vmatprep.subr.bf16.mxu0 0
        %8250 = vmatpush1.bf16.msra.mxu0 %v7518
        %8251 = vmatprep.subr.bf16.mxu0 0
        %8252 = vmatpush1.bf16.msra.mxu0 0
        %8253 = vmatprep.subr.bf16.mxu0 0
        %8254 = vmatpush1.bf16.msra.mxu0 0
        %8255 = vmatprep.subr.bf16.mxu0 0
        %8256 = vmatpush1.bf16.msra.mxu0 0
        %8257 = vmatprep.subr.bf16.mxu0 0
        %8258 = vmatpush1.bf16.msra.mxu0 0
        %8259 = vmatprep.subr.bf16.mxu0 0
        %8260 = vmatpush1.bf16.msra.mxu0 0
        %8261 = vmatprep.subr.bf16.mxu0 0
        %8262 = vmatpush1.bf16.msra.mxu0 0
        %8263 = vmatprep.subr.bf16.mxu0 0
        %8264 = vmatpush1.bf16.msra.mxu0 0
        %8265 = vmatprep.subr.bf16.mxu0 0
        %8266 = vmatpush1.bf16.msra.mxu0 0
        %8267 = vmatprep.mubr.bf16.mxu0 0
        %8268 = vmatmul.mubr.bf16.gmra.mrb[0].mxu0 %v6976
        %v8269 = vpop.f32.mrb[0].mxu0
        %v8270 = vadd.f32 %v8109, %v8269
        %v8271 = vpop.f32.mrb[0].mxu0
        %v8272 = vpop.f32.mrb[0].mxu0
        %v8273 = vadd.f32 %v8112, %v8272
        %v8274 = vpop.f32.mrb[0].mxu0
        %8275 = vmatprep.mubr.bf16.mxu0 0
        %8276 = vmatmul.mubr.bf16.gmra.mrb[0].mxu0 %v6977
        %v8277 = vpop.f32.mrb[0].mxu0
        %v8278 = vadd.f32 %v8117, %v8277
        %v8279 = vpop.f32.mrb[0].mxu0
        %v8280 = vpop.f32.mrb[0].mxu0
        %v8281 = vadd.f32 %v8120, %v8280
        %v8282 = vpop.f32.mrb[0].mxu0
        %8283 = vmatprep.mubr.bf16.mxu0 0
        %8284 = vmatmul.mubr.bf16.gmra.mrb[0].mxu0 %v6978
        %v8285 = vpop.f32.mrb[0].mxu0
        %v8286 = vadd.f32 %v8125, %v8285
        %v8287 = vpop.f32.mrb[0].mxu0
        %v8288 = vpop.f32.mrb[0].mxu0
        %v8289 = vadd.f32 %v8128, %v8288
        %v8290 = vpop.f32.mrb[0].mxu0
        %8291 = vmatprep.mubr.bf16.mxu0 0
        %8292 = vmatmul.mubr.bf16.gmra.mrb[0].mxu0 %v6979
        %v8293 = vpop.f32.mrb[0].mxu0
        %v8294 = vadd.f32 %v8133, %v8293
        %v8295 = vpop.f32.mrb[0].mxu0
        %v8296 = vpop.f32.mrb[0].mxu0
        %v8297 = vadd.f32 %v8136, %v8296
        %v8298 = vpop.f32.mrb[0].mxu0
        %8299 = vmatprep.mubr.bf16.mxu0 0
        %8300 = vmatmul.mubr.bf16.gmra.mrb[0].mxu0 %v6980
        %v8301 = vpop.f32.mrb[0].mxu0
        %v8302 = vadd.f32 %v8141, %v8301
        %v8303 = vpop.f32.mrb[0].mxu0
        %v8304 = vpop.f32.mrb[0].mxu0
        %v8305 = vadd.f32 %v8144, %v8304
        %v8306 = vpop.f32.mrb[0].mxu0
        %8307 = vmatprep.mubr.bf16.mxu0 0
        %8308 = vmatmul.mubr.bf16.gmra.mrb[0].mxu0 %v6981
        %v8309 = vpop.f32.mrb[0].mxu0
        %v8310 = vadd.f32 %v8149, %v8309
        %v8311 = vpop.f32.mrb[0].mxu0
        %v8312 = vpop.f32.mrb[0].mxu0
        %v8313 = vadd.f32 %v8152, %v8312
        %v8314 = vpop.f32.mrb[0].mxu0
        %8315 = vmatprep.mubr.bf16.mxu0 0
        %8316 = vmatmul.mubr.bf16.gmra.mrb[0].mxu0 %v6982
        %v8317 = vpop.f32.mrb[0].mxu0
        %v8318 = vadd.f32 %v8157, %v8317
        %v8319 = vpop.f32.mrb[0].mxu0
        %v8320 = vpop.f32.mrb[0].mxu0
        %v8321 = vadd.f32 %v8160, %v8320
        %v8322 = vpop.f32.mrb[0].mxu0
        %8323 = vmatprep.mubr.bf16.mxu0 0
        %8324 = vmatmul.mubr.bf16.gmra.mrb[0].mxu0 %v6983
        %v8325 = vpop.f32.mrb[0].mxu0
        %v8326 = vadd.f32 %v8165, %v8325
        %v8327 = vpop.f32.mrb[0].mxu0
        %v8328 = vpop.f32.mrb[0].mxu0
        %v8329 = vadd.f32 %v8168, %v8328
        %v8330 = vpop.f32.mrb[0].mxu0
        %8331 = vmatprep.mubr.bf16.mxu0 0
        %8332 = vmatmul.mubr.bf16.gmra.mrb[0].mxu0 %v6984
        %v8333 = vpop.f32.mrb[0].mxu0
        %v8334 = vadd.f32 %v8173, %v8333
        %v8335 = vpop.f32.mrb[0].mxu0
        %v8336 = vpop.f32.mrb[0].mxu0
        %v8337 = vadd.f32 %v8176, %v8336
        %v8338 = vpop.f32.mrb[0].mxu0
        %8339 = vmatprep.mubr.bf16.mxu0 0
        %8340 = vmatmul.mubr.bf16.gmra.mrb[0].mxu0 %v6985
        %v8341 = vpop.f32.mrb[0].mxu0
        %v8342 = vadd.f32 %v8181, %v8341
        %v8343 = vpop.f32.mrb[0].mxu0
        %v8344 = vpop.f32.mrb[0].mxu0
        %v8345 = vadd.f32 %v8184, %v8344
        %v8346 = vpop.f32.mrb[0].mxu0
        %8347 = vmatprep.mubr.bf16.mxu0 0
        %8348 = vmatmul.mubr.bf16.gmra.mrb[0].mxu0 %v6986
        %v8349 = vpop.f32.mrb[0].mxu0
        %v8350 = vadd.f32 %v8189, %v8349
        %v8351 = vpop.f32.mrb[0].mxu0
        %v8352 = vpop.f32.mrb[0].mxu0
        %v8353 = vadd.f32 %v8192, %v8352
        %v8354 = vpop.f32.mrb[0].mxu0
        %8355 = vmatprep.mubr.bf16.mxu0 0
        %8356 = vmatmul.mubr.bf16.gmra.mrb[0].mxu0 %v6987
        %v8357 = vpop.f32.mrb[0].mxu0
        %v8358 = vadd.f32 %v8197, %v8357
        %v8359 = vpop.f32.mrb[0].mxu0
        %v8360 = vpop.f32.mrb[0].mxu0
        %v8361 = vadd.f32 %v8200, %v8360
        %v8362 = vpop.f32.mrb[0].mxu0
        %8363 = vmatprep.mubr.bf16.mxu0 0
        %8364 = vmatmul.mubr.bf16.gmra.mrb[0].mxu0 %v6988
        %v8365 = vpop.f32.mrb[0].mxu0
        %v8366 = vadd.f32 %v8205, %v8365
        %v8367 = vpop.f32.mrb[0].mxu0
        %v8368 = vpop.f32.mrb[0].mxu0
        %v8369 = vadd.f32 %v8208, %v8368
        %v8370 = vpop.f32.mrb[0].mxu0
        %8371 = vmatprep.mubr.bf16.mxu0 0
        %8372 = vmatmul.mubr.bf16.gmra.mrb[0].mxu0 %v6989
        %v8373 = vpop.f32.mrb[0].mxu0
        %v8374 = vadd.f32 %v8213, %v8373
        %v8375 = vpop.f32.mrb[0].mxu0
        %v8376 = vpop.f32.mrb[0].mxu0
        %v8377 = vadd.f32 %v8216, %v8376
        %v8378 = vpop.f32.mrb[0].mxu0
        %8379 = vmatprep.mubr.bf16.mxu0 0
        %8380 = vmatmul.mubr.bf16.gmra.mrb[0].mxu0 %v6990
        %v8381 = vpop.f32.mrb[0].mxu0
        %v8382 = vadd.f32 %v8221, %v8381
        %v8383 = vpop.f32.mrb[0].mxu0
        %v8384 = vpop.f32.mrb[0].mxu0
        %v8385 = vadd.f32 %v8224, %v8384
        %v8386 = vpop.f32.mrb[0].mxu0
        %8387 = vmatprep.mubr.bf16.mxu0 0
        %8388 = vmatmul.mubr.bf16.gmra.mrb[0].mxu0 %v6991
        %v8389 = vpop.f32.mrb[0].mxu0
        %v8390 = vadd.f32 %v8229, %v8389
        %v8391 = vpop.f32.mrb[0].mxu0
        %v8392 = vpop.f32.mrb[0].mxu0
        %v8393 = vadd.f32 %v8232, %v8392
        %v8394 = vpop.f32.mrb[0].mxu0
        %8395 = vdwg.mxu0
        %v8396 = vmax.f32 %v8270, 0.0
        %v8397 = vmax.f32 %v8273, 0.0
        %v8398 = vmax.f32 %v8278, 0.0
        %v8399 = vmax.f32 %v8281, 0.0
        %v8400 = vmax.f32 %v8286, 0.0
        %v8401 = vmax.f32 %v8289, 0.0
        %v8402 = vmax.f32 %v8294, 0.0
        %v8403 = vmax.f32 %v8297, 0.0
        %v8404 = vmax.f32 %v8302, 0.0
        %v8405 = vmax.f32 %v8305, 0.0
        %v8406 = vmax.f32 %v8310, 0.0
        %v8407 = vmax.f32 %v8313, 0.0
        %v8408 = vmax.f32 %v8318, 0.0
        %v8409 = vmax.f32 %v8321, 0.0
        %v8410 = vmax.f32 %v8326, 0.0
        %v8411 = vmax.f32 %v8329, 0.0
        %v8412 = vmax.f32 %v8334, 0.0
        %v8413 = vmax.f32 %v8337, 0.0
        %v8414 = vmax.f32 %v8342, 0.0
        %v8415 = vmax.f32 %v8345, 0.0
        %v8416 = vmax.f32 %v8350, 0.0
        %v8417 = vmax.f32 %v8353, 0.0
        %v8418 = vmax.f32 %v8358, 0.0
        %v8419 = vmax.f32 %v8361, 0.0
        %v8420 = vmax.f32 %v8366, 0.0
        %v8421 = vmax.f32 %v8369, 0.0
        %v8422 = vmax.f32 %v8374, 0.0
        %v8423 = vmax.f32 %v8377, 0.0
        %v8424 = vmax.f32 %v8382, 0.0
        %v8425 = vmax.f32 %v8385, 0.0
        %v8426 = vmax.f32 %v8390, 0.0
        %v8427 = vmax.f32 %v8393, 0.0
        %8428 = vst [vmem:[%s296] sm:$0xff] %v8396
        %8429 = vst [vmem:[%s296 + $0x8] sm:$0xff] %v8397
        %8430 = vst [vmem:[%s296 + $0x10] sm:$0xff] %v8398
        %8431 = vst [vmem:[%s296 + $0x18] sm:$0xff] %v8399
        %8432 = vst [vmem:[%s296 + $0x20] sm:$0xff] %v8400
        %8433 = vst [vmem:[%s296 + $0x28] sm:$0xff] %v8401
        %8434 = vst [vmem:[%s296 + $0x30] sm:$0xff] %v8402
        %8435 = vst [vmem:[%s296 + $0x38] sm:$0xff] %v8403
        %8436 = vst [vmem:[%s296 + $0x40] sm:$0xff] %v8404
        %8437 = vst [vmem:[%s296 + $0x48] sm:$0xff] %v8405
        %8438 = vst [vmem:[%s296 + $0x50] sm:$0xff] %v8406
        %8439 = vst [vmem:[%s296 + $0x58] sm:$0xff] %v8407
        %8440 = vst [vmem:[%s296 + $0x60] sm:$0xff] %v8408
        %8441 = vst [vmem:[%s296 + $0x68] sm:$0xff] %v8409
        %8442 = vst [vmem:[%s296 + $0x70] sm:$0xff] %v8410
        %8443 = vst [vmem:[%s296 + $0x78] sm:$0xff] %v8411
        %8444 = vst [vmem:[%s296 + $0x80] sm:$0xff] %v8412
        %8445 = vst [vmem:[%s296 + $0x88] sm:$0xff] %v8413
        %8446 = vst [vmem:[%s296 + $0x90] sm:$0xff] %v8414
        %8447 = vst [vmem:[%s296 + $0x98] sm:$0xff] %v8415
        %8448 = vst [vmem:[%s296 + $0xa0] sm:$0xff] %v8416
        %8449 = vst [vmem:[%s296 + $0xa8] sm:$0xff] %v8417
        %8450 = vst [vmem:[%s296 + $0xb0] sm:$0xff] %v8418
        %8451 = vst [vmem:[%s296 + $0xb8] sm:$0xff] %v8419
        %8452 = vst [vmem:[%s296 + $0xc0] sm:$0xff] %v8420
        %8453 = vst [vmem:[%s296 + $0xc8] sm:$0xff] %v8421
        %8454 = vst [vmem:[%s296 + $0xd0] sm:$0xff] %v8422
        %8455 = vst [vmem:[%s296 + $0xd8] sm:$0xff] %v8423
        %8456 = vst [vmem:[%s296 + $0xe0] sm:$0xff] %v8424
        %8457 = vst [vmem:[%s296 + $0xe8] sm:$0xff] %v8425
        %8458 = vst [vmem:[%s296 + $0xf0] sm:$0xff] %v8426
        %8459 = vst [vmem:[%s296 + $0xf8] sm:$0xff] %v8427
        %s8460 = sand.u32 %s142, 1
        %s8461 = scalar_lea.sflag [#allocation6], %s8460
        %s8462 = sand.u32 %s142, 1
        %s8463 = smul.addr %s8462, 256
        %s8464 = scalar_lea.vmem [#allocation13], %s8463
        // Predicated region
        $region61: #{tpu_custom_call.1} parent=39 // pred_check
          %p8465 = pneg %p152
        $region62: #{tpu_custom_call.1} parent=39 // pred_check_branch
          %8467 = sbr.rel (%p8465) target = $region64
        $region63: #{tpu_custom_call.1} parent=39 // pred_region
          %s8469 = ssub.s32 4096, 4096
          %8470 = vsyncadd %s8461, %s8469
          %s8471 = smul.addr %s24, 32
          %s8472 = smul.addr %s8471, 128
          %s8473 = scalar_lea.hbm %s5, %s8472
          %s8474 = sshll.u32 %s8464, 4
          %s8475 = int_to_ptr.vmem [resolvable:$true] %s8474
          %8480 = dma.vmem_to_hbm [thread:$0]  %s8475, 4096, %s8473, %s8461, 128, 128, 8
        $region64: #{tpu_custom_call.1} parent=39 // pred_fallthru
          _
      $region40: #{tpu_custom_call.1} parent=5 // pred_fallthru
        _
      %p8481 = scmp.le.s32.totalorder 2, %s19
      // Predicated region
      $region65: #{tpu_custom_call.1} parent=5 // pred_check
        %p8482 = pneg %p8481
      $region66: #{tpu_custom_call.1} parent=5 // pred_check_branch
        %8484 = sbr.rel (%p8482) target = $region68
      $region67: #{tpu_custom_call.1} parent=5 // pred_region
        %s8485 = ssub.s32 %s19, 2
        // Predicated region
        $region69: #{tpu_custom_call.1} parent=67 // pred_check
          %p8486 = pneg %p158
        $region70: #{tpu_custom_call.1} parent=67 // pred_check_branch
          %8488 = sbr.rel (%p8486) target = $region72
        $region71: #{tpu_custom_call.1} parent=67 // pred_region
          %s8489 = sand.u32 %s143, 1
          %s8490 = scalar_lea.sflag [#allocation6], %s8489
          %s8491 = sand.u32 %s143, 1
          %s8492 = smul.addr %s8491, 256
          %s8493 = scalar_lea.vmem [#allocation13], %s8492
          %8494 = dma.done %s8490, 4096
        $region72: #{tpu_custom_call.1} parent=67 // pred_fallthru
          _
      $region68: #{tpu_custom_call.1} parent=5 // pred_fallthru
        _
    $region6: #{tpu_custom_call.1} parent=1 // loop_footer
      %s23 = sadd.s32 1, %s19
    $region7: #{tpu_custom_call.1} parent=1 // loop_footer_branch
      %18 = sbr.rel target = $region3
    $region8: #{tpu_custom_call.1} parent=1 // loop_exit
      _
    %8495 = vsyncpa [#allocation5], 1
    %s8496 = scalar_lea.sflag [#allocation5], 1
    %8497 = vsyncpa %s8496, 1
    %8498 = vsyncpa [#allocation8], 1
    %8499 = vsyncpa [#allocation11], 1
    %8500 = vsyncpa [#allocation6], 1
    %s8501 = scalar_lea.sflag [#allocation6], 1
    %8502 = vsyncpa %s8501, 1

</llo_original>
